<compile_context>
chip_gen: v5e
topology: v5e:2x2
jax: 0.10.0
libtpu: 0.0.40
codegen_flags: <defaults>
</compile_context>

<pallas_src>
import jax
import jax.numpy as jnp
from jax import lax
from jax.experimental import pallas as pl
from jax.experimental.pallas import tpu as pltpu

EPS = 1e-5
VMEM_LIMIT_BYTES = 48 * 1024 * 1024   # scoped VMEM limit (leaves headroom on v7x's 64 MiB)
TILE_VMEM_BUDGET = 24 * 1024 * 1024   # double-buffered activation budget used for tiling


def _compiler_params(n_axes=1):
    return pltpu.CompilerParams(
        dimension_semantics=("parallel",) * n_axes,
        vmem_limit_bytes=VMEM_LIMIT_BYTES)


def _images_per_tile(n_imgs, hw, row_bytes, budget=TILE_VMEM_BUDGET):
    """Largest divisor of n_imgs whose double-buffered row tile fits the budget."""
    best = 1
    for k in range(1, n_imgs + 1):
        if n_imgs % k == 0 and 2 * k * hw * row_bytes <= budget:
            best = k
    return best


# ----------------------------- Pallas kernels ------------------------------

def _affine_relu_matmul_kernel(x_ref, s_ref, b_ref, w_ref, o_ref):
    # y = relu(x * scale + bias)   (fused BN(eval) + ReLU, f32 on the VPU)
    # o = y @ w                    (1x1 conv == channel matmul; bf16 on the MXU)
    y = jnp.maximum(x_ref[...] * s_ref[...] + b_ref[...], 0.0)
    o_ref[...] = jnp.dot(y.astype(jnp.bfloat16), w_ref[...],
                         preferred_element_type=jnp.float32).astype(o_ref.dtype)


def affine_relu_matmul(x2d, scale, bias, w_bf16):
    """relu(x2d*scale+bias) @ w — used for the tiny pooled scale1..4 branches."""
    p, cin = x2d.shape
    cout = w_bf16.shape[1]
    return pl.pallas_call(
        _affine_relu_matmul_kernel,
        out_shape=jax.ShapeDtypeStruct((p, cout), jnp.float32),
        grid=(1,),
        in_specs=[
            pl.BlockSpec((p, cin), lambda i: (0, 0)),
            pl.BlockSpec((1, cin), lambda i: (0, 0)),
            pl.BlockSpec((1, cin), lambda i: (0, 0)),
            pl.BlockSpec((cin, cout), lambda i: (0, 0)),
        ],
        out_specs=pl.BlockSpec((p, cout), lambda i: (0, 0)),
        compiler_params=_compiler_params(1),
    )(x2d, scale, bias, w_bf16)


def _scale0_shortcut_kernel(x_ref, s0_ref, b0_ref, w0_ref, ss_ref, bs_ref, ws_ref,
                            y0_ref, sh_ref):
    # One read of x, two BN+ReLU+1x1conv heads (scale0 and shortcut).
    x = x_ref[...]
    a0 = jnp.maximum(x * s0_ref[...] + b0_ref[...], 0.0)
    y0_ref[...] = jnp.dot(a0.astype(jnp.bfloat16), w0_ref[...],
                          preferred_element_type=jnp.float32).astype(y0_ref.dtype)
    a1 = jnp.maximum(x * ss_ref[...] + bs_ref[...], 0.0)
    sh_ref[...] = jnp.dot(a1.astype(jnp.bfloat16), ws_ref[...],
                          preferred_element_type=jnp.float32).astype(sh_ref.dtype)


def scale0_shortcut(x2d, s0, b0, w0, ssc, bsc, wsc, n_imgs, hw):
    p, cin = x2d.shape
    br = w0.shape[1]
    cout = wsc.shape[1]
    row_bytes = 4 * (cin + br + cout)
    tm = _images_per_tile(n_imgs, hw, row_bytes) * hw
    return pl.pallas_call(
        _scale0_shortcut_kernel,
        out_shape=(jax.ShapeDtypeStruct((p, br), jnp.float32),
                   jax.ShapeDtypeStruct((p, cout), jnp.float32)),
        grid=(p // tm,),
        in_specs=[
            pl.BlockSpec((tm, cin), lambda i: (i, 0)),
            pl.BlockSpec((1, cin), lambda i: (0, 0)),
            pl.BlockSpec((1, cin), lambda i: (0, 0)),
            pl.BlockSpec((cin, br), lambda i: (0, 0)),
            pl.BlockSpec((1, cin), lambda i: (0, 0)),
            pl.BlockSpec((1, cin), lambda i: (0, 0)),
            pl.BlockSpec((cin, cout), lambda i: (0, 0)),
        ],
        out_specs=(pl.BlockSpec((tm, br), lambda i: (i, 0)),
                   pl.BlockSpec((tm, cout), lambda i: (i, 0))),
        compiler_params=_compiler_params(1),
    )(x2d, s0, b0, w0, ssc, bsc, wsc)


def _make_process_kernel(h, w, pad):
    """Fused: (up + y_prev) add -> BN(eval) -> ReLU -> 3x3 conv (zero pad 1).

    The post-activation image lives in a VMEM halo buffer (zero rows above/below);
    the conv is 9 shifted (HW, C) x (C, Cout) MXU matmuls, with two host-provided
    column masks handling the left/right image-edge taps.
    """
    hw = h * w

    def kernel(up_ref, yp_ref, ml_ref, mr_ref, s_ref, b_ref, w_ref, o_ref, a_ref):
        # zero the whole halo buffer, then write the activated interior
        a_ref[...] = jnp.zeros_like(a_ref)
        z = up_ref[...] + yp_ref[...]
        a_ref[pad:pad + hw, :] = jnp.maximum(z * s_ref[...] + b_ref[...], 0.0)

        ml = ml_ref[...]                      # (hw, 1) zero where pixel col == 0
        mr = mr_ref[...]                      # (hw, 1) zero where pixel col == W-1
        cout = o_ref.shape[1]
        acc = jnp.zeros((hw, cout), jnp.float32)
        for kh in range(3):
            for kw in range(3):
                off = pad + (kh - 1) * w + (kw - 1)
                tap = a_ref[off:off + hw, :]
                if kw == 0:
                    tap = tap * ml
                elif kw == 2:
                    tap = tap * mr
                acc = acc + jnp.dot(tap.astype(jnp.bfloat16), w_ref[kh * 3 + kw],
                                    preferred_element_type=jnp.float32)
        o_ref[...] = acc.astype(o_ref.dtype)

    return kernel


def process_stage(up2d, yprev2d, mask_l, mask_r, scale, bias, w9, n_imgs, h, w):
    hw = h * w
    p, br = up2d.shape
    cout = w9.shape[2]
    pad = ((w + 1 + 7) // 8) * 8            # halo rows (>= W+1, sublane aligned)
    kernel = _make_process_kernel(h, w, pad)
    return pl.pallas_call(
        kernel,
        out_shape=jax.ShapeDtypeStruct((p, cout), jnp.float32),
        grid=(n_imgs,),
        in_specs=[
            pl.BlockSpec((hw, br), lambda i: (i, 0)),
            pl.BlockSpec((hw, br), lambda i: (i, 0)),
            pl.BlockSpec((hw, 1), lambda i: (0, 0)),
            pl.BlockSpec((hw, 1), lambda i: (0, 0)),
            pl.BlockSpec((1, br), lambda i: (0, 0)),
            pl.BlockSpec((1, br), lambda i: (0, 0)),
            pl.BlockSpec((9, br, cout), lambda i: (0, 0, 0)),
        ],
        out_specs=pl.BlockSpec((hw, cout), lambda i: (i, 0)),
        scratch_shapes=[pltpu.VMEM((hw + 2 * pad, br), jnp.float32)],
        compiler_params=_compiler_params(1),
    )(up2d, yprev2d, mask_l, mask_r, scale, bias, w9)


def _compression_add_kernel(y0_ref, y1_ref, y2_ref, y3_ref, y4_ref, sh_ref,
                            s_ref, b_ref, w_ref, o_ref):
    # out = sum_i relu(y_i * s_i + b_i) @ w_i   + shortcut
    # (the 5-way channel concat is never materialized; K is split over the 5
    #  branch slabs and accumulated in f32)
    acc = sh_ref[...].astype(jnp.float32)
    ys = (y0_ref, y1_ref, y2_ref, y3_ref, y4_ref)
    for i in range(5):
        a = jnp.maximum(ys[i][...] * s_ref[i] + b_ref[i], 0.0)
        acc = acc + jnp.dot(a.astype(jnp.bfloat16), w_ref[i],
                            preferred_element_type=jnp.float32)
    o_ref[...] = acc.astype(o_ref.dtype)


def compression_add(y0, y1, y2, y3, y4, short, scale5, bias5, w5, n_imgs, hw):
    p, br = y0.shape
    cout = w5.shape[2]
    row_bytes = 4 * (5 * br + 2 * cout)
    tm = _images_per_tile(n_imgs, hw, row_bytes) * hw
    return pl.pallas_call(
        _compression_add_kernel,
        out_shape=jax.ShapeDtypeStruct((p, cout), jnp.float32),
        grid=(p // tm,),
        in_specs=[pl.BlockSpec((tm, br), lambda i: (i, 0))] * 5
                 + [pl.BlockSpec((tm, cout), lambda i: (i, 0)),
                    pl.BlockSpec((5, 1, br), lambda i: (0, 0, 0)),
                    pl.BlockSpec((5, 1, br), lambda i: (0, 0, 0)),
                    pl.BlockSpec((5, br, cout), lambda i: (0, 0, 0))],
        out_specs=pl.BlockSpec((tm, cout), lambda i: (i, 0)),
        compiler_params=_compiler_params(1),
    )(y0, y1, y2, y3, y4, short, scale5, bias5, w5)


# ------------------------------ JAX glue ops --------------------------------

def avg_pool_nhwc(x, k, s, p):
    # PyTorch AvgPool2d defaults: count_include_pad=True, ceil_mode=False.
    # TODO(synk): pooling is a strided window reduction kept in lax.reduce_window
    # (tiny pooled tensors; not worth a dedicated Pallas kernel).
    xp = jnp.pad(x, ((0, 0), (p, p), (p, p), (0, 0)))
    summed = lax.reduce_window(xp, 0.0, lax.add, (1, k, k, 1), (1, s, s, 1), 'VALID')
    return summed / float(k * k)


def bilinear_resize_nhwc(x, out_h, out_w):
    # F.interpolate(mode='bilinear', align_corners=False) semantics.
    # TODO(synk): gather-based resize kept in plain JAX (no clean rectangular BlockSpec).
    n, h, w, c = x.shape

    def coords(osz, isz):
        i = jnp.arange(osz, dtype=jnp.float32)
        src = (i + 0.5) * (isz / osz) - 0.5
        src = jnp.maximum(src, 0.0)
        lo = jnp.floor(src).astype(jnp.int32)
        hi = jnp.minimum(lo + 1, isz - 1)
        frac = src - lo.astype(jnp.float32)
        return lo, hi, frac

    lo_h, hi_h, fh = coords(out_h, h)
    lo_w, hi_w, fw = coords(out_w, w)
    xh = (jnp.take(x, lo_h, axis=1) * (1.0 - fh)[None, :, None, None]
          + jnp.take(x, hi_h, axis=1) * fh[None, :, None, None])
    out = (jnp.take(xh, lo_w, axis=2) * (1.0 - fw)[None, None, :, None]
           + jnp.take(xh, hi_w, axis=2) * fw[None, None, :, None])
    return out


# ------------------------------ parameters ----------------------------------

def bn_params(key, c):
    kg, kb, km, kv = jax.random.split(key, 4)
    gamma = 1.0 + 0.1 * jax.random.normal(kg, (c,), jnp.float32)
    beta = 0.1 * jax.random.normal(kb, (c,), jnp.float32)
    mean = 0.1 * jax.random.normal(km, (c,), jnp.float32)
    var = 1.0 + 0.1 * jax.random.uniform(kv, (c,), jnp.float32)
    scale = gamma / jnp.sqrt(var + EPS)
    bias = beta - mean * scale
    return scale.reshape(1, c), bias.reshape(1, c)


def conv1x1_w(key, cin, cout):
    # PyTorch weight (cout, cin, 1, 1) -> (cin, cout), stored bf16 for the MXU.
    w = 0.1 * jax.random.normal(key, (cout, cin), jnp.float32)
    return w.T.astype(jnp.bfloat16)


def conv3x3_w9(key, cin, cout):
    # PyTorch weight (cout, cin, 3, 3) -> (9 taps kh*3+kw, cin, cout), bf16.
    w = 0.1 * jax.random.normal(key, (cout, cin, 3, 3), jnp.float32)
    return jnp.transpose(w, (2, 3, 1, 0)).reshape(9, cin, cout).astype(jnp.bfloat16)


def init_dappm_params(key, inplanes, branch, outplanes):
    keys = jax.random.split(key, 22)
    p = {}
    p['bn_s0'] = bn_params(keys[0], inplanes); p['w_s0'] = conv1x1_w(keys[1], inplanes, branch)
    p['bn_s1'] = bn_params(keys[2], inplanes); p['w_s1'] = conv1x1_w(keys[3], inplanes, branch)
    p['bn_s2'] = bn_params(keys[4], inplanes); p['w_s2'] = conv1x1_w(keys[5], inplanes, branch)
    p['bn_s3'] = bn_params(keys[6], inplanes); p['w_s3'] = conv1x1_w(keys[7], inplanes, branch)
    p['bn_s4'] = bn_params(keys[8], inplanes); p['w_s4'] = conv1x1_w(keys[9], inplanes, branch)
    p['bn_p1'] = bn_params(keys[10], branch);  p['w_p1'] = conv3x3_w9(keys[11], branch, branch)
    p['bn_p2'] = bn_params(keys[12], branch);  p['w_p2'] = conv3x3_w9(keys[13], branch, branch)
    p['bn_p3'] = bn_params(keys[14], branch);  p['w_p3'] = conv3x3_w9(keys[15], branch, branch)
    p['bn_p4'] = bn_params(keys[16], branch);  p['w_p4'] = conv3x3_w9(keys[17], branch, branch)
    # compression BN/conv stored chunked over the 5 branch slabs (no concat needed)
    sc, bc = bn_params(keys[18], branch * 5)
    p['bn_c'] = (sc.reshape(5, 1, branch), bc.reshape(5, 1, branch))
    p['w_c'] = conv1x1_w(keys[19], branch * 5, outplanes).reshape(5, branch, outplanes)
    p['bn_sc'] = bn_params(keys[20], inplanes)
    p['w_sc'] = conv1x1_w(keys[21], inplanes, outplanes)
    return p


# ------------------------------ DAPPM forward --------------------------------

def dappm_forward(params, x_nchw):
    n, cin, h, w = x_nchw.shape
    hw = h * w                               # NOTE: H*W must be a multiple of 8
    x = jnp.transpose(x_nchw, (0, 2, 3, 1)).astype(jnp.float32)   # NHWC
    x2d = x.reshape(n * hw, cin)
    branch = params['w_s0'].shape[1]
    outp = params['w_sc'].shape[1]

    # column masks for the left/right 3x3-conv taps (image-edge zero padding)
    col = jnp.arange(hw, dtype=jnp.int32) % w
    mask_l = (col > 0).astype(jnp.float32).reshape(hw, 1)
    mask_r = (col < w - 1).astype(jnp.float32).reshape(hw, 1)

    # scale0 + shortcut: one read of x, two 1x1-conv heads
    y0, short = scale0_shortcut(x2d,
                                *params['bn_s0'], params['w_s0'],
                                *params['bn_sc'], params['w_sc'],
                                n, hw)

    def scale_branch(pooled, bn, wkey):
        pn, ph, pw, pc = pooled.shape
        y = affine_relu_matmul(pooled.reshape(pn * ph * pw, pc), *bn, params[wkey])
        return y.reshape(pn, ph, pw, branch)

    def process(up_nhwc, yprev2d, bn, wkey):
        up2d = up_nhwc.reshape(n * hw, branch)
        return process_stage(up2d, yprev2d, mask_l, mask_r, *bn, params[wkey], n, h, w)

    # scale1..3: avg pool -> BN+ReLU+1x1 -> upsample; scale4: global avg pool
    s1 = scale_branch(avg_pool_nhwc(x, 5, 2, 2), params['bn_s1'], 'w_s1')
    y1 = process(bilinear_resize_nhwc(s1, h, w), y0, params['bn_p1'], 'w_p1')

    s2 = scale_branch(avg_pool_nhwc(x, 9, 4, 4), params['bn_s2'], 'w_s2')
    y2 = process(bilinear_resize_nhwc(s2, h, w), y1, params['bn_p2'], 'w_p2')

    s3 = scale_branch(avg_pool_nhwc(x, 17, 8, 8), params['bn_s3'], 'w_s3')
    y3 = process(bilinear_resize_nhwc(s3, h, w), y2, params['bn_p3'], 'w_p3')

    s4 = scale_branch(jnp.mean(x, axis=(1, 2), keepdims=True), params['bn_s4'], 'w_s4')
    y4 = process(bilinear_resize_nhwc(s4, h, w), y3, params['bn_p4'], 'w_p4')

    # compression(cat(y0..y4)) + shortcut, concat-free and add-fused
    sc5, bc5 = params['bn_c']
    out2d = compression_add(y0, y1, y2, y3, y4, short, sc5, bc5, params['w_c'], n, hw)
    out = out2d.reshape(n, h, w, outp)
    return jnp.transpose(out, (0, 3, 1, 2))  # back to NCHW


# ---------------------- pure-JAX f32 reference (for checking) ----------------

def dappm_reference(params, x_nchw):
    n, cin, h, w = x_nchw.shape
    x = jnp.transpose(x_nchw, (0, 2, 3, 1)).astype(jnp.float32)
    x2d = x.reshape(n * h * w, cin)
    branch = params['w_s0'].shape[1]

    def f32(a):
        return a.astype(jnp.float32)

    def arm(x2, bn, wkey):
        s, b = bn
        return jnp.maximum(x2 * s + b, 0.0) @ f32(params[wkey])

    def conv3x3(a_nhwc, w9):
        nn, hh, ww, cc = a_nhwc.shape
        ap = jnp.pad(a_nhwc, ((0, 0), (1, 1), (1, 1), (0, 0)))
        out = jnp.zeros((nn, hh, ww, w9.shape[2]), jnp.float32)
        for kh in range(3):
            for kw in range(3):
                tap = ap[:, kh:kh + hh, kw:kw + ww, :]
                out = out + jnp.einsum('nhwc,co->nhwo', tap, f32(w9[kh * 3 + kw]))
        return out

    def process(z_nhwc, bn, wkey):
        s, b = bn
        a = jnp.maximum(z_nhwc * s.reshape(1, 1, 1, -1) + b.reshape(1, 1, 1, -1), 0.0)
        return conv3x3(a, params[wkey])

    def sb(pooled, bn, wkey):
        pn, ph, pw, pc = pooled.shape
        return arm(pooled.reshape(-1, pc), bn, wkey).reshape(pn, ph, pw, branch)

    y0 = arm(x2d, params['bn_s0'], 'w_s0').reshape(n, h, w, branch)
    short = arm(x2d, params['bn_sc'], 'w_sc')

    s1 = sb(avg_pool_nhwc(x, 5, 2, 2), params['bn_s1'], 'w_s1')
    y1 = process(bilinear_resize_nhwc(s1, h, w) + y0, params['bn_p1'], 'w_p1')
    s2 = sb(avg_pool_nhwc(x, 9, 4, 4), params['bn_s2'], 'w_s2')
    y2 = process(bilinear_resize_nhwc(s2, h, w) + y1, params['bn_p2'], 'w_p2')
    s3 = sb(avg_pool_nhwc(x, 17, 8, 8), params['bn_s3'], 'w_s3')
    y3 = process(bilinear_resize_nhwc(s3, h, w) + y2, params['bn_p3'], 'w_p3')
    s4 = sb(jnp.mean(x, axis=(1, 2), keepdims=True), params['bn_s4'], 'w_s4')
    y4 = process(bilinear_resize_nhwc(s4, h, w) + y3, params['bn_p4'], 'w_p4')

    cat = jnp.concatenate([y0, y1, y2, y3, y4], axis=-1).reshape(n * h * w, 5 * branch)
    sc5, bc5 = params['bn_c']
    sc = sc5.reshape(1, -1)
    bc = bc5.reshape(1, -1)
    wc = f32(params['w_c']).reshape(5 * branch, -1)
    comp = jnp.maximum(cat * sc + bc, 0.0) @ wc
    out = (comp + short).reshape(n, h, w, -1)
    return jnp.transpose(out, (0, 3, 1, 2))


if __name__ == "__main__":
    key = jax.random.PRNGKey(0)
    k_param, k_x = jax.random.split(key)

    N, INPLANES, H, W = 2, 4, 16, 16
    BRANCH, OUTPLANES = 8, 16

    params = init_dappm_params(k_param, INPLANES, BRANCH, OUTPLANES)
    x = jax.random.normal(k_x, (N, INPLANES, H, W), jnp.float32)

    fwd = jax.jit(dappm_forward)
    out = jax.block_until_ready(fwd(params, x))

    assert out.shape == (N, OUTPLANES, H, W), out.shape
    assert bool(jnp.all(jnp.isfinite(out)))

    # cross-check against a pure-JAX f32 reference (bf16 MXU tolerance)
    ref = jax.jit(dappm_reference)(params, x)
    ref = jax.block_until_ready(ref)
    rel_err = float(jnp.max(jnp.abs(out - ref)) / (jnp.max(jnp.abs(ref)) + 1e-6))
    assert rel_err < 0.1, f"relative error too large: {rel_err}"

    print("KERNEL_OK")
</pallas_src>

<mosaic_0001>
module attributes {stable_mosaic.version = 11 : i64} {
  func.func @_affine_relu_matmul_kernel(%arg0: i32, %arg1: memref<128x4xf32, #tpu.memory_space<vmem>>, %arg2: memref<1x4xf32, #tpu.memory_space<vmem>>, %arg3: memref<1x4xf32, #tpu.memory_space<vmem>>, %arg4: memref<4x8xbf16, #tpu.memory_space<vmem>>, %arg5: memref<128x8xf32, #tpu.memory_space<vmem>>) attributes {dimension_semantics = [#tpu.dimension_semantics<parallel>], iteration_bounds = array<i64: 1>, scalar_prefetch = 0 : i64, scratch_operands = 0 : i64, tpu.core_type = #tpu.core_type<tc>, window_params = [{pipeline_mode = #tpu.pipeline_mode<synchronous>, transform_indices = @transform_0, window_bounds = array<i64: 128, 4>}, {pipeline_mode = #tpu.pipeline_mode<synchronous>, transform_indices = @transform_1, window_bounds = array<i64: 1, 4>}, {pipeline_mode = #tpu.pipeline_mode<synchronous>, transform_indices = @transform_2, window_bounds = array<i64: 1, 4>}, {pipeline_mode = #tpu.pipeline_mode<synchronous>, transform_indices = @transform_3, window_bounds = array<i64: 4, 8>}, {pipeline_mode = #tpu.pipeline_mode<synchronous>, transform_indices = @transform_4, window_bounds = array<i64: 128, 8>}]} {
    %c0 = arith.constant 0 : index
    %c0_0 = arith.constant 0 : index
    %0 = vector.load %arg1[%c0, %c0_0] : memref<128x4xf32, #tpu.memory_space<vmem>>, vector<128x4xf32>
    %c0_1 = arith.constant 0 : index
    %c0_2 = arith.constant 0 : index
    %1 = vector.load %arg2[%c0_1, %c0_2] : memref<1x4xf32, #tpu.memory_space<vmem>>, vector<1x4xf32>
    %2 = vector.broadcast %1 : vector<1x4xf32> to vector<128x4xf32>
    %3 = arith.mulf %0, %2 : vector<128x4xf32>
    %c0_3 = arith.constant 0 : index
    %c0_4 = arith.constant 0 : index
    %4 = vector.load %arg3[%c0_3, %c0_4] : memref<1x4xf32, #tpu.memory_space<vmem>>, vector<1x4xf32>
    %5 = vector.broadcast %4 : vector<1x4xf32> to vector<128x4xf32>
    %6 = arith.addf %3, %5 : vector<128x4xf32>
    %cst = arith.constant 0.000000e+00 : f32
    %7 = vector.broadcast %cst : f32 to vector<128x4xf32>
    %8 = arith.maximumf %6, %7 : vector<128x4xf32>
    %9 = arith.truncf %8 : vector<128x4xf32> to vector<128x4xbf16>
    %c0_5 = arith.constant 0 : index
    %c0_6 = arith.constant 0 : index
    %10 = vector.load %arg4[%c0_5, %c0_6] : memref<4x8xbf16, #tpu.memory_space<vmem>>, vector<4x8xbf16>
    %cst_7 = arith.constant dense<0.000000e+00> : vector<128x8xf32>
    %11 = tpu.matmul %9, %10, %cst_7 {dimension_numbers = #tpu.dot_dimension_numbers<[1], [0], [0], [1], [0, 0, 1, 1], [], []>} : vector<128x4xbf16>, vector<4x8xbf16>, vector<128x8xf32> -> vector<128x8xf32>
    %c0_8 = arith.constant 0 : index
    %c0_9 = arith.constant 0 : index
    %12 = vector.load %arg5[%c0_8, %c0_9] : memref<128x8xf32, #tpu.memory_space<vmem>>, vector<128x8xf32>
    tpu.vector_store %arg5[%c0_8, %c0_9], %11 {strides = array<i32>} : memref<128x8xf32, #tpu.memory_space<vmem>>, vector<128x8xf32>,
    return
  }
  func.func @transform_0(%arg0: i32) -> (i32, i32) {
    %c0_i32 = arith.constant 0 : i32
    %c0_i32_0 = arith.constant 0 : i32
    %c0_i32_1 = arith.constant 0 : i32
    return %c0_i32, %c0_i32_0 : i32, i32
  }
  func.func @transform_1(%arg0: i32) -> (i32, i32) {
    %c0_i32 = arith.constant 0 : i32
    %c0_i32_0 = arith.constant 0 : i32
    %c0_i32_1 = arith.constant 0 : i32
    return %c0_i32, %c0_i32_0 : i32, i32
  }
  func.func @transform_2(%arg0: i32) -> (i32, i32) {
    %c0_i32 = arith.constant 0 : i32
    %c0_i32_0 = arith.constant 0 : i32
    %c0_i32_1 = arith.constant 0 : i32
    return %c0_i32, %c0_i32_0 : i32, i32
  }
  func.func @transform_3(%arg0: i32) -> (i32, i32) {
    %c0_i32 = arith.constant 0 : i32
    %c0_i32_0 = arith.constant 0 : i32
    %c0_i32_1 = arith.constant 0 : i32
    return %c0_i32, %c0_i32_0 : i32, i32
  }
  func.func @transform_4(%arg0: i32) -> (i32, i32) {
    %c0_i32 = arith.constant 0 : i32
    %c0_i32_0 = arith.constant 0 : i32
    %c0_i32_1 = arith.constant 0 : i32
    return %c0_i32, %c0_i32_0 : i32, i32
  }
}

module attributes {stable_mosaic.version = 11 : i64} {
  func.func @_scale0_shortcut_kernel(%arg0: i32, %arg1: memref<512x4xf32, #tpu.memory_space<vmem>>, %arg2: memref<1x4xf32, #tpu.memory_space<vmem>>, %arg3: memref<1x4xf32, #tpu.memory_space<vmem>>, %arg4: memref<4x8xbf16, #tpu.memory_space<vmem>>, %arg5: memref<1x4xf32, #tpu.memory_space<vmem>>, %arg6: memref<1x4xf32, #tpu.memory_space<vmem>>, %arg7: memref<4x16xbf16, #tpu.memory_space<vmem>>, %arg8: memref<512x8xf32, #tpu.memory_space<vmem>>, %arg9: memref<512x16xf32, #tpu.memory_space<vmem>>) attributes {dimension_semantics = [#tpu.dimension_semantics<parallel>], iteration_bounds = array<i64: 1>, scalar_prefetch = 0 : i64, scratch_operands = 0 : i64, tpu.core_type = #tpu.core_type<tc>, window_params = [{transform_indices = @transform_0, window_bounds = array<i64: 512, 4>}, {pipeline_mode = #tpu.pipeline_mode<synchronous>, transform_indices = @transform_1, window_bounds = array<i64: 1, 4>}, {pipeline_mode = #tpu.pipeline_mode<synchronous>, transform_indices = @transform_2, window_bounds = array<i64: 1, 4>}, {pipeline_mode = #tpu.pipeline_mode<synchronous>, transform_indices = @transform_3, window_bounds = array<i64: 4, 8>}, {pipeline_mode = #tpu.pipeline_mode<synchronous>, transform_indices = @transform_4, window_bounds = array<i64: 1, 4>}, {pipeline_mode = #tpu.pipeline_mode<synchronous>, transform_indices = @transform_5, window_bounds = array<i64: 1, 4>}, {pipeline_mode = #tpu.pipeline_mode<synchronous>, transform_indices = @transform_6, window_bounds = array<i64: 4, 16>}, {transform_indices = @transform_7, window_bounds = array<i64: 512, 8>}, {transform_indices = @transform_8, window_bounds = array<i64: 512, 16>}]} {
    %c0 = arith.constant 0 : index
    %c0_0 = arith.constant 0 : index
    %0 = vector.load %arg1[%c0, %c0_0] : memref<512x4xf32, #tpu.memory_space<vmem>>, vector<512x4xf32>
    %c0_1 = arith.constant 0 : index
    %c0_2 = arith.constant 0 : index
    %1 = vector.load %arg2[%c0_1, %c0_2] : memref<1x4xf32, #tpu.memory_space<vmem>>, vector<1x4xf32>
    %2 = vector.broadcast %1 : vector<1x4xf32> to vector<512x4xf32>
    %3 = arith.mulf %0, %2 : vector<512x4xf32>
    %c0_3 = arith.constant 0 : index
    %c0_4 = arith.constant 0 : index
    %4 = vector.load %arg3[%c0_3, %c0_4] : memref<1x4xf32, #tpu.memory_space<vmem>>, vector<1x4xf32>
    %5 = vector.broadcast %4 : vector<1x4xf32> to vector<512x4xf32>
    %6 = arith.addf %3, %5 : vector<512x4xf32>
    %cst = arith.constant 0.000000e+00 : f32
    %7 = vector.broadcast %cst : f32 to vector<512x4xf32>
    %8 = arith.maximumf %6, %7 : vector<512x4xf32>
    %9 = arith.truncf %8 : vector<512x4xf32> to vector<512x4xbf16>
    %c0_5 = arith.constant 0 : index
    %c0_6 = arith.constant 0 : index
    %10 = vector.load %arg4[%c0_5, %c0_6] : memref<4x8xbf16, #tpu.memory_space<vmem>>, vector<4x8xbf16>
    %cst_7 = arith.constant dense<0.000000e+00> : vector<512x8xf32>
    %11 = tpu.matmul %9, %10, %cst_7 {dimension_numbers = #tpu.dot_dimension_numbers<[1], [0], [0], [1], [0, 0, 1, 1], [], []>} : vector<512x4xbf16>, vector<4x8xbf16>, vector<512x8xf32> -> vector<512x8xf32>
    %c0_8 = arith.constant 0 : index
    %c0_9 = arith.constant 0 : index
    %12 = vector.load %arg8[%c0_8, %c0_9] : memref<512x8xf32, #tpu.memory_space<vmem>>, vector<512x8xf32>
    tpu.vector_store %arg8[%c0_8, %c0_9], %11 {strides = array<i32>} : memref<512x8xf32, #tpu.memory_space<vmem>>, vector<512x8xf32>,
    %c0_10 = arith.constant 0 : index
    %c0_11 = arith.constant 0 : index
    %13 = vector.load %arg5[%c0_10, %c0_11] : memref<1x4xf32, #tpu.memory_space<vmem>>, vector<1x4xf32>
    %14 = vector.broadcast %13 : vector<1x4xf32> to vector<512x4xf32>
    %15 = arith.mulf %0, %14 : vector<512x4xf32>
    %c0_12 = arith.constant 0 : index
    %c0_13 = arith.constant 0 : index
    %16 = vector.load %arg6[%c0_12, %c0_13] : memref<1x4xf32, #tpu.memory_space<vmem>>, vector<1x4xf32>
    %17 = vector.broadcast %16 : vector<1x4xf32> to vector<512x4xf32>
    %18 = arith.addf %15, %17 : vector<512x4xf32>
    %cst_14 = arith.constant 0.000000e+00 : f32
    %19 = vector.broadcast %cst_14 : f32 to vector<512x4xf32>
    %20 = arith.maximumf %18, %19 : vector<512x4xf32>
    %21 = arith.truncf %20 : vector<512x4xf32> to vector<512x4xbf16>
    %c0_15 = arith.constant 0 : index
    %c0_16 = arith.constant 0 : index
    %22 = vector.load %arg7[%c0_15, %c0_16] : memref<4x16xbf16, #tpu.memory_space<vmem>>, vector<4x16xbf16>
    %cst_17 = arith.constant dense<0.000000e+00> : vector<512x16xf32>
    %23 = tpu.matmul %21, %22, %cst_17 {dimension_numbers = #tpu.dot_dimension_numbers<[1], [0], [0], [1], [0, 0, 1, 1], [], []>} : vector<512x4xbf16>, vector<4x16xbf16>, vector<512x16xf32> -> vector<512x16xf32>
    %c0_18 = arith.constant 0 : index
    %c0_19 = arith.constant 0 : index
    %24 = vector.load %arg9[%c0_18, %c0_19] : memref<512x16xf32, #tpu.memory_space<vmem>>, vector<512x16xf32>
    tpu.vector_store %arg9[%c0_18, %c0_19], %23 {strides = array<i32>} : memref<512x16xf32, #tpu.memory_space<vmem>>, vector<512x16xf32>,
    return
  }
  func.func @transform_0(%arg0: i32) -> (i32, i32) {
    %c0_i32 = arith.constant 0 : i32
    %c0_i32_0 = arith.constant 0 : i32
    return %arg0, %c0_i32 : i32, i32
  }
  func.func @transform_1(%arg0: i32) -> (i32, i32) {
    %c0_i32 = arith.constant 0 : i32
    %c0_i32_0 = arith.constant 0 : i32
    %c0_i32_1 = arith.constant 0 : i32
    return %c0_i32, %c0_i32_0 : i32, i32
  }
  func.func @transform_2(%arg0: i32) -> (i32, i32) {
    %c0_i32 = arith.constant 0 : i32
    %c0_i32_0 = arith.constant 0 : i32
    %c0_i32_1 = arith.constant 0 : i32
    return %c0_i32, %c0_i32_0 : i32, i32
  }
  func.func @transform_3(%arg0: i32) -> (i32, i32) {
    %c0_i32 = arith.constant 0 : i32
    %c0_i32_0 = arith.constant 0 : i32
    %c0_i32_1 = arith.constant 0 : i32
    return %c0_i32, %c0_i32_0 : i32, i32
  }
  func.func @transform_4(%arg0: i32) -> (i32, i32) {
    %c0_i32 = arith.constant 0 : i32
    %c0_i32_0 = arith.constant 0 : i32
    %c0_i32_1 = arith.constant 0 : i32
    return %c0_i32, %c0_i32_0 : i32, i32
  }
  func.func @transform_5(%arg0: i32) -> (i32, i32) {
    %c0_i32 = arith.constant 0 : i32
    %c0_i32_0 = arith.constant 0 : i32
    %c0_i32_1 = arith.constant 0 : i32
    return %c0_i32, %c0_i32_0 : i32, i32
  }
  func.func @transform_6(%arg0: i32) -> (i32, i32) {
    %c0_i32 = arith.constant 0 : i32
    %c0_i32_0 = arith.constant 0 : i32
    %c0_i32_1 = arith.constant 0 : i32
    return %c0_i32, %c0_i32_0 : i32, i32
  }
  func.func @transform_7(%arg0: i32) -> (i32, i32) {
    %c0_i32 = arith.constant 0 : i32
    %c0_i32_0 = arith.constant 0 : i32
    return %arg0, %c0_i32 : i32, i32
  }
  func.func @transform_8(%arg0: i32) -> (i32, i32) {
    %c0_i32 = arith.constant 0 : i32
    %c0_i32_0 = arith.constant 0 : i32
    return %arg0, %c0_i32 : i32, i32
  }
}

module attributes {stable_mosaic.version = 11 : i64} {
  func.func @kernel(%arg0: i32, %arg1: memref<256x8xf32, #tpu.memory_space<vmem>>, %arg2: memref<256x8xf32, #tpu.memory_space<vmem>>, %arg3: memref<256x1xf32, #tpu.memory_space<vmem>>, %arg4: memref<256x1xf32, #tpu.memory_space<vmem>>, %arg5: memref<1x8xf32, #tpu.memory_space<vmem>>, %arg6: memref<1x8xf32, #tpu.memory_space<vmem>>, %arg7: memref<9x8x8xbf16, #tpu.memory_space<vmem>>, %arg8: memref<256x8xf32, #tpu.memory_space<vmem>>, %arg9: memref<304x8xf32, #tpu.memory_space<vmem>>) attributes {dimension_semantics = [#tpu.dimension_semantics<parallel>], iteration_bounds = array<i64: 2>, scalar_prefetch = 0 : i64, scratch_operands = 1 : i64, tpu.core_type = #tpu.core_type<tc>, window_params = [{transform_indices = @transform_0, window_bounds = array<i64: 256, 8>}, {transform_indices = @transform_1, window_bounds = array<i64: 256, 8>}, {pipeline_mode = #tpu.pipeline_mode<synchronous>, transform_indices = @transform_2, window_bounds = array<i64: 256, 1>}, {pipeline_mode = #tpu.pipeline_mode<synchronous>, transform_indices = @transform_3, window_bounds = array<i64: 256, 1>}, {pipeline_mode = #tpu.pipeline_mode<synchronous>, transform_indices = @transform_4, window_bounds = array<i64: 1, 8>}, {pipeline_mode = #tpu.pipeline_mode<synchronous>, transform_indices = @transform_5, window_bounds = array<i64: 1, 8>}, {pipeline_mode = #tpu.pipeline_mode<synchronous>, transform_indices = @transform_6, window_bounds = array<i64: 9, 8, 8>}, {transform_indices = @transform_7, window_bounds = array<i64: 256, 8>}]} {
    %cst = arith.constant 0.000000e+00 : f32
    %0 = vector.broadcast %cst : f32 to vector<304x8xf32>
    %c0 = arith.constant 0 : index
    %c0_0 = arith.constant 0 : index
    %1 = vector.load %arg9[%c0, %c0_0] : memref<304x8xf32, #tpu.memory_space<vmem>>, vector<304x8xf32>
    tpu.vector_store %arg9[%c0, %c0_0], %0 {strides = array<i32>} : memref<304x8xf32, #tpu.memory_space<vmem>>, vector<304x8xf32>,
    %c0_1 = arith.constant 0 : index
    %c0_2 = arith.constant 0 : index
    %2 = vector.load %arg1[%c0_1, %c0_2] : memref<256x8xf32, #tpu.memory_space<vmem>>, vector<256x8xf32>
    %c0_3 = arith.constant 0 : index
    %c0_4 = arith.constant 0 : index
    %3 = vector.load %arg2[%c0_3, %c0_4] : memref<256x8xf32, #tpu.memory_space<vmem>>, vector<256x8xf32>
    %4 = arith.addf %2, %3 : vector<256x8xf32>
    %c0_5 = arith.constant 0 : index
    %c0_6 = arith.constant 0 : index
    %5 = vector.load %arg5[%c0_5, %c0_6] : memref<1x8xf32, #tpu.memory_space<vmem>>, vector<1x8xf32>
    %6 = vector.broadcast %5 : vector<1x8xf32> to vector<256x8xf32>
    %7 = arith.mulf %4, %6 : vector<256x8xf32>
    %c0_7 = arith.constant 0 : index
    %c0_8 = arith.constant 0 : index
    %8 = vector.load %arg6[%c0_7, %c0_8] : memref<1x8xf32, #tpu.memory_space<vmem>>, vector<1x8xf32>
    %9 = vector.broadcast %8 : vector<1x8xf32> to vector<256x8xf32>
    %10 = arith.addf %7, %9 : vector<256x8xf32>
    %cst_9 = arith.constant 0.000000e+00 : f32
    %11 = vector.broadcast %cst_9 : f32 to vector<256x8xf32>
    %12 = arith.maximumf %10, %11 : vector<256x8xf32>
    %c24 = arith.constant 24 : index
    %c0_10 = arith.constant 0 : index
    %13 = vector.load %arg9[%c24, %c0_10] : memref<304x8xf32, #tpu.memory_space<vmem>>, vector<256x8xf32>
    tpu.vector_store %arg9[%c24, %c0_10], %12 {strides = array<i32>} : memref<304x8xf32, #tpu.memory_space<vmem>>, vector<256x8xf32>,
    %c0_11 = arith.constant 0 : index
    %c0_12 = arith.constant 0 : index
    %14 = vector.load %arg3[%c0_11, %c0_12] : memref<256x1xf32, #tpu.memory_space<vmem>>, vector<256x1xf32>
    %c0_13 = arith.constant 0 : index
    %c0_14 = arith.constant 0 : index
    %15 = vector.load %arg4[%c0_13, %c0_14] : memref<256x1xf32, #tpu.memory_space<vmem>>, vector<256x1xf32>
    %cst_15 = arith.constant 0.000000e+00 : f32
    %16 = vector.broadcast %cst_15 : f32 to vector<256x8xf32>
    %c7 = arith.constant 7 : index
    %c0_16 = arith.constant 0 : index
    %17 = vector.load %arg9[%c7, %c0_16] : memref<304x8xf32, #tpu.memory_space<vmem>>, vector<256x8xf32>
    %18 = vector.broadcast %14 : vector<256x1xf32> to vector<256x8xf32>
    %19 = arith.mulf %17, %18 : vector<256x8xf32>
    %20 = arith.truncf %19 : vector<256x8xf32> to vector<256x8xbf16>
    %c0_17 = arith.constant 0 : index
    %c0_18 = arith.constant 0 : index
    %c0_19 = arith.constant 0 : index
    %21 = vector.load %arg7[%c0_17, %c0_18, %c0_19] : memref<9x8x8xbf16, #tpu.memory_space<vmem>>, vector<1x8x8xbf16>
    %22 = vector.shape_cast %21 : vector<1x8x8xbf16> to vector<8x8xbf16>
    %cst_20 = arith.constant dense<0.000000e+00> : vector<256x8xf32>
    %23 = tpu.matmul %20, %22, %cst_20 {dimension_numbers = #tpu.dot_dimension_numbers<[1], [0], [0], [1], [0, 0, 1, 1], [], []>} : vector<256x8xbf16>, vector<8x8xbf16>, vector<256x8xf32> -> vector<256x8xf32>
    %24 = arith.addf %16, %23 : vector<256x8xf32>
    %c8 = arith.constant 8 : index
    %c0_21 = arith.constant 0 : index
    %25 = vector.load %arg9[%c8, %c0_21] : memref<304x8xf32, #tpu.memory_space<vmem>>, vector<256x8xf32>
    %26 = arith.truncf %25 : vector<256x8xf32> to vector<256x8xbf16>
    %c1 = arith.constant 1 : index
    %c0_22 = arith.constant 0 : index
    %c0_23 = arith.constant 0 : index
    %27 = vector.load %arg7[%c1, %c0_22, %c0_23] : memref<9x8x8xbf16, #tpu.memory_space<vmem>>, vector<1x8x8xbf16>
    %28 = vector.shape_cast %27 : vector<1x8x8xbf16> to vector<8x8xbf16>
    %cst_24 = arith.constant dense<0.000000e+00> : vector<256x8xf32>
    %29 = tpu.matmul %26, %28, %cst_24 {dimension_numbers = #tpu.dot_dimension_numbers<[1], [0], [0], [1], [0, 0, 1, 1], [], []>} : vector<256x8xbf16>, vector<8x8xbf16>, vector<256x8xf32> -> vector<256x8xf32>
    %30 = arith.addf %24, %29 : vector<256x8xf32>
    %c9 = arith.constant 9 : index
    %c0_25 = arith.constant 0 : index
    %31 = vector.load %arg9[%c9, %c0_25] : memref<304x8xf32, #tpu.memory_space<vmem>>, vector<256x8xf32>
    %32 = vector.broadcast %15 : vector<256x1xf32> to vector<256x8xf32>
    %33 = arith.mulf %31, %32 : vector<256x8xf32>
    %34 = arith.truncf %33 : vector<256x8xf32> to vector<256x8xbf16>
    %c2 = arith.constant 2 : index
    %c0_26 = arith.constant 0 : index
    %c0_27 = arith.constant 0 : index
    %35 = vector.load %arg7[%c2, %c0_26, %c0_27] : memref<9x8x8xbf16, #tpu.memory_space<vmem>>, vector<1x8x8xbf16>
    %36 = vector.shape_cast %35 : vector<1x8x8xbf16> to vector<8x8xbf16>
    %cst_28 = arith.constant dense<0.000000e+00> : vector<256x8xf32>
    %37 = tpu.matmul %34, %36, %cst_28 {dimension_numbers = #tpu.dot_dimension_numbers<[1], [0], [0], [1], [0, 0, 1, 1], [], []>} : vector<256x8xbf16>, vector<8x8xbf16>, vector<256x8xf32> -> vector<256x8xf32>
    %38 = arith.addf %30, %37 : vector<256x8xf32>
    %c23 = arith.constant 23 : index
    %c0_29 = arith.constant 0 : index
    %39 = vector.load %arg9[%c23, %c0_29] : memref<304x8xf32, #tpu.memory_space<vmem>>, vector<256x8xf32>
    %40 = vector.broadcast %14 : vector<256x1xf32> to vector<256x8xf32>
    %41 = arith.mulf %39, %40 : vector<256x8xf32>
    %42 = arith.truncf %41 : vector<256x8xf32> to vector<256x8xbf16>
    %c3 = arith.constant 3 : index
    %c0_30 = arith.constant 0 : index
    %c0_31 = arith.constant 0 : index
    %43 = vector.load %arg7[%c3, %c0_30, %c0_31] : memref<9x8x8xbf16, #tpu.memory_space<vmem>>, vector<1x8x8xbf16>
    %44 = vector.shape_cast %43 : vector<1x8x8xbf16> to vector<8x8xbf16>
    %cst_32 = arith.constant dense<0.000000e+00> : vector<256x8xf32>
    %45 = tpu.matmul %42, %44, %cst_32 {dimension_numbers = #tpu.dot_dimension_numbers<[1], [0], [0], [1], [0, 0, 1, 1], [], []>} : vector<256x8xbf16>, vector<8x8xbf16>, vector<256x8xf32> -> vector<256x8xf32>
    %46 = arith.addf %38, %45 : vector<256x8xf32>
    %c24_33 = arith.constant 24 : index
    %c0_34 = arith.constant 0 : index
    %47 = vector.load %arg9[%c24_33, %c0_34] : memref<304x8xf32, #tpu.memory_space<vmem>>, vector<256x8xf32>
    %48 = arith.truncf %47 : vector<256x8xf32> to vector<256x8xbf16>
    %c4 = arith.constant 4 : index
    %c0_35 = arith.constant 0 : index
    %c0_36 = arith.constant 0 : index
    %49 = vector.load %arg7[%c4, %c0_35, %c0_36] : memref<9x8x8xbf16, #tpu.memory_space<vmem>>, vector<1x8x8xbf16>
    %50 = vector.shape_cast %49 : vector<1x8x8xbf16> to vector<8x8xbf16>
    %cst_37 = arith.constant dense<0.000000e+00> : vector<256x8xf32>
    %51 = tpu.matmul %48, %50, %cst_37 {dimension_numbers = #tpu.dot_dimension_numbers<[1], [0], [0], [1], [0, 0, 1, 1], [], []>} : vector<256x8xbf16>, vector<8x8xbf16>, vector<256x8xf32> -> vector<256x8xf32>
    %52 = arith.addf %46, %51 : vector<256x8xf32>
    %c25 = arith.constant 25 : index
    %c0_38 = arith.constant 0 : index
    %53 = vector.load %arg9[%c25, %c0_38] : memref<304x8xf32, #tpu.memory_space<vmem>>, vector<256x8xf32>
    %54 = vector.broadcast %15 : vector<256x1xf32> to vector<256x8xf32>
    %55 = arith.mulf %53, %54 : vector<256x8xf32>
    %56 = arith.truncf %55 : vector<256x8xf32> to vector<256x8xbf16>
    %c5 = arith.constant 5 : index
    %c0_39 = arith.constant 0 : index
    %c0_40 = arith.constant 0 : index
    %57 = vector.load %arg7[%c5, %c0_39, %c0_40] : memref<9x8x8xbf16, #tpu.memory_space<vmem>>, vector<1x8x8xbf16>
    %58 = vector.shape_cast %57 : vector<1x8x8xbf16> to vector<8x8xbf16>
    %cst_41 = arith.constant dense<0.000000e+00> : vector<256x8xf32>
    %59 = tpu.matmul %56, %58, %cst_41 {dimension_numbers = #tpu.dot_dimension_numbers<[1], [0], [0], [1], [0, 0, 1, 1], [], []>} : vector<256x8xbf16>, vector<8x8xbf16>, vector<256x8xf32> -> vector<256x8xf32>
    %60 = arith.addf %52, %59 : vector<256x8xf32>
    %c39 = arith.constant 39 : index
    %c0_42 = arith.constant 0 : index
    %61 = vector.load %arg9[%c39, %c0_42] : memref<304x8xf32, #tpu.memory_space<vmem>>, vector<256x8xf32>
    %62 = vector.broadcast %14 : vector<256x1xf32> to vector<256x8xf32>
    %63 = arith.mulf %61, %62 : vector<256x8xf32>
    %64 = arith.truncf %63 : vector<256x8xf32> to vector<256x8xbf16>
    %c6 = arith.constant 6 : index
    %c0_43 = arith.constant 0 : index
    %c0_44 = arith.constant 0 : index
    %65 = vector.load %arg7[%c6, %c0_43, %c0_44] : memref<9x8x8xbf16, #tpu.memory_space<vmem>>, vector<1x8x8xbf16>
    %66 = vector.shape_cast %65 : vector<1x8x8xbf16> to vector<8x8xbf16>
    %cst_45 = arith.constant dense<0.000000e+00> : vector<256x8xf32>
    %67 = tpu.matmul %64, %66, %cst_45 {dimension_numbers = #tpu.dot_dimension_numbers<[1], [0], [0], [1], [0, 0, 1, 1], [], []>} : vector<256x8xbf16>, vector<8x8xbf16>, vector<256x8xf32> -> vector<256x8xf32>
    %68 = arith.addf %60, %67 : vector<256x8xf32>
    %c40 = arith.constant 40 : index
    %c0_46 = arith.constant 0 : index
    %69 = vector.load %arg9[%c40, %c0_46] : memref<304x8xf32, #tpu.memory_space<vmem>>, vector<256x8xf32>
    %70 = arith.truncf %69 : vector<256x8xf32> to vector<256x8xbf16>
    %c7_47 = arith.constant 7 : index
    %c0_48 = arith.constant 0 : index
    %c0_49 = arith.constant 0 : index
    %71 = vector.load %arg7[%c7_47, %c0_48, %c0_49] : memref<9x8x8xbf16, #tpu.memory_space<vmem>>, vector<1x8x8xbf16>
    %72 = vector.shape_cast %71 : vector<1x8x8xbf16> to vector<8x8xbf16>
    %cst_50 = arith.constant dense<0.000000e+00> : vector<256x8xf32>
    %73 = tpu.matmul %70, %72, %cst_50 {dimension_numbers = #tpu.dot_dimension_numbers<[1], [0], [0], [1], [0, 0, 1, 1], [], []>} : vector<256x8xbf16>, vector<8x8xbf16>, vector<256x8xf32> -> vector<256x8xf32>
    %74 = arith.addf %68, %73 : vector<256x8xf32>
    %c41 = arith.constant 41 : index
    %c0_51 = arith.constant 0 : index
    %75 = vector.load %arg9[%c41, %c0_51] : memref<304x8xf32, #tpu.memory_space<vmem>>, vector<256x8xf32>
    %76 = vector.broadcast %15 : vector<256x1xf32> to vector<256x8xf32>
    %77 = arith.mulf %75, %76 : vector<256x8xf32>
    %78 = arith.truncf %77 : vector<256x8xf32> to vector<256x8xbf16>
    %c8_52 = arith.constant 8 : index
    %c0_53 = arith.constant 0 : index
    %c0_54 = arith.constant 0 : index
    %79 = vector.load %arg7[%c8_52, %c0_53, %c0_54] : memref<9x8x8xbf16, #tpu.memory_space<vmem>>, vector<1x8x8xbf16>
    %80 = vector.shape_cast %79 : vector<1x8x8xbf16> to vector<8x8xbf16>
    %cst_55 = arith.constant dense<0.000000e+00> : vector<256x8xf32>
    %81 = tpu.matmul %78, %80, %cst_55 {dimension_numbers = #tpu.dot_dimension_numbers<[1], [0], [0], [1], [0, 0, 1, 1], [], []>} : vector<256x8xbf16>, vector<8x8xbf16>, vector<256x8xf32> -> vector<256x8xf32>
    %82 = arith.addf %74, %81 : vector<256x8xf32>
    %c0_56 = arith.constant 0 : index
    %c0_57 = arith.constant 0 : index
    %83 = vector.load %arg8[%c0_56, %c0_57] : memref<256x8xf32, #tpu.memory_space<vmem>>, vector<256x8xf32>
    tpu.vector_store %arg8[%c0_56, %c0_57], %82 {strides = array<i32>} : memref<256x8xf32, #tpu.memory_space<vmem>>, vector<256x8xf32>,
    return
  }
  func.func @transform_0(%arg0: i32) -> (i32, i32) {
    %c0_i32 = arith.constant 0 : i32
    %c0_i32_0 = arith.constant 0 : i32
    return %arg0, %c0_i32 : i32, i32
  }
  func.func @transform_1(%arg0: i32) -> (i32, i32) {
    %c0_i32 = arith.constant 0 : i32
    %c0_i32_0 = arith.constant 0 : i32
    return %arg0, %c0_i32 : i32, i32
  }
  func.func @transform_2(%arg0: i32) -> (i32, i32) {
    %c0_i32 = arith.constant 0 : i32
    %c0_i32_0 = arith.constant 0 : i32
    %c0_i32_1 = arith.constant 0 : i32
    return %c0_i32, %c0_i32_0 : i32, i32
  }
  func.func @transform_3(%arg0: i32) -> (i32, i32) {
    %c0_i32 = arith.constant 0 : i32
    %c0_i32_0 = arith.constant 0 : i32
    %c0_i32_1 = arith.constant 0 : i32
    return %c0_i32, %c0_i32_0 : i32, i32
  }
  func.func @transform_4(%arg0: i32) -> (i32, i32) {
    %c0_i32 = arith.constant 0 : i32
    %c0_i32_0 = arith.constant 0 : i32
    %c0_i32_1 = arith.constant 0 : i32
    return %c0_i32, %c0_i32_0 : i32, i32
  }
  func.func @transform_5(%arg0: i32) -> (i32, i32) {
    %c0_i32 = arith.constant 0 : i32
    %c0_i32_0 = arith.constant 0 : i32
    %c0_i32_1 = arith.constant 0 : i32
    return %c0_i32, %c0_i32_0 : i32, i32
  }
  func.func @transform_6(%arg0: i32) -> (i32, i32, i32) {
    %c0_i32 = arith.constant 0 : i32
    %c0_i32_0 = arith.constant 0 : i32
    %c0_i32_1 = arith.constant 0 : i32
    %c0_i32_2 = arith.constant 0 : i32
    return %c0_i32, %c0_i32_0, %c0_i32_1 : i32, i32, i32
  }
  func.func @transform_7(%arg0: i32) -> (i32, i32) {
    %c0_i32 = arith.constant 0 : i32
    %c0_i32_0 = arith.constant 0 : i32
    return %arg0, %c0_i32 : i32, i32
  }
}

module attributes {stable_mosaic.version = 11 : i64} {
  func.func @_affine_relu_matmul_kernel(%arg0: i32, %arg1: memref<32x4xf32, #tpu.memory_space<vmem>>, %arg2: memref<1x4xf32, #tpu.memory_space<vmem>>, %arg3: memref<1x4xf32, #tpu.memory_space<vmem>>, %arg4: memref<4x8xbf16, #tpu.memory_space<vmem>>, %arg5: memref<32x8xf32, #tpu.memory_space<vmem>>) attributes {dimension_semantics = [#tpu.dimension_semantics<parallel>], iteration_bounds = array<i64: 1>, scalar_prefetch = 0 : i64, scratch_operands = 0 : i64, tpu.core_type = #tpu.core_type<tc>, window_params = [{pipeline_mode = #tpu.pipeline_mode<synchronous>, transform_indices = @transform_0, window_bounds = array<i64: 32, 4>}, {pipeline_mode = #tpu.pipeline_mode<synchronous>, transform_indices = @transform_1, window_bounds = array<i64: 1, 4>}, {pipeline_mode = #tpu.pipeline_mode<synchronous>, transform_indices = @transform_2, window_bounds = array<i64: 1, 4>}, {pipeline_mode = #tpu.pipeline_mode<synchronous>, transform_indices = @transform_3, window_bounds = array<i64: 4, 8>}, {pipeline_mode = #tpu.pipeline_mode<synchronous>, transform_indices = @transform_4, window_bounds = array<i64: 32, 8>}]} {
    %c0 = arith.constant 0 : index
    %c0_0 = arith.constant 0 : index
    %0 = vector.load %arg1[%c0, %c0_0] : memref<32x4xf32, #tpu.memory_space<vmem>>, vector<32x4xf32>
    %c0_1 = arith.constant 0 : index
    %c0_2 = arith.constant 0 : index
    %1 = vector.load %arg2[%c0_1, %c0_2] : memref<1x4xf32, #tpu.memory_space<vmem>>, vector<1x4xf32>
    %2 = vector.broadcast %1 : vector<1x4xf32> to vector<32x4xf32>
    %3 = arith.mulf %0, %2 : vector<32x4xf32>
    %c0_3 = arith.constant 0 : index
    %c0_4 = arith.constant 0 : index
    %4 = vector.load %arg3[%c0_3, %c0_4] : memref<1x4xf32, #tpu.memory_space<vmem>>, vector<1x4xf32>
    %5 = vector.broadcast %4 : vector<1x4xf32> to vector<32x4xf32>
    %6 = arith.addf %3, %5 : vector<32x4xf32>
    %cst = arith.constant 0.000000e+00 : f32
    %7 = vector.broadcast %cst : f32 to vector<32x4xf32>
    %8 = arith.maximumf %6, %7 : vector<32x4xf32>
    %9 = arith.truncf %8 : vector<32x4xf32> to vector<32x4xbf16>
    %c0_5 = arith.constant 0 : index
    %c0_6 = arith.constant 0 : index
    %10 = vector.load %arg4[%c0_5, %c0_6] : memref<4x8xbf16, #tpu.memory_space<vmem>>, vector<4x8xbf16>
    %cst_7 = arith.constant dense<0.000000e+00> : vector<32x8xf32>
    %11 = tpu.matmul %9, %10, %cst_7 {dimension_numbers = #tpu.dot_dimension_numbers<[1], [0], [0], [1], [0, 0, 1, 1], [], []>} : vector<32x4xbf16>, vector<4x8xbf16>, vector<32x8xf32> -> vector<32x8xf32>
    %c0_8 = arith.constant 0 : index
    %c0_9 = arith.constant 0 : index
    %12 = vector.load %arg5[%c0_8, %c0_9] : memref<32x8xf32, #tpu.memory_space<vmem>>, vector<32x8xf32>
    tpu.vector_store %arg5[%c0_8, %c0_9], %11 {strides = array<i32>} : memref<32x8xf32, #tpu.memory_space<vmem>>, vector<32x8xf32>,
    return
  }
  func.func @transform_0(%arg0: i32) -> (i32, i32) {
    %c0_i32 = arith.constant 0 : i32
    %c0_i32_0 = arith.constant 0 : i32
    %c0_i32_1 = arith.constant 0 : i32
    return %c0_i32, %c0_i32_0 : i32, i32
  }
  func.func @transform_1(%arg0: i32) -> (i32, i32) {
    %c0_i32 = arith.constant 0 : i32
    %c0_i32_0 = arith.constant 0 : i32
    %c0_i32_1 = arith.constant 0 : i32
    return %c0_i32, %c0_i32_0 : i32, i32
  }
  func.func @transform_2(%arg0: i32) -> (i32, i32) {
    %c0_i32 = arith.constant 0 : i32
    %c0_i32_0 = arith.constant 0 : i32
    %c0_i32_1 = arith.constant 0 : i32
    return %c0_i32, %c0_i32_0 : i32, i32
  }
  func.func @transform_3(%arg0: i32) -> (i32, i32) {
    %c0_i32 = arith.constant 0 : i32
    %c0_i32_0 = arith.constant 0 : i32
    %c0_i32_1 = arith.constant 0 : i32
    return %c0_i32, %c0_i32_0 : i32, i32
  }
  func.func @transform_4(%arg0: i32) -> (i32, i32) {
    %c0_i32 = arith.constant 0 : i32
    %c0_i32_0 = arith.constant 0 : i32
    %c0_i32_1 = arith.constant 0 : i32
    return %c0_i32, %c0_i32_0 : i32, i32
  }
}

module attributes {stable_mosaic.version = 11 : i64} {
  func.func @_affine_relu_matmul_kernel(%arg0: i32, %arg1: memref<8x4xf32, #tpu.memory_space<vmem>>, %arg2: memref<1x4xf32, #tpu.memory_space<vmem>>, %arg3: memref<1x4xf32, #tpu.memory_space<vmem>>, %arg4: memref<4x8xbf16, #tpu.memory_space<vmem>>, %arg5: memref<8x8xf32, #tpu.memory_space<vmem>>) attributes {dimension_semantics = [#tpu.dimension_semantics<parallel>], iteration_bounds = array<i64: 1>, scalar_prefetch = 0 : i64, scratch_operands = 0 : i64, tpu.core_type = #tpu.core_type<tc>, window_params = [{pipeline_mode = #tpu.pipeline_mode<synchronous>, transform_indices = @transform_0, window_bounds = array<i64: 8, 4>}, {pipeline_mode = #tpu.pipeline_mode<synchronous>, transform_indices = @transform_1, window_bounds = array<i64: 1, 4>}, {pipeline_mode = #tpu.pipeline_mode<synchronous>, transform_indices = @transform_2, window_bounds = array<i64: 1, 4>}, {pipeline_mode = #tpu.pipeline_mode<synchronous>, transform_indices = @transform_3, window_bounds = array<i64: 4, 8>}, {pipeline_mode = #tpu.pipeline_mode<synchronous>, transform_indices = @transform_4, window_bounds = array<i64: 8, 8>}]} {
    %c0 = arith.constant 0 : index
    %c0_0 = arith.constant 0 : index
    %0 = vector.load %arg1[%c0, %c0_0] : memref<8x4xf32, #tpu.memory_space<vmem>>, vector<8x4xf32>
    %c0_1 = arith.constant 0 : index
    %c0_2 = arith.constant 0 : index
    %1 = vector.load %arg2[%c0_1, %c0_2] : memref<1x4xf32, #tpu.memory_space<vmem>>, vector<1x4xf32>
    %2 = vector.broadcast %1 : vector<1x4xf32> to vector<8x4xf32>
    %3 = arith.mulf %0, %2 : vector<8x4xf32>
    %c0_3 = arith.constant 0 : index
    %c0_4 = arith.constant 0 : index
    %4 = vector.load %arg3[%c0_3, %c0_4] : memref<1x4xf32, #tpu.memory_space<vmem>>, vector<1x4xf32>
    %5 = vector.broadcast %4 : vector<1x4xf32> to vector<8x4xf32>
    %6 = arith.addf %3, %5 : vector<8x4xf32>
    %cst = arith.constant 0.000000e+00 : f32
    %7 = vector.broadcast %cst : f32 to vector<8x4xf32>
    %8 = arith.maximumf %6, %7 : vector<8x4xf32>
    %9 = arith.truncf %8 : vector<8x4xf32> to vector<8x4xbf16>
    %c0_5 = arith.constant 0 : index
    %c0_6 = arith.constant 0 : index
    %10 = vector.load %arg4[%c0_5, %c0_6] : memref<4x8xbf16, #tpu.memory_space<vmem>>, vector<4x8xbf16>
    %cst_7 = arith.constant dense<0.000000e+00> : vector<8x8xf32>
    %11 = tpu.matmul %9, %10, %cst_7 {dimension_numbers = #tpu.dot_dimension_numbers<[1], [0], [0], [1], [0, 0, 1, 1], [], []>} : vector<8x4xbf16>, vector<4x8xbf16>, vector<8x8xf32> -> vector<8x8xf32>
    %c0_8 = arith.constant 0 : index
    %c0_9 = arith.constant 0 : index
    %12 = vector.load %arg5[%c0_8, %c0_9] : memref<8x8xf32, #tpu.memory_space<vmem>>, vector<8x8xf32>
    tpu.vector_store %arg5[%c0_8, %c0_9], %11 {strides = array<i32>} : memref<8x8xf32, #tpu.memory_space<vmem>>, vector<8x8xf32>,
    return
  }
  func.func @transform_0(%arg0: i32) -> (i32, i32) {
    %c0_i32 = arith.constant 0 : i32
    %c0_i32_0 = arith.constant 0 : i32
    %c0_i32_1 = arith.constant 0 : i32
    return %c0_i32, %c0_i32_0 : i32, i32
  }
  func.func @transform_1(%arg0: i32) -> (i32, i32) {
    %c0_i32 = arith.constant 0 : i32
    %c0_i32_0 = arith.constant 0 : i32
    %c0_i32_1 = arith.constant 0 : i32
    return %c0_i32, %c0_i32_0 : i32, i32
  }
  func.func @transform_2(%arg0: i32) -> (i32, i32) {
    %c0_i32 = arith.constant 0 : i32
    %c0_i32_0 = arith.constant 0 : i32
    %c0_i32_1 = arith.constant 0 : i32
    return %c0_i32, %c0_i32_0 : i32, i32
  }
  func.func @transform_3(%arg0: i32) -> (i32, i32) {
    %c0_i32 = arith.constant 0 : i32
    %c0_i32_0 = arith.constant 0 : i32
    %c0_i32_1 = arith.constant 0 : i32
    return %c0_i32, %c0_i32_0 : i32, i32
  }
  func.func @transform_4(%arg0: i32) -> (i32, i32) {
    %c0_i32 = arith.constant 0 : i32
    %c0_i32_0 = arith.constant 0 : i32
    %c0_i32_1 = arith.constant 0 : i32
    return %c0_i32, %c0_i32_0 : i32, i32
  }
}

module attributes {stable_mosaic.version = 11 : i64} {
  func.func @_affine_relu_matmul_kernel(%arg0: i32, %arg1: memref<2x4xf32, #tpu.memory_space<vmem>>, %arg2: memref<1x4xf32, #tpu.memory_space<vmem>>, %arg3: memref<1x4xf32, #tpu.memory_space<vmem>>, %arg4: memref<4x8xbf16, #tpu.memory_space<vmem>>, %arg5: memref<2x8xf32, #tpu.memory_space<vmem>>) attributes {dimension_semantics = [#tpu.dimension_semantics<parallel>], iteration_bounds = array<i64: 1>, scalar_prefetch = 0 : i64, scratch_operands = 0 : i64, tpu.core_type = #tpu.core_type<tc>, window_params = [{pipeline_mode = #tpu.pipeline_mode<synchronous>, transform_indices = @transform_0, window_bounds = array<i64: 2, 4>}, {pipeline_mode = #tpu.pipeline_mode<synchronous>, transform_indices = @transform_1, window_bounds = array<i64: 1, 4>}, {pipeline_mode = #tpu.pipeline_mode<synchronous>, transform_indices = @transform_2, window_bounds = array<i64: 1, 4>}, {pipeline_mode = #tpu.pipeline_mode<synchronous>, transform_indices = @transform_3, window_bounds = array<i64: 4, 8>}, {pipeline_mode = #tpu.pipeline_mode<synchronous>, transform_indices = @transform_4, window_bounds = array<i64: 2, 8>}]} {
    %c0 = arith.constant 0 : index
    %c0_0 = arith.constant 0 : index
    %0 = vector.load %arg1[%c0, %c0_0] : memref<2x4xf32, #tpu.memory_space<vmem>>, vector<2x4xf32>
    %c0_1 = arith.constant 0 : index
    %c0_2 = arith.constant 0 : index
    %1 = vector.load %arg2[%c0_1, %c0_2] : memref<1x4xf32, #tpu.memory_space<vmem>>, vector<1x4xf32>
    %2 = vector.broadcast %1 : vector<1x4xf32> to vector<2x4xf32>
    %3 = arith.mulf %0, %2 : vector<2x4xf32>
    %c0_3 = arith.constant 0 : index
    %c0_4 = arith.constant 0 : index
    %4 = vector.load %arg3[%c0_3, %c0_4] : memref<1x4xf32, #tpu.memory_space<vmem>>, vector<1x4xf32>
    %5 = vector.broadcast %4 : vector<1x4xf32> to vector<2x4xf32>
    %6 = arith.addf %3, %5 : vector<2x4xf32>
    %cst = arith.constant 0.000000e+00 : f32
    %7 = vector.broadcast %cst : f32 to vector<2x4xf32>
    %8 = arith.maximumf %6, %7 : vector<2x4xf32>
    %9 = arith.truncf %8 : vector<2x4xf32> to vector<2x4xbf16>
    %c0_5 = arith.constant 0 : index
    %c0_6 = arith.constant 0 : index
    %10 = vector.load %arg4[%c0_5, %c0_6] : memref<4x8xbf16, #tpu.memory_space<vmem>>, vector<4x8xbf16>
    %cst_7 = arith.constant dense<0.000000e+00> : vector<2x8xf32>
    %11 = tpu.matmul %9, %10, %cst_7 {dimension_numbers = #tpu.dot_dimension_numbers<[1], [0], [0], [1], [0, 0, 1, 1], [], []>} : vector<2x4xbf16>, vector<4x8xbf16>, vector<2x8xf32> -> vector<2x8xf32>
    %c0_8 = arith.constant 0 : index
    %c0_9 = arith.constant 0 : index
    %12 = vector.load %arg5[%c0_8, %c0_9] : memref<2x8xf32, #tpu.memory_space<vmem>>, vector<2x8xf32>
    tpu.vector_store %arg5[%c0_8, %c0_9], %11 {strides = array<i32>} : memref<2x8xf32, #tpu.memory_space<vmem>>, vector<2x8xf32>,
    return
  }
  func.func @transform_0(%arg0: i32) -> (i32, i32) {
    %c0_i32 = arith.constant 0 : i32
    %c0_i32_0 = arith.constant 0 : i32
    %c0_i32_1 = arith.constant 0 : i32
    return %c0_i32, %c0_i32_0 : i32, i32
  }
  func.func @transform_1(%arg0: i32) -> (i32, i32) {
    %c0_i32 = arith.constant 0 : i32
    %c0_i32_0 = arith.constant 0 : i32
    %c0_i32_1 = arith.constant 0 : i32
    return %c0_i32, %c0_i32_0 : i32, i32
  }
  func.func @transform_2(%arg0: i32) -> (i32, i32) {
    %c0_i32 = arith.constant 0 : i32
    %c0_i32_0 = arith.constant 0 : i32
    %c0_i32_1 = arith.constant 0 : i32
    return %c0_i32, %c0_i32_0 : i32, i32
  }
  func.func @transform_3(%arg0: i32) -> (i32, i32) {
    %c0_i32 = arith.constant 0 : i32
    %c0_i32_0 = arith.constant 0 : i32
    %c0_i32_1 = arith.constant 0 : i32
    return %c0_i32, %c0_i32_0 : i32, i32
  }
  func.func @transform_4(%arg0: i32) -> (i32, i32) {
    %c0_i32 = arith.constant 0 : i32
    %c0_i32_0 = arith.constant 0 : i32
    %c0_i32_1 = arith.constant 0 : i32
    return %c0_i32, %c0_i32_0 : i32, i32
  }
}

module attributes {stable_mosaic.version = 11 : i64} {
  func.func @_compression_add_kernel(%arg0: i32, %arg1: memref<512x8xf32, #tpu.memory_space<vmem>>, %arg2: memref<512x8xf32, #tpu.memory_space<vmem>>, %arg3: memref<512x8xf32, #tpu.memory_space<vmem>>, %arg4: memref<512x8xf32, #tpu.memory_space<vmem>>, %arg5: memref<512x8xf32, #tpu.memory_space<vmem>>, %arg6: memref<512x16xf32, #tpu.memory_space<vmem>>, %arg7: memref<5x1x8xf32, #tpu.memory_space<vmem>>, %arg8: memref<5x1x8xf32, #tpu.memory_space<vmem>>, %arg9: memref<5x8x16xbf16, #tpu.memory_space<vmem>>, %arg10: memref<512x16xf32, #tpu.memory_space<vmem>>) attributes {dimension_semantics = [#tpu.dimension_semantics<parallel>], iteration_bounds = array<i64: 1>, scalar_prefetch = 0 : i64, scratch_operands = 0 : i64, tpu.core_type = #tpu.core_type<tc>, window_params = [{transform_indices = @transform_0, window_bounds = array<i64: 512, 8>}, {transform_indices = @transform_1, window_bounds = array<i64: 512, 8>}, {transform_indices = @transform_2, window_bounds = array<i64: 512, 8>}, {transform_indices = @transform_3, window_bounds = array<i64: 512, 8>}, {transform_indices = @transform_4, window_bounds = array<i64: 512, 8>}, {transform_indices = @transform_5, window_bounds = array<i64: 512, 16>}, {pipeline_mode = #tpu.pipeline_mode<synchronous>, transform_indices = @transform_6, window_bounds = array<i64: 5, 1, 8>}, {pipeline_mode = #tpu.pipeline_mode<synchronous>, transform_indices = @transform_7, window_bounds = array<i64: 5, 1, 8>}, {pipeline_mode = #tpu.pipeline_mode<synchronous>, transform_indices = @transform_8, window_bounds = array<i64: 5, 8, 16>}, {transform_indices = @transform_9, window_bounds = array<i64: 512, 16>}]} {
    %c0 = arith.constant 0 : index
    %c0_0 = arith.constant 0 : index
    %0 = vector.load %arg6[%c0, %c0_0] : memref<512x16xf32, #tpu.memory_space<vmem>>, vector<512x16xf32>
    %c0_1 = arith.constant 0 : index
    %c0_2 = arith.constant 0 : index
    %1 = vector.load %arg1[%c0_1, %c0_2] : memref<512x8xf32, #tpu.memory_space<vmem>>, vector<512x8xf32>
    %c0_3 = arith.constant 0 : index
    %c0_4 = arith.constant 0 : index
    %c0_5 = arith.constant 0 : index
    %2 = vector.load %arg7[%c0_3, %c0_4, %c0_5] : memref<5x1x8xf32, #tpu.memory_space<vmem>>, vector<1x1x8xf32>
    %3 = vector.shape_cast %2 : vector<1x1x8xf32> to vector<1x8xf32>
    %4 = vector.broadcast %3 : vector<1x8xf32> to vector<512x8xf32>
    %5 = arith.mulf %1, %4 : vector<512x8xf32>
    %c0_6 = arith.constant 0 : index
    %c0_7 = arith.constant 0 : index
    %c0_8 = arith.constant 0 : index
    %6 = vector.load %arg8[%c0_6, %c0_7, %c0_8] : memref<5x1x8xf32, #tpu.memory_space<vmem>>, vector<1x1x8xf32>
    %7 = vector.shape_cast %6 : vector<1x1x8xf32> to vector<1x8xf32>
    %8 = vector.broadcast %7 : vector<1x8xf32> to vector<512x8xf32>
    %9 = arith.addf %5, %8 : vector<512x8xf32>
    %cst = arith.constant 0.000000e+00 : f32
    %10 = vector.broadcast %cst : f32 to vector<512x8xf32>
    %11 = arith.maximumf %9, %10 : vector<512x8xf32>
    %12 = arith.truncf %11 : vector<512x8xf32> to vector<512x8xbf16>
    %c0_9 = arith.constant 0 : index
    %c0_10 = arith.constant 0 : index
    %c0_11 = arith.constant 0 : index
    %13 = vector.load %arg9[%c0_9, %c0_10, %c0_11] : memref<5x8x16xbf16, #tpu.memory_space<vmem>>, vector<1x8x16xbf16>
    %14 = vector.shape_cast %13 : vector<1x8x16xbf16> to vector<8x16xbf16>
    %cst_12 = arith.constant dense<0.000000e+00> : vector<512x16xf32>
    %15 = tpu.matmul %12, %14, %cst_12 {dimension_numbers = #tpu.dot_dimension_numbers<[1], [0], [0], [1], [0, 0, 1, 1], [], []>} : vector<512x8xbf16>, vector<8x16xbf16>, vector<512x16xf32> -> vector<512x16xf32>
    %16 = arith.addf %0, %15 : vector<512x16xf32>
    %c0_13 = arith.constant 0 : index
    %c0_14 = arith.constant 0 : index
    %17 = vector.load %arg2[%c0_13, %c0_14] : memref<512x8xf32, #tpu.memory_space<vmem>>, vector<512x8xf32>
    %c1 = arith.constant 1 : index
    %c0_15 = arith.constant 0 : index
    %c0_16 = arith.constant 0 : index
    %18 = vector.load %arg7[%c1, %c0_15, %c0_16] : memref<5x1x8xf32, #tpu.memory_space<vmem>>, vector<1x1x8xf32>
    %19 = vector.shape_cast %18 : vector<1x1x8xf32> to vector<1x8xf32>
    %20 = vector.broadcast %19 : vector<1x8xf32> to vector<512x8xf32>
    %21 = arith.mulf %17, %20 : vector<512x8xf32>
    %c1_17 = arith.constant 1 : index
    %c0_18 = arith.constant 0 : index
    %c0_19 = arith.constant 0 : index
    %22 = vector.load %arg8[%c1_17, %c0_18, %c0_19] : memref<5x1x8xf32, #tpu.memory_space<vmem>>, vector<1x1x8xf32>
    %23 = vector.shape_cast %22 : vector<1x1x8xf32> to vector<1x8xf32>
    %24 = vector.broadcast %23 : vector<1x8xf32> to vector<512x8xf32>
    %25 = arith.addf %21, %24 : vector<512x8xf32>
    %cst_20 = arith.constant 0.000000e+00 : f32
    %26 = vector.broadcast %cst_20 : f32 to vector<512x8xf32>
    %27 = arith.maximumf %25, %26 : vector<512x8xf32>
    %28 = arith.truncf %27 : vector<512x8xf32> to vector<512x8xbf16>
    %c1_21 = arith.constant 1 : index
    %c0_22 = arith.constant 0 : index
    %c0_23 = arith.constant 0 : index
    %29 = vector.load %arg9[%c1_21, %c0_22, %c0_23] : memref<5x8x16xbf16, #tpu.memory_space<vmem>>, vector<1x8x16xbf16>
    %30 = vector.shape_cast %29 : vector<1x8x16xbf16> to vector<8x16xbf16>
    %cst_24 = arith.constant dense<0.000000e+00> : vector<512x16xf32>
    %31 = tpu.matmul %28, %30, %cst_24 {dimension_numbers = #tpu.dot_dimension_numbers<[1], [0], [0], [1], [0, 0, 1, 1], [], []>} : vector<512x8xbf16>, vector<8x16xbf16>, vector<512x16xf32> -> vector<512x16xf32>
    %32 = arith.addf %16, %31 : vector<512x16xf32>
    %c0_25 = arith.constant 0 : index
    %c0_26 = arith.constant 0 : index
    %33 = vector.load %arg3[%c0_25, %c0_26] : memref<512x8xf32, #tpu.memory_space<vmem>>, vector<512x8xf32>
    %c2 = arith.constant 2 : index
    %c0_27 = arith.constant 0 : index
    %c0_28 = arith.constant 0 : index
    %34 = vector.load %arg7[%c2, %c0_27, %c0_28] : memref<5x1x8xf32, #tpu.memory_space<vmem>>, vector<1x1x8xf32>
    %35 = vector.shape_cast %34 : vector<1x1x8xf32> to vector<1x8xf32>
    %36 = vector.broadcast %35 : vector<1x8xf32> to vector<512x8xf32>
    %37 = arith.mulf %33, %36 : vector<512x8xf32>
    %c2_29 = arith.constant 2 : index
    %c0_30 = arith.constant 0 : index
    %c0_31 = arith.constant 0 : index
    %38 = vector.load %arg8[%c2_29, %c0_30, %c0_31] : memref<5x1x8xf32, #tpu.memory_space<vmem>>, vector<1x1x8xf32>
    %39 = vector.shape_cast %38 : vector<1x1x8xf32> to vector<1x8xf32>
    %40 = vector.broadcast %39 : vector<1x8xf32> to vector<512x8xf32>
    %41 = arith.addf %37, %40 : vector<512x8xf32>
    %cst_32 = arith.constant 0.000000e+00 : f32
    %42 = vector.broadcast %cst_32 : f32 to vector<512x8xf32>
    %43 = arith.maximumf %41, %42 : vector<512x8xf32>
    %44 = arith.truncf %43 : vector<512x8xf32> to vector<512x8xbf16>
    %c2_33 = arith.constant 2 : index
    %c0_34 = arith.constant 0 : index
    %c0_35 = arith.constant 0 : index
    %45 = vector.load %arg9[%c2_33, %c0_34, %c0_35] : memref<5x8x16xbf16, #tpu.memory_space<vmem>>, vector<1x8x16xbf16>
    %46 = vector.shape_cast %45 : vector<1x8x16xbf16> to vector<8x16xbf16>
    %cst_36 = arith.constant dense<0.000000e+00> : vector<512x16xf32>
    %47 = tpu.matmul %44, %46, %cst_36 {dimension_numbers = #tpu.dot_dimension_numbers<[1], [0], [0], [1], [0, 0, 1, 1], [], []>} : vector<512x8xbf16>, vector<8x16xbf16>, vector<512x16xf32> -> vector<512x16xf32>
    %48 = arith.addf %32, %47 : vector<512x16xf32>
    %c0_37 = arith.constant 0 : index
    %c0_38 = arith.constant 0 : index
    %49 = vector.load %arg4[%c0_37, %c0_38] : memref<512x8xf32, #tpu.memory_space<vmem>>, vector<512x8xf32>
    %c3 = arith.constant 3 : index
    %c0_39 = arith.constant 0 : index
    %c0_40 = arith.constant 0 : index
    %50 = vector.load %arg7[%c3, %c0_39, %c0_40] : memref<5x1x8xf32, #tpu.memory_space<vmem>>, vector<1x1x8xf32>
    %51 = vector.shape_cast %50 : vector<1x1x8xf32> to vector<1x8xf32>
    %52 = vector.broadcast %51 : vector<1x8xf32> to vector<512x8xf32>
    %53 = arith.mulf %49, %52 : vector<512x8xf32>
    %c3_41 = arith.constant 3 : index
    %c0_42 = arith.constant 0 : index
    %c0_43 = arith.constant 0 : index
    %54 = vector.load %arg8[%c3_41, %c0_42, %c0_43] : memref<5x1x8xf32, #tpu.memory_space<vmem>>, vector<1x1x8xf32>
    %55 = vector.shape_cast %54 : vector<1x1x8xf32> to vector<1x8xf32>
    %56 = vector.broadcast %55 : vector<1x8xf32> to vector<512x8xf32>
    %57 = arith.addf %53, %56 : vector<512x8xf32>
    %cst_44 = arith.constant 0.000000e+00 : f32
    %58 = vector.broadcast %cst_44 : f32 to vector<512x8xf32>
    %59 = arith.maximumf %57, %58 : vector<512x8xf32>
    %60 = arith.truncf %59 : vector<512x8xf32> to vector<512x8xbf16>
    %c3_45 = arith.constant 3 : index
    %c0_46 = arith.constant 0 : index
    %c0_47 = arith.constant 0 : index
    %61 = vector.load %arg9[%c3_45, %c0_46, %c0_47] : memref<5x8x16xbf16, #tpu.memory_space<vmem>>, vector<1x8x16xbf16>
    %62 = vector.shape_cast %61 : vector<1x8x16xbf16> to vector<8x16xbf16>
    %cst_48 = arith.constant dense<0.000000e+00> : vector<512x16xf32>
    %63 = tpu.matmul %60, %62, %cst_48 {dimension_numbers = #tpu.dot_dimension_numbers<[1], [0], [0], [1], [0, 0, 1, 1], [], []>} : vector<512x8xbf16>, vector<8x16xbf16>, vector<512x16xf32> -> vector<512x16xf32>
    %64 = arith.addf %48, %63 : vector<512x16xf32>
    %c0_49 = arith.constant 0 : index
    %c0_50 = arith.constant 0 : index
    %65 = vector.load %arg5[%c0_49, %c0_50] : memref<512x8xf32, #tpu.memory_space<vmem>>, vector<512x8xf32>
    %c4 = arith.constant 4 : index
    %c0_51 = arith.constant 0 : index
    %c0_52 = arith.constant 0 : index
    %66 = vector.load %arg7[%c4, %c0_51, %c0_52] : memref<5x1x8xf32, #tpu.memory_space<vmem>>, vector<1x1x8xf32>
    %67 = vector.shape_cast %66 : vector<1x1x8xf32> to vector<1x8xf32>
    %68 = vector.broadcast %67 : vector<1x8xf32> to vector<512x8xf32>
    %69 = arith.mulf %65, %68 : vector<512x8xf32>
    %c4_53 = arith.constant 4 : index
    %c0_54 = arith.constant 0 : index
    %c0_55 = arith.constant 0 : index
    %70 = vector.load %arg8[%c4_53, %c0_54, %c0_55] : memref<5x1x8xf32, #tpu.memory_space<vmem>>, vector<1x1x8xf32>
    %71 = vector.shape_cast %70 : vector<1x1x8xf32> to vector<1x8xf32>
    %72 = vector.broadcast %71 : vector<1x8xf32> to vector<512x8xf32>
    %73 = arith.addf %69, %72 : vector<512x8xf32>
    %cst_56 = arith.constant 0.000000e+00 : f32
    %74 = vector.broadcast %cst_56 : f32 to vector<512x8xf32>
    %75 = arith.maximumf %73, %74 : vector<512x8xf32>
    %76 = arith.truncf %75 : vector<512x8xf32> to vector<512x8xbf16>
    %c4_57 = arith.constant 4 : index
    %c0_58 = arith.constant 0 : index
    %c0_59 = arith.constant 0 : index
    %77 = vector.load %arg9[%c4_57, %c0_58, %c0_59] : memref<5x8x16xbf16, #tpu.memory_space<vmem>>, vector<1x8x16xbf16>
    %78 = vector.shape_cast %77 : vector<1x8x16xbf16> to vector<8x16xbf16>
    %cst_60 = arith.constant dense<0.000000e+00> : vector<512x16xf32>
    %79 = tpu.matmul %76, %78, %cst_60 {dimension_numbers = #tpu.dot_dimension_numbers<[1], [0], [0], [1], [0, 0, 1, 1], [], []>} : vector<512x8xbf16>, vector<8x16xbf16>, vector<512x16xf32> -> vector<512x16xf32>
    %80 = arith.addf %64, %79 : vector<512x16xf32>
    %c0_61 = arith.constant 0 : index
    %c0_62 = arith.constant 0 : index
    %81 = vector.load %arg10[%c0_61, %c0_62] : memref<512x16xf32, #tpu.memory_space<vmem>>, vector<512x16xf32>
    tpu.vector_store %arg10[%c0_61, %c0_62], %80 {strides = array<i32>} : memref<512x16xf32, #tpu.memory_space<vmem>>, vector<512x16xf32>,
    return
  }
  func.func @transform_0(%arg0: i32) -> (i32, i32) {
    %c0_i32 = arith.constant 0 : i32
    %c0_i32_0 = arith.constant 0 : i32
    return %arg0, %c0_i32 : i32, i32
  }
  func.func @transform_1(%arg0: i32) -> (i32, i32) {
    %c0_i32 = arith.constant 0 : i32
    %c0_i32_0 = arith.constant 0 : i32
    return %arg0, %c0_i32 : i32, i32
  }
  func.func @transform_2(%arg0: i32) -> (i32, i32) {
    %c0_i32 = arith.constant 0 : i32
    %c0_i32_0 = arith.constant 0 : i32
    return %arg0, %c0_i32 : i32, i32
  }
  func.func @transform_3(%arg0: i32) -> (i32, i32) {
    %c0_i32 = arith.constant 0 : i32
    %c0_i32_0 = arith.constant 0 : i32
    return %arg0, %c0_i32 : i32, i32
  }
  func.func @transform_4(%arg0: i32) -> (i32, i32) {
    %c0_i32 = arith.constant 0 : i32
    %c0_i32_0 = arith.constant 0 : i32
    return %arg0, %c0_i32 : i32, i32
  }
  func.func @transform_5(%arg0: i32) -> (i32, i32) {
    %c0_i32 = arith.constant 0 : i32
    %c0_i32_0 = arith.constant 0 : i32
    return %arg0, %c0_i32 : i32, i32
  }
  func.func @transform_6(%arg0: i32) -> (i32, i32, i32) {
    %c0_i32 = arith.constant 0 : i32
    %c0_i32_0 = arith.constant 0 : i32
    %c0_i32_1 = arith.constant 0 : i32
    %c0_i32_2 = arith.constant 0 : i32
    return %c0_i32, %c0_i32_0, %c0_i32_1 : i32, i32, i32
  }
  func.func @transform_7(%arg0: i32) -> (i32, i32, i32) {
    %c0_i32 = arith.constant 0 : i32
    %c0_i32_0 = arith.constant 0 : i32
    %c0_i32_1 = arith.constant 0 : i32
    %c0_i32_2 = arith.constant 0 : i32
    return %c0_i32, %c0_i32_0, %c0_i32_1 : i32, i32, i32
  }
  func.func @transform_8(%arg0: i32) -> (i32, i32, i32) {
    %c0_i32 = arith.constant 0 : i32
    %c0_i32_0 = arith.constant 0 : i32
    %c0_i32_1 = arith.constant 0 : i32
    %c0_i32_2 = arith.constant 0 : i32
    return %c0_i32, %c0_i32_0, %c0_i32_1 : i32, i32, i32
  }
  func.func @transform_9(%arg0: i32) -> (i32, i32) {
    %c0_i32 = arith.constant 0 : i32
    %c0_i32_0 = arith.constant 0 : i32
    return %arg0, %c0_i32 : i32, i32
  }
}

</mosaic_0001>

<llo_original>
// kernel: dappm_forward.11
$region0: #{dappm_forward.11}
  #allocation0 [shape = 'u32[]', space=smem, size = 0x4, offset = 0x4, fixed_abs, tag = 'smem constant byte address 0x4 - core index']
  #allocation1 [shape = 'u32[72,128]{1,0:T(1,128)}', space=vmem, size = 0x9000, scoped, tag = 'internal scratch']
  %s0 = inlined_call_operand.vmem [shape: f32[128,4], index: 0, kind: input, shape index: {}]
  %s1 = inlined_call_operand.vmem [shape: f32[1,4], index: 1, kind: input, shape index: {}]
  %s2 = inlined_call_operand.vmem [shape: f32[1,4], index: 2, kind: input, shape index: {}]
  %s3 = inlined_call_operand.vmem [shape: bf16[4,8], index: 3, kind: input, shape index: {}]
  %s4 = inlined_call_operand.vmem [shape: f32[128,8], index: 4, kind: output, shape index: {}]
  %s5 = sld [smem:[#allocation0]]
  $region26: #{dappm_forward.11} parent=0
    _
  %s7 = ssub.s32 1, %s5
  %s8 = scalar_select 0, %s7, %s5
  // Predicated region
  $region2: #{dappm_forward.11} parent=0 // pred_check
    _
  $region3: #{dappm_forward.11} parent=0 // pred_check_branch
    %10 = sbr.rel (0) target = $region5
  $region4: #{dappm_forward.11} parent=0 // pred_region
    _
  $region5: #{dappm_forward.11} parent=0 // pred_fallthru
    _
  // Predicated region
  $region6: #{dappm_forward.11} parent=0 // pred_check
    _
  $region7: #{dappm_forward.11} parent=0 // pred_check_branch
    %12 = sbr.rel (0) target = $region9
  $region8: #{dappm_forward.11} parent=0 // pred_region
    _
  $region9: #{dappm_forward.11} parent=0 // pred_fallthru
    _
  // Predicated region
  $region10: #{dappm_forward.11} parent=0 // pred_check
    _
  $region11: #{dappm_forward.11} parent=0 // pred_check_branch
    %14 = sbr.rel (0) target = $region13
  $region12: #{dappm_forward.11} parent=0 // pred_region
    _
  $region13: #{dappm_forward.11} parent=0 // pred_fallthru
    _
  // Predicated region
  $region14: #{dappm_forward.11} parent=0 // pred_check
    _
  $region15: #{dappm_forward.11} parent=0 // pred_check_branch
    %16 = sbr.rel (0) target = $region17
  $region16: #{dappm_forward.11} parent=0 // pred_region
    _
  $region17: #{dappm_forward.11} parent=0 // pred_fallthru
    _
  %v18 = vld [vmem:[%s0] sm:$0xff]
  %v19 = vld [vmem:[%s0 + $0x8] sm:$0xff]
  %v20 = vld [vmem:[%s0 + $0x10] sm:$0xff]
  %v21 = vld [vmem:[%s0 + $0x18] sm:$0xff]
  %v22 = vld [vmem:[%s0 + $0x20] sm:$0xff]
  %v23 = vld [vmem:[%s0 + $0x28] sm:$0xff]
  %v24 = vld [vmem:[%s0 + $0x30] sm:$0xff]
  %v25 = vld [vmem:[%s0 + $0x38] sm:$0xff]
  %v26 = vld [vmem:[%s0 + $0x40] sm:$0xff]
  %v27 = vld [vmem:[%s0 + $0x48] sm:$0xff]
  %v28 = vld [vmem:[%s0 + $0x50] sm:$0xff]
  %v29 = vld [vmem:[%s0 + $0x58] sm:$0xff]
  %v30 = vld [vmem:[%s0 + $0x60] sm:$0xff]
  %v31 = vld [vmem:[%s0 + $0x68] sm:$0xff]
  %v32 = vld [vmem:[%s0 + $0x70] sm:$0xff]
  %v33 = vld [vmem:[%s0 + $0x78] sm:$0xff]
  %v34 = vld [vmem:[%s1] sm:$0x1]
  %v36 = vperm.slane %v34, 0
  %v38 = vmul.f32 %v18, %v36
  %v39 = vmul.f32 %v19, %v36
  %v40 = vmul.f32 %v20, %v36
  %v41 = vmul.f32 %v21, %v36
  %v42 = vmul.f32 %v22, %v36
  %v43 = vmul.f32 %v23, %v36
  %v44 = vmul.f32 %v24, %v36
  %v45 = vmul.f32 %v25, %v36
  %v46 = vmul.f32 %v26, %v36
  %v47 = vmul.f32 %v27, %v36
  %v48 = vmul.f32 %v28, %v36
  %v49 = vmul.f32 %v29, %v36
  %v50 = vmul.f32 %v30, %v36
  %v51 = vmul.f32 %v31, %v36
  %v52 = vmul.f32 %v32, %v36
  %v53 = vmul.f32 %v33, %v36
  %v54 = vld [vmem:[%s2] sm:$0x1]
  %v56 = vperm.slane %v54, 0
  %v58 = vadd.f32 %v38, %v56
  %v59 = vadd.f32 %v39, %v56
  %v60 = vadd.f32 %v40, %v56
  %v61 = vadd.f32 %v41, %v56
  %v62 = vadd.f32 %v42, %v56
  %v63 = vadd.f32 %v43, %v56
  %v64 = vadd.f32 %v44, %v56
  %v65 = vadd.f32 %v45, %v56
  %v66 = vadd.f32 %v46, %v56
  %v67 = vadd.f32 %v47, %v56
  %v68 = vadd.f32 %v48, %v56
  %v69 = vadd.f32 %v49, %v56
  %v70 = vadd.f32 %v50, %v56
  %v71 = vadd.f32 %v51, %v56
  %v72 = vadd.f32 %v52, %v56
  %v73 = vadd.f32 %v53, %v56
  %v74 = vmax.f32 %v58, 0.0
  %v75 = vmax.f32 %v59, 0.0
  %v76 = vmax.f32 %v60, 0.0
  %v77 = vmax.f32 %v61, 0.0
  %v78 = vmax.f32 %v62, 0.0
  %v79 = vmax.f32 %v63, 0.0
  %v80 = vmax.f32 %v64, 0.0
  %v81 = vmax.f32 %v65, 0.0
  %v82 = vmax.f32 %v66, 0.0
  %v83 = vmax.f32 %v67, 0.0
  %v84 = vmax.f32 %v68, 0.0
  %v85 = vmax.f32 %v69, 0.0
  %v86 = vmax.f32 %v70, 0.0
  %v87 = vmax.f32 %v71, 0.0
  %v88 = vmax.f32 %v72, 0.0
  %v89 = vmax.f32 %v73, 0.0
  %v90 = vpack.c.bf16 %v75, %v74
  %v91 = vpack.c.bf16 %v77, %v76
  %v92 = vpack.c.bf16 %v79, %v78
  %v93 = vpack.c.bf16 %v81, %v80
  %v94 = vpack.c.bf16 %v83, %v82
  %v95 = vpack.c.bf16 %v85, %v84
  %v96 = vpack.c.bf16 %v87, %v86
  %v97 = vpack.c.bf16 %v89, %v88
  %v98 = vld [vmem:[%s3] sm:$0x3]
  %vm99 = vcmask 31744
  %v101 = vsel %vm99, %v90, 0
  %v104 = vsel %vm99, %v91, 0
  %v107 = vsel %vm99, %v92, 0
  %v110 = vsel %vm99, %v93, 0
  %v113 = vsel %vm99, %v94, 0
  %v116 = vsel %vm99, %v95, 0
  %v119 = vsel %vm99, %v96, 0
  %v122 = vsel %vm99, %v97, 0
  %vm124 = vcmask 1041408
  %v126 = vsel %vm124, %v98, 0
  %128 = vmatpush.bf16.msra.mxu0 0
  %129 = vmatpush.bf16.msra.mxu0 0
  %130 = vmatpush.bf16.msra.mxu0 0
  %131 = vmatpush.bf16.msra.mxu0 0
  %132 = vmatpush.bf16.msra.mxu0 0
  %133 = vmatpush.bf16.msra.mxu0 0
  %134 = vmatpush.bf16.msra.mxu0 0
  %135 = vmatpush.bf16.msra.mxu0 %v126
  %136 = vmatmul.bf16.gmra.mxu0 %v101
  %v137 = vpop.f32.mrf.mxu0
  %v138 = vadd.f32 0.0, %v137
  %v139 = vpop.f32.mrf.mxu0
  %v140 = vadd.f32 0.0, %v139
  %141 = vmatmul.bf16.gmra.mxu0 %v104
  %v142 = vpop.f32.mrf.mxu0
  %v143 = vadd.f32 0.0, %v142
  %v144 = vpop.f32.mrf.mxu0
  %v145 = vadd.f32 0.0, %v144
  %146 = vmatmul.bf16.gmra.mxu0 %v107
  %v147 = vpop.f32.mrf.mxu0
  %v148 = vadd.f32 0.0, %v147
  %v149 = vpop.f32.mrf.mxu0
  %v150 = vadd.f32 0.0, %v149
  %151 = vmatmul.bf16.gmra.mxu0 %v110
  %v152 = vpop.f32.mrf.mxu0
  %v153 = vadd.f32 0.0, %v152
  %v154 = vpop.f32.mrf.mxu0
  %v155 = vadd.f32 0.0, %v154
  %156 = vmatmul.bf16.gmra.mxu0 %v113
  %v157 = vpop.f32.mrf.mxu0
  %v158 = vadd.f32 0.0, %v157
  %v159 = vpop.f32.mrf.mxu0
  %v160 = vadd.f32 0.0, %v159
  %161 = vmatmul.bf16.gmra.mxu0 %v116
  %v162 = vpop.f32.mrf.mxu0
  %v163 = vadd.f32 0.0, %v162
  %v164 = vpop.f32.mrf.mxu0
  %v165 = vadd.f32 0.0, %v164
  %166 = vmatmul.bf16.gmra.mxu0 %v119
  %v167 = vpop.f32.mrf.mxu0
  %v168 = vadd.f32 0.0, %v167
  %v169 = vpop.f32.mrf.mxu0
  %v170 = vadd.f32 0.0, %v169
  %171 = vmatmul.bf16.gmra.mxu0 %v122
  %v172 = vpop.f32.mrf.mxu0
  %v173 = vadd.f32 0.0, %v172
  %v174 = vpop.f32.mrf.mxu0
  %v175 = vadd.f32 0.0, %v174
  %176 = vdwg.mxu0
  %vm177 = vcmask 64512
  %178 = vst.msk [vmem:[%s4] sm:$0xff] %vm177, %v138
  %179 = vst.msk [vmem:[%s4 + $0x8] sm:$0xff] %vm177, %v140
  %180 = vst.msk [vmem:[%s4 + $0x10] sm:$0xff] %vm177, %v143
  %181 = vst.msk [vmem:[%s4 + $0x18] sm:$0xff] %vm177, %v145
  %182 = vst.msk [vmem:[%s4 + $0x20] sm:$0xff] %vm177, %v148
  %183 = vst.msk [vmem:[%s4 + $0x28] sm:$0xff] %vm177, %v150
  %184 = vst.msk [vmem:[%s4 + $0x30] sm:$0xff] %vm177, %v153
  %185 = vst.msk [vmem:[%s4 + $0x38] sm:$0xff] %vm177, %v155
  %186 = vst.msk [vmem:[%s4 + $0x40] sm:$0xff] %vm177, %v158
  %187 = vst.msk [vmem:[%s4 + $0x48] sm:$0xff] %vm177, %v160
  %188 = vst.msk [vmem:[%s4 + $0x50] sm:$0xff] %vm177, %v163
  %189 = vst.msk [vmem:[%s4 + $0x58] sm:$0xff] %vm177, %v165
  %190 = vst.msk [vmem:[%s4 + $0x60] sm:$0xff] %vm177, %v168
  %191 = vst.msk [vmem:[%s4 + $0x68] sm:$0xff] %vm177, %v170
  %192 = vst.msk [vmem:[%s4 + $0x70] sm:$0xff] %vm177, %v173
  %193 = vst.msk [vmem:[%s4 + $0x78] sm:$0xff] %vm177, %v175
  // Predicated region
  $region18: #{dappm_forward.11} parent=0 // pred_check
    _
  $region19: #{dappm_forward.11} parent=0 // pred_check_branch
    %195 = sbr.rel (0) target = $region21
  $region20: #{dappm_forward.11} parent=0 // pred_region
    _
  $region21: #{dappm_forward.11} parent=0 // pred_fallthru
    _
  // Predicated region
  $region22: #{dappm_forward.11} parent=0 // pred_check
    _
  $region23: #{dappm_forward.11} parent=0 // pred_check_branch
    %197 = sbr.rel (0) target = $region25
  $region24: #{dappm_forward.11} parent=0 // pred_region
    _
  $region25: #{dappm_forward.11} parent=0 // pred_fallthru
    _

// kernel: dappm_forward.10
$region0: #{dappm_forward.10}
  #allocation0 [shape = 'u32[]', space=smem, size = 0x4, offset = 0x4, fixed_abs, tag = 'smem constant byte address 0x4 - core index']
  #allocation1 [shape = 'u32[72,128]{1,0:T(1,128)}', space=vmem, size = 0x9000, scoped, tag = 'internal scratch']
  %s0 = inlined_call_operand.vmem [shape: f32[512,4], index: 0, kind: input, shape index: {}]
  %s1 = inlined_call_operand.vmem [shape: f32[1,4], index: 1, kind: input, shape index: {}]
  %s2 = inlined_call_operand.vmem [shape: f32[1,4], index: 2, kind: input, shape index: {}]
  %s3 = inlined_call_operand.vmem [shape: bf16[4,8], index: 3, kind: input, shape index: {}]
  %s4 = inlined_call_operand.vmem [shape: f32[1,4], index: 4, kind: input, shape index: {}]
  %s5 = inlined_call_operand.vmem [shape: f32[1,4], index: 5, kind: input, shape index: {}]
  %s6 = inlined_call_operand.vmem [shape: bf16[4,16], index: 6, kind: input, shape index: {}]
  %s7 = inlined_call_operand.vmem [shape: f32[512,8], index: 7, kind: output, shape index: {0}]
  %s8 = inlined_call_operand.vmem [shape: f32[512,16], index: 8, kind: output, shape index: {1}]
  %9 = xla_tuple %s7, %s8
  %s10 = sld [smem:[#allocation0]]
  $region46: #{dappm_forward.10} parent=0
    _
  %s12 = ssub.s32 1, %s10
  %s13 = scalar_select 0, %s12, %s10
  // Predicated region
  $region2: #{dappm_forward.10} parent=0 // pred_check
    _
  $region3: #{dappm_forward.10} parent=0 // pred_check_branch
    %15 = sbr.rel (0) target = $region5
  $region4: #{dappm_forward.10} parent=0 // pred_region
    _
  $region5: #{dappm_forward.10} parent=0 // pred_fallthru
    _
  // Predicated region
  $region6: #{dappm_forward.10} parent=0 // pred_check
    _
  $region7: #{dappm_forward.10} parent=0 // pred_check_branch
    %17 = sbr.rel (0) target = $region9
  $region8: #{dappm_forward.10} parent=0 // pred_region
    _
  $region9: #{dappm_forward.10} parent=0 // pred_fallthru
    _
  // Predicated region
  $region10: #{dappm_forward.10} parent=0 // pred_check
    _
  $region11: #{dappm_forward.10} parent=0 // pred_check_branch
    %19 = sbr.rel (0) target = $region13
  $region12: #{dappm_forward.10} parent=0 // pred_region
    _
  $region13: #{dappm_forward.10} parent=0 // pred_fallthru
    _
  // Predicated region
  $region14: #{dappm_forward.10} parent=0 // pred_check
    _
  $region15: #{dappm_forward.10} parent=0 // pred_check_branch
    %21 = sbr.rel (0) target = $region17
  $region16: #{dappm_forward.10} parent=0 // pred_region
    _
  $region17: #{dappm_forward.10} parent=0 // pred_fallthru
    _
  // Predicated region
  $region18: #{dappm_forward.10} parent=0 // pred_check
    _
  $region19: #{dappm_forward.10} parent=0 // pred_check_branch
    %23 = sbr.rel (0) target = $region21
  $region20: #{dappm_forward.10} parent=0 // pred_region
    _
  $region21: #{dappm_forward.10} parent=0 // pred_fallthru
    _
  // Predicated region
  $region22: #{dappm_forward.10} parent=0 // pred_check
    _
  $region23: #{dappm_forward.10} parent=0 // pred_check_branch
    %25 = sbr.rel (0) target = $region25
  $region24: #{dappm_forward.10} parent=0 // pred_region
    _
  $region25: #{dappm_forward.10} parent=0 // pred_fallthru
    _
  // Predicated region
  $region26: #{dappm_forward.10} parent=0 // pred_check
    _
  $region27: #{dappm_forward.10} parent=0 // pred_check_branch
    %27 = sbr.rel (0) target = $region29
  $region28: #{dappm_forward.10} parent=0 // pred_region
    _
  $region29: #{dappm_forward.10} parent=0 // pred_fallthru
    _
  %v29 = vld [vmem:[%s0] sm:$0xff]
  %v30 = vld [vmem:[%s0 + $0x8] sm:$0xff]
  %v31 = vld [vmem:[%s0 + $0x10] sm:$0xff]
  %v32 = vld [vmem:[%s0 + $0x18] sm:$0xff]
  %v33 = vld [vmem:[%s0 + $0x20] sm:$0xff]
  %v34 = vld [vmem:[%s0 + $0x28] sm:$0xff]
  %v35 = vld [vmem:[%s0 + $0x30] sm:$0xff]
  %v36 = vld [vmem:[%s0 + $0x38] sm:$0xff]
  %v37 = vld [vmem:[%s0 + $0x40] sm:$0xff]
  %v38 = vld [vmem:[%s0 + $0x48] sm:$0xff]
  %v39 = vld [vmem:[%s0 + $0x50] sm:$0xff]
  %v40 = vld [vmem:[%s0 + $0x58] sm:$0xff]
  %v41 = vld [vmem:[%s0 + $0x60] sm:$0xff]
  %v42 = vld [vmem:[%s0 + $0x68] sm:$0xff]
  %v43 = vld [vmem:[%s0 + $0x70] sm:$0xff]
  %v44 = vld [vmem:[%s0 + $0x78] sm:$0xff]
  %v45 = vld [vmem:[%s0 + $0x80] sm:$0xff]
  %v46 = vld [vmem:[%s0 + $0x88] sm:$0xff]
  %v47 = vld [vmem:[%s0 + $0x90] sm:$0xff]
  %v48 = vld [vmem:[%s0 + $0x98] sm:$0xff]
  %v49 = vld [vmem:[%s0 + $0xa0] sm:$0xff]
  %v50 = vld [vmem:[%s0 + $0xa8] sm:$0xff]
  %v51 = vld [vmem:[%s0 + $0xb0] sm:$0xff]
  %v52 = vld [vmem:[%s0 + $0xb8] sm:$0xff]
  %v53 = vld [vmem:[%s0 + $0xc0] sm:$0xff]
  %v54 = vld [vmem:[%s0 + $0xc8] sm:$0xff]
  %v55 = vld [vmem:[%s0 + $0xd0] sm:$0xff]
  %v56 = vld [vmem:[%s0 + $0xd8] sm:$0xff]
  %v57 = vld [vmem:[%s0 + $0xe0] sm:$0xff]
  %v58 = vld [vmem:[%s0 + $0xe8] sm:$0xff]
  %v59 = vld [vmem:[%s0 + $0xf0] sm:$0xff]
  %v60 = vld [vmem:[%s0 + $0xf8] sm:$0xff]
  %v61 = vld [vmem:[%s0 + $0x100] sm:$0xff]
  %v62 = vld [vmem:[%s0 + $0x108] sm:$0xff]
  %v63 = vld [vmem:[%s0 + $0x110] sm:$0xff]
  %v64 = vld [vmem:[%s0 + $0x118] sm:$0xff]
  %v65 = vld [vmem:[%s0 + $0x120] sm:$0xff]
  %v66 = vld [vmem:[%s0 + $0x128] sm:$0xff]
  %v67 = vld [vmem:[%s0 + $0x130] sm:$0xff]
  %v68 = vld [vmem:[%s0 + $0x138] sm:$0xff]
  %v69 = vld [vmem:[%s0 + $0x140] sm:$0xff]
  %v70 = vld [vmem:[%s0 + $0x148] sm:$0xff]
  %v71 = vld [vmem:[%s0 + $0x150] sm:$0xff]
  %v72 = vld [vmem:[%s0 + $0x158] sm:$0xff]
  %v73 = vld [vmem:[%s0 + $0x160] sm:$0xff]
  %v74 = vld [vmem:[%s0 + $0x168] sm:$0xff]
  %v75 = vld [vmem:[%s0 + $0x170] sm:$0xff]
  %v76 = vld [vmem:[%s0 + $0x178] sm:$0xff]
  %v77 = vld [vmem:[%s0 + $0x180] sm:$0xff]
  %v78 = vld [vmem:[%s0 + $0x188] sm:$0xff]
  %v79 = vld [vmem:[%s0 + $0x190] sm:$0xff]
  %v80 = vld [vmem:[%s0 + $0x198] sm:$0xff]
  %v81 = vld [vmem:[%s0 + $0x1a0] sm:$0xff]
  %v82 = vld [vmem:[%s0 + $0x1a8] sm:$0xff]
  %v83 = vld [vmem:[%s0 + $0x1b0] sm:$0xff]
  %v84 = vld [vmem:[%s0 + $0x1b8] sm:$0xff]
  %v85 = vld [vmem:[%s0 + $0x1c0] sm:$0xff]
  %v86 = vld [vmem:[%s0 + $0x1c8] sm:$0xff]
  %v87 = vld [vmem:[%s0 + $0x1d0] sm:$0xff]
  %v88 = vld [vmem:[%s0 + $0x1d8] sm:$0xff]
  %v89 = vld [vmem:[%s0 + $0x1e0] sm:$0xff]
  %v90 = vld [vmem:[%s0 + $0x1e8] sm:$0xff]
  %v91 = vld [vmem:[%s0 + $0x1f0] sm:$0xff]
  %v92 = vld [vmem:[%s0 + $0x1f8] sm:$0xff]
  %v93 = vld [vmem:[%s1] sm:$0x1]
  %v95 = vperm.slane %v93, 0
  %v97 = vmul.f32 %v29, %v95
  %v98 = vmul.f32 %v30, %v95
  %v99 = vmul.f32 %v31, %v95
  %v100 = vmul.f32 %v32, %v95
  %v101 = vmul.f32 %v33, %v95
  %v102 = vmul.f32 %v34, %v95
  %v103 = vmul.f32 %v35, %v95
  %v104 = vmul.f32 %v36, %v95
  %v105 = vmul.f32 %v37, %v95
  %v106 = vmul.f32 %v38, %v95
  %v107 = vmul.f32 %v39, %v95
  %v108 = vmul.f32 %v40, %v95
  %v109 = vmul.f32 %v41, %v95
  %v110 = vmul.f32 %v42, %v95
  %v111 = vmul.f32 %v43, %v95
  %v112 = vmul.f32 %v44, %v95
  %v113 = vmul.f32 %v45, %v95
  %v114 = vmul.f32 %v46, %v95
  %v115 = vmul.f32 %v47, %v95
  %v116 = vmul.f32 %v48, %v95
  %v117 = vmul.f32 %v49, %v95
  %v118 = vmul.f32 %v50, %v95
  %v119 = vmul.f32 %v51, %v95
  %v120 = vmul.f32 %v52, %v95
  %v121 = vmul.f32 %v53, %v95
  %v122 = vmul.f32 %v54, %v95
  %v123 = vmul.f32 %v55, %v95
  %v124 = vmul.f32 %v56, %v95
  %v125 = vmul.f32 %v57, %v95
  %v126 = vmul.f32 %v58, %v95
  %v127 = vmul.f32 %v59, %v95
  %v128 = vmul.f32 %v60, %v95
  %v129 = vmul.f32 %v61, %v95
  %v130 = vmul.f32 %v62, %v95
  %v131 = vmul.f32 %v63, %v95
  %v132 = vmul.f32 %v64, %v95
  %v133 = vmul.f32 %v65, %v95
  %v134 = vmul.f32 %v66, %v95
  %v135 = vmul.f32 %v67, %v95
  %v136 = vmul.f32 %v68, %v95
  %v137 = vmul.f32 %v69, %v95
  %v138 = vmul.f32 %v70, %v95
  %v139 = vmul.f32 %v71, %v95
  %v140 = vmul.f32 %v72, %v95
  %v141 = vmul.f32 %v73, %v95
  %v142 = vmul.f32 %v74, %v95
  %v143 = vmul.f32 %v75, %v95
  %v144 = vmul.f32 %v76, %v95
  %v145 = vmul.f32 %v77, %v95
  %v146 = vmul.f32 %v78, %v95
  %v147 = vmul.f32 %v79, %v95
  %v148 = vmul.f32 %v80, %v95
  %v149 = vmul.f32 %v81, %v95
  %v150 = vmul.f32 %v82, %v95
  %v151 = vmul.f32 %v83, %v95
  %v152 = vmul.f32 %v84, %v95
  %v153 = vmul.f32 %v85, %v95
  %v154 = vmul.f32 %v86, %v95
  %v155 = vmul.f32 %v87, %v95
  %v156 = vmul.f32 %v88, %v95
  %v157 = vmul.f32 %v89, %v95
  %v158 = vmul.f32 %v90, %v95
  %v159 = vmul.f32 %v91, %v95
  %v160 = vmul.f32 %v92, %v95
  %v161 = vld [vmem:[%s2] sm:$0x1]
  %v163 = vperm.slane %v161, 0
  %v165 = vadd.f32 %v97, %v163
  %v166 = vadd.f32 %v98, %v163
  %v167 = vadd.f32 %v99, %v163
  %v168 = vadd.f32 %v100, %v163
  %v169 = vadd.f32 %v101, %v163
  %v170 = vadd.f32 %v102, %v163
  %v171 = vadd.f32 %v103, %v163
  %v172 = vadd.f32 %v104, %v163
  %v173 = vadd.f32 %v105, %v163
  %v174 = vadd.f32 %v106, %v163
  %v175 = vadd.f32 %v107, %v163
  %v176 = vadd.f32 %v108, %v163
  %v177 = vadd.f32 %v109, %v163
  %v178 = vadd.f32 %v110, %v163
  %v179 = vadd.f32 %v111, %v163
  %v180 = vadd.f32 %v112, %v163
  %v181 = vadd.f32 %v113, %v163
  %v182 = vadd.f32 %v114, %v163
  %v183 = vadd.f32 %v115, %v163
  %v184 = vadd.f32 %v116, %v163
  %v185 = vadd.f32 %v117, %v163
  %v186 = vadd.f32 %v118, %v163
  %v187 = vadd.f32 %v119, %v163
  %v188 = vadd.f32 %v120, %v163
  %v189 = vadd.f32 %v121, %v163
  %v190 = vadd.f32 %v122, %v163
  %v191 = vadd.f32 %v123, %v163
  %v192 = vadd.f32 %v124, %v163
  %v193 = vadd.f32 %v125, %v163
  %v194 = vadd.f32 %v126, %v163
  %v195 = vadd.f32 %v127, %v163
  %v196 = vadd.f32 %v128, %v163
  %v197 = vadd.f32 %v129, %v163
  %v198 = vadd.f32 %v130, %v163
  %v199 = vadd.f32 %v131, %v163
  %v200 = vadd.f32 %v132, %v163
  %v201 = vadd.f32 %v133, %v163
  %v202 = vadd.f32 %v134, %v163
  %v203 = vadd.f32 %v135, %v163
  %v204 = vadd.f32 %v136, %v163
  %v205 = vadd.f32 %v137, %v163
  %v206 = vadd.f32 %v138, %v163
  %v207 = vadd.f32 %v139, %v163
  %v208 = vadd.f32 %v140, %v163
  %v209 = vadd.f32 %v141, %v163
  %v210 = vadd.f32 %v142, %v163
  %v211 = vadd.f32 %v143, %v163
  %v212 = vadd.f32 %v144, %v163
  %v213 = vadd.f32 %v145, %v163
  %v214 = vadd.f32 %v146, %v163
  %v215 = vadd.f32 %v147, %v163
  %v216 = vadd.f32 %v148, %v163
  %v217 = vadd.f32 %v149, %v163
  %v218 = vadd.f32 %v150, %v163
  %v219 = vadd.f32 %v151, %v163
  %v220 = vadd.f32 %v152, %v163
  %v221 = vadd.f32 %v153, %v163
  %v222 = vadd.f32 %v154, %v163
  %v223 = vadd.f32 %v155, %v163
  %v224 = vadd.f32 %v156, %v163
  %v225 = vadd.f32 %v157, %v163
  %v226 = vadd.f32 %v158, %v163
  %v227 = vadd.f32 %v159, %v163
  %v228 = vadd.f32 %v160, %v163
  %v229 = vmax.f32 %v165, 0.0
  %v230 = vmax.f32 %v166, 0.0
  %v231 = vmax.f32 %v167, 0.0
  %v232 = vmax.f32 %v168, 0.0
  %v233 = vmax.f32 %v169, 0.0
  %v234 = vmax.f32 %v170, 0.0
  %v235 = vmax.f32 %v171, 0.0
  %v236 = vmax.f32 %v172, 0.0
  %v237 = vmax.f32 %v173, 0.0
  %v238 = vmax.f32 %v174, 0.0
  %v239 = vmax.f32 %v175, 0.0
  %v240 = vmax.f32 %v176, 0.0
  %v241 = vmax.f32 %v177, 0.0
  %v242 = vmax.f32 %v178, 0.0
  %v243 = vmax.f32 %v179, 0.0
  %v244 = vmax.f32 %v180, 0.0
  %v245 = vmax.f32 %v181, 0.0
  %v246 = vmax.f32 %v182, 0.0
  %v247 = vmax.f32 %v183, 0.0
  %v248 = vmax.f32 %v184, 0.0
  %v249 = vmax.f32 %v185, 0.0
  %v250 = vmax.f32 %v186, 0.0
  %v251 = vmax.f32 %v187, 0.0
  %v252 = vmax.f32 %v188, 0.0
  %v253 = vmax.f32 %v189, 0.0
  %v254 = vmax.f32 %v190, 0.0
  %v255 = vmax.f32 %v191, 0.0
  %v256 = vmax.f32 %v192, 0.0
  %v257 = vmax.f32 %v193, 0.0
  %v258 = vmax.f32 %v194, 0.0
  %v259 = vmax.f32 %v195, 0.0
  %v260 = vmax.f32 %v196, 0.0
  %v261 = vmax.f32 %v197, 0.0
  %v262 = vmax.f32 %v198, 0.0
  %v263 = vmax.f32 %v199, 0.0
  %v264 = vmax.f32 %v200, 0.0
  %v265 = vmax.f32 %v201, 0.0
  %v266 = vmax.f32 %v202, 0.0
  %v267 = vmax.f32 %v203, 0.0
  %v268 = vmax.f32 %v204, 0.0
  %v269 = vmax.f32 %v205, 0.0
  %v270 = vmax.f32 %v206, 0.0
  %v271 = vmax.f32 %v207, 0.0
  %v272 = vmax.f32 %v208, 0.0
  %v273 = vmax.f32 %v209, 0.0
  %v274 = vmax.f32 %v210, 0.0
  %v275 = vmax.f32 %v211, 0.0
  %v276 = vmax.f32 %v212, 0.0
  %v277 = vmax.f32 %v213, 0.0
  %v278 = vmax.f32 %v214, 0.0
  %v279 = vmax.f32 %v215, 0.0
  %v280 = vmax.f32 %v216, 0.0
  %v281 = vmax.f32 %v217, 0.0
  %v282 = vmax.f32 %v218, 0.0
  %v283 = vmax.f32 %v219, 0.0
  %v284 = vmax.f32 %v220, 0.0
  %v285 = vmax.f32 %v221, 0.0
  %v286 = vmax.f32 %v222, 0.0
  %v287 = vmax.f32 %v223, 0.0
  %v288 = vmax.f32 %v224, 0.0
  %v289 = vmax.f32 %v225, 0.0
  %v290 = vmax.f32 %v226, 0.0
  %v291 = vmax.f32 %v227, 0.0
  %v292 = vmax.f32 %v228, 0.0
  %v293 = vpack.c.bf16 %v230, %v229
  %v294 = vpack.c.bf16 %v232, %v231
  %v295 = vpack.c.bf16 %v234, %v233
  %v296 = vpack.c.bf16 %v236, %v235
  %v297 = vpack.c.bf16 %v238, %v237
  %v298 = vpack.c.bf16 %v240, %v239
  %v299 = vpack.c.bf16 %v242, %v241
  %v300 = vpack.c.bf16 %v244, %v243
  %v301 = vpack.c.bf16 %v246, %v245
  %v302 = vpack.c.bf16 %v248, %v247
  %v303 = vpack.c.bf16 %v250, %v249
  %v304 = vpack.c.bf16 %v252, %v251
  %v305 = vpack.c.bf16 %v254, %v253
  %v306 = vpack.c.bf16 %v256, %v255
  %v307 = vpack.c.bf16 %v258, %v257
  %v308 = vpack.c.bf16 %v260, %v259
  %v309 = vpack.c.bf16 %v262, %v261
  %v310 = vpack.c.bf16 %v264, %v263
  %v311 = vpack.c.bf16 %v266, %v265
  %v312 = vpack.c.bf16 %v268, %v267
  %v313 = vpack.c.bf16 %v270, %v269
  %v314 = vpack.c.bf16 %v272, %v271
  %v315 = vpack.c.bf16 %v274, %v273
  %v316 = vpack.c.bf16 %v276, %v275
  %v317 = vpack.c.bf16 %v278, %v277
  %v318 = vpack.c.bf16 %v280, %v279
  %v319 = vpack.c.bf16 %v282, %v281
  %v320 = vpack.c.bf16 %v284, %v283
  %v321 = vpack.c.bf16 %v286, %v285
  %v322 = vpack.c.bf16 %v288, %v287
  %v323 = vpack.c.bf16 %v290, %v289
  %v324 = vpack.c.bf16 %v292, %v291
  %v325 = vld [vmem:[%s3] sm:$0x3]
  %vm326 = vcmask 31744
  %v328 = vsel %vm326, %v293, 0
  %v331 = vsel %vm326, %v294, 0
  %v334 = vsel %vm326, %v295, 0
  %v337 = vsel %vm326, %v296, 0
  %v340 = vsel %vm326, %v297, 0
  %v343 = vsel %vm326, %v298, 0
  %v346 = vsel %vm326, %v299, 0
  %v349 = vsel %vm326, %v300, 0
  %v352 = vsel %vm326, %v301, 0
  %v355 = vsel %vm326, %v302, 0
  %v358 = vsel %vm326, %v303, 0
  %v361 = vsel %vm326, %v304, 0
  %v364 = vsel %vm326, %v305, 0
  %v367 = vsel %vm326, %v306, 0
  %v370 = vsel %vm326, %v307, 0
  %v373 = vsel %vm326, %v308, 0
  %v376 = vsel %vm326, %v309, 0
  %v379 = vsel %vm326, %v310, 0
  %v382 = vsel %vm326, %v311, 0
  %v385 = vsel %vm326, %v312, 0
  %v388 = vsel %vm326, %v313, 0
  %v391 = vsel %vm326, %v314, 0
  %v394 = vsel %vm326, %v315, 0
  %v397 = vsel %vm326, %v316, 0
  %v400 = vsel %vm326, %v317, 0
  %v403 = vsel %vm326, %v318, 0
  %v406 = vsel %vm326, %v319, 0
  %v409 = vsel %vm326, %v320, 0
  %v412 = vsel %vm326, %v321, 0
  %v415 = vsel %vm326, %v322, 0
  %v418 = vsel %vm326, %v323, 0
  %v421 = vsel %vm326, %v324, 0
  %vm423 = vcmask 1041408
  %v425 = vsel %vm423, %v325, 0
  %427 = vmatpush.bf16.msra.mxu0 0
  %428 = vmatpush.bf16.msra.mxu0 0
  %429 = vmatpush.bf16.msra.mxu0 0
  %430 = vmatpush.bf16.msra.mxu0 0
  %431 = vmatpush.bf16.msra.mxu0 0
  %432 = vmatpush.bf16.msra.mxu0 0
  %433 = vmatpush.bf16.msra.mxu0 0
  %434 = vmatpush.bf16.msra.mxu0 %v425
  %435 = vmatmul.bf16.gmra.mxu0 %v328
  %v436 = vpop.f32.mrf.mxu0
  %v437 = vadd.f32 0.0, %v436
  %v438 = vpop.f32.mrf.mxu0
  %v439 = vadd.f32 0.0, %v438
  %440 = vmatmul.bf16.gmra.mxu0 %v331
  %v441 = vpop.f32.mrf.mxu0
  %v442 = vadd.f32 0.0, %v441
  %v443 = vpop.f32.mrf.mxu0
  %v444 = vadd.f32 0.0, %v443
  %445 = vmatmul.bf16.gmra.mxu0 %v334
  %v446 = vpop.f32.mrf.mxu0
  %v447 = vadd.f32 0.0, %v446
  %v448 = vpop.f32.mrf.mxu0
  %v449 = vadd.f32 0.0, %v448
  %450 = vmatmul.bf16.gmra.mxu0 %v337
  %v451 = vpop.f32.mrf.mxu0
  %v452 = vadd.f32 0.0, %v451
  %v453 = vpop.f32.mrf.mxu0
  %v454 = vadd.f32 0.0, %v453
  %455 = vmatmul.bf16.gmra.mxu0 %v340
  %v456 = vpop.f32.mrf.mxu0
  %v457 = vadd.f32 0.0, %v456
  %v458 = vpop.f32.mrf.mxu0
  %v459 = vadd.f32 0.0, %v458
  %460 = vmatmul.bf16.gmra.mxu0 %v343
  %v461 = vpop.f32.mrf.mxu0
  %v462 = vadd.f32 0.0, %v461
  %v463 = vpop.f32.mrf.mxu0
  %v464 = vadd.f32 0.0, %v463
  %465 = vmatmul.bf16.gmra.mxu0 %v346
  %v466 = vpop.f32.mrf.mxu0
  %v467 = vadd.f32 0.0, %v466
  %v468 = vpop.f32.mrf.mxu0
  %v469 = vadd.f32 0.0, %v468
  %470 = vmatmul.bf16.gmra.mxu0 %v349
  %v471 = vpop.f32.mrf.mxu0
  %v472 = vadd.f32 0.0, %v471
  %v473 = vpop.f32.mrf.mxu0
  %v474 = vadd.f32 0.0, %v473
  %475 = vmatmul.bf16.gmra.mxu0 %v352
  %v476 = vpop.f32.mrf.mxu0
  %v477 = vadd.f32 0.0, %v476
  %v478 = vpop.f32.mrf.mxu0
  %v479 = vadd.f32 0.0, %v478
  %480 = vmatmul.bf16.gmra.mxu0 %v355
  %v481 = vpop.f32.mrf.mxu0
  %v482 = vadd.f32 0.0, %v481
  %v483 = vpop.f32.mrf.mxu0
  %v484 = vadd.f32 0.0, %v483
  %485 = vmatmul.bf16.gmra.mxu0 %v358
  %v486 = vpop.f32.mrf.mxu0
  %v487 = vadd.f32 0.0, %v486
  %v488 = vpop.f32.mrf.mxu0
  %v489 = vadd.f32 0.0, %v488
  %490 = vmatmul.bf16.gmra.mxu0 %v361
  %v491 = vpop.f32.mrf.mxu0
  %v492 = vadd.f32 0.0, %v491
  %v493 = vpop.f32.mrf.mxu0
  %v494 = vadd.f32 0.0, %v493
  %495 = vmatmul.bf16.gmra.mxu0 %v364
  %v496 = vpop.f32.mrf.mxu0
  %v497 = vadd.f32 0.0, %v496
  %v498 = vpop.f32.mrf.mxu0
  %v499 = vadd.f32 0.0, %v498
  %500 = vmatmul.bf16.gmra.mxu0 %v367
  %v501 = vpop.f32.mrf.mxu0
  %v502 = vadd.f32 0.0, %v501
  %v503 = vpop.f32.mrf.mxu0
  %v504 = vadd.f32 0.0, %v503
  %505 = vmatmul.bf16.gmra.mxu0 %v370
  %v506 = vpop.f32.mrf.mxu0
  %v507 = vadd.f32 0.0, %v506
  %v508 = vpop.f32.mrf.mxu0
  %v509 = vadd.f32 0.0, %v508
  %510 = vmatmul.bf16.gmra.mxu0 %v373
  %v511 = vpop.f32.mrf.mxu0
  %v512 = vadd.f32 0.0, %v511
  %v513 = vpop.f32.mrf.mxu0
  %v514 = vadd.f32 0.0, %v513
  %515 = vmatmul.bf16.gmra.mxu0 %v376
  %v516 = vpop.f32.mrf.mxu0
  %v517 = vadd.f32 0.0, %v516
  %v518 = vpop.f32.mrf.mxu0
  %v519 = vadd.f32 0.0, %v518
  %520 = vmatmul.bf16.gmra.mxu0 %v379
  %v521 = vpop.f32.mrf.mxu0
  %v522 = vadd.f32 0.0, %v521
  %v523 = vpop.f32.mrf.mxu0
  %v524 = vadd.f32 0.0, %v523
  %525 = vmatmul.bf16.gmra.mxu0 %v382
  %v526 = vpop.f32.mrf.mxu0
  %v527 = vadd.f32 0.0, %v526
  %v528 = vpop.f32.mrf.mxu0
  %v529 = vadd.f32 0.0, %v528
  %530 = vmatmul.bf16.gmra.mxu0 %v385
  %v531 = vpop.f32.mrf.mxu0
  %v532 = vadd.f32 0.0, %v531
  %v533 = vpop.f32.mrf.mxu0
  %v534 = vadd.f32 0.0, %v533
  %535 = vmatmul.bf16.gmra.mxu0 %v388
  %v536 = vpop.f32.mrf.mxu0
  %v537 = vadd.f32 0.0, %v536
  %v538 = vpop.f32.mrf.mxu0
  %v539 = vadd.f32 0.0, %v538
  %540 = vmatmul.bf16.gmra.mxu0 %v391
  %v541 = vpop.f32.mrf.mxu0
  %v542 = vadd.f32 0.0, %v541
  %v543 = vpop.f32.mrf.mxu0
  %v544 = vadd.f32 0.0, %v543
  %545 = vmatmul.bf16.gmra.mxu0 %v394
  %v546 = vpop.f32.mrf.mxu0
  %v547 = vadd.f32 0.0, %v546
  %v548 = vpop.f32.mrf.mxu0
  %v549 = vadd.f32 0.0, %v548
  %550 = vmatmul.bf16.gmra.mxu0 %v397
  %v551 = vpop.f32.mrf.mxu0
  %v552 = vadd.f32 0.0, %v551
  %v553 = vpop.f32.mrf.mxu0
  %v554 = vadd.f32 0.0, %v553
  %555 = vmatmul.bf16.gmra.mxu0 %v400
  %v556 = vpop.f32.mrf.mxu0
  %v557 = vadd.f32 0.0, %v556
  %v558 = vpop.f32.mrf.mxu0
  %v559 = vadd.f32 0.0, %v558
  %560 = vmatmul.bf16.gmra.mxu0 %v403
  %v561 = vpop.f32.mrf.mxu0
  %v562 = vadd.f32 0.0, %v561
  %v563 = vpop.f32.mrf.mxu0
  %v564 = vadd.f32 0.0, %v563
  %565 = vmatmul.bf16.gmra.mxu0 %v406
  %v566 = vpop.f32.mrf.mxu0
  %v567 = vadd.f32 0.0, %v566
  %v568 = vpop.f32.mrf.mxu0
  %v569 = vadd.f32 0.0, %v568
  %570 = vmatmul.bf16.gmra.mxu0 %v409
  %v571 = vpop.f32.mrf.mxu0
  %v572 = vadd.f32 0.0, %v571
  %v573 = vpop.f32.mrf.mxu0
  %v574 = vadd.f32 0.0, %v573
  %575 = vmatmul.bf16.gmra.mxu0 %v412
  %v576 = vpop.f32.mrf.mxu0
  %v577 = vadd.f32 0.0, %v576
  %v578 = vpop.f32.mrf.mxu0
  %v579 = vadd.f32 0.0, %v578
  %580 = vmatmul.bf16.gmra.mxu0 %v415
  %v581 = vpop.f32.mrf.mxu0
  %v582 = vadd.f32 0.0, %v581
  %v583 = vpop.f32.mrf.mxu0
  %v584 = vadd.f32 0.0, %v583
  %585 = vmatmul.bf16.gmra.mxu0 %v418
  %v586 = vpop.f32.mrf.mxu0
  %v587 = vadd.f32 0.0, %v586
  %v588 = vpop.f32.mrf.mxu0
  %v589 = vadd.f32 0.0, %v588
  %590 = vmatmul.bf16.gmra.mxu0 %v421
  %v591 = vpop.f32.mrf.mxu0
  %v592 = vadd.f32 0.0, %v591
  %v593 = vpop.f32.mrf.mxu0
  %v594 = vadd.f32 0.0, %v593
  %595 = vdwg.mxu0
  %vm596 = vcmask 64512
  %597 = vst.msk [vmem:[%s7] sm:$0xff] %vm596, %v437
  %598 = vst.msk [vmem:[%s7 + $0x8] sm:$0xff] %vm596, %v439
  %599 = vst.msk [vmem:[%s7 + $0x10] sm:$0xff] %vm596, %v442
  %600 = vst.msk [vmem:[%s7 + $0x18] sm:$0xff] %vm596, %v444
  %601 = vst.msk [vmem:[%s7 + $0x20] sm:$0xff] %vm596, %v447
  %602 = vst.msk [vmem:[%s7 + $0x28] sm:$0xff] %vm596, %v449
  %603 = vst.msk [vmem:[%s7 + $0x30] sm:$0xff] %vm596, %v452
  %604 = vst.msk [vmem:[%s7 + $0x38] sm:$0xff] %vm596, %v454
  %605 = vst.msk [vmem:[%s7 + $0x40] sm:$0xff] %vm596, %v457
  %606 = vst.msk [vmem:[%s7 + $0x48] sm:$0xff] %vm596, %v459
  %607 = vst.msk [vmem:[%s7 + $0x50] sm:$0xff] %vm596, %v462
  %608 = vst.msk [vmem:[%s7 + $0x58] sm:$0xff] %vm596, %v464
  %609 = vst.msk [vmem:[%s7 + $0x60] sm:$0xff] %vm596, %v467
  %610 = vst.msk [vmem:[%s7 + $0x68] sm:$0xff] %vm596, %v469
  %611 = vst.msk [vmem:[%s7 + $0x70] sm:$0xff] %vm596, %v472
  %612 = vst.msk [vmem:[%s7 + $0x78] sm:$0xff] %vm596, %v474
  %613 = vst.msk [vmem:[%s7 + $0x80] sm:$0xff] %vm596, %v477
  %614 = vst.msk [vmem:[%s7 + $0x88] sm:$0xff] %vm596, %v479
  %615 = vst.msk [vmem:[%s7 + $0x90] sm:$0xff] %vm596, %v482
  %616 = vst.msk [vmem:[%s7 + $0x98] sm:$0xff] %vm596, %v484
  %617 = vst.msk [vmem:[%s7 + $0xa0] sm:$0xff] %vm596, %v487
  %618 = vst.msk [vmem:[%s7 + $0xa8] sm:$0xff] %vm596, %v489
  %619 = vst.msk [vmem:[%s7 + $0xb0] sm:$0xff] %vm596, %v492
  %620 = vst.msk [vmem:[%s7 + $0xb8] sm:$0xff] %vm596, %v494
  %621 = vst.msk [vmem:[%s7 + $0xc0] sm:$0xff] %vm596, %v497
  %622 = vst.msk [vmem:[%s7 + $0xc8] sm:$0xff] %vm596, %v499
  %623 = vst.msk [vmem:[%s7 + $0xd0] sm:$0xff] %vm596, %v502
  %624 = vst.msk [vmem:[%s7 + $0xd8] sm:$0xff] %vm596, %v504
  %625 = vst.msk [vmem:[%s7 + $0xe0] sm:$0xff] %vm596, %v507
  %626 = vst.msk [vmem:[%s7 + $0xe8] sm:$0xff] %vm596, %v509
  %627 = vst.msk [vmem:[%s7 + $0xf0] sm:$0xff] %vm596, %v512
  %628 = vst.msk [vmem:[%s7 + $0xf8] sm:$0xff] %vm596, %v514
  %629 = vst.msk [vmem:[%s7 + $0x100] sm:$0xff] %vm596, %v517
  %630 = vst.msk [vmem:[%s7 + $0x108] sm:$0xff] %vm596, %v519
  %631 = vst.msk [vmem:[%s7 + $0x110] sm:$0xff] %vm596, %v522
  %632 = vst.msk [vmem:[%s7 + $0x118] sm:$0xff] %vm596, %v524
  %633 = vst.msk [vmem:[%s7 + $0x120] sm:$0xff] %vm596, %v527
  %634 = vst.msk [vmem:[%s7 + $0x128] sm:$0xff] %vm596, %v529
  %635 = vst.msk [vmem:[%s7 + $0x130] sm:$0xff] %vm596, %v532
  %636 = vst.msk [vmem:[%s7 + $0x138] sm:$0xff] %vm596, %v534
  %637 = vst.msk [vmem:[%s7 + $0x140] sm:$0xff] %vm596, %v537
  %638 = vst.msk [vmem:[%s7 + $0x148] sm:$0xff] %vm596, %v539
  %639 = vst.msk [vmem:[%s7 + $0x150] sm:$0xff] %vm596, %v542
  %640 = vst.msk [vmem:[%s7 + $0x158] sm:$0xff] %vm596, %v544
  %641 = vst.msk [vmem:[%s7 + $0x160] sm:$0xff] %vm596, %v547
  %642 = vst.msk [vmem:[%s7 + $0x168] sm:$0xff] %vm596, %v549
  %643 = vst.msk [vmem:[%s7 + $0x170] sm:$0xff] %vm596, %v552
  %644 = vst.msk [vmem:[%s7 + $0x178] sm:$0xff] %vm596, %v554
  %645 = vst.msk [vmem:[%s7 + $0x180] sm:$0xff] %vm596, %v557
  %646 = vst.msk [vmem:[%s7 + $0x188] sm:$0xff] %vm596, %v559
  %647 = vst.msk [vmem:[%s7 + $0x190] sm:$0xff] %vm596, %v562
  %648 = vst.msk [vmem:[%s7 + $0x198] sm:$0xff] %vm596, %v564
  %649 = vst.msk [vmem:[%s7 + $0x1a0] sm:$0xff] %vm596, %v567
  %650 = vst.msk [vmem:[%s7 + $0x1a8] sm:$0xff] %vm596, %v569
  %651 = vst.msk [vmem:[%s7 + $0x1b0] sm:$0xff] %vm596, %v572
  %652 = vst.msk [vmem:[%s7 + $0x1b8] sm:$0xff] %vm596, %v574
  %653 = vst.msk [vmem:[%s7 + $0x1c0] sm:$0xff] %vm596, %v577
  %654 = vst.msk [vmem:[%s7 + $0x1c8] sm:$0xff] %vm596, %v579
  %655 = vst.msk [vmem:[%s7 + $0x1d0] sm:$0xff] %vm596, %v582
  %656 = vst.msk [vmem:[%s7 + $0x1d8] sm:$0xff] %vm596, %v584
  %657 = vst.msk [vmem:[%s7 + $0x1e0] sm:$0xff] %vm596, %v587
  %658 = vst.msk [vmem:[%s7 + $0x1e8] sm:$0xff] %vm596, %v589
  %659 = vst.msk [vmem:[%s7 + $0x1f0] sm:$0xff] %vm596, %v592
  %660 = vst.msk [vmem:[%s7 + $0x1f8] sm:$0xff] %vm596, %v594
  %v661 = vld [vmem:[%s4] sm:$0x1]
  %v663 = vperm.slane %v661, 0
  %v665 = vmul.f32 %v29, %v663
  %v666 = vmul.f32 %v30, %v663
  %v667 = vmul.f32 %v31, %v663
  %v668 = vmul.f32 %v32, %v663
  %v669 = vmul.f32 %v33, %v663
  %v670 = vmul.f32 %v34, %v663
  %v671 = vmul.f32 %v35, %v663
  %v672 = vmul.f32 %v36, %v663
  %v673 = vmul.f32 %v37, %v663
  %v674 = vmul.f32 %v38, %v663
  %v675 = vmul.f32 %v39, %v663
  %v676 = vmul.f32 %v40, %v663
  %v677 = vmul.f32 %v41, %v663
  %v678 = vmul.f32 %v42, %v663
  %v679 = vmul.f32 %v43, %v663
  %v680 = vmul.f32 %v44, %v663
  %v681 = vmul.f32 %v45, %v663
  %v682 = vmul.f32 %v46, %v663
  %v683 = vmul.f32 %v47, %v663
  %v684 = vmul.f32 %v48, %v663
  %v685 = vmul.f32 %v49, %v663
  %v686 = vmul.f32 %v50, %v663
  %v687 = vmul.f32 %v51, %v663
  %v688 = vmul.f32 %v52, %v663
  %v689 = vmul.f32 %v53, %v663
  %v690 = vmul.f32 %v54, %v663
  %v691 = vmul.f32 %v55, %v663
  %v692 = vmul.f32 %v56, %v663
  %v693 = vmul.f32 %v57, %v663
  %v694 = vmul.f32 %v58, %v663
  %v695 = vmul.f32 %v59, %v663
  %v696 = vmul.f32 %v60, %v663
  %v697 = vmul.f32 %v61, %v663
  %v698 = vmul.f32 %v62, %v663
  %v699 = vmul.f32 %v63, %v663
  %v700 = vmul.f32 %v64, %v663
  %v701 = vmul.f32 %v65, %v663
  %v702 = vmul.f32 %v66, %v663
  %v703 = vmul.f32 %v67, %v663
  %v704 = vmul.f32 %v68, %v663
  %v705 = vmul.f32 %v69, %v663
  %v706 = vmul.f32 %v70, %v663
  %v707 = vmul.f32 %v71, %v663
  %v708 = vmul.f32 %v72, %v663
  %v709 = vmul.f32 %v73, %v663
  %v710 = vmul.f32 %v74, %v663
  %v711 = vmul.f32 %v75, %v663
  %v712 = vmul.f32 %v76, %v663
  %v713 = vmul.f32 %v77, %v663
  %v714 = vmul.f32 %v78, %v663
  %v715 = vmul.f32 %v79, %v663
  %v716 = vmul.f32 %v80, %v663
  %v717 = vmul.f32 %v81, %v663
  %v718 = vmul.f32 %v82, %v663
  %v719 = vmul.f32 %v83, %v663
  %v720 = vmul.f32 %v84, %v663
  %v721 = vmul.f32 %v85, %v663
  %v722 = vmul.f32 %v86, %v663
  %v723 = vmul.f32 %v87, %v663
  %v724 = vmul.f32 %v88, %v663
  %v725 = vmul.f32 %v89, %v663
  %v726 = vmul.f32 %v90, %v663
  %v727 = vmul.f32 %v91, %v663
  %v728 = vmul.f32 %v92, %v663
  %v729 = vld [vmem:[%s5] sm:$0x1]
  %v731 = vperm.slane %v729, 0
  %v733 = vadd.f32 %v665, %v731
  %v734 = vadd.f32 %v666, %v731
  %v735 = vadd.f32 %v667, %v731
  %v736 = vadd.f32 %v668, %v731
  %v737 = vadd.f32 %v669, %v731
  %v738 = vadd.f32 %v670, %v731
  %v739 = vadd.f32 %v671, %v731
  %v740 = vadd.f32 %v672, %v731
  %v741 = vadd.f32 %v673, %v731
  %v742 = vadd.f32 %v674, %v731
  %v743 = vadd.f32 %v675, %v731
  %v744 = vadd.f32 %v676, %v731
  %v745 = vadd.f32 %v677, %v731
  %v746 = vadd.f32 %v678, %v731
  %v747 = vadd.f32 %v679, %v731
  %v748 = vadd.f32 %v680, %v731
  %v749 = vadd.f32 %v681, %v731
  %v750 = vadd.f32 %v682, %v731
  %v751 = vadd.f32 %v683, %v731
  %v752 = vadd.f32 %v684, %v731
  %v753 = vadd.f32 %v685, %v731
  %v754 = vadd.f32 %v686, %v731
  %v755 = vadd.f32 %v687, %v731
  %v756 = vadd.f32 %v688, %v731
  %v757 = vadd.f32 %v689, %v731
  %v758 = vadd.f32 %v690, %v731
  %v759 = vadd.f32 %v691, %v731
  %v760 = vadd.f32 %v692, %v731
  %v761 = vadd.f32 %v693, %v731
  %v762 = vadd.f32 %v694, %v731
  %v763 = vadd.f32 %v695, %v731
  %v764 = vadd.f32 %v696, %v731
  %v765 = vadd.f32 %v697, %v731
  %v766 = vadd.f32 %v698, %v731
  %v767 = vadd.f32 %v699, %v731
  %v768 = vadd.f32 %v700, %v731
  %v769 = vadd.f32 %v701, %v731
  %v770 = vadd.f32 %v702, %v731
  %v771 = vadd.f32 %v703, %v731
  %v772 = vadd.f32 %v704, %v731
  %v773 = vadd.f32 %v705, %v731
  %v774 = vadd.f32 %v706, %v731
  %v775 = vadd.f32 %v707, %v731
  %v776 = vadd.f32 %v708, %v731
  %v777 = vadd.f32 %v709, %v731
  %v778 = vadd.f32 %v710, %v731
  %v779 = vadd.f32 %v711, %v731
  %v780 = vadd.f32 %v712, %v731
  %v781 = vadd.f32 %v713, %v731
  %v782 = vadd.f32 %v714, %v731
  %v783 = vadd.f32 %v715, %v731
  %v784 = vadd.f32 %v716, %v731
  %v785 = vadd.f32 %v717, %v731
  %v786 = vadd.f32 %v718, %v731
  %v787 = vadd.f32 %v719, %v731
  %v788 = vadd.f32 %v720, %v731
  %v789 = vadd.f32 %v721, %v731
  %v790 = vadd.f32 %v722, %v731
  %v791 = vadd.f32 %v723, %v731
  %v792 = vadd.f32 %v724, %v731
  %v793 = vadd.f32 %v725, %v731
  %v794 = vadd.f32 %v726, %v731
  %v795 = vadd.f32 %v727, %v731
  %v796 = vadd.f32 %v728, %v731
  %v797 = vmax.f32 %v733, 0.0
  %v798 = vmax.f32 %v734, 0.0
  %v799 = vmax.f32 %v735, 0.0
  %v800 = vmax.f32 %v736, 0.0
  %v801 = vmax.f32 %v737, 0.0
  %v802 = vmax.f32 %v738, 0.0
  %v803 = vmax.f32 %v739, 0.0
  %v804 = vmax.f32 %v740, 0.0
  %v805 = vmax.f32 %v741, 0.0
  %v806 = vmax.f32 %v742, 0.0
  %v807 = vmax.f32 %v743, 0.0
  %v808 = vmax.f32 %v744, 0.0
  %v809 = vmax.f32 %v745, 0.0
  %v810 = vmax.f32 %v746, 0.0
  %v811 = vmax.f32 %v747, 0.0
  %v812 = vmax.f32 %v748, 0.0
  %v813 = vmax.f32 %v749, 0.0
  %v814 = vmax.f32 %v750, 0.0
  %v815 = vmax.f32 %v751, 0.0
  %v816 = vmax.f32 %v752, 0.0
  %v817 = vmax.f32 %v753, 0.0
  %v818 = vmax.f32 %v754, 0.0
  %v819 = vmax.f32 %v755, 0.0
  %v820 = vmax.f32 %v756, 0.0
  %v821 = vmax.f32 %v757, 0.0
  %v822 = vmax.f32 %v758, 0.0
  %v823 = vmax.f32 %v759, 0.0
  %v824 = vmax.f32 %v760, 0.0
  %v825 = vmax.f32 %v761, 0.0
  %v826 = vmax.f32 %v762, 0.0
  %v827 = vmax.f32 %v763, 0.0
  %v828 = vmax.f32 %v764, 0.0
  %v829 = vmax.f32 %v765, 0.0
  %v830 = vmax.f32 %v766, 0.0
  %v831 = vmax.f32 %v767, 0.0
  %v832 = vmax.f32 %v768, 0.0
  %v833 = vmax.f32 %v769, 0.0
  %v834 = vmax.f32 %v770, 0.0
  %v835 = vmax.f32 %v771, 0.0
  %v836 = vmax.f32 %v772, 0.0
  %v837 = vmax.f32 %v773, 0.0
  %v838 = vmax.f32 %v774, 0.0
  %v839 = vmax.f32 %v775, 0.0
  %v840 = vmax.f32 %v776, 0.0
  %v841 = vmax.f32 %v777, 0.0
  %v842 = vmax.f32 %v778, 0.0
  %v843 = vmax.f32 %v779, 0.0
  %v844 = vmax.f32 %v780, 0.0
  %v845 = vmax.f32 %v781, 0.0
  %v846 = vmax.f32 %v782, 0.0
  %v847 = vmax.f32 %v783, 0.0
  %v848 = vmax.f32 %v784, 0.0
  %v849 = vmax.f32 %v785, 0.0
  %v850 = vmax.f32 %v786, 0.0
  %v851 = vmax.f32 %v787, 0.0
  %v852 = vmax.f32 %v788, 0.0
  %v853 = vmax.f32 %v789, 0.0
  %v854 = vmax.f32 %v790, 0.0
  %v855 = vmax.f32 %v791, 0.0
  %v856 = vmax.f32 %v792, 0.0
  %v857 = vmax.f32 %v793, 0.0
  %v858 = vmax.f32 %v794, 0.0
  %v859 = vmax.f32 %v795, 0.0
  %v860 = vmax.f32 %v796, 0.0
  %v861 = vpack.c.bf16 %v798, %v797
  %v862 = vpack.c.bf16 %v800, %v799
  %v863 = vpack.c.bf16 %v802, %v801
  %v864 = vpack.c.bf16 %v804, %v803
  %v865 = vpack.c.bf16 %v806, %v805
  %v866 = vpack.c.bf16 %v808, %v807
  %v867 = vpack.c.bf16 %v810, %v809
  %v868 = vpack.c.bf16 %v812, %v811
  %v869 = vpack.c.bf16 %v814, %v813
  %v870 = vpack.c.bf16 %v816, %v815
  %v871 = vpack.c.bf16 %v818, %v817
  %v872 = vpack.c.bf16 %v820, %v819
  %v873 = vpack.c.bf16 %v822, %v821
  %v874 = vpack.c.bf16 %v824, %v823
  %v875 = vpack.c.bf16 %v826, %v825
  %v876 = vpack.c.bf16 %v828, %v827
  %v877 = vpack.c.bf16 %v830, %v829
  %v878 = vpack.c.bf16 %v832, %v831
  %v879 = vpack.c.bf16 %v834, %v833
  %v880 = vpack.c.bf16 %v836, %v835
  %v881 = vpack.c.bf16 %v838, %v837
  %v882 = vpack.c.bf16 %v840, %v839
  %v883 = vpack.c.bf16 %v842, %v841
  %v884 = vpack.c.bf16 %v844, %v843
  %v885 = vpack.c.bf16 %v846, %v845
  %v886 = vpack.c.bf16 %v848, %v847
  %v887 = vpack.c.bf16 %v850, %v849
  %v888 = vpack.c.bf16 %v852, %v851
  %v889 = vpack.c.bf16 %v854, %v853
  %v890 = vpack.c.bf16 %v856, %v855
  %v891 = vpack.c.bf16 %v858, %v857
  %v892 = vpack.c.bf16 %v860, %v859
  %v893 = vld [vmem:[%s6] sm:$0x3]
  %v895 = vsel %vm326, %v861, 0
  %v898 = vsel %vm326, %v862, 0
  %v901 = vsel %vm326, %v863, 0
  %v904 = vsel %vm326, %v864, 0
  %v907 = vsel %vm326, %v865, 0
  %v910 = vsel %vm326, %v866, 0
  %v913 = vsel %vm326, %v867, 0
  %v916 = vsel %vm326, %v868, 0
  %v919 = vsel %vm326, %v869, 0
  %v922 = vsel %vm326, %v870, 0
  %v925 = vsel %vm326, %v871, 0
  %v928 = vsel %vm326, %v872, 0
  %v931 = vsel %vm326, %v873, 0
  %v934 = vsel %vm326, %v874, 0
  %v937 = vsel %vm326, %v875, 0
  %v940 = vsel %vm326, %v876, 0
  %v943 = vsel %vm326, %v877, 0
  %v946 = vsel %vm326, %v878, 0
  %v949 = vsel %vm326, %v879, 0
  %v952 = vsel %vm326, %v880, 0
  %v955 = vsel %vm326, %v881, 0
  %v958 = vsel %vm326, %v882, 0
  %v961 = vsel %vm326, %v883, 0
  %v964 = vsel %vm326, %v884, 0
  %v967 = vsel %vm326, %v885, 0
  %v970 = vsel %vm326, %v886, 0
  %v973 = vsel %vm326, %v887, 0
  %v976 = vsel %vm326, %v888, 0
  %v979 = vsel %vm326, %v889, 0
  %v982 = vsel %vm326, %v890, 0
  %v985 = vsel %vm326, %v891, 0
  %v988 = vsel %vm326, %v892, 0
  %v991 = vsel %vm423, %v893, 0
  %993 = vmatpush.bf16.msra.mxu0 0
  %994 = vmatpush.bf16.msra.mxu0 0
  %995 = vmatpush.bf16.msra.mxu0 0
  %996 = vmatpush.bf16.msra.mxu0 0
  %997 = vmatpush.bf16.msra.mxu0 0
  %998 = vmatpush.bf16.msra.mxu0 0
  %999 = vmatpush.bf16.msra.mxu0 0
  %1000 = vmatpush.bf16.msra.mxu0 %v991
  %1001 = vmatmul.bf16.gmra.mxu0 %v895
  %v1002 = vpop.f32.mrf.mxu0
  %v1003 = vadd.f32 0.0, %v1002
  %v1004 = vpop.f32.mrf.mxu0
  %v1005 = vadd.f32 0.0, %v1004
  %1006 = vmatmul.bf16.gmra.mxu0 %v898
  %v1007 = vpop.f32.mrf.mxu0
  %v1008 = vadd.f32 0.0, %v1007
  %v1009 = vpop.f32.mrf.mxu0
  %v1010 = vadd.f32 0.0, %v1009
  %1011 = vmatmul.bf16.gmra.mxu0 %v901
  %v1012 = vpop.f32.mrf.mxu0
  %v1013 = vadd.f32 0.0, %v1012
  %v1014 = vpop.f32.mrf.mxu0
  %v1015 = vadd.f32 0.0, %v1014
  %1016 = vmatmul.bf16.gmra.mxu0 %v904
  %v1017 = vpop.f32.mrf.mxu0
  %v1018 = vadd.f32 0.0, %v1017
  %v1019 = vpop.f32.mrf.mxu0
  %v1020 = vadd.f32 0.0, %v1019
  %1021 = vmatmul.bf16.gmra.mxu0 %v907
  %v1022 = vpop.f32.mrf.mxu0
  %v1023 = vadd.f32 0.0, %v1022
  %v1024 = vpop.f32.mrf.mxu0
  %v1025 = vadd.f32 0.0, %v1024
  %1026 = vmatmul.bf16.gmra.mxu0 %v910
  %v1027 = vpop.f32.mrf.mxu0
  %v1028 = vadd.f32 0.0, %v1027
  %v1029 = vpop.f32.mrf.mxu0
  %v1030 = vadd.f32 0.0, %v1029
  %1031 = vmatmul.bf16.gmra.mxu0 %v913
  %v1032 = vpop.f32.mrf.mxu0
  %v1033 = vadd.f32 0.0, %v1032
  %v1034 = vpop.f32.mrf.mxu0
  %v1035 = vadd.f32 0.0, %v1034
  %1036 = vmatmul.bf16.gmra.mxu0 %v916
  %v1037 = vpop.f32.mrf.mxu0
  %v1038 = vadd.f32 0.0, %v1037
  %v1039 = vpop.f32.mrf.mxu0
  %v1040 = vadd.f32 0.0, %v1039
  %1041 = vmatmul.bf16.gmra.mxu0 %v919
  %v1042 = vpop.f32.mrf.mxu0
  %v1043 = vadd.f32 0.0, %v1042
  %v1044 = vpop.f32.mrf.mxu0
  %v1045 = vadd.f32 0.0, %v1044
  %1046 = vmatmul.bf16.gmra.mxu0 %v922
  %v1047 = vpop.f32.mrf.mxu0
  %v1048 = vadd.f32 0.0, %v1047
  %v1049 = vpop.f32.mrf.mxu0
  %v1050 = vadd.f32 0.0, %v1049
  %1051 = vmatmul.bf16.gmra.mxu0 %v925
  %v1052 = vpop.f32.mrf.mxu0
  %v1053 = vadd.f32 0.0, %v1052
  %v1054 = vpop.f32.mrf.mxu0
  %v1055 = vadd.f32 0.0, %v1054
  %1056 = vmatmul.bf16.gmra.mxu0 %v928
  %v1057 = vpop.f32.mrf.mxu0
  %v1058 = vadd.f32 0.0, %v1057
  %v1059 = vpop.f32.mrf.mxu0
  %v1060 = vadd.f32 0.0, %v1059
  %1061 = vmatmul.bf16.gmra.mxu0 %v931
  %v1062 = vpop.f32.mrf.mxu0
  %v1063 = vadd.f32 0.0, %v1062
  %v1064 = vpop.f32.mrf.mxu0
  %v1065 = vadd.f32 0.0, %v1064
  %1066 = vmatmul.bf16.gmra.mxu0 %v934
  %v1067 = vpop.f32.mrf.mxu0
  %v1068 = vadd.f32 0.0, %v1067
  %v1069 = vpop.f32.mrf.mxu0
  %v1070 = vadd.f32 0.0, %v1069
  %1071 = vmatmul.bf16.gmra.mxu0 %v937
  %v1072 = vpop.f32.mrf.mxu0
  %v1073 = vadd.f32 0.0, %v1072
  %v1074 = vpop.f32.mrf.mxu0
  %v1075 = vadd.f32 0.0, %v1074
  %1076 = vmatmul.bf16.gmra.mxu0 %v940
  %v1077 = vpop.f32.mrf.mxu0
  %v1078 = vadd.f32 0.0, %v1077
  %v1079 = vpop.f32.mrf.mxu0
  %v1080 = vadd.f32 0.0, %v1079
  %1081 = vmatmul.bf16.gmra.mxu0 %v943
  %v1082 = vpop.f32.mrf.mxu0
  %v1083 = vadd.f32 0.0, %v1082
  %v1084 = vpop.f32.mrf.mxu0
  %v1085 = vadd.f32 0.0, %v1084
  %1086 = vmatmul.bf16.gmra.mxu0 %v946
  %v1087 = vpop.f32.mrf.mxu0
  %v1088 = vadd.f32 0.0, %v1087
  %v1089 = vpop.f32.mrf.mxu0
  %v1090 = vadd.f32 0.0, %v1089
  %1091 = vmatmul.bf16.gmra.mxu0 %v949
  %v1092 = vpop.f32.mrf.mxu0
  %v1093 = vadd.f32 0.0, %v1092
  %v1094 = vpop.f32.mrf.mxu0
  %v1095 = vadd.f32 0.0, %v1094
  %1096 = vmatmul.bf16.gmra.mxu0 %v952
  %v1097 = vpop.f32.mrf.mxu0
  %v1098 = vadd.f32 0.0, %v1097
  %v1099 = vpop.f32.mrf.mxu0
  %v1100 = vadd.f32 0.0, %v1099
  %1101 = vmatmul.bf16.gmra.mxu0 %v955
  %v1102 = vpop.f32.mrf.mxu0
  %v1103 = vadd.f32 0.0, %v1102
  %v1104 = vpop.f32.mrf.mxu0
  %v1105 = vadd.f32 0.0, %v1104
  %1106 = vmatmul.bf16.gmra.mxu0 %v958
  %v1107 = vpop.f32.mrf.mxu0
  %v1108 = vadd.f32 0.0, %v1107
  %v1109 = vpop.f32.mrf.mxu0
  %v1110 = vadd.f32 0.0, %v1109
  %1111 = vmatmul.bf16.gmra.mxu0 %v961
  %v1112 = vpop.f32.mrf.mxu0
  %v1113 = vadd.f32 0.0, %v1112
  %v1114 = vpop.f32.mrf.mxu0
  %v1115 = vadd.f32 0.0, %v1114
  %1116 = vmatmul.bf16.gmra.mxu0 %v964
  %v1117 = vpop.f32.mrf.mxu0
  %v1118 = vadd.f32 0.0, %v1117
  %v1119 = vpop.f32.mrf.mxu0
  %v1120 = vadd.f32 0.0, %v1119
  %1121 = vmatmul.bf16.gmra.mxu0 %v967
  %v1122 = vpop.f32.mrf.mxu0
  %v1123 = vadd.f32 0.0, %v1122
  %v1124 = vpop.f32.mrf.mxu0
  %v1125 = vadd.f32 0.0, %v1124
  %1126 = vmatmul.bf16.gmra.mxu0 %v970
  %v1127 = vpop.f32.mrf.mxu0
  %v1128 = vadd.f32 0.0, %v1127
  %v1129 = vpop.f32.mrf.mxu0
  %v1130 = vadd.f32 0.0, %v1129
  %1131 = vmatmul.bf16.gmra.mxu0 %v973
  %v1132 = vpop.f32.mrf.mxu0
  %v1133 = vadd.f32 0.0, %v1132
  %v1134 = vpop.f32.mrf.mxu0
  %v1135 = vadd.f32 0.0, %v1134
  %1136 = vmatmul.bf16.gmra.mxu0 %v976
  %v1137 = vpop.f32.mrf.mxu0
  %v1138 = vadd.f32 0.0, %v1137
  %v1139 = vpop.f32.mrf.mxu0
  %v1140 = vadd.f32 0.0, %v1139
  %1141 = vmatmul.bf16.gmra.mxu0 %v979
  %v1142 = vpop.f32.mrf.mxu0
  %v1143 = vadd.f32 0.0, %v1142
  %v1144 = vpop.f32.mrf.mxu0
  %v1145 = vadd.f32 0.0, %v1144
  %1146 = vmatmul.bf16.gmra.mxu0 %v982
  %v1147 = vpop.f32.mrf.mxu0
  %v1148 = vadd.f32 0.0, %v1147
  %v1149 = vpop.f32.mrf.mxu0
  %v1150 = vadd.f32 0.0, %v1149
  %1151 = vmatmul.bf16.gmra.mxu0 %v985
  %v1152 = vpop.f32.mrf.mxu0
  %v1153 = vadd.f32 0.0, %v1152
  %v1154 = vpop.f32.mrf.mxu0
  %v1155 = vadd.f32 0.0, %v1154
  %1156 = vmatmul.bf16.gmra.mxu0 %v988
  %v1157 = vpop.f32.mrf.mxu0
  %v1158 = vadd.f32 0.0, %v1157
  %v1159 = vpop.f32.mrf.mxu0
  %v1160 = vadd.f32 0.0, %v1159
  %1161 = vdwg.mxu0
  %vm1162 = vcmask 130048
  %1163 = vst.msk [vmem:[%s8] sm:$0xff] %vm1162, %v1003
  %1164 = vst.msk [vmem:[%s8 + $0x8] sm:$0xff] %vm1162, %v1005
  %1165 = vst.msk [vmem:[%s8 + $0x10] sm:$0xff] %vm1162, %v1008
  %1166 = vst.msk [vmem:[%s8 + $0x18] sm:$0xff] %vm1162, %v1010
  %1167 = vst.msk [vmem:[%s8 + $0x20] sm:$0xff] %vm1162, %v1013
  %1168 = vst.msk [vmem:[%s8 + $0x28] sm:$0xff] %vm1162, %v1015
  %1169 = vst.msk [vmem:[%s8 + $0x30] sm:$0xff] %vm1162, %v1018
  %1170 = vst.msk [vmem:[%s8 + $0x38] sm:$0xff] %vm1162, %v1020
  %1171 = vst.msk [vmem:[%s8 + $0x40] sm:$0xff] %vm1162, %v1023
  %1172 = vst.msk [vmem:[%s8 + $0x48] sm:$0xff] %vm1162, %v1025
  %1173 = vst.msk [vmem:[%s8 + $0x50] sm:$0xff] %vm1162, %v1028
  %1174 = vst.msk [vmem:[%s8 + $0x58] sm:$0xff] %vm1162, %v1030
  %1175 = vst.msk [vmem:[%s8 + $0x60] sm:$0xff] %vm1162, %v1033
  %1176 = vst.msk [vmem:[%s8 + $0x68] sm:$0xff] %vm1162, %v1035
  %1177 = vst.msk [vmem:[%s8 + $0x70] sm:$0xff] %vm1162, %v1038
  %1178 = vst.msk [vmem:[%s8 + $0x78] sm:$0xff] %vm1162, %v1040
  %1179 = vst.msk [vmem:[%s8 + $0x80] sm:$0xff] %vm1162, %v1043
  %1180 = vst.msk [vmem:[%s8 + $0x88] sm:$0xff] %vm1162, %v1045
  %1181 = vst.msk [vmem:[%s8 + $0x90] sm:$0xff] %vm1162, %v1048
  %1182 = vst.msk [vmem:[%s8 + $0x98] sm:$0xff] %vm1162, %v1050
  %1183 = vst.msk [vmem:[%s8 + $0xa0] sm:$0xff] %vm1162, %v1053
  %1184 = vst.msk [vmem:[%s8 + $0xa8] sm:$0xff] %vm1162, %v1055
  %1185 = vst.msk [vmem:[%s8 + $0xb0] sm:$0xff] %vm1162, %v1058
  %1186 = vst.msk [vmem:[%s8 + $0xb8] sm:$0xff] %vm1162, %v1060
  %1187 = vst.msk [vmem:[%s8 + $0xc0] sm:$0xff] %vm1162, %v1063
  %1188 = vst.msk [vmem:[%s8 + $0xc8] sm:$0xff] %vm1162, %v1065
  %1189 = vst.msk [vmem:[%s8 + $0xd0] sm:$0xff] %vm1162, %v1068
  %1190 = vst.msk [vmem:[%s8 + $0xd8] sm:$0xff] %vm1162, %v1070
  %1191 = vst.msk [vmem:[%s8 + $0xe0] sm:$0xff] %vm1162, %v1073
  %1192 = vst.msk [vmem:[%s8 + $0xe8] sm:$0xff] %vm1162, %v1075
  %1193 = vst.msk [vmem:[%s8 + $0xf0] sm:$0xff] %vm1162, %v1078
  %1194 = vst.msk [vmem:[%s8 + $0xf8] sm:$0xff] %vm1162, %v1080
  %1195 = vst.msk [vmem:[%s8 + $0x100] sm:$0xff] %vm1162, %v1083
  %1196 = vst.msk [vmem:[%s8 + $0x108] sm:$0xff] %vm1162, %v1085
  %1197 = vst.msk [vmem:[%s8 + $0x110] sm:$0xff] %vm1162, %v1088
  %1198 = vst.msk [vmem:[%s8 + $0x118] sm:$0xff] %vm1162, %v1090
  %1199 = vst.msk [vmem:[%s8 + $0x120] sm:$0xff] %vm1162, %v1093
  %1200 = vst.msk [vmem:[%s8 + $0x128] sm:$0xff] %vm1162, %v1095
  %1201 = vst.msk [vmem:[%s8 + $0x130] sm:$0xff] %vm1162, %v1098
  %1202 = vst.msk [vmem:[%s8 + $0x138] sm:$0xff] %vm1162, %v1100
  %1203 = vst.msk [vmem:[%s8 + $0x140] sm:$0xff] %vm1162, %v1103
  %1204 = vst.msk [vmem:[%s8 + $0x148] sm:$0xff] %vm1162, %v1105
  %1205 = vst.msk [vmem:[%s8 + $0x150] sm:$0xff] %vm1162, %v1108
  %1206 = vst.msk [vmem:[%s8 + $0x158] sm:$0xff] %vm1162, %v1110
  %1207 = vst.msk [vmem:[%s8 + $0x160] sm:$0xff] %vm1162, %v1113
  %1208 = vst.msk [vmem:[%s8 + $0x168] sm:$0xff] %vm1162, %v1115
  %1209 = vst.msk [vmem:[%s8 + $0x170] sm:$0xff] %vm1162, %v1118
  %1210 = vst.msk [vmem:[%s8 + $0x178] sm:$0xff] %vm1162, %v1120
  %1211 = vst.msk [vmem:[%s8 + $0x180] sm:$0xff] %vm1162, %v1123
  %1212 = vst.msk [vmem:[%s8 + $0x188] sm:$0xff] %vm1162, %v1125
  %1213 = vst.msk [vmem:[%s8 + $0x190] sm:$0xff] %vm1162, %v1128
  %1214 = vst.msk [vmem:[%s8 + $0x198] sm:$0xff] %vm1162, %v1130
  %1215 = vst.msk [vmem:[%s8 + $0x1a0] sm:$0xff] %vm1162, %v1133
  %1216 = vst.msk [vmem:[%s8 + $0x1a8] sm:$0xff] %vm1162, %v1135
  %1217 = vst.msk [vmem:[%s8 + $0x1b0] sm:$0xff] %vm1162, %v1138
  %1218 = vst.msk [vmem:[%s8 + $0x1b8] sm:$0xff] %vm1162, %v1140
  %1219 = vst.msk [vmem:[%s8 + $0x1c0] sm:$0xff] %vm1162, %v1143
  %1220 = vst.msk [vmem:[%s8 + $0x1c8] sm:$0xff] %vm1162, %v1145
  %1221 = vst.msk [vmem:[%s8 + $0x1d0] sm:$0xff] %vm1162, %v1148
  %1222 = vst.msk [vmem:[%s8 + $0x1d8] sm:$0xff] %vm1162, %v1150
  %1223 = vst.msk [vmem:[%s8 + $0x1e0] sm:$0xff] %vm1162, %v1153
  %1224 = vst.msk [vmem:[%s8 + $0x1e8] sm:$0xff] %vm1162, %v1155
  %1225 = vst.msk [vmem:[%s8 + $0x1f0] sm:$0xff] %vm1162, %v1158
  %1226 = vst.msk [vmem:[%s8 + $0x1f8] sm:$0xff] %vm1162, %v1160
  // Predicated region
  $region30: #{dappm_forward.10} parent=0 // pred_check
    _
  $region31: #{dappm_forward.10} parent=0 // pred_check_branch
    %1228 = sbr.rel (0) target = $region33
  $region32: #{dappm_forward.10} parent=0 // pred_region
    _
  $region33: #{dappm_forward.10} parent=0 // pred_fallthru
    _
  // Predicated region
  $region34: #{dappm_forward.10} parent=0 // pred_check
    _
  $region35: #{dappm_forward.10} parent=0 // pred_check_branch
    %1230 = sbr.rel (0) target = $region37
  $region36: #{dappm_forward.10} parent=0 // pred_region
    _
  $region37: #{dappm_forward.10} parent=0 // pred_fallthru
    _
  // Predicated region
  $region38: #{dappm_forward.10} parent=0 // pred_check
    _
  $region39: #{dappm_forward.10} parent=0 // pred_check_branch
    %1232 = sbr.rel (0) target = $region41
  $region40: #{dappm_forward.10} parent=0 // pred_region
    _
  $region41: #{dappm_forward.10} parent=0 // pred_fallthru
    _
  // Predicated region
  $region42: #{dappm_forward.10} parent=0 // pred_check
    _
  $region43: #{dappm_forward.10} parent=0 // pred_check_branch
    %1234 = sbr.rel (0) target = $region45
  $region44: #{dappm_forward.10} parent=0 // pred_region
    _
  $region45: #{dappm_forward.10} parent=0 // pred_fallthru
    _

// kernel: dappm_forward.13
$region0: #{dappm_forward.13}
  #allocation0 [shape = 'u32[]', space=smem, size = 0x4, offset = 0x4, fixed_abs, tag = 'smem constant byte address 0x4 - core index']
  #allocation1 [shape = 'u32[72,128]{1,0:T(1,128)}', space=vmem, size = 0x9000, scoped, tag = 'internal scratch']
  %s0 = inlined_call_operand.vmem [shape: f32[32,4], index: 0, kind: input, shape index: {}]
  %s1 = inlined_call_operand.vmem [shape: f32[1,4], index: 1, kind: input, shape index: {}]
  %s2 = inlined_call_operand.vmem [shape: f32[1,4], index: 2, kind: input, shape index: {}]
  %s3 = inlined_call_operand.vmem [shape: bf16[4,8], index: 3, kind: input, shape index: {}]
  %s4 = inlined_call_operand.vmem [shape: f32[32,8], index: 4, kind: output, shape index: {}]
  %s5 = sld [smem:[#allocation0]]
  $region26: #{dappm_forward.13} parent=0
    _
  %s7 = ssub.s32 1, %s5
  %s8 = scalar_select 0, %s7, %s5
  // Predicated region
  $region2: #{dappm_forward.13} parent=0 // pred_check
    _
  $region3: #{dappm_forward.13} parent=0 // pred_check_branch
    %10 = sbr.rel (0) target = $region5
  $region4: #{dappm_forward.13} parent=0 // pred_region
    _
  $region5: #{dappm_forward.13} parent=0 // pred_fallthru
    _
  // Predicated region
  $region6: #{dappm_forward.13} parent=0 // pred_check
    _
  $region7: #{dappm_forward.13} parent=0 // pred_check_branch
    %12 = sbr.rel (0) target = $region9
  $region8: #{dappm_forward.13} parent=0 // pred_region
    _
  $region9: #{dappm_forward.13} parent=0 // pred_fallthru
    _
  // Predicated region
  $region10: #{dappm_forward.13} parent=0 // pred_check
    _
  $region11: #{dappm_forward.13} parent=0 // pred_check_branch
    %14 = sbr.rel (0) target = $region13
  $region12: #{dappm_forward.13} parent=0 // pred_region
    _
  $region13: #{dappm_forward.13} parent=0 // pred_fallthru
    _
  // Predicated region
  $region14: #{dappm_forward.13} parent=0 // pred_check
    _
  $region15: #{dappm_forward.13} parent=0 // pred_check_branch
    %16 = sbr.rel (0) target = $region17
  $region16: #{dappm_forward.13} parent=0 // pred_region
    _
  $region17: #{dappm_forward.13} parent=0 // pred_fallthru
    _
  %v18 = vld [vmem:[%s0] sm:$0xff]
  %v19 = vld [vmem:[%s0 + $0x8] sm:$0xff]
  %v20 = vld [vmem:[%s0 + $0x10] sm:$0xff]
  %v21 = vld [vmem:[%s0 + $0x18] sm:$0xff]
  %v22 = vld [vmem:[%s1] sm:$0x1]
  %v24 = vperm.slane %v22, 0
  %v26 = vmul.f32 %v18, %v24
  %v27 = vmul.f32 %v19, %v24
  %v28 = vmul.f32 %v20, %v24
  %v29 = vmul.f32 %v21, %v24
  %v30 = vld [vmem:[%s2] sm:$0x1]
  %v32 = vperm.slane %v30, 0
  %v34 = vadd.f32 %v26, %v32
  %v35 = vadd.f32 %v27, %v32
  %v36 = vadd.f32 %v28, %v32
  %v37 = vadd.f32 %v29, %v32
  %v38 = vmax.f32 %v34, 0.0
  %v39 = vmax.f32 %v35, 0.0
  %v40 = vmax.f32 %v36, 0.0
  %v41 = vmax.f32 %v37, 0.0
  %v42 = vpack.c.bf16 %v39, %v38
  %v43 = vpack.c.bf16 %v41, %v40
  %v44 = vld [vmem:[%s3] sm:$0x3]
  %vm45 = vcmask 31744
  %v47 = vsel %vm45, %v42, 0
  %v50 = vsel %vm45, %v43, 0
  %vm52 = vcmask 1041408
  %v54 = vsel %vm52, %v44, 0
  %56 = vmatpush.bf16.msra.mxu0 0
  %57 = vmatpush.bf16.msra.mxu0 0
  %58 = vmatpush.bf16.msra.mxu0 0
  %59 = vmatpush.bf16.msra.mxu0 0
  %60 = vmatpush.bf16.msra.mxu0 0
  %61 = vmatpush.bf16.msra.mxu0 0
  %62 = vmatpush.bf16.msra.mxu0 0
  %63 = vmatpush.bf16.msra.mxu0 %v54
  %64 = vmatmul.bf16.gmra.mxu0 %v47
  %v65 = vpop.f32.mrf.mxu0
  %v66 = vadd.f32 0.0, %v65
  %v67 = vpop.f32.mrf.mxu0
  %v68 = vadd.f32 0.0, %v67
  %69 = vmatmul.bf16.gmra.mxu0 %v50
  %v70 = vpop.f32.mrf.mxu0
  %v71 = vadd.f32 0.0, %v70
  %v72 = vpop.f32.mrf.mxu0
  %v73 = vadd.f32 0.0, %v72
  %74 = vdwg.mxu0
  %vm75 = vcmask 64512
  %76 = vst.msk [vmem:[%s4] sm:$0xff] %vm75, %v66
  %77 = vst.msk [vmem:[%s4 + $0x8] sm:$0xff] %vm75, %v68
  %78 = vst.msk [vmem:[%s4 + $0x10] sm:$0xff] %vm75, %v71
  %79 = vst.msk [vmem:[%s4 + $0x18] sm:$0xff] %vm75, %v73
  // Predicated region
  $region18: #{dappm_forward.13} parent=0 // pred_check
    _
  $region19: #{dappm_forward.13} parent=0 // pred_check_branch
    %81 = sbr.rel (0) target = $region21
  $region20: #{dappm_forward.13} parent=0 // pred_region
    _
  $region21: #{dappm_forward.13} parent=0 // pred_fallthru
    _
  // Predicated region
  $region22: #{dappm_forward.13} parent=0 // pred_check
    _
  $region23: #{dappm_forward.13} parent=0 // pred_check_branch
    %83 = sbr.rel (0) target = $region25
  $region24: #{dappm_forward.13} parent=0 // pred_region
    _
  $region25: #{dappm_forward.13} parent=0 // pred_fallthru
    _

// kernel: dappm_forward.15
$region0: #{dappm_forward.15}
  #allocation0 [shape = 'u32[]', space=smem, size = 0x4, offset = 0x4, fixed_abs, tag = 'smem constant byte address 0x4 - core index']
  #allocation1 [shape = 'u32[72,128]{1,0:T(1,128)}', space=vmem, size = 0x9000, scoped, tag = 'internal scratch']
  %s0 = inlined_call_operand.vmem [shape: f32[8,4], index: 0, kind: input, shape index: {}]
  %s1 = inlined_call_operand.vmem [shape: f32[1,4], index: 1, kind: input, shape index: {}]
  %s2 = inlined_call_operand.vmem [shape: f32[1,4], index: 2, kind: input, shape index: {}]
  %s3 = inlined_call_operand.vmem [shape: bf16[4,8], index: 3, kind: input, shape index: {}]
  %s4 = inlined_call_operand.vmem [shape: f32[8,8], index: 4, kind: output, shape index: {}]
  %s5 = sld [smem:[#allocation0]]
  $region26: #{dappm_forward.15} parent=0
    _
  %s7 = ssub.s32 1, %s5
  %s8 = scalar_select 0, %s7, %s5
  // Predicated region
  $region2: #{dappm_forward.15} parent=0 // pred_check
    _
  $region3: #{dappm_forward.15} parent=0 // pred_check_branch
    %10 = sbr.rel (0) target = $region5
  $region4: #{dappm_forward.15} parent=0 // pred_region
    _
  $region5: #{dappm_forward.15} parent=0 // pred_fallthru
    _
  // Predicated region
  $region6: #{dappm_forward.15} parent=0 // pred_check
    _
  $region7: #{dappm_forward.15} parent=0 // pred_check_branch
    %12 = sbr.rel (0) target = $region9
  $region8: #{dappm_forward.15} parent=0 // pred_region
    _
  $region9: #{dappm_forward.15} parent=0 // pred_fallthru
    _
  // Predicated region
  $region10: #{dappm_forward.15} parent=0 // pred_check
    _
  $region11: #{dappm_forward.15} parent=0 // pred_check_branch
    %14 = sbr.rel (0) target = $region13
  $region12: #{dappm_forward.15} parent=0 // pred_region
    _
  $region13: #{dappm_forward.15} parent=0 // pred_fallthru
    _
  // Predicated region
  $region14: #{dappm_forward.15} parent=0 // pred_check
    _
  $region15: #{dappm_forward.15} parent=0 // pred_check_branch
    %16 = sbr.rel (0) target = $region17
  $region16: #{dappm_forward.15} parent=0 // pred_region
    _
  $region17: #{dappm_forward.15} parent=0 // pred_fallthru
    _
  %v18 = vld [vmem:[%s0] sm:$0xff]
  %v19 = vld [vmem:[%s1] sm:$0x1]
  %v21 = vperm.slane %v19, 0
  %v23 = vmul.f32 %v18, %v21
  %v24 = vld [vmem:[%s2] sm:$0x1]
  %v26 = vperm.slane %v24, 0
  %v28 = vadd.f32 %v23, %v26
  %v29 = vmax.f32 %v28, 0.0
  %v30 = vpack.c.bf16 %v29, %v29
  %v31 = vld [vmem:[%s3] sm:$0x3]
  %vm32 = vcmask 31744
  %v34 = vsel %vm32, %v30, 0
  %vm36 = vcmask 1041408
  %v38 = vsel %vm36, %v31, 0
  %40 = vmatpush.bf16.msra.mxu0 0
  %41 = vmatpush.bf16.msra.mxu0 0
  %42 = vmatpush.bf16.msra.mxu0 0
  %43 = vmatpush.bf16.msra.mxu0 0
  %44 = vmatpush.bf16.msra.mxu0 0
  %45 = vmatpush.bf16.msra.mxu0 0
  %46 = vmatpush.bf16.msra.mxu0 0
  %47 = vmatpush.bf16.msra.mxu0 %v38
  %48 = vmatmul.bf16.gmra.mxu0 %v34
  %v49 = vpop.f32.mrf.mxu0
  %v50 = vadd.f32 0.0, %v49
  %v51 = vpop.f32.mrf.mxu0
  %52 = vdwg.mxu0
  %vm53 = vcmask 64512
  %54 = vst.msk [vmem:[%s4] sm:$0xff] %vm53, %v50
  // Predicated region
  $region18: #{dappm_forward.15} parent=0 // pred_check
    _
  $region19: #{dappm_forward.15} parent=0 // pred_check_branch
    %56 = sbr.rel (0) target = $region21
  $region20: #{dappm_forward.15} parent=0 // pred_region
    _
  $region21: #{dappm_forward.15} parent=0 // pred_fallthru
    _
  // Predicated region
  $region22: #{dappm_forward.15} parent=0 // pred_check
    _
  $region23: #{dappm_forward.15} parent=0 // pred_check_branch
    %58 = sbr.rel (0) target = $region25
  $region24: #{dappm_forward.15} parent=0 // pred_region
    _
  $region25: #{dappm_forward.15} parent=0 // pred_fallthru
    _

// kernel: dappm_forward.12
$region0: #{dappm_forward.12}
  #allocation0 [shape = 'u32[]', space=smem, size = 0x4, offset = 0x4, fixed_abs, tag = 'smem constant byte address 0x4 - core index']
  #allocation1 [shape = 'u32[72,128]{1,0:T(1,128)}', space=vmem, size = 0x9000, scoped, tag = 'internal scratch']
  #allocation2 [shape = 'f32[304,8]{1,0:T(8,128)}', space=vmem, size = 0x26000, scoped, tag = 'scratch operand']
  %s0 = inlined_call_operand.vmem [shape: f32[512,8], index: 0, kind: input, shape index: {}]
  %s1 = inlined_call_operand.vmem [shape: f32[512,8], index: 1, kind: input, shape index: {}]
  %s2 = inlined_call_operand.vmem [shape: f32[256,1], index: 2, kind: input, shape index: {}]
  %s3 = inlined_call_operand.vmem [shape: f32[256,1], index: 3, kind: input, shape index: {}]
  %s4 = inlined_call_operand.vmem [shape: f32[1,8], index: 4, kind: input, shape index: {}]
  %s5 = inlined_call_operand.vmem [shape: f32[1,8], index: 5, kind: input, shape index: {}]
  %s6 = inlined_call_operand.vmem [shape: bf16[9,8,8], index: 6, kind: input, shape index: {}]
  %s7 = inlined_call_operand.vmem [shape: f32[512,8], index: 7, kind: output, shape index: {}]
  %s8 = sld [smem:[#allocation0]]
  $region61: #{dappm_forward.12} parent=0
    _
  %s10 = ssub.s32 1, %s8
  %s11 = scalar_select 0, %s10, %s8
  loop: start=0, step=1, limit=4
  $region2: #{dappm_forward.12} parent=0 // loop_pre_header
    _
  $region3: #{dappm_forward.12} parent=0 // loop_header
    %s13 = sphi 0, %s17
    %p14 = scmp.ge.s32.totalorder %s13, 4
    %s23 = sphi 0, %s25
    %s26 = sphi 0, %s23
    %s27 = sphi 0, %s26
    %s43 = sphi 0, %s27
    %s49 = sphi 0, %s51
    %s52 = sphi 0, %s49
    %s53 = sphi 0, %s52
    %s69 = sphi 0, %s53
    %s73 = sphi 0, %s73
    %s75 = sphi 0, %s73
    %s76 = sphi 0, %s75
    %s90 = sphi 0, %s76
    %s94 = sphi 0, %s94
    %s96 = sphi 0, %s94
    %s97 = sphi 0, %s96
    %s111 = sphi 0, %s97
    %s115 = sphi 0, %s115
    %s117 = sphi 0, %s115
    %s118 = sphi 0, %s117
    %s132 = sphi 0, %s118
    %s136 = sphi 0, %s136
    %s138 = sphi 0, %s136
    %s139 = sphi 0, %s138
    %s153 = sphi 0, %s139
    %s157 = sphi 0, %s157
    %s159 = sphi 0, %s157
    %s160 = sphi 0, %s159
    %s174 = sphi 0, %s160
    %s180 = sphi 0, %s182
    %s183 = sphi 0, %s180
    %s184 = sphi 0, %s183
    %s200 = sphi 0, %s184
  $region4: #{dappm_forward.12} parent=0 // loop_header_branch
    %16 = sbr.rel (%p14) target = $region8
  $region5: #{dappm_forward.12} parent=0 // loop_body
    %s18 = ssub.s32 %s13, 1
    %s19 = ssub.s32 %s13, 2
    %s20 = sadd.s32 %s13, 1
    %s21 = ssub.s32 %s13, %s20
    %p22 = scmp.eq.s32.totalorder %s21, 0
    %s24 = sadd.s32 %s23, 1
    %s25 = scalar_select %p22, %s23, %s24
    %p28 = pneg %p22
    %p29 = scmp.eq.s32.totalorder %s13, 1
    %p30 = por %p28, %p29
    %p31 = scmp.ne.s32.totalorder %s23, %s26
    %p32 = scmp.eq.s32.totalorder %s13, 0
    %p33 = por %p31, %p32
    %p34 = scmp.ne.s32.totalorder %s23, %s26
    %p35 = scmp.eq.s32.totalorder %s18, 1
    %p36 = por %p34, %p35
    %p37 = scmp.ne.s32.totalorder %s26, %s27
    %p38 = scmp.eq.s32.totalorder %s18, 0
    %p39 = por %p37, %p38
    %p40 = scmp.ne.s32.totalorder %s26, %s27
    %p41 = scmp.eq.s32.totalorder %s19, 1
    %p42 = por %p40, %p41
    %p44 = scmp.ne.s32.totalorder %s27, %s43
    %p45 = scmp.eq.s32.totalorder %s19, 0
    %p46 = por %p44, %p45
    %s47 = ssub.s32 %s13, %s20
    %p48 = scmp.eq.s32.totalorder %s47, 0
    %s50 = sadd.s32 %s49, 1
    %s51 = scalar_select %p48, %s49, %s50
    %p54 = pneg %p48
    %p55 = scmp.eq.s32.totalorder %s13, 1
    %p56 = por %p54, %p55
    %p57 = scmp.ne.s32.totalorder %s49, %s52
    %p58 = scmp.eq.s32.totalorder %s13, 0
    %p59 = por %p57, %p58
    %p60 = scmp.ne.s32.totalorder %s49, %s52
    %p61 = scmp.eq.s32.totalorder %s18, 1
    %p62 = por %p60, %p61
    %p63 = scmp.ne.s32.totalorder %s52, %s53
    %p64 = scmp.eq.s32.totalorder %s18, 0
    %p65 = por %p63, %p64
    %p66 = scmp.ne.s32.totalorder %s52, %s53
    %p67 = scmp.eq.s32.totalorder %s19, 1
    %p68 = por %p66, %p67
    %p70 = scmp.ne.s32.totalorder %s53, %s69
    %p71 = scmp.eq.s32.totalorder %s19, 0
    %p72 = por %p70, %p71
    %s74 = sadd.s32 %s73, 1
    %p77 = scmp.eq.s32.totalorder %s13, 1
    %p78 = scmp.ne.s32.totalorder %s73, %s75
    %p79 = scmp.eq.s32.totalorder %s13, 0
    %p80 = por %p78, %p79
    %p81 = scmp.ne.s32.totalorder %s73, %s75
    %p82 = scmp.eq.s32.totalorder %s18, 1
    %p83 = por %p81, %p82
    %p84 = scmp.ne.s32.totalorder %s75, %s76
    %p85 = scmp.eq.s32.totalorder %s18, 0
    %p86 = por %p84, %p85
    %p87 = scmp.ne.s32.totalorder %s75, %s76
    %p88 = scmp.eq.s32.totalorder %s19, 1
    %p89 = por %p87, %p88
    %p91 = scmp.ne.s32.totalorder %s76, %s90
    %p92 = scmp.eq.s32.totalorder %s19, 0
    %p93 = por %p91, %p92
    %s95 = sadd.s32 %s94, 1
    %p98 = scmp.eq.s32.totalorder %s13, 1
    %p99 = scmp.ne.s32.totalorder %s94, %s96
    %p100 = scmp.eq.s32.totalorder %s13, 0
    %p101 = por %p99, %p100
    %p102 = scmp.ne.s32.totalorder %s94, %s96
    %p103 = scmp.eq.s32.totalorder %s18, 1
    %p104 = por %p102, %p103
    %p105 = scmp.ne.s32.totalorder %s96, %s97
    %p106 = scmp.eq.s32.totalorder %s18, 0
    %p107 = por %p105, %p106
    %p108 = scmp.ne.s32.totalorder %s96, %s97
    %p109 = scmp.eq.s32.totalorder %s19, 1
    %p110 = por %p108, %p109
    %p112 = scmp.ne.s32.totalorder %s97, %s111
    %p113 = scmp.eq.s32.totalorder %s19, 0
    %p114 = por %p112, %p113
    %s116 = sadd.s32 %s115, 1
    %p119 = scmp.eq.s32.totalorder %s13, 1
    %p120 = scmp.ne.s32.totalorder %s115, %s117
    %p121 = scmp.eq.s32.totalorder %s13, 0
    %p122 = por %p120, %p121
    %p123 = scmp.ne.s32.totalorder %s115, %s117
    %p124 = scmp.eq.s32.totalorder %s18, 1
    %p125 = por %p123, %p124
    %p126 = scmp.ne.s32.totalorder %s117, %s118
    %p127 = scmp.eq.s32.totalorder %s18, 0
    %p128 = por %p126, %p127
    %p129 = scmp.ne.s32.totalorder %s117, %s118
    %p130 = scmp.eq.s32.totalorder %s19, 1
    %p131 = por %p129, %p130
    %p133 = scmp.ne.s32.totalorder %s118, %s132
    %p134 = scmp.eq.s32.totalorder %s19, 0
    %p135 = por %p133, %p134
    %s137 = sadd.s32 %s136, 1
    %p140 = scmp.eq.s32.totalorder %s13, 1
    %p141 = scmp.ne.s32.totalorder %s136, %s138
    %p142 = scmp.eq.s32.totalorder %s13, 0
    %p143 = por %p141, %p142
    %p144 = scmp.ne.s32.totalorder %s136, %s138
    %p145 = scmp.eq.s32.totalorder %s18, 1
    %p146 = por %p144, %p145
    %p147 = scmp.ne.s32.totalorder %s138, %s139
    %p148 = scmp.eq.s32.totalorder %s18, 0
    %p149 = por %p147, %p148
    %p150 = scmp.ne.s32.totalorder %s138, %s139
    %p151 = scmp.eq.s32.totalorder %s19, 1
    %p152 = por %p150, %p151
    %p154 = scmp.ne.s32.totalorder %s139, %s153
    %p155 = scmp.eq.s32.totalorder %s19, 0
    %p156 = por %p154, %p155
    %s158 = sadd.s32 %s157, 1
    %p161 = scmp.eq.s32.totalorder %s13, 1
    %p162 = scmp.ne.s32.totalorder %s157, %s159
    %p163 = scmp.eq.s32.totalorder %s13, 0
    %p164 = por %p162, %p163
    %p165 = scmp.ne.s32.totalorder %s157, %s159
    %p166 = scmp.eq.s32.totalorder %s18, 1
    %p167 = por %p165, %p166
    %p168 = scmp.ne.s32.totalorder %s159, %s160
    %p169 = scmp.eq.s32.totalorder %s18, 0
    %p170 = por %p168, %p169
    %p171 = scmp.ne.s32.totalorder %s159, %s160
    %p172 = scmp.eq.s32.totalorder %s19, 1
    %p173 = por %p171, %p172
    %p175 = scmp.ne.s32.totalorder %s160, %s174
    %p176 = scmp.eq.s32.totalorder %s19, 0
    %p177 = por %p175, %p176
    %s178 = ssub.s32 %s13, %s20
    %p179 = scmp.eq.s32.totalorder %s178, 0
    %s181 = sadd.s32 %s180, 1
    %s182 = scalar_select %p179, %s180, %s181
    %p185 = pneg %p179
    %p186 = scmp.eq.s32.totalorder %s13, 1
    %p187 = por %p185, %p186
    %p188 = scmp.ne.s32.totalorder %s180, %s183
    %p189 = scmp.eq.s32.totalorder %s13, 0
    %p190 = por %p188, %p189
    %p191 = scmp.ne.s32.totalorder %s180, %s183
    %p192 = scmp.eq.s32.totalorder %s18, 1
    %p193 = por %p191, %p192
    %p194 = scmp.ne.s32.totalorder %s183, %s184
    %p195 = scmp.eq.s32.totalorder %s18, 0
    %p196 = por %p194, %p195
    %p197 = scmp.ne.s32.totalorder %s183, %s184
    %p198 = scmp.eq.s32.totalorder %s19, 1
    %p199 = por %p197, %p198
    %p201 = scmp.ne.s32.totalorder %s184, %s200
    %p202 = scmp.eq.s32.totalorder %s19, 0
    %p203 = por %p201, %p202
    %p204 = scmp.le.s32.totalorder 1, %s13
    %p205 = scmp.lt.s32.totalorder %s13, 3
    %p206 = pnand %p204, %p205
    %p207 = pneg %p206
    // Predicated region
    $region9: #{dappm_forward.12} parent=5 // pred_check
      _
    $region10: #{dappm_forward.12} parent=5 // pred_check_branch
      %209 = sbr.rel (%p206) target = $region12
    $region11: #{dappm_forward.12} parent=5 // pred_region
      %s210 = ssub.s32 %s13, 1
      // Predicated region
      $region13: #{dappm_forward.12} parent=11 // pred_check
        %p211 = pneg %p86
      $region14: #{dappm_forward.12} parent=11 // pred_check_branch
        %213 = sbr.rel (%p211) target = $region16
      $region15: #{dappm_forward.12} parent=11 // pred_region
        _
      $region16: #{dappm_forward.12} parent=11 // pred_fallthru
        _
      // Predicated region
      $region17: #{dappm_forward.12} parent=11 // pred_check
        %p214 = pneg %p107
      $region18: #{dappm_forward.12} parent=11 // pred_check_branch
        %216 = sbr.rel (%p214) target = $region20
      $region19: #{dappm_forward.12} parent=11 // pred_region
        _
      $region20: #{dappm_forward.12} parent=11 // pred_fallthru
        _
      // Predicated region
      $region21: #{dappm_forward.12} parent=11 // pred_check
        %p217 = pneg %p128
      $region22: #{dappm_forward.12} parent=11 // pred_check_branch
        %219 = sbr.rel (%p217) target = $region24
      $region23: #{dappm_forward.12} parent=11 // pred_region
        _
      $region24: #{dappm_forward.12} parent=11 // pred_fallthru
        _
      // Predicated region
      $region25: #{dappm_forward.12} parent=11 // pred_check
        %p220 = pneg %p149
      $region26: #{dappm_forward.12} parent=11 // pred_check_branch
        %222 = sbr.rel (%p220) target = $region28
      $region27: #{dappm_forward.12} parent=11 // pred_region
        _
      $region28: #{dappm_forward.12} parent=11 // pred_fallthru
        _
      // Predicated region
      $region29: #{dappm_forward.12} parent=11 // pred_check
        %p223 = pneg %p170
      $region30: #{dappm_forward.12} parent=11 // pred_check_branch
        %225 = sbr.rel (%p223) target = $region32
      $region31: #{dappm_forward.12} parent=11 // pred_region
        _
      $region32: #{dappm_forward.12} parent=11 // pred_fallthru
        _
    $region12: #{dappm_forward.12} parent=5 // pred_fallthru
      _
    %p226 = scmp.lt.s32.totalorder %s13, 2
    // Predicated region
    $region33: #{dappm_forward.12} parent=5 // pred_check
      %p227 = pneg %p226
    $region34: #{dappm_forward.12} parent=5 // pred_check_branch
      %229 = sbr.rel (%p227) target = $region36
    $region35: #{dappm_forward.12} parent=5 // pred_region
      // Predicated region
      $region37: #{dappm_forward.12} parent=35 // pred_check
        %p230 = pneg %p33
      $region38: #{dappm_forward.12} parent=35 // pred_check_branch
        %232 = sbr.rel (%p230) target = $region40
      $region39: #{dappm_forward.12} parent=35 // pred_region
        %s233 = smul.u32 32, %s13
        %p234 = scmp.lt.s32.totalorder %s233, 63
        %s235 = scalar_select %p234, %s233, 63
        %s236 = smul.addr %s235, 8
        %s237 = scalar_lea.vmem %s0, %s236
        %s238 = smul.u32 32, %s13
      $region40: #{dappm_forward.12} parent=35 // pred_fallthru
        _
      // Predicated region
      $region41: #{dappm_forward.12} parent=35 // pred_check
        %p239 = pneg %p59
      $region42: #{dappm_forward.12} parent=35 // pred_check_branch
        %241 = sbr.rel (%p239) target = $region44
      $region43: #{dappm_forward.12} parent=35 // pred_region
        %s242 = smul.u32 32, %s13
        %p243 = scmp.lt.s32.totalorder %s242, 63
        %s244 = scalar_select %p243, %s242, 63
        %s245 = smul.addr %s244, 8
        %s246 = scalar_lea.vmem %s1, %s245
        %s247 = smul.u32 32, %s13
      $region44: #{dappm_forward.12} parent=35 // pred_fallthru
        _
    $region36: #{dappm_forward.12} parent=5 // pred_fallthru
      _
    %p248 = scmp.le.s32.totalorder 1, %s13
    %p249 = scmp.lt.s32.totalorder %s13, 3
    %p250 = pnand %p248, %p249
    %p251 = pneg %p250
    // Predicated region
    $region45: #{dappm_forward.12} parent=5 // pred_check
      _
    $region46: #{dappm_forward.12} parent=5 // pred_check_branch
      %253 = sbr.rel (%p250) target = $region48
    $region47: #{dappm_forward.12} parent=5 // pred_region
      %s254 = ssub.s32 %s13, 1
      %s255 = smul.u32 32, %s18
      %p256 = scmp.lt.s32.totalorder %s255, 63
      %s257 = scalar_select %p256, %s255, 63
      %s258 = smul.addr %s257, 8
      %s259 = scalar_lea.vmem %s0, %s258
      %p260 = pneg %p39
      %p261 = pneg %p36
      %s262 = smul.u32 32, %s18
      %p263 = scmp.lt.s32.totalorder %s262, 63
      %s264 = scalar_select %p263, %s262, 63
      %s265 = smul.addr %s264, 8
      %s266 = scalar_lea.vmem %s1, %s265
      %p267 = pneg %p65
      %p268 = pneg %p62
      %p269 = pneg %p86
      %p270 = pneg %p83
      %p271 = pneg %p107
      %p272 = pneg %p104
      %p273 = pneg %p128
      %p274 = pneg %p125
      %p275 = pneg %p149
      %p276 = pneg %p146
      %p277 = pneg %p170
      %p278 = pneg %p167
      %p279 = pneg %p196
      %p280 = pneg %p193
      %s281 = smul.u32 32, %s18
      %p282 = scmp.lt.s32.totalorder %s281, 63
      %s283 = scalar_select %p282, %s281, 63
      %s284 = smul.addr %s283, 8
      %s285 = scalar_lea.vmem %s7, %s284
      %s286 = smul.u32 32, %s18
      %p287 = scmp.lt.s32.totalorder %s286, 63
      %s288 = scalar_select %p287, %s286, 63
      %s289 = smul.addr %s288, 8
      %s290 = scalar_lea.vmem %s0, %s289
      %s291 = smul.u32 32, %s18
      %s292 = smul.u32 32, %s18
      %p293 = scmp.lt.s32.totalorder %s292, 63
      %s294 = scalar_select %p293, %s292, 63
      %s295 = smul.addr %s294, 8
      %s296 = scalar_lea.vmem %s1, %s295
      %s297 = smul.u32 32, %s18
      %s298 = smul.u32 32, %s18
      %p299 = scmp.lt.s32.totalorder %s298, 63
      %s300 = scalar_select %p299, %s298, 63
      %s301 = smul.addr %s300, 8
      %s302 = scalar_lea.vmem %s7, %s301
      %s303 = smul.u32 32, %s18
      %vm305 = vcmask 64512
      %306 = vst.msk [vmem:[#allocation2] sm:$0xff] %vm305, 0.0
      %307 = vst.msk [vmem:[#allocation2 + $0x8] sm:$0xff] %vm305, 0.0
      %308 = vst.msk [vmem:[#allocation2 + $0x10] sm:$0xff] %vm305, 0.0
      %309 = vst.msk [vmem:[#allocation2 + $0x18] sm:$0xff] %vm305, 0.0
      %310 = vst.msk [vmem:[#allocation2 + $0x20] sm:$0xff] %vm305, 0.0
      %311 = vst.msk [vmem:[#allocation2 + $0x28] sm:$0xff] %vm305, 0.0
      %312 = vst.msk [vmem:[#allocation2 + $0x30] sm:$0xff] %vm305, 0.0
      %313 = vst.msk [vmem:[#allocation2 + $0x38] sm:$0xff] %vm305, 0.0
      %314 = vst.msk [vmem:[#allocation2 + $0x40] sm:$0xff] %vm305, 0.0
      %315 = vst.msk [vmem:[#allocation2 + $0x48] sm:$0xff] %vm305, 0.0
      %316 = vst.msk [vmem:[#allocation2 + $0x50] sm:$0xff] %vm305, 0.0
      %317 = vst.msk [vmem:[#allocation2 + $0x58] sm:$0xff] %vm305, 0.0
      %318 = vst.msk [vmem:[#allocation2 + $0x60] sm:$0xff] %vm305, 0.0
      %319 = vst.msk [vmem:[#allocation2 + $0x68] sm:$0xff] %vm305, 0.0
      %320 = vst.msk [vmem:[#allocation2 + $0x70] sm:$0xff] %vm305, 0.0
      %321 = vst.msk [vmem:[#allocation2 + $0x78] sm:$0xff] %vm305, 0.0
      %322 = vst.msk [vmem:[#allocation2 + $0x80] sm:$0xff] %vm305, 0.0
      %323 = vst.msk [vmem:[#allocation2 + $0x88] sm:$0xff] %vm305, 0.0
      %324 = vst.msk [vmem:[#allocation2 + $0x90] sm:$0xff] %vm305, 0.0
      %325 = vst.msk [vmem:[#allocation2 + $0x98] sm:$0xff] %vm305, 0.0
      %326 = vst.msk [vmem:[#allocation2 + $0xa0] sm:$0xff] %vm305, 0.0
      %327 = vst.msk [vmem:[#allocation2 + $0xa8] sm:$0xff] %vm305, 0.0
      %328 = vst.msk [vmem:[#allocation2 + $0xb0] sm:$0xff] %vm305, 0.0
      %329 = vst.msk [vmem:[#allocation2 + $0xb8] sm:$0xff] %vm305, 0.0
      %330 = vst.msk [vmem:[#allocation2 + $0xc0] sm:$0xff] %vm305, 0.0
      %331 = vst.msk [vmem:[#allocation2 + $0xc8] sm:$0xff] %vm305, 0.0
      %332 = vst.msk [vmem:[#allocation2 + $0xd0] sm:$0xff] %vm305, 0.0
      %333 = vst.msk [vmem:[#allocation2 + $0xd8] sm:$0xff] %vm305, 0.0
      %334 = vst.msk [vmem:[#allocation2 + $0xe0] sm:$0xff] %vm305, 0.0
      %335 = vst.msk [vmem:[#allocation2 + $0xe8] sm:$0xff] %vm305, 0.0
      %336 = vst.msk [vmem:[#allocation2 + $0xf0] sm:$0xff] %vm305, 0.0
      %337 = vst.msk [vmem:[#allocation2 + $0xf8] sm:$0xff] %vm305, 0.0
      %338 = vst.msk [vmem:[#allocation2 + $0x100] sm:$0xff] %vm305, 0.0
      %339 = vst.msk [vmem:[#allocation2 + $0x108] sm:$0xff] %vm305, 0.0
      %340 = vst.msk [vmem:[#allocation2 + $0x110] sm:$0xff] %vm305, 0.0
      %341 = vst.msk [vmem:[#allocation2 + $0x118] sm:$0xff] %vm305, 0.0
      %342 = vst.msk [vmem:[#allocation2 + $0x120] sm:$0xff] %vm305, 0.0
      %343 = vst.msk [vmem:[#allocation2 + $0x128] sm:$0xff] %vm305, 0.0
      %v344 = vld [vmem:[%s290] sm:$0xff]
      %v345 = vld [vmem:[%s290 + $0x8] sm:$0xff]
      %v346 = vld [vmem:[%s290 + $0x10] sm:$0xff]
      %v347 = vld [vmem:[%s290 + $0x18] sm:$0xff]
      %v348 = vld [vmem:[%s290 + $0x20] sm:$0xff]
      %v349 = vld [vmem:[%s290 + $0x28] sm:$0xff]
      %v350 = vld [vmem:[%s290 + $0x30] sm:$0xff]
      %v351 = vld [vmem:[%s290 + $0x38] sm:$0xff]
      %v352 = vld [vmem:[%s290 + $0x40] sm:$0xff]
      %v353 = vld [vmem:[%s290 + $0x48] sm:$0xff]
      %v354 = vld [vmem:[%s290 + $0x50] sm:$0xff]
      %v355 = vld [vmem:[%s290 + $0x58] sm:$0xff]
      %v356 = vld [vmem:[%s290 + $0x60] sm:$0xff]
      %v357 = vld [vmem:[%s290 + $0x68] sm:$0xff]
      %v358 = vld [vmem:[%s290 + $0x70] sm:$0xff]
      %v359 = vld [vmem:[%s290 + $0x78] sm:$0xff]
      %v360 = vld [vmem:[%s290 + $0x80] sm:$0xff]
      %v361 = vld [vmem:[%s290 + $0x88] sm:$0xff]
      %v362 = vld [vmem:[%s290 + $0x90] sm:$0xff]
      %v363 = vld [vmem:[%s290 + $0x98] sm:$0xff]
      %v364 = vld [vmem:[%s290 + $0xa0] sm:$0xff]
      %v365 = vld [vmem:[%s290 + $0xa8] sm:$0xff]
      %v366 = vld [vmem:[%s290 + $0xb0] sm:$0xff]
      %v367 = vld [vmem:[%s290 + $0xb8] sm:$0xff]
      %v368 = vld [vmem:[%s290 + $0xc0] sm:$0xff]
      %v369 = vld [vmem:[%s290 + $0xc8] sm:$0xff]
      %v370 = vld [vmem:[%s290 + $0xd0] sm:$0xff]
      %v371 = vld [vmem:[%s290 + $0xd8] sm:$0xff]
      %v372 = vld [vmem:[%s290 + $0xe0] sm:$0xff]
      %v373 = vld [vmem:[%s290 + $0xe8] sm:$0xff]
      %v374 = vld [vmem:[%s290 + $0xf0] sm:$0xff]
      %v375 = vld [vmem:[%s290 + $0xf8] sm:$0xff]
      %v376 = vld [vmem:[%s296] sm:$0xff]
      %v377 = vld [vmem:[%s296 + $0x8] sm:$0xff]
      %v378 = vld [vmem:[%s296 + $0x10] sm:$0xff]
      %v379 = vld [vmem:[%s296 + $0x18] sm:$0xff]
      %v380 = vld [vmem:[%s296 + $0x20] sm:$0xff]
      %v381 = vld [vmem:[%s296 + $0x28] sm:$0xff]
      %v382 = vld [vmem:[%s296 + $0x30] sm:$0xff]
      %v383 = vld [vmem:[%s296 + $0x38] sm:$0xff]
      %v384 = vld [vmem:[%s296 + $0x40] sm:$0xff]
      %v385 = vld [vmem:[%s296 + $0x48] sm:$0xff]
      %v386 = vld [vmem:[%s296 + $0x50] sm:$0xff]
      %v387 = vld [vmem:[%s296 + $0x58] sm:$0xff]
      %v388 = vld [vmem:[%s296 + $0x60] sm:$0xff]
      %v389 = vld [vmem:[%s296 + $0x68] sm:$0xff]
      %v390 = vld [vmem:[%s296 + $0x70] sm:$0xff]
      %v391 = vld [vmem:[%s296 + $0x78] sm:$0xff]
      %v392 = vld [vmem:[%s296 + $0x80] sm:$0xff]
      %v393 = vld [vmem:[%s296 + $0x88] sm:$0xff]
      %v394 = vld [vmem:[%s296 + $0x90] sm:$0xff]
      %v395 = vld [vmem:[%s296 + $0x98] sm:$0xff]
      %v396 = vld [vmem:[%s296 + $0xa0] sm:$0xff]
      %v397 = vld [vmem:[%s296 + $0xa8] sm:$0xff]
      %v398 = vld [vmem:[%s296 + $0xb0] sm:$0xff]
      %v399 = vld [vmem:[%s296 + $0xb8] sm:$0xff]
      %v400 = vld [vmem:[%s296 + $0xc0] sm:$0xff]
      %v401 = vld [vmem:[%s296 + $0xc8] sm:$0xff]
      %v402 = vld [vmem:[%s296 + $0xd0] sm:$0xff]
      %v403 = vld [vmem:[%s296 + $0xd8] sm:$0xff]
      %v404 = vld [vmem:[%s296 + $0xe0] sm:$0xff]
      %v405 = vld [vmem:[%s296 + $0xe8] sm:$0xff]
      %v406 = vld [vmem:[%s296 + $0xf0] sm:$0xff]
      %v407 = vld [vmem:[%s296 + $0xf8] sm:$0xff]
      %v408 = vadd.f32 %v344, %v376
      %v409 = vadd.f32 %v345, %v377
      %v410 = vadd.f32 %v346, %v378
      %v411 = vadd.f32 %v347, %v379
      %v412 = vadd.f32 %v348, %v380
      %v413 = vadd.f32 %v349, %v381
      %v414 = vadd.f32 %v350, %v382
      %v415 = vadd.f32 %v351, %v383
      %v416 = vadd.f32 %v352, %v384
      %v417 = vadd.f32 %v353, %v385
      %v418 = vadd.f32 %v354, %v386
      %v419 = vadd.f32 %v355, %v387
      %v420 = vadd.f32 %v356, %v388
      %v421 = vadd.f32 %v357, %v389
      %v422 = vadd.f32 %v358, %v390
      %v423 = vadd.f32 %v359, %v391
      %v424 = vadd.f32 %v360, %v392
      %v425 = vadd.f32 %v361, %v393
      %v426 = vadd.f32 %v362, %v394
      %v427 = vadd.f32 %v363, %v395
      %v428 = vadd.f32 %v364, %v396
      %v429 = vadd.f32 %v365, %v397
      %v430 = vadd.f32 %v366, %v398
      %v431 = vadd.f32 %v367, %v399
      %v432 = vadd.f32 %v368, %v400
      %v433 = vadd.f32 %v369, %v401
      %v434 = vadd.f32 %v370, %v402
      %v435 = vadd.f32 %v371, %v403
      %v436 = vadd.f32 %v372, %v404
      %v437 = vadd.f32 %v373, %v405
      %v438 = vadd.f32 %v374, %v406
      %v439 = vadd.f32 %v375, %v407
      %v440 = vld [vmem:[%s4] sm:$0x1]
      %v442 = vperm.slane %v440, 0
      %v444 = vmul.f32 %v408, %v442
      %v445 = vmul.f32 %v409, %v442
      %v446 = vmul.f32 %v410, %v442
      %v447 = vmul.f32 %v411, %v442
      %v448 = vmul.f32 %v412, %v442
      %v449 = vmul.f32 %v413, %v442
      %v450 = vmul.f32 %v414, %v442
      %v451 = vmul.f32 %v415, %v442
      %v452 = vmul.f32 %v416, %v442
      %v453 = vmul.f32 %v417, %v442
      %v454 = vmul.f32 %v418, %v442
      %v455 = vmul.f32 %v419, %v442
      %v456 = vmul.f32 %v420, %v442
      %v457 = vmul.f32 %v421, %v442
      %v458 = vmul.f32 %v422, %v442
      %v459 = vmul.f32 %v423, %v442
      %v460 = vmul.f32 %v424, %v442
      %v461 = vmul.f32 %v425, %v442
      %v462 = vmul.f32 %v426, %v442
      %v463 = vmul.f32 %v427, %v442
      %v464 = vmul.f32 %v428, %v442
      %v465 = vmul.f32 %v429, %v442
      %v466 = vmul.f32 %v430, %v442
      %v467 = vmul.f32 %v431, %v442
      %v468 = vmul.f32 %v432, %v442
      %v469 = vmul.f32 %v433, %v442
      %v470 = vmul.f32 %v434, %v442
      %v471 = vmul.f32 %v435, %v442
      %v472 = vmul.f32 %v436, %v442
      %v473 = vmul.f32 %v437, %v442
      %v474 = vmul.f32 %v438, %v442
      %v475 = vmul.f32 %v439, %v442
      %v476 = vld [vmem:[%s5] sm:$0x1]
      %v478 = vperm.slane %v476, 0
      %v480 = vadd.f32 %v444, %v478
      %v481 = vadd.f32 %v445, %v478
      %v482 = vadd.f32 %v446, %v478
      %v483 = vadd.f32 %v447, %v478
      %v484 = vadd.f32 %v448, %v478
      %v485 = vadd.f32 %v449, %v478
      %v486 = vadd.f32 %v450, %v478
      %v487 = vadd.f32 %v451, %v478
      %v488 = vadd.f32 %v452, %v478
      %v489 = vadd.f32 %v453, %v478
      %v490 = vadd.f32 %v454, %v478
      %v491 = vadd.f32 %v455, %v478
      %v492 = vadd.f32 %v456, %v478
      %v493 = vadd.f32 %v457, %v478
      %v494 = vadd.f32 %v458, %v478
      %v495 = vadd.f32 %v459, %v478
      %v496 = vadd.f32 %v460, %v478
      %v497 = vadd.f32 %v461, %v478
      %v498 = vadd.f32 %v462, %v478
      %v499 = vadd.f32 %v463, %v478
      %v500 = vadd.f32 %v464, %v478
      %v501 = vadd.f32 %v465, %v478
      %v502 = vadd.f32 %v466, %v478
      %v503 = vadd.f32 %v467, %v478
      %v504 = vadd.f32 %v468, %v478
      %v505 = vadd.f32 %v469, %v478
      %v506 = vadd.f32 %v470, %v478
      %v507 = vadd.f32 %v471, %v478
      %v508 = vadd.f32 %v472, %v478
      %v509 = vadd.f32 %v473, %v478
      %v510 = vadd.f32 %v474, %v478
      %v511 = vadd.f32 %v475, %v478
      %v512 = vmax.f32 %v480, 0.0
      %v513 = vmax.f32 %v481, 0.0
      %v514 = vmax.f32 %v482, 0.0
      %v515 = vmax.f32 %v483, 0.0
      %v516 = vmax.f32 %v484, 0.0
      %v517 = vmax.f32 %v485, 0.0
      %v518 = vmax.f32 %v486, 0.0
      %v519 = vmax.f32 %v487, 0.0
      %v520 = vmax.f32 %v488, 0.0
      %v521 = vmax.f32 %v489, 0.0
      %v522 = vmax.f32 %v490, 0.0
      %v523 = vmax.f32 %v491, 0.0
      %v524 = vmax.f32 %v492, 0.0
      %v525 = vmax.f32 %v493, 0.0
      %v526 = vmax.f32 %v494, 0.0
      %v527 = vmax.f32 %v495, 0.0
      %v528 = vmax.f32 %v496, 0.0
      %v529 = vmax.f32 %v497, 0.0
      %v530 = vmax.f32 %v498, 0.0
      %v531 = vmax.f32 %v499, 0.0
      %v532 = vmax.f32 %v500, 0.0
      %v533 = vmax.f32 %v501, 0.0
      %v534 = vmax.f32 %v502, 0.0
      %v535 = vmax.f32 %v503, 0.0
      %v536 = vmax.f32 %v504, 0.0
      %v537 = vmax.f32 %v505, 0.0
      %v538 = vmax.f32 %v506, 0.0
      %v539 = vmax.f32 %v507, 0.0
      %v540 = vmax.f32 %v508, 0.0
      %v541 = vmax.f32 %v509, 0.0
      %v542 = vmax.f32 %v510, 0.0
      %v543 = vmax.f32 %v511, 0.0
      %544 = vst.msk [vmem:[#allocation2 + $0x18] sm:$0xff] %vm305, %v512
      %545 = vst.msk [vmem:[#allocation2 + $0x20] sm:$0xff] %vm305, %v513
      %546 = vst.msk [vmem:[#allocation2 + $0x28] sm:$0xff] %vm305, %v514
      %547 = vst.msk [vmem:[#allocation2 + $0x30] sm:$0xff] %vm305, %v515
      %548 = vst.msk [vmem:[#allocation2 + $0x38] sm:$0xff] %vm305, %v516
      %549 = vst.msk [vmem:[#allocation2 + $0x40] sm:$0xff] %vm305, %v517
      %550 = vst.msk [vmem:[#allocation2 + $0x48] sm:$0xff] %vm305, %v518
      %551 = vst.msk [vmem:[#allocation2 + $0x50] sm:$0xff] %vm305, %v519
      %552 = vst.msk [vmem:[#allocation2 + $0x58] sm:$0xff] %vm305, %v520
      %553 = vst.msk [vmem:[#allocation2 + $0x60] sm:$0xff] %vm305, %v521
      %554 = vst.msk [vmem:[#allocation2 + $0x68] sm:$0xff] %vm305, %v522
      %555 = vst.msk [vmem:[#allocation2 + $0x70] sm:$0xff] %vm305, %v523
      %556 = vst.msk [vmem:[#allocation2 + $0x78] sm:$0xff] %vm305, %v524
      %557 = vst.msk [vmem:[#allocation2 + $0x80] sm:$0xff] %vm305, %v525
      %558 = vst.msk [vmem:[#allocation2 + $0x88] sm:$0xff] %vm305, %v526
      %559 = vst.msk [vmem:[#allocation2 + $0x90] sm:$0xff] %vm305, %v527
      %560 = vst.msk [vmem:[#allocation2 + $0x98] sm:$0xff] %vm305, %v528
      %561 = vst.msk [vmem:[#allocation2 + $0xa0] sm:$0xff] %vm305, %v529
      %562 = vst.msk [vmem:[#allocation2 + $0xa8] sm:$0xff] %vm305, %v530
      %563 = vst.msk [vmem:[#allocation2 + $0xb0] sm:$0xff] %vm305, %v531
      %564 = vst.msk [vmem:[#allocation2 + $0xb8] sm:$0xff] %vm305, %v532
      %565 = vst.msk [vmem:[#allocation2 + $0xc0] sm:$0xff] %vm305, %v533
      %566 = vst.msk [vmem:[#allocation2 + $0xc8] sm:$0xff] %vm305, %v534
      %567 = vst.msk [vmem:[#allocation2 + $0xd0] sm:$0xff] %vm305, %v535
      %568 = vst.msk [vmem:[#allocation2 + $0xd8] sm:$0xff] %vm305, %v536
      %569 = vst.msk [vmem:[#allocation2 + $0xe0] sm:$0xff] %vm305, %v537
      %570 = vst.msk [vmem:[#allocation2 + $0xe8] sm:$0xff] %vm305, %v538
      %571 = vst.msk [vmem:[#allocation2 + $0xf0] sm:$0xff] %vm305, %v539
      %572 = vst.msk [vmem:[#allocation2 + $0xf8] sm:$0xff] %vm305, %v540
      %573 = vst.msk [vmem:[#allocation2 + $0x100] sm:$0xff] %vm305, %v541
      %574 = vst.msk [vmem:[#allocation2 + $0x108] sm:$0xff] %vm305, %v542
      %575 = vst.msk [vmem:[#allocation2 + $0x110] sm:$0xff] %vm305, %v543
      %v576 = vld [vmem:[%s2] sm:$0xff]
      %v577 = vld [vmem:[%s2 + $0x8] sm:$0xff]
      %v578 = vld [vmem:[%s2 + $0x10] sm:$0xff]
      %v579 = vld [vmem:[%s2 + $0x18] sm:$0xff]
      %v580 = vld [vmem:[%s2 + $0x20] sm:$0xff]
      %v581 = vld [vmem:[%s2 + $0x28] sm:$0xff]
      %v582 = vld [vmem:[%s2 + $0x30] sm:$0xff]
      %v583 = vld [vmem:[%s2 + $0x38] sm:$0xff]
      %v584 = vld [vmem:[%s2 + $0x40] sm:$0xff]
      %v585 = vld [vmem:[%s2 + $0x48] sm:$0xff]
      %v586 = vld [vmem:[%s2 + $0x50] sm:$0xff]
      %v587 = vld [vmem:[%s2 + $0x58] sm:$0xff]
      %v588 = vld [vmem:[%s2 + $0x60] sm:$0xff]
      %v589 = vld [vmem:[%s2 + $0x68] sm:$0xff]
      %v590 = vld [vmem:[%s2 + $0x70] sm:$0xff]
      %v591 = vld [vmem:[%s2 + $0x78] sm:$0xff]
      %v592 = vld [vmem:[%s2 + $0x80] sm:$0xff]
      %v593 = vld [vmem:[%s2 + $0x88] sm:$0xff]
      %v594 = vld [vmem:[%s2 + $0x90] sm:$0xff]
      %v595 = vld [vmem:[%s2 + $0x98] sm:$0xff]
      %v596 = vld [vmem:[%s2 + $0xa0] sm:$0xff]
      %v597 = vld [vmem:[%s2 + $0xa8] sm:$0xff]
      %v598 = vld [vmem:[%s2 + $0xb0] sm:$0xff]
      %v599 = vld [vmem:[%s2 + $0xb8] sm:$0xff]
      %v600 = vld [vmem:[%s2 + $0xc0] sm:$0xff]
      %v601 = vld [vmem:[%s2 + $0xc8] sm:$0xff]
      %v602 = vld [vmem:[%s2 + $0xd0] sm:$0xff]
      %v603 = vld [vmem:[%s2 + $0xd8] sm:$0xff]
      %v604 = vld [vmem:[%s2 + $0xe0] sm:$0xff]
      %v605 = vld [vmem:[%s2 + $0xe8] sm:$0xff]
      %v606 = vld [vmem:[%s2 + $0xf0] sm:$0xff]
      %v607 = vld [vmem:[%s2 + $0xf8] sm:$0xff]
      %v608 = vld [vmem:[%s3] sm:$0xff]
      %v609 = vld [vmem:[%s3 + $0x8] sm:$0xff]
      %v610 = vld [vmem:[%s3 + $0x10] sm:$0xff]
      %v611 = vld [vmem:[%s3 + $0x18] sm:$0xff]
      %v612 = vld [vmem:[%s3 + $0x20] sm:$0xff]
      %v613 = vld [vmem:[%s3 + $0x28] sm:$0xff]
      %v614 = vld [vmem:[%s3 + $0x30] sm:$0xff]
      %v615 = vld [vmem:[%s3 + $0x38] sm:$0xff]
      %v616 = vld [vmem:[%s3 + $0x40] sm:$0xff]
      %v617 = vld [vmem:[%s3 + $0x48] sm:$0xff]
      %v618 = vld [vmem:[%s3 + $0x50] sm:$0xff]
      %v619 = vld [vmem:[%s3 + $0x58] sm:$0xff]
      %v620 = vld [vmem:[%s3 + $0x60] sm:$0xff]
      %v621 = vld [vmem:[%s3 + $0x68] sm:$0xff]
      %v622 = vld [vmem:[%s3 + $0x70] sm:$0xff]
      %v623 = vld [vmem:[%s3 + $0x78] sm:$0xff]
      %v624 = vld [vmem:[%s3 + $0x80] sm:$0xff]
      %v625 = vld [vmem:[%s3 + $0x88] sm:$0xff]
      %v626 = vld [vmem:[%s3 + $0x90] sm:$0xff]
      %v627 = vld [vmem:[%s3 + $0x98] sm:$0xff]
      %v628 = vld [vmem:[%s3 + $0xa0] sm:$0xff]
      %v629 = vld [vmem:[%s3 + $0xa8] sm:$0xff]
      %v630 = vld [vmem:[%s3 + $0xb0] sm:$0xff]
      %v631 = vld [vmem:[%s3 + $0xb8] sm:$0xff]
      %v632 = vld [vmem:[%s3 + $0xc0] sm:$0xff]
      %v633 = vld [vmem:[%s3 + $0xc8] sm:$0xff]
      %v634 = vld [vmem:[%s3 + $0xd0] sm:$0xff]
      %v635 = vld [vmem:[%s3 + $0xd8] sm:$0xff]
      %v636 = vld [vmem:[%s3 + $0xe0] sm:$0xff]
      %v637 = vld [vmem:[%s3 + $0xe8] sm:$0xff]
      %v638 = vld [vmem:[%s3 + $0xf0] sm:$0xff]
      %v639 = vld [vmem:[%s3 + $0xf8] sm:$0xff]
      %v640 = vld [vmem:[#allocation2 + $0x7] sm:$0xff]
      %v641 = vld [vmem:[#allocation2 + $0xf] sm:$0xff]
      %v642 = vld [vmem:[#allocation2 + $0x17] sm:$0xff]
      %v643 = vld [vmem:[#allocation2 + $0x1f] sm:$0xff]
      %v644 = vld [vmem:[#allocation2 + $0x27] sm:$0xff]
      %v645 = vld [vmem:[#allocation2 + $0x2f] sm:$0xff]
      %v646 = vld [vmem:[#allocation2 + $0x37] sm:$0xff]
      %v647 = vld [vmem:[#allocation2 + $0x3f] sm:$0xff]
      %v648 = vld [vmem:[#allocation2 + $0x47] sm:$0xff]
      %v649 = vld [vmem:[#allocation2 + $0x4f] sm:$0xff]
      %v650 = vld [vmem:[#allocation2 + $0x57] sm:$0xff]
      %v651 = vld [vmem:[#allocation2 + $0x5f] sm:$0xff]
      %v652 = vld [vmem:[#allocation2 + $0x67] sm:$0xff]
      %v653 = vld [vmem:[#allocation2 + $0x6f] sm:$0xff]
      %v654 = vld [vmem:[#allocation2 + $0x77] sm:$0xff]
      %v655 = vld [vmem:[#allocation2 + $0x7f] sm:$0xff]
      %v656 = vld [vmem:[#allocation2 + $0x87] sm:$0xff]
      %v657 = vld [vmem:[#allocation2 + $0x8f] sm:$0xff]
      %v658 = vld [vmem:[#allocation2 + $0x97] sm:$0xff]
      %v659 = vld [vmem:[#allocation2 + $0x9f] sm:$0xff]
      %v660 = vld [vmem:[#allocation2 + $0xa7] sm:$0xff]
      %v661 = vld [vmem:[#allocation2 + $0xaf] sm:$0xff]
      %v662 = vld [vmem:[#allocation2 + $0xb7] sm:$0xff]
      %v663 = vld [vmem:[#allocation2 + $0xbf] sm:$0xff]
      %v664 = vld [vmem:[#allocation2 + $0xc7] sm:$0xff]
      %v665 = vld [vmem:[#allocation2 + $0xcf] sm:$0xff]
      %v666 = vld [vmem:[#allocation2 + $0xd7] sm:$0xff]
      %v667 = vld [vmem:[#allocation2 + $0xdf] sm:$0xff]
      %v668 = vld [vmem:[#allocation2 + $0xe7] sm:$0xff]
      %v669 = vld [vmem:[#allocation2 + $0xef] sm:$0xff]
      %v670 = vld [vmem:[#allocation2 + $0xf7] sm:$0xff]
      %v671 = vld [vmem:[#allocation2 + $0xff] sm:$0xff]
      %673 = vset.pattern.permute.xlu0 0
      %674 = vperm.xlu0 %673, %v576
      %v675 = vpop.permute.xlu0 %674
      %678 = vset.pattern.permute.xlu0 0
      %679 = vperm.xlu0 %678, %v577
      %v680 = vpop.permute.xlu0 %679
      %683 = vset.pattern.permute.xlu0 0
      %684 = vperm.xlu0 %683, %v578
      %v685 = vpop.permute.xlu0 %684
      %688 = vset.pattern.permute.xlu0 0
      %689 = vperm.xlu0 %688, %v579
      %v690 = vpop.permute.xlu0 %689
      %693 = vset.pattern.permute.xlu0 0
      %694 = vperm.xlu0 %693, %v580
      %v695 = vpop.permute.xlu0 %694
      %698 = vset.pattern.permute.xlu0 0
      %699 = vperm.xlu0 %698, %v581
      %v700 = vpop.permute.xlu0 %699
      %703 = vset.pattern.permute.xlu0 0
      %704 = vperm.xlu0 %703, %v582
      %v705 = vpop.permute.xlu0 %704
      %708 = vset.pattern.permute.xlu0 0
      %709 = vperm.xlu0 %708, %v583
      %v710 = vpop.permute.xlu0 %709
      %713 = vset.pattern.permute.xlu0 0
      %714 = vperm.xlu0 %713, %v584
      %v715 = vpop.permute.xlu0 %714
      %718 = vset.pattern.permute.xlu0 0
      %719 = vperm.xlu0 %718, %v585
      %v720 = vpop.permute.xlu0 %719
      %723 = vset.pattern.permute.xlu0 0
      %724 = vperm.xlu0 %723, %v586
      %v725 = vpop.permute.xlu0 %724
      %728 = vset.pattern.permute.xlu0 0
      %729 = vperm.xlu0 %728, %v587
      %v730 = vpop.permute.xlu0 %729
      %733 = vset.pattern.permute.xlu0 0
      %734 = vperm.xlu0 %733, %v588
      %v735 = vpop.permute.xlu0 %734
      %738 = vset.pattern.permute.xlu0 0
      %739 = vperm.xlu0 %738, %v589
      %v740 = vpop.permute.xlu0 %739
      %743 = vset.pattern.permute.xlu0 0
      %744 = vperm.xlu0 %743, %v590
      %v745 = vpop.permute.xlu0 %744
      %748 = vset.pattern.permute.xlu0 0
      %749 = vperm.xlu0 %748, %v591
      %v750 = vpop.permute.xlu0 %749
      %753 = vset.pattern.permute.xlu0 0
      %754 = vperm.xlu0 %753, %v592
      %v755 = vpop.permute.xlu0 %754
      %758 = vset.pattern.permute.xlu0 0
      %759 = vperm.xlu0 %758, %v593
      %v760 = vpop.permute.xlu0 %759
      %763 = vset.pattern.permute.xlu0 0
      %764 = vperm.xlu0 %763, %v594
      %v765 = vpop.permute.xlu0 %764
      %768 = vset.pattern.permute.xlu0 0
      %769 = vperm.xlu0 %768, %v595
      %v770 = vpop.permute.xlu0 %769
      %773 = vset.pattern.permute.xlu0 0
      %774 = vperm.xlu0 %773, %v596
      %v775 = vpop.permute.xlu0 %774
      %778 = vset.pattern.permute.xlu0 0
      %779 = vperm.xlu0 %778, %v597
      %v780 = vpop.permute.xlu0 %779
      %783 = vset.pattern.permute.xlu0 0
      %784 = vperm.xlu0 %783, %v598
      %v785 = vpop.permute.xlu0 %784
      %788 = vset.pattern.permute.xlu0 0
      %789 = vperm.xlu0 %788, %v599
      %v790 = vpop.permute.xlu0 %789
      %793 = vset.pattern.permute.xlu0 0
      %794 = vperm.xlu0 %793, %v600
      %v795 = vpop.permute.xlu0 %794
      %798 = vset.pattern.permute.xlu0 0
      %799 = vperm.xlu0 %798, %v601
      %v800 = vpop.permute.xlu0 %799
      %803 = vset.pattern.permute.xlu0 0
      %804 = vperm.xlu0 %803, %v602
      %v805 = vpop.permute.xlu0 %804
      %808 = vset.pattern.permute.xlu0 0
      %809 = vperm.xlu0 %808, %v603
      %v810 = vpop.permute.xlu0 %809
      %813 = vset.pattern.permute.xlu0 0
      %814 = vperm.xlu0 %813, %v604
      %v815 = vpop.permute.xlu0 %814
      %818 = vset.pattern.permute.xlu0 0
      %819 = vperm.xlu0 %818, %v605
      %v820 = vpop.permute.xlu0 %819
      %823 = vset.pattern.permute.xlu0 0
      %824 = vperm.xlu0 %823, %v606
      %v825 = vpop.permute.xlu0 %824
      %828 = vset.pattern.permute.xlu0 0
      %829 = vperm.xlu0 %828, %v607
      %v830 = vpop.permute.xlu0 %829
      %v832 = vmul.f32 %v640, %v675
      %v833 = vmul.f32 %v641, %v680
      %v834 = vmul.f32 %v642, %v685
      %v835 = vmul.f32 %v643, %v690
      %v836 = vmul.f32 %v644, %v695
      %v837 = vmul.f32 %v645, %v700
      %v838 = vmul.f32 %v646, %v705
      %v839 = vmul.f32 %v647, %v710
      %v840 = vmul.f32 %v648, %v715
      %v841 = vmul.f32 %v649, %v720
      %v842 = vmul.f32 %v650, %v725
      %v843 = vmul.f32 %v651, %v730
      %v844 = vmul.f32 %v652, %v735
      %v845 = vmul.f32 %v653, %v740
      %v846 = vmul.f32 %v654, %v745
      %v847 = vmul.f32 %v655, %v750
      %v848 = vmul.f32 %v656, %v755
      %v849 = vmul.f32 %v657, %v760
      %v850 = vmul.f32 %v658, %v765
      %v851 = vmul.f32 %v659, %v770
      %v852 = vmul.f32 %v660, %v775
      %v853 = vmul.f32 %v661, %v780
      %v854 = vmul.f32 %v662, %v785
      %v855 = vmul.f32 %v663, %v790
      %v856 = vmul.f32 %v664, %v795
      %v857 = vmul.f32 %v665, %v800
      %v858 = vmul.f32 %v666, %v805
      %v859 = vmul.f32 %v667, %v810
      %v860 = vmul.f32 %v668, %v815
      %v861 = vmul.f32 %v669, %v820
      %v862 = vmul.f32 %v670, %v825
      %v863 = vmul.f32 %v671, %v830
      %v864 = vpack.c.bf16 %v833, %v832
      %v865 = vpack.c.bf16 %v835, %v834
      %v866 = vpack.c.bf16 %v837, %v836
      %v867 = vpack.c.bf16 %v839, %v838
      %v868 = vpack.c.bf16 %v841, %v840
      %v869 = vpack.c.bf16 %v843, %v842
      %v870 = vpack.c.bf16 %v845, %v844
      %v871 = vpack.c.bf16 %v847, %v846
      %v872 = vpack.c.bf16 %v849, %v848
      %v873 = vpack.c.bf16 %v851, %v850
      %v874 = vpack.c.bf16 %v853, %v852
      %v875 = vpack.c.bf16 %v855, %v854
      %v876 = vpack.c.bf16 %v857, %v856
      %v877 = vpack.c.bf16 %v859, %v858
      %v878 = vpack.c.bf16 %v861, %v860
      %v879 = vpack.c.bf16 %v863, %v862
      %v880 = vld [vmem:[%s6] sm:$0xf]
      %v881 = vld [vmem:[#allocation2 + $0x8] sm:$0xff]
      %v882 = vld [vmem:[#allocation2 + $0x10] sm:$0xff]
      %v883 = vld [vmem:[#allocation2 + $0x18] sm:$0xff]
      %v884 = vld [vmem:[#allocation2 + $0x20] sm:$0xff]
      %v885 = vld [vmem:[#allocation2 + $0x28] sm:$0xff]
      %v886 = vld [vmem:[#allocation2 + $0x30] sm:$0xff]
      %v887 = vld [vmem:[#allocation2 + $0x38] sm:$0xff]
      %v888 = vld [vmem:[#allocation2 + $0x40] sm:$0xff]
      %v889 = vld [vmem:[#allocation2 + $0x48] sm:$0xff]
      %v890 = vld [vmem:[#allocation2 + $0x50] sm:$0xff]
      %v891 = vld [vmem:[#allocation2 + $0x58] sm:$0xff]
      %v892 = vld [vmem:[#allocation2 + $0x60] sm:$0xff]
      %v893 = vld [vmem:[#allocation2 + $0x68] sm:$0xff]
      %v894 = vld [vmem:[#allocation2 + $0x70] sm:$0xff]
      %v895 = vld [vmem:[#allocation2 + $0x78] sm:$0xff]
      %v896 = vld [vmem:[#allocation2 + $0x80] sm:$0xff]
      %v897 = vld [vmem:[#allocation2 + $0x88] sm:$0xff]
      %v898 = vld [vmem:[#allocation2 + $0x90] sm:$0xff]
      %v899 = vld [vmem:[#allocation2 + $0x98] sm:$0xff]
      %v900 = vld [vmem:[#allocation2 + $0xa0] sm:$0xff]
      %v901 = vld [vmem:[#allocation2 + $0xa8] sm:$0xff]
      %v902 = vld [vmem:[#allocation2 + $0xb0] sm:$0xff]
      %v903 = vld [vmem:[#allocation2 + $0xb8] sm:$0xff]
      %v904 = vld [vmem:[#allocation2 + $0xc0] sm:$0xff]
      %v905 = vld [vmem:[#allocation2 + $0xc8] sm:$0xff]
      %v906 = vld [vmem:[#allocation2 + $0xd0] sm:$0xff]
      %v907 = vld [vmem:[#allocation2 + $0xd8] sm:$0xff]
      %v908 = vld [vmem:[#allocation2 + $0xe0] sm:$0xff]
      %v909 = vld [vmem:[#allocation2 + $0xe8] sm:$0xff]
      %v910 = vld [vmem:[#allocation2 + $0xf0] sm:$0xff]
      %v911 = vld [vmem:[#allocation2 + $0xf8] sm:$0xff]
      %v912 = vld [vmem:[#allocation2 + $0x100] sm:$0xff]
      %v913 = vpack.c.bf16 %v882, %v881
      %v914 = vpack.c.bf16 %v884, %v883
      %v915 = vpack.c.bf16 %v886, %v885
      %v916 = vpack.c.bf16 %v888, %v887
      %v917 = vpack.c.bf16 %v890, %v889
      %v918 = vpack.c.bf16 %v892, %v891
      %v919 = vpack.c.bf16 %v894, %v893
      %v920 = vpack.c.bf16 %v896, %v895
      %v921 = vpack.c.bf16 %v898, %v897
      %v922 = vpack.c.bf16 %v900, %v899
      %v923 = vpack.c.bf16 %v902, %v901
      %v924 = vpack.c.bf16 %v904, %v903
      %v925 = vpack.c.bf16 %v906, %v905
      %v926 = vpack.c.bf16 %v908, %v907
      %v927 = vpack.c.bf16 %v910, %v909
      %v928 = vpack.c.bf16 %v912, %v911
      %s929 = scalar_lea.vmem %s6, 4
      %v930 = vld [vmem:[%s929] sm:$0xf]
      %v932 = vsel %vm305, %v913, 0
      %v935 = vsel %vm305, %v914, 0
      %v938 = vsel %vm305, %v915, 0
      %v941 = vsel %vm305, %v916, 0
      %v944 = vsel %vm305, %v917, 0
      %v947 = vsel %vm305, %v918, 0
      %v950 = vsel %vm305, %v919, 0
      %v953 = vsel %vm305, %v920, 0
      %v956 = vsel %vm305, %v921, 0
      %v959 = vsel %vm305, %v922, 0
      %v962 = vsel %vm305, %v923, 0
      %v965 = vsel %vm305, %v924, 0
      %v968 = vsel %vm305, %v925, 0
      %v971 = vsel %vm305, %v926, 0
      %v974 = vsel %vm305, %v927, 0
      %v977 = vsel %vm305, %v928, 0
      %vm979 = vcmask 1043456
      %v981 = vsel %vm979, %v930, 0
      %983 = vmatpush.bf16.msra.mxu0 0
      %984 = vmatpush.bf16.msra.mxu0 0
      %985 = vmatpush.bf16.msra.mxu0 0
      %986 = vmatpush.bf16.msra.mxu0 0
      %987 = vmatpush.bf16.msra.mxu0 0
      %988 = vmatpush.bf16.msra.mxu0 0
      %989 = vmatpush.bf16.msra.mxu0 0
      %990 = vmatpush.bf16.msra.mxu0 %v981
      %991 = vmatmul.bf16.gmra.mxu0 %v932
      %v992 = vpop.f32.mrf.mxu0
      %v993 = vadd.f32 0.0, %v992
      %v994 = vpop.f32.mrf.mxu0
      %v995 = vadd.f32 0.0, %v994
      %996 = vmatmul.bf16.gmra.mxu0 %v935
      %v997 = vpop.f32.mrf.mxu0
      %v998 = vadd.f32 0.0, %v997
      %v999 = vpop.f32.mrf.mxu0
      %v1000 = vadd.f32 0.0, %v999
      %1001 = vmatmul.bf16.gmra.mxu0 %v938
      %v1002 = vpop.f32.mrf.mxu0
      %v1003 = vadd.f32 0.0, %v1002
      %v1004 = vpop.f32.mrf.mxu0
      %v1005 = vadd.f32 0.0, %v1004
      %1006 = vmatmul.bf16.gmra.mxu0 %v941
      %v1007 = vpop.f32.mrf.mxu0
      %v1008 = vadd.f32 0.0, %v1007
      %v1009 = vpop.f32.mrf.mxu0
      %v1010 = vadd.f32 0.0, %v1009
      %1011 = vmatmul.bf16.gmra.mxu0 %v944
      %v1012 = vpop.f32.mrf.mxu0
      %v1013 = vadd.f32 0.0, %v1012
      %v1014 = vpop.f32.mrf.mxu0
      %v1015 = vadd.f32 0.0, %v1014
      %1016 = vmatmul.bf16.gmra.mxu0 %v947
      %v1017 = vpop.f32.mrf.mxu0
      %v1018 = vadd.f32 0.0, %v1017
      %v1019 = vpop.f32.mrf.mxu0
      %v1020 = vadd.f32 0.0, %v1019
      %1021 = vmatmul.bf16.gmra.mxu0 %v950
      %v1022 = vpop.f32.mrf.mxu0
      %v1023 = vadd.f32 0.0, %v1022
      %v1024 = vpop.f32.mrf.mxu0
      %v1025 = vadd.f32 0.0, %v1024
      %1026 = vmatmul.bf16.gmra.mxu0 %v953
      %v1027 = vpop.f32.mrf.mxu0
      %v1028 = vadd.f32 0.0, %v1027
      %v1029 = vpop.f32.mrf.mxu0
      %v1030 = vadd.f32 0.0, %v1029
      %1031 = vmatmul.bf16.gmra.mxu0 %v956
      %v1032 = vpop.f32.mrf.mxu0
      %v1033 = vadd.f32 0.0, %v1032
      %v1034 = vpop.f32.mrf.mxu0
      %v1035 = vadd.f32 0.0, %v1034
      %1036 = vmatmul.bf16.gmra.mxu0 %v959
      %v1037 = vpop.f32.mrf.mxu0
      %v1038 = vadd.f32 0.0, %v1037
      %v1039 = vpop.f32.mrf.mxu0
      %v1040 = vadd.f32 0.0, %v1039
      %1041 = vmatmul.bf16.gmra.mxu0 %v962
      %v1042 = vpop.f32.mrf.mxu0
      %v1043 = vadd.f32 0.0, %v1042
      %v1044 = vpop.f32.mrf.mxu0
      %v1045 = vadd.f32 0.0, %v1044
      %1046 = vmatmul.bf16.gmra.mxu0 %v965
      %v1047 = vpop.f32.mrf.mxu0
      %v1048 = vadd.f32 0.0, %v1047
      %v1049 = vpop.f32.mrf.mxu0
      %v1050 = vadd.f32 0.0, %v1049
      %1051 = vmatmul.bf16.gmra.mxu0 %v968
      %v1052 = vpop.f32.mrf.mxu0
      %v1053 = vadd.f32 0.0, %v1052
      %v1054 = vpop.f32.mrf.mxu0
      %v1055 = vadd.f32 0.0, %v1054
      %1056 = vmatmul.bf16.gmra.mxu0 %v971
      %v1057 = vpop.f32.mrf.mxu0
      %v1058 = vadd.f32 0.0, %v1057
      %v1059 = vpop.f32.mrf.mxu0
      %v1060 = vadd.f32 0.0, %v1059
      %1061 = vmatmul.bf16.gmra.mxu0 %v974
      %v1062 = vpop.f32.mrf.mxu0
      %v1063 = vadd.f32 0.0, %v1062
      %v1064 = vpop.f32.mrf.mxu0
      %v1065 = vadd.f32 0.0, %v1064
      %1066 = vmatmul.bf16.gmra.mxu0 %v977
      %v1067 = vpop.f32.mrf.mxu0
      %v1068 = vadd.f32 0.0, %v1067
      %v1069 = vpop.f32.mrf.mxu0
      %v1070 = vadd.f32 0.0, %v1069
      %1071 = vdwg.mxu0
      %v1073 = vsel %vm305, %v864, 0
      %v1076 = vsel %vm305, %v865, 0
      %v1079 = vsel %vm305, %v866, 0
      %v1082 = vsel %vm305, %v867, 0
      %v1085 = vsel %vm305, %v868, 0
      %v1088 = vsel %vm305, %v869, 0
      %v1091 = vsel %vm305, %v870, 0
      %v1094 = vsel %vm305, %v871, 0
      %v1097 = vsel %vm305, %v872, 0
      %v1100 = vsel %vm305, %v873, 0
      %v1103 = vsel %vm305, %v874, 0
      %v1106 = vsel %vm305, %v875, 0
      %v1109 = vsel %vm305, %v876, 0
      %v1112 = vsel %vm305, %v877, 0
      %v1115 = vsel %vm305, %v878, 0
      %v1118 = vsel %vm305, %v879, 0
      %v1121 = vsel %vm979, %v880, 0
      %1123 = vmatpush.bf16.msra.mxu0 0
      %1124 = vmatpush.bf16.msra.mxu0 0
      %1125 = vmatpush.bf16.msra.mxu0 0
      %1126 = vmatpush.bf16.msra.mxu0 0
      %1127 = vmatpush.bf16.msra.mxu0 0
      %1128 = vmatpush.bf16.msra.mxu0 0
      %1129 = vmatpush.bf16.msra.mxu0 0
      %1130 = vmatpush.bf16.msra.mxu0 %v1121
      %1131 = vmatmul.bf16.gmra.mxu0 %v1073
      %v1132 = vpop.f32.mrf.mxu0
      %v1133 = vadd.f32 %v993, %v1132
      %v1134 = vpop.f32.mrf.mxu0
      %v1135 = vadd.f32 %v995, %v1134
      %1136 = vmatmul.bf16.gmra.mxu0 %v1076
      %v1137 = vpop.f32.mrf.mxu0
      %v1138 = vadd.f32 %v998, %v1137
      %v1139 = vpop.f32.mrf.mxu0
      %v1140 = vadd.f32 %v1000, %v1139
      %1141 = vmatmul.bf16.gmra.mxu0 %v1079
      %v1142 = vpop.f32.mrf.mxu0
      %v1143 = vadd.f32 %v1003, %v1142
      %v1144 = vpop.f32.mrf.mxu0
      %v1145 = vadd.f32 %v1005, %v1144
      %1146 = vmatmul.bf16.gmra.mxu0 %v1082
      %v1147 = vpop.f32.mrf.mxu0
      %v1148 = vadd.f32 %v1008, %v1147
      %v1149 = vpop.f32.mrf.mxu0
      %v1150 = vadd.f32 %v1010, %v1149
      %1151 = vmatmul.bf16.gmra.mxu0 %v1085
      %v1152 = vpop.f32.mrf.mxu0
      %v1153 = vadd.f32 %v1013, %v1152
      %v1154 = vpop.f32.mrf.mxu0
      %v1155 = vadd.f32 %v1015, %v1154
      %1156 = vmatmul.bf16.gmra.mxu0 %v1088
      %v1157 = vpop.f32.mrf.mxu0
      %v1158 = vadd.f32 %v1018, %v1157
      %v1159 = vpop.f32.mrf.mxu0
      %v1160 = vadd.f32 %v1020, %v1159
      %1161 = vmatmul.bf16.gmra.mxu0 %v1091
      %v1162 = vpop.f32.mrf.mxu0
      %v1163 = vadd.f32 %v1023, %v1162
      %v1164 = vpop.f32.mrf.mxu0
      %v1165 = vadd.f32 %v1025, %v1164
      %1166 = vmatmul.bf16.gmra.mxu0 %v1094
      %v1167 = vpop.f32.mrf.mxu0
      %v1168 = vadd.f32 %v1028, %v1167
      %v1169 = vpop.f32.mrf.mxu0
      %v1170 = vadd.f32 %v1030, %v1169
      %1171 = vmatmul.bf16.gmra.mxu0 %v1097
      %v1172 = vpop.f32.mrf.mxu0
      %v1173 = vadd.f32 %v1033, %v1172
      %v1174 = vpop.f32.mrf.mxu0
      %v1175 = vadd.f32 %v1035, %v1174
      %1176 = vmatmul.bf16.gmra.mxu0 %v1100
      %v1177 = vpop.f32.mrf.mxu0
      %v1178 = vadd.f32 %v1038, %v1177
      %v1179 = vpop.f32.mrf.mxu0
      %v1180 = vadd.f32 %v1040, %v1179
      %1181 = vmatmul.bf16.gmra.mxu0 %v1103
      %v1182 = vpop.f32.mrf.mxu0
      %v1183 = vadd.f32 %v1043, %v1182
      %v1184 = vpop.f32.mrf.mxu0
      %v1185 = vadd.f32 %v1045, %v1184
      %1186 = vmatmul.bf16.gmra.mxu0 %v1106
      %v1187 = vpop.f32.mrf.mxu0
      %v1188 = vadd.f32 %v1048, %v1187
      %v1189 = vpop.f32.mrf.mxu0
      %v1190 = vadd.f32 %v1050, %v1189
      %1191 = vmatmul.bf16.gmra.mxu0 %v1109
      %v1192 = vpop.f32.mrf.mxu0
      %v1193 = vadd.f32 %v1053, %v1192
      %v1194 = vpop.f32.mrf.mxu0
      %v1195 = vadd.f32 %v1055, %v1194
      %1196 = vmatmul.bf16.gmra.mxu0 %v1112
      %v1197 = vpop.f32.mrf.mxu0
      %v1198 = vadd.f32 %v1058, %v1197
      %v1199 = vpop.f32.mrf.mxu0
      %v1200 = vadd.f32 %v1060, %v1199
      %1201 = vmatmul.bf16.gmra.mxu0 %v1115
      %v1202 = vpop.f32.mrf.mxu0
      %v1203 = vadd.f32 %v1063, %v1202
      %v1204 = vpop.f32.mrf.mxu0
      %v1205 = vadd.f32 %v1065, %v1204
      %1206 = vmatmul.bf16.gmra.mxu0 %v1118
      %v1207 = vpop.f32.mrf.mxu0
      %v1208 = vadd.f32 %v1068, %v1207
      %v1209 = vpop.f32.mrf.mxu0
      %v1210 = vadd.f32 %v1070, %v1209
      %1211 = vdwg.mxu0
      %v1212 = vld [vmem:[#allocation2 + $0x9] sm:$0xff]
      %v1213 = vld [vmem:[#allocation2 + $0x11] sm:$0xff]
      %v1214 = vld [vmem:[#allocation2 + $0x19] sm:$0xff]
      %v1215 = vld [vmem:[#allocation2 + $0x21] sm:$0xff]
      %v1216 = vld [vmem:[#allocation2 + $0x29] sm:$0xff]
      %v1217 = vld [vmem:[#allocation2 + $0x31] sm:$0xff]
      %v1218 = vld [vmem:[#allocation2 + $0x39] sm:$0xff]
      %v1219 = vld [vmem:[#allocation2 + $0x41] sm:$0xff]
      %v1220 = vld [vmem:[#allocation2 + $0x49] sm:$0xff]
      %v1221 = vld [vmem:[#allocation2 + $0x51] sm:$0xff]
      %v1222 = vld [vmem:[#allocation2 + $0x59] sm:$0xff]
      %v1223 = vld [vmem:[#allocation2 + $0x61] sm:$0xff]
      %v1224 = vld [vmem:[#allocation2 + $0x69] sm:$0xff]
      %v1225 = vld [vmem:[#allocation2 + $0x71] sm:$0xff]
      %v1226 = vld [vmem:[#allocation2 + $0x79] sm:$0xff]
      %v1227 = vld [vmem:[#allocation2 + $0x81] sm:$0xff]
      %v1228 = vld [vmem:[#allocation2 + $0x89] sm:$0xff]
      %v1229 = vld [vmem:[#allocation2 + $0x91] sm:$0xff]
      %v1230 = vld [vmem:[#allocation2 + $0x99] sm:$0xff]
      %v1231 = vld [vmem:[#allocation2 + $0xa1] sm:$0xff]
      %v1232 = vld [vmem:[#allocation2 + $0xa9] sm:$0xff]
      %v1233 = vld [vmem:[#allocation2 + $0xb1] sm:$0xff]
      %v1234 = vld [vmem:[#allocation2 + $0xb9] sm:$0xff]
      %v1235 = vld [vmem:[#allocation2 + $0xc1] sm:$0xff]
      %v1236 = vld [vmem:[#allocation2 + $0xc9] sm:$0xff]
      %v1237 = vld [vmem:[#allocation2 + $0xd1] sm:$0xff]
      %v1238 = vld [vmem:[#allocation2 + $0xd9] sm:$0xff]
      %v1239 = vld [vmem:[#allocation2 + $0xe1] sm:$0xff]
      %v1240 = vld [vmem:[#allocation2 + $0xe9] sm:$0xff]
      %v1241 = vld [vmem:[#allocation2 + $0xf1] sm:$0xff]
      %v1242 = vld [vmem:[#allocation2 + $0xf9] sm:$0xff]
      %v1243 = vld [vmem:[#allocation2 + $0x101] sm:$0xff]
      %1245 = vset.pattern.permute.xlu0 0
      %1246 = vperm.xlu0 %1245, %v608
      %v1247 = vpop.permute.xlu0 %1246
      %1250 = vset.pattern.permute.xlu0 0
      %1251 = vperm.xlu0 %1250, %v609
      %v1252 = vpop.permute.xlu0 %1251
      %1255 = vset.pattern.permute.xlu0 0
      %1256 = vperm.xlu0 %1255, %v610
      %v1257 = vpop.permute.xlu0 %1256
      %1260 = vset.pattern.permute.xlu0 0
      %1261 = vperm.xlu0 %1260, %v611
      %v1262 = vpop.permute.xlu0 %1261
      %1265 = vset.pattern.permute.xlu0 0
      %1266 = vperm.xlu0 %1265, %v612
      %v1267 = vpop.permute.xlu0 %1266
      %1270 = vset.pattern.permute.xlu0 0
      %1271 = vperm.xlu0 %1270, %v613
      %v1272 = vpop.permute.xlu0 %1271
      %1275 = vset.pattern.permute.xlu0 0
      %1276 = vperm.xlu0 %1275, %v614
      %v1277 = vpop.permute.xlu0 %1276
      %1280 = vset.pattern.permute.xlu0 0
      %1281 = vperm.xlu0 %1280, %v615
      %v1282 = vpop.permute.xlu0 %1281
      %1285 = vset.pattern.permute.xlu0 0
      %1286 = vperm.xlu0 %1285, %v616
      %v1287 = vpop.permute.xlu0 %1286
      %1290 = vset.pattern.permute.xlu0 0
      %1291 = vperm.xlu0 %1290, %v617
      %v1292 = vpop.permute.xlu0 %1291
      %1295 = vset.pattern.permute.xlu0 0
      %1296 = vperm.xlu0 %1295, %v618
      %v1297 = vpop.permute.xlu0 %1296
      %1300 = vset.pattern.permute.xlu0 0
      %1301 = vperm.xlu0 %1300, %v619
      %v1302 = vpop.permute.xlu0 %1301
      %1305 = vset.pattern.permute.xlu0 0
      %1306 = vperm.xlu0 %1305, %v620
      %v1307 = vpop.permute.xlu0 %1306
      %1310 = vset.pattern.permute.xlu0 0
      %1311 = vperm.xlu0 %1310, %v621
      %v1312 = vpop.permute.xlu0 %1311
      %1315 = vset.pattern.permute.xlu0 0
      %1316 = vperm.xlu0 %1315, %v622
      %v1317 = vpop.permute.xlu0 %1316
      %1320 = vset.pattern.permute.xlu0 0
      %1321 = vperm.xlu0 %1320, %v623
      %v1322 = vpop.permute.xlu0 %1321
      %1325 = vset.pattern.permute.xlu0 0
      %1326 = vperm.xlu0 %1325, %v624
      %v1327 = vpop.permute.xlu0 %1326
      %1330 = vset.pattern.permute.xlu0 0
      %1331 = vperm.xlu0 %1330, %v625
      %v1332 = vpop.permute.xlu0 %1331
      %1335 = vset.pattern.permute.xlu0 0
      %1336 = vperm.xlu0 %1335, %v626
      %v1337 = vpop.permute.xlu0 %1336
      %1340 = vset.pattern.permute.xlu0 0
      %1341 = vperm.xlu0 %1340, %v627
      %v1342 = vpop.permute.xlu0 %1341
      %1345 = vset.pattern.permute.xlu0 0
      %1346 = vperm.xlu0 %1345, %v628
      %v1347 = vpop.permute.xlu0 %1346
      %1350 = vset.pattern.permute.xlu0 0
      %1351 = vperm.xlu0 %1350, %v629
      %v1352 = vpop.permute.xlu0 %1351
      %1355 = vset.pattern.permute.xlu0 0
      %1356 = vperm.xlu0 %1355, %v630
      %v1357 = vpop.permute.xlu0 %1356
      %1360 = vset.pattern.permute.xlu0 0
      %1361 = vperm.xlu0 %1360, %v631
      %v1362 = vpop.permute.xlu0 %1361
      %1365 = vset.pattern.permute.xlu0 0
      %1366 = vperm.xlu0 %1365, %v632
      %v1367 = vpop.permute.xlu0 %1366
      %1370 = vset.pattern.permute.xlu0 0
      %1371 = vperm.xlu0 %1370, %v633
      %v1372 = vpop.permute.xlu0 %1371
      %1375 = vset.pattern.permute.xlu0 0
      %1376 = vperm.xlu0 %1375, %v634
      %v1377 = vpop.permute.xlu0 %1376
      %1380 = vset.pattern.permute.xlu0 0
      %1381 = vperm.xlu0 %1380, %v635
      %v1382 = vpop.permute.xlu0 %1381
      %1385 = vset.pattern.permute.xlu0 0
      %1386 = vperm.xlu0 %1385, %v636
      %v1387 = vpop.permute.xlu0 %1386
      %1390 = vset.pattern.permute.xlu0 0
      %1391 = vperm.xlu0 %1390, %v637
      %v1392 = vpop.permute.xlu0 %1391
      %1395 = vset.pattern.permute.xlu0 0
      %1396 = vperm.xlu0 %1395, %v638
      %v1397 = vpop.permute.xlu0 %1396
      %1400 = vset.pattern.permute.xlu0 0
      %1401 = vperm.xlu0 %1400, %v639
      %v1402 = vpop.permute.xlu0 %1401
      %v1404 = vmul.f32 %v1212, %v1247
      %v1405 = vmul.f32 %v1213, %v1252
      %v1406 = vmul.f32 %v1214, %v1257
      %v1407 = vmul.f32 %v1215, %v1262
      %v1408 = vmul.f32 %v1216, %v1267
      %v1409 = vmul.f32 %v1217, %v1272
      %v1410 = vmul.f32 %v1218, %v1277
      %v1411 = vmul.f32 %v1219, %v1282
      %v1412 = vmul.f32 %v1220, %v1287
      %v1413 = vmul.f32 %v1221, %v1292
      %v1414 = vmul.f32 %v1222, %v1297
      %v1415 = vmul.f32 %v1223, %v1302
      %v1416 = vmul.f32 %v1224, %v1307
      %v1417 = vmul.f32 %v1225, %v1312
      %v1418 = vmul.f32 %v1226, %v1317
      %v1419 = vmul.f32 %v1227, %v1322
      %v1420 = vmul.f32 %v1228, %v1327
      %v1421 = vmul.f32 %v1229, %v1332
      %v1422 = vmul.f32 %v1230, %v1337
      %v1423 = vmul.f32 %v1231, %v1342
      %v1424 = vmul.f32 %v1232, %v1347
      %v1425 = vmul.f32 %v1233, %v1352
      %v1426 = vmul.f32 %v1234, %v1357
      %v1427 = vmul.f32 %v1235, %v1362
      %v1428 = vmul.f32 %v1236, %v1367
      %v1429 = vmul.f32 %v1237, %v1372
      %v1430 = vmul.f32 %v1238, %v1377
      %v1431 = vmul.f32 %v1239, %v1382
      %v1432 = vmul.f32 %v1240, %v1387
      %v1433 = vmul.f32 %v1241, %v1392
      %v1434 = vmul.f32 %v1242, %v1397
      %v1435 = vmul.f32 %v1243, %v1402
      %v1436 = vpack.c.bf16 %v1405, %v1404
      %v1437 = vpack.c.bf16 %v1407, %v1406
      %v1438 = vpack.c.bf16 %v1409, %v1408
      %v1439 = vpack.c.bf16 %v1411, %v1410
      %v1440 = vpack.c.bf16 %v1413, %v1412
      %v1441 = vpack.c.bf16 %v1415, %v1414
      %v1442 = vpack.c.bf16 %v1417, %v1416
      %v1443 = vpack.c.bf16 %v1419, %v1418
      %v1444 = vpack.c.bf16 %v1421, %v1420
      %v1445 = vpack.c.bf16 %v1423, %v1422
      %v1446 = vpack.c.bf16 %v1425, %v1424
      %v1447 = vpack.c.bf16 %v1427, %v1426
      %v1448 = vpack.c.bf16 %v1429, %v1428
      %v1449 = vpack.c.bf16 %v1431, %v1430
      %v1450 = vpack.c.bf16 %v1433, %v1432
      %v1451 = vpack.c.bf16 %v1435, %v1434
      %s1452 = scalar_lea.vmem %s6, 8
      %v1453 = vld [vmem:[%s1452] sm:$0xf]
      %v1455 = vsel %vm305, %v1436, 0
      %v1458 = vsel %vm305, %v1437, 0
      %v1461 = vsel %vm305, %v1438, 0
      %v1464 = vsel %vm305, %v1439, 0
      %v1467 = vsel %vm305, %v1440, 0
      %v1470 = vsel %vm305, %v1441, 0
      %v1473 = vsel %vm305, %v1442, 0
      %v1476 = vsel %vm305, %v1443, 0
      %v1479 = vsel %vm305, %v1444, 0
      %v1482 = vsel %vm305, %v1445, 0
      %v1485 = vsel %vm305, %v1446, 0
      %v1488 = vsel %vm305, %v1447, 0
      %v1491 = vsel %vm305, %v1448, 0
      %v1494 = vsel %vm305, %v1449, 0
      %v1497 = vsel %vm305, %v1450, 0
      %v1500 = vsel %vm305, %v1451, 0
      %v1503 = vsel %vm979, %v1453, 0
      %1505 = vmatpush.bf16.msra.mxu0 0
      %1506 = vmatpush.bf16.msra.mxu0 0
      %1507 = vmatpush.bf16.msra.mxu0 0
      %1508 = vmatpush.bf16.msra.mxu0 0
      %1509 = vmatpush.bf16.msra.mxu0 0
      %1510 = vmatpush.bf16.msra.mxu0 0
      %1511 = vmatpush.bf16.msra.mxu0 0
      %1512 = vmatpush.bf16.msra.mxu0 %v1503
      %1513 = vmatmul.bf16.gmra.mxu0 %v1455
      %v1514 = vpop.f32.mrf.mxu0
      %v1515 = vadd.f32 0.0, %v1514
      %v1516 = vpop.f32.mrf.mxu0
      %v1517 = vadd.f32 0.0, %v1516
      %1518 = vmatmul.bf16.gmra.mxu0 %v1458
      %v1519 = vpop.f32.mrf.mxu0
      %v1520 = vadd.f32 0.0, %v1519
      %v1521 = vpop.f32.mrf.mxu0
      %v1522 = vadd.f32 0.0, %v1521
      %1523 = vmatmul.bf16.gmra.mxu0 %v1461
      %v1524 = vpop.f32.mrf.mxu0
      %v1525 = vadd.f32 0.0, %v1524
      %v1526 = vpop.f32.mrf.mxu0
      %v1527 = vadd.f32 0.0, %v1526
      %1528 = vmatmul.bf16.gmra.mxu0 %v1464
      %v1529 = vpop.f32.mrf.mxu0
      %v1530 = vadd.f32 0.0, %v1529
      %v1531 = vpop.f32.mrf.mxu0
      %v1532 = vadd.f32 0.0, %v1531
      %1533 = vmatmul.bf16.gmra.mxu0 %v1467
      %v1534 = vpop.f32.mrf.mxu0
      %v1535 = vadd.f32 0.0, %v1534
      %v1536 = vpop.f32.mrf.mxu0
      %v1537 = vadd.f32 0.0, %v1536
      %1538 = vmatmul.bf16.gmra.mxu0 %v1470
      %v1539 = vpop.f32.mrf.mxu0
      %v1540 = vadd.f32 0.0, %v1539
      %v1541 = vpop.f32.mrf.mxu0
      %v1542 = vadd.f32 0.0, %v1541
      %1543 = vmatmul.bf16.gmra.mxu0 %v1473
      %v1544 = vpop.f32.mrf.mxu0
      %v1545 = vadd.f32 0.0, %v1544
      %v1546 = vpop.f32.mrf.mxu0
      %v1547 = vadd.f32 0.0, %v1546
      %1548 = vmatmul.bf16.gmra.mxu0 %v1476
      %v1549 = vpop.f32.mrf.mxu0
      %v1550 = vadd.f32 0.0, %v1549
      %v1551 = vpop.f32.mrf.mxu0
      %v1552 = vadd.f32 0.0, %v1551
      %1553 = vmatmul.bf16.gmra.mxu0 %v1479
      %v1554 = vpop.f32.mrf.mxu0
      %v1555 = vadd.f32 0.0, %v1554
      %v1556 = vpop.f32.mrf.mxu0
      %v1557 = vadd.f32 0.0, %v1556
      %1558 = vmatmul.bf16.gmra.mxu0 %v1482
      %v1559 = vpop.f32.mrf.mxu0
      %v1560 = vadd.f32 0.0, %v1559
      %v1561 = vpop.f32.mrf.mxu0
      %v1562 = vadd.f32 0.0, %v1561
      %1563 = vmatmul.bf16.gmra.mxu0 %v1485
      %v1564 = vpop.f32.mrf.mxu0
      %v1565 = vadd.f32 0.0, %v1564
      %v1566 = vpop.f32.mrf.mxu0
      %v1567 = vadd.f32 0.0, %v1566
      %1568 = vmatmul.bf16.gmra.mxu0 %v1488
      %v1569 = vpop.f32.mrf.mxu0
      %v1570 = vadd.f32 0.0, %v1569
      %v1571 = vpop.f32.mrf.mxu0
      %v1572 = vadd.f32 0.0, %v1571
      %1573 = vmatmul.bf16.gmra.mxu0 %v1491
      %v1574 = vpop.f32.mrf.mxu0
      %v1575 = vadd.f32 0.0, %v1574
      %v1576 = vpop.f32.mrf.mxu0
      %v1577 = vadd.f32 0.0, %v1576
      %1578 = vmatmul.bf16.gmra.mxu0 %v1494
      %v1579 = vpop.f32.mrf.mxu0
      %v1580 = vadd.f32 0.0, %v1579
      %v1581 = vpop.f32.mrf.mxu0
      %v1582 = vadd.f32 0.0, %v1581
      %1583 = vmatmul.bf16.gmra.mxu0 %v1497
      %v1584 = vpop.f32.mrf.mxu0
      %v1585 = vadd.f32 0.0, %v1584
      %v1586 = vpop.f32.mrf.mxu0
      %v1587 = vadd.f32 0.0, %v1586
      %1588 = vmatmul.bf16.gmra.mxu0 %v1500
      %v1589 = vpop.f32.mrf.mxu0
      %v1590 = vadd.f32 0.0, %v1589
      %v1591 = vpop.f32.mrf.mxu0
      %v1592 = vadd.f32 0.0, %v1591
      %1593 = vdwg.mxu0
      %v1594 = vadd.f32 %v1133, %v1515
      %v1595 = vadd.f32 %v1135, %v1517
      %v1596 = vadd.f32 %v1138, %v1520
      %v1597 = vadd.f32 %v1140, %v1522
      %v1598 = vadd.f32 %v1143, %v1525
      %v1599 = vadd.f32 %v1145, %v1527
      %v1600 = vadd.f32 %v1148, %v1530
      %v1601 = vadd.f32 %v1150, %v1532
      %v1602 = vadd.f32 %v1153, %v1535
      %v1603 = vadd.f32 %v1155, %v1537
      %v1604 = vadd.f32 %v1158, %v1540
      %v1605 = vadd.f32 %v1160, %v1542
      %v1606 = vadd.f32 %v1163, %v1545
      %v1607 = vadd.f32 %v1165, %v1547
      %v1608 = vadd.f32 %v1168, %v1550
      %v1609 = vadd.f32 %v1170, %v1552
      %v1610 = vadd.f32 %v1173, %v1555
      %v1611 = vadd.f32 %v1175, %v1557
      %v1612 = vadd.f32 %v1178, %v1560
      %v1613 = vadd.f32 %v1180, %v1562
      %v1614 = vadd.f32 %v1183, %v1565
      %v1615 = vadd.f32 %v1185, %v1567
      %v1616 = vadd.f32 %v1188, %v1570
      %v1617 = vadd.f32 %v1190, %v1572
      %v1618 = vadd.f32 %v1193, %v1575
      %v1619 = vadd.f32 %v1195, %v1577
      %v1620 = vadd.f32 %v1198, %v1580
      %v1621 = vadd.f32 %v1200, %v1582
      %v1622 = vadd.f32 %v1203, %v1585
      %v1623 = vadd.f32 %v1205, %v1587
      %v1624 = vadd.f32 %v1208, %v1590
      %v1625 = vadd.f32 %v1210, %v1592
      %v1626 = vld [vmem:[#allocation2 + $0x17] sm:$0xff]
      %v1627 = vld [vmem:[#allocation2 + $0x1f] sm:$0xff]
      %v1628 = vld [vmem:[#allocation2 + $0x27] sm:$0xff]
      %v1629 = vld [vmem:[#allocation2 + $0x2f] sm:$0xff]
      %v1630 = vld [vmem:[#allocation2 + $0x37] sm:$0xff]
      %v1631 = vld [vmem:[#allocation2 + $0x3f] sm:$0xff]
      %v1632 = vld [vmem:[#allocation2 + $0x47] sm:$0xff]
      %v1633 = vld [vmem:[#allocation2 + $0x4f] sm:$0xff]
      %v1634 = vld [vmem:[#allocation2 + $0x57] sm:$0xff]
      %v1635 = vld [vmem:[#allocation2 + $0x5f] sm:$0xff]
      %v1636 = vld [vmem:[#allocation2 + $0x67] sm:$0xff]
      %v1637 = vld [vmem:[#allocation2 + $0x6f] sm:$0xff]
      %v1638 = vld [vmem:[#allocation2 + $0x77] sm:$0xff]
      %v1639 = vld [vmem:[#allocation2 + $0x7f] sm:$0xff]
      %v1640 = vld [vmem:[#allocation2 + $0x87] sm:$0xff]
      %v1641 = vld [vmem:[#allocation2 + $0x8f] sm:$0xff]
      %v1642 = vld [vmem:[#allocation2 + $0x97] sm:$0xff]
      %v1643 = vld [vmem:[#allocation2 + $0x9f] sm:$0xff]
      %v1644 = vld [vmem:[#allocation2 + $0xa7] sm:$0xff]
      %v1645 = vld [vmem:[#allocation2 + $0xaf] sm:$0xff]
      %v1646 = vld [vmem:[#allocation2 + $0xb7] sm:$0xff]
      %v1647 = vld [vmem:[#allocation2 + $0xbf] sm:$0xff]
      %v1648 = vld [vmem:[#allocation2 + $0xc7] sm:$0xff]
      %v1649 = vld [vmem:[#allocation2 + $0xcf] sm:$0xff]
      %v1650 = vld [vmem:[#allocation2 + $0xd7] sm:$0xff]
      %v1651 = vld [vmem:[#allocation2 + $0xdf] sm:$0xff]
      %v1652 = vld [vmem:[#allocation2 + $0xe7] sm:$0xff]
      %v1653 = vld [vmem:[#allocation2 + $0xef] sm:$0xff]
      %v1654 = vld [vmem:[#allocation2 + $0xf7] sm:$0xff]
      %v1655 = vld [vmem:[#allocation2 + $0xff] sm:$0xff]
      %v1656 = vld [vmem:[#allocation2 + $0x107] sm:$0xff]
      %v1657 = vld [vmem:[#allocation2 + $0x10f] sm:$0xff]
      %v1658 = vmul.f32 %v1626, %v675
      %v1659 = vmul.f32 %v1627, %v680
      %v1660 = vmul.f32 %v1628, %v685
      %v1661 = vmul.f32 %v1629, %v690
      %v1662 = vmul.f32 %v1630, %v695
      %v1663 = vmul.f32 %v1631, %v700
      %v1664 = vmul.f32 %v1632, %v705
      %v1665 = vmul.f32 %v1633, %v710
      %v1666 = vmul.f32 %v1634, %v715
      %v1667 = vmul.f32 %v1635, %v720
      %v1668 = vmul.f32 %v1636, %v725
      %v1669 = vmul.f32 %v1637, %v730
      %v1670 = vmul.f32 %v1638, %v735
      %v1671 = vmul.f32 %v1639, %v740
      %v1672 = vmul.f32 %v1640, %v745
      %v1673 = vmul.f32 %v1641, %v750
      %v1674 = vmul.f32 %v1642, %v755
      %v1675 = vmul.f32 %v1643, %v760
      %v1676 = vmul.f32 %v1644, %v765
      %v1677 = vmul.f32 %v1645, %v770
      %v1678 = vmul.f32 %v1646, %v775
      %v1679 = vmul.f32 %v1647, %v780
      %v1680 = vmul.f32 %v1648, %v785
      %v1681 = vmul.f32 %v1649, %v790
      %v1682 = vmul.f32 %v1650, %v795
      %v1683 = vmul.f32 %v1651, %v800
      %v1684 = vmul.f32 %v1652, %v805
      %v1685 = vmul.f32 %v1653, %v810
      %v1686 = vmul.f32 %v1654, %v815
      %v1687 = vmul.f32 %v1655, %v820
      %v1688 = vmul.f32 %v1656, %v825
      %v1689 = vmul.f32 %v1657, %v830
      %v1690 = vpack.c.bf16 %v1659, %v1658
      %v1691 = vpack.c.bf16 %v1661, %v1660
      %v1692 = vpack.c.bf16 %v1663, %v1662
      %v1693 = vpack.c.bf16 %v1665, %v1664
      %v1694 = vpack.c.bf16 %v1667, %v1666
      %v1695 = vpack.c.bf16 %v1669, %v1668
      %v1696 = vpack.c.bf16 %v1671, %v1670
      %v1697 = vpack.c.bf16 %v1673, %v1672
      %v1698 = vpack.c.bf16 %v1675, %v1674
      %v1699 = vpack.c.bf16 %v1677, %v1676
      %v1700 = vpack.c.bf16 %v1679, %v1678
      %v1701 = vpack.c.bf16 %v1681, %v1680
      %v1702 = vpack.c.bf16 %v1683, %v1682
      %v1703 = vpack.c.bf16 %v1685, %v1684
      %v1704 = vpack.c.bf16 %v1687, %v1686
      %v1705 = vpack.c.bf16 %v1689, %v1688
      %s1706 = scalar_lea.vmem %s6, 12
      %v1707 = vld [vmem:[%s1706] sm:$0xf]
      %v1709 = vsel %vm305, %v1690, 0
      %v1712 = vsel %vm305, %v1691, 0
      %v1715 = vsel %vm305, %v1692, 0
      %v1718 = vsel %vm305, %v1693, 0
      %v1721 = vsel %vm305, %v1694, 0
      %v1724 = vsel %vm305, %v1695, 0
      %v1727 = vsel %vm305, %v1696, 0
      %v1730 = vsel %vm305, %v1697, 0
      %v1733 = vsel %vm305, %v1698, 0
      %v1736 = vsel %vm305, %v1699, 0
      %v1739 = vsel %vm305, %v1700, 0
      %v1742 = vsel %vm305, %v1701, 0
      %v1745 = vsel %vm305, %v1702, 0
      %v1748 = vsel %vm305, %v1703, 0
      %v1751 = vsel %vm305, %v1704, 0
      %v1754 = vsel %vm305, %v1705, 0
      %v1757 = vsel %vm979, %v1707, 0
      %1759 = vmatpush.bf16.msra.mxu0 0
      %1760 = vmatpush.bf16.msra.mxu0 0
      %1761 = vmatpush.bf16.msra.mxu0 0
      %1762 = vmatpush.bf16.msra.mxu0 0
      %1763 = vmatpush.bf16.msra.mxu0 0
      %1764 = vmatpush.bf16.msra.mxu0 0
      %1765 = vmatpush.bf16.msra.mxu0 0
      %1766 = vmatpush.bf16.msra.mxu0 %v1757
      %1767 = vmatmul.bf16.gmra.mxu0 %v1709
      %v1768 = vpop.f32.mrf.mxu0
      %v1769 = vadd.f32 0.0, %v1768
      %v1770 = vpop.f32.mrf.mxu0
      %v1771 = vadd.f32 0.0, %v1770
      %1772 = vmatmul.bf16.gmra.mxu0 %v1712
      %v1773 = vpop.f32.mrf.mxu0
      %v1774 = vadd.f32 0.0, %v1773
      %v1775 = vpop.f32.mrf.mxu0
      %v1776 = vadd.f32 0.0, %v1775
      %1777 = vmatmul.bf16.gmra.mxu0 %v1715
      %v1778 = vpop.f32.mrf.mxu0
      %v1779 = vadd.f32 0.0, %v1778
      %v1780 = vpop.f32.mrf.mxu0
      %v1781 = vadd.f32 0.0, %v1780
      %1782 = vmatmul.bf16.gmra.mxu0 %v1718
      %v1783 = vpop.f32.mrf.mxu0
      %v1784 = vadd.f32 0.0, %v1783
      %v1785 = vpop.f32.mrf.mxu0
      %v1786 = vadd.f32 0.0, %v1785
      %1787 = vmatmul.bf16.gmra.mxu0 %v1721
      %v1788 = vpop.f32.mrf.mxu0
      %v1789 = vadd.f32 0.0, %v1788
      %v1790 = vpop.f32.mrf.mxu0
      %v1791 = vadd.f32 0.0, %v1790
      %1792 = vmatmul.bf16.gmra.mxu0 %v1724
      %v1793 = vpop.f32.mrf.mxu0
      %v1794 = vadd.f32 0.0, %v1793
      %v1795 = vpop.f32.mrf.mxu0
      %v1796 = vadd.f32 0.0, %v1795
      %1797 = vmatmul.bf16.gmra.mxu0 %v1727
      %v1798 = vpop.f32.mrf.mxu0
      %v1799 = vadd.f32 0.0, %v1798
      %v1800 = vpop.f32.mrf.mxu0
      %v1801 = vadd.f32 0.0, %v1800
      %1802 = vmatmul.bf16.gmra.mxu0 %v1730
      %v1803 = vpop.f32.mrf.mxu0
      %v1804 = vadd.f32 0.0, %v1803
      %v1805 = vpop.f32.mrf.mxu0
      %v1806 = vadd.f32 0.0, %v1805
      %1807 = vmatmul.bf16.gmra.mxu0 %v1733
      %v1808 = vpop.f32.mrf.mxu0
      %v1809 = vadd.f32 0.0, %v1808
      %v1810 = vpop.f32.mrf.mxu0
      %v1811 = vadd.f32 0.0, %v1810
      %1812 = vmatmul.bf16.gmra.mxu0 %v1736
      %v1813 = vpop.f32.mrf.mxu0
      %v1814 = vadd.f32 0.0, %v1813
      %v1815 = vpop.f32.mrf.mxu0
      %v1816 = vadd.f32 0.0, %v1815
      %1817 = vmatmul.bf16.gmra.mxu0 %v1739
      %v1818 = vpop.f32.mrf.mxu0
      %v1819 = vadd.f32 0.0, %v1818
      %v1820 = vpop.f32.mrf.mxu0
      %v1821 = vadd.f32 0.0, %v1820
      %1822 = vmatmul.bf16.gmra.mxu0 %v1742
      %v1823 = vpop.f32.mrf.mxu0
      %v1824 = vadd.f32 0.0, %v1823
      %v1825 = vpop.f32.mrf.mxu0
      %v1826 = vadd.f32 0.0, %v1825
      %1827 = vmatmul.bf16.gmra.mxu0 %v1745
      %v1828 = vpop.f32.mrf.mxu0
      %v1829 = vadd.f32 0.0, %v1828
      %v1830 = vpop.f32.mrf.mxu0
      %v1831 = vadd.f32 0.0, %v1830
      %1832 = vmatmul.bf16.gmra.mxu0 %v1748
      %v1833 = vpop.f32.mrf.mxu0
      %v1834 = vadd.f32 0.0, %v1833
      %v1835 = vpop.f32.mrf.mxu0
      %v1836 = vadd.f32 0.0, %v1835
      %1837 = vmatmul.bf16.gmra.mxu0 %v1751
      %v1838 = vpop.f32.mrf.mxu0
      %v1839 = vadd.f32 0.0, %v1838
      %v1840 = vpop.f32.mrf.mxu0
      %v1841 = vadd.f32 0.0, %v1840
      %1842 = vmatmul.bf16.gmra.mxu0 %v1754
      %v1843 = vpop.f32.mrf.mxu0
      %v1844 = vadd.f32 0.0, %v1843
      %v1845 = vpop.f32.mrf.mxu0
      %v1846 = vadd.f32 0.0, %v1845
      %1847 = vdwg.mxu0
      %v1848 = vadd.f32 %v1594, %v1769
      %v1849 = vadd.f32 %v1595, %v1771
      %v1850 = vadd.f32 %v1596, %v1774
      %v1851 = vadd.f32 %v1597, %v1776
      %v1852 = vadd.f32 %v1598, %v1779
      %v1853 = vadd.f32 %v1599, %v1781
      %v1854 = vadd.f32 %v1600, %v1784
      %v1855 = vadd.f32 %v1601, %v1786
      %v1856 = vadd.f32 %v1602, %v1789
      %v1857 = vadd.f32 %v1603, %v1791
      %v1858 = vadd.f32 %v1604, %v1794
      %v1859 = vadd.f32 %v1605, %v1796
      %v1860 = vadd.f32 %v1606, %v1799
      %v1861 = vadd.f32 %v1607, %v1801
      %v1862 = vadd.f32 %v1608, %v1804
      %v1863 = vadd.f32 %v1609, %v1806
      %v1864 = vadd.f32 %v1610, %v1809
      %v1865 = vadd.f32 %v1611, %v1811
      %v1866 = vadd.f32 %v1612, %v1814
      %v1867 = vadd.f32 %v1613, %v1816
      %v1868 = vadd.f32 %v1614, %v1819
      %v1869 = vadd.f32 %v1615, %v1821
      %v1870 = vadd.f32 %v1616, %v1824
      %v1871 = vadd.f32 %v1617, %v1826
      %v1872 = vadd.f32 %v1618, %v1829
      %v1873 = vadd.f32 %v1619, %v1831
      %v1874 = vadd.f32 %v1620, %v1834
      %v1875 = vadd.f32 %v1621, %v1836
      %v1876 = vadd.f32 %v1622, %v1839
      %v1877 = vadd.f32 %v1623, %v1841
      %v1878 = vadd.f32 %v1624, %v1844
      %v1879 = vadd.f32 %v1625, %v1846
      %v1880 = vld [vmem:[#allocation2 + $0x18] sm:$0xff]
      %v1881 = vld [vmem:[#allocation2 + $0x20] sm:$0xff]
      %v1882 = vld [vmem:[#allocation2 + $0x28] sm:$0xff]
      %v1883 = vld [vmem:[#allocation2 + $0x30] sm:$0xff]
      %v1884 = vld [vmem:[#allocation2 + $0x38] sm:$0xff]
      %v1885 = vld [vmem:[#allocation2 + $0x40] sm:$0xff]
      %v1886 = vld [vmem:[#allocation2 + $0x48] sm:$0xff]
      %v1887 = vld [vmem:[#allocation2 + $0x50] sm:$0xff]
      %v1888 = vld [vmem:[#allocation2 + $0x58] sm:$0xff]
      %v1889 = vld [vmem:[#allocation2 + $0x60] sm:$0xff]
      %v1890 = vld [vmem:[#allocation2 + $0x68] sm:$0xff]
      %v1891 = vld [vmem:[#allocation2 + $0x70] sm:$0xff]
      %v1892 = vld [vmem:[#allocation2 + $0x78] sm:$0xff]
      %v1893 = vld [vmem:[#allocation2 + $0x80] sm:$0xff]
      %v1894 = vld [vmem:[#allocation2 + $0x88] sm:$0xff]
      %v1895 = vld [vmem:[#allocation2 + $0x90] sm:$0xff]
      %v1896 = vld [vmem:[#allocation2 + $0x98] sm:$0xff]
      %v1897 = vld [vmem:[#allocation2 + $0xa0] sm:$0xff]
      %v1898 = vld [vmem:[#allocation2 + $0xa8] sm:$0xff]
      %v1899 = vld [vmem:[#allocation2 + $0xb0] sm:$0xff]
      %v1900 = vld [vmem:[#allocation2 + $0xb8] sm:$0xff]
      %v1901 = vld [vmem:[#allocation2 + $0xc0] sm:$0xff]
      %v1902 = vld [vmem:[#allocation2 + $0xc8] sm:$0xff]
      %v1903 = vld [vmem:[#allocation2 + $0xd0] sm:$0xff]
      %v1904 = vld [vmem:[#allocation2 + $0xd8] sm:$0xff]
      %v1905 = vld [vmem:[#allocation2 + $0xe0] sm:$0xff]
      %v1906 = vld [vmem:[#allocation2 + $0xe8] sm:$0xff]
      %v1907 = vld [vmem:[#allocation2 + $0xf0] sm:$0xff]
      %v1908 = vld [vmem:[#allocation2 + $0xf8] sm:$0xff]
      %v1909 = vld [vmem:[#allocation2 + $0x100] sm:$0xff]
      %v1910 = vld [vmem:[#allocation2 + $0x108] sm:$0xff]
      %v1911 = vld [vmem:[#allocation2 + $0x110] sm:$0xff]
      %v1912 = vpack.c.bf16 %v1881, %v1880
      %v1913 = vpack.c.bf16 %v1883, %v1882
      %v1914 = vpack.c.bf16 %v1885, %v1884
      %v1915 = vpack.c.bf16 %v1887, %v1886
      %v1916 = vpack.c.bf16 %v1889, %v1888
      %v1917 = vpack.c.bf16 %v1891, %v1890
      %v1918 = vpack.c.bf16 %v1893, %v1892
      %v1919 = vpack.c.bf16 %v1895, %v1894
      %v1920 = vpack.c.bf16 %v1897, %v1896
      %v1921 = vpack.c.bf16 %v1899, %v1898
      %v1922 = vpack.c.bf16 %v1901, %v1900
      %v1923 = vpack.c.bf16 %v1903, %v1902
      %v1924 = vpack.c.bf16 %v1905, %v1904
      %v1925 = vpack.c.bf16 %v1907, %v1906
      %v1926 = vpack.c.bf16 %v1909, %v1908
      %v1927 = vpack.c.bf16 %v1911, %v1910
      %s1928 = scalar_lea.vmem %s6, 16
      %v1929 = vld [vmem:[%s1928] sm:$0xf]
      %v1931 = vsel %vm305, %v1912, 0
      %v1934 = vsel %vm305, %v1913, 0
      %v1937 = vsel %vm305, %v1914, 0
      %v1940 = vsel %vm305, %v1915, 0
      %v1943 = vsel %vm305, %v1916, 0
      %v1946 = vsel %vm305, %v1917, 0
      %v1949 = vsel %vm305, %v1918, 0
      %v1952 = vsel %vm305, %v1919, 0
      %v1955 = vsel %vm305, %v1920, 0
      %v1958 = vsel %vm305, %v1921, 0
      %v1961 = vsel %vm305, %v1922, 0
      %v1964 = vsel %vm305, %v1923, 0
      %v1967 = vsel %vm305, %v1924, 0
      %v1970 = vsel %vm305, %v1925, 0
      %v1973 = vsel %vm305, %v1926, 0
      %v1976 = vsel %vm305, %v1927, 0
      %v1979 = vsel %vm979, %v1929, 0
      %1981 = vmatpush.bf16.msra.mxu0 0
      %1982 = vmatpush.bf16.msra.mxu0 0
      %1983 = vmatpush.bf16.msra.mxu0 0
      %1984 = vmatpush.bf16.msra.mxu0 0
      %1985 = vmatpush.bf16.msra.mxu0 0
      %1986 = vmatpush.bf16.msra.mxu0 0
      %1987 = vmatpush.bf16.msra.mxu0 0
      %1988 = vmatpush.bf16.msra.mxu0 %v1979
      %1989 = vmatmul.bf16.gmra.mxu0 %v1931
      %v1990 = vpop.f32.mrf.mxu0
      %v1991 = vadd.f32 0.0, %v1990
      %v1992 = vpop.f32.mrf.mxu0
      %v1993 = vadd.f32 0.0, %v1992
      %1994 = vmatmul.bf16.gmra.mxu0 %v1934
      %v1995 = vpop.f32.mrf.mxu0
      %v1996 = vadd.f32 0.0, %v1995
      %v1997 = vpop.f32.mrf.mxu0
      %v1998 = vadd.f32 0.0, %v1997
      %1999 = vmatmul.bf16.gmra.mxu0 %v1937
      %v2000 = vpop.f32.mrf.mxu0
      %v2001 = vadd.f32 0.0, %v2000
      %v2002 = vpop.f32.mrf.mxu0
      %v2003 = vadd.f32 0.0, %v2002
      %2004 = vmatmul.bf16.gmra.mxu0 %v1940
      %v2005 = vpop.f32.mrf.mxu0
      %v2006 = vadd.f32 0.0, %v2005
      %v2007 = vpop.f32.mrf.mxu0
      %v2008 = vadd.f32 0.0, %v2007
      %2009 = vmatmul.bf16.gmra.mxu0 %v1943
      %v2010 = vpop.f32.mrf.mxu0
      %v2011 = vadd.f32 0.0, %v2010
      %v2012 = vpop.f32.mrf.mxu0
      %v2013 = vadd.f32 0.0, %v2012
      %2014 = vmatmul.bf16.gmra.mxu0 %v1946
      %v2015 = vpop.f32.mrf.mxu0
      %v2016 = vadd.f32 0.0, %v2015
      %v2017 = vpop.f32.mrf.mxu0
      %v2018 = vadd.f32 0.0, %v2017
      %2019 = vmatmul.bf16.gmra.mxu0 %v1949
      %v2020 = vpop.f32.mrf.mxu0
      %v2021 = vadd.f32 0.0, %v2020
      %v2022 = vpop.f32.mrf.mxu0
      %v2023 = vadd.f32 0.0, %v2022
      %2024 = vmatmul.bf16.gmra.mxu0 %v1952
      %v2025 = vpop.f32.mrf.mxu0
      %v2026 = vadd.f32 0.0, %v2025
      %v2027 = vpop.f32.mrf.mxu0
      %v2028 = vadd.f32 0.0, %v2027
      %2029 = vmatmul.bf16.gmra.mxu0 %v1955
      %v2030 = vpop.f32.mrf.mxu0
      %v2031 = vadd.f32 0.0, %v2030
      %v2032 = vpop.f32.mrf.mxu0
      %v2033 = vadd.f32 0.0, %v2032
      %2034 = vmatmul.bf16.gmra.mxu0 %v1958
      %v2035 = vpop.f32.mrf.mxu0
      %v2036 = vadd.f32 0.0, %v2035
      %v2037 = vpop.f32.mrf.mxu0
      %v2038 = vadd.f32 0.0, %v2037
      %2039 = vmatmul.bf16.gmra.mxu0 %v1961
      %v2040 = vpop.f32.mrf.mxu0
      %v2041 = vadd.f32 0.0, %v2040
      %v2042 = vpop.f32.mrf.mxu0
      %v2043 = vadd.f32 0.0, %v2042
      %2044 = vmatmul.bf16.gmra.mxu0 %v1964
      %v2045 = vpop.f32.mrf.mxu0
      %v2046 = vadd.f32 0.0, %v2045
      %v2047 = vpop.f32.mrf.mxu0
      %v2048 = vadd.f32 0.0, %v2047
      %2049 = vmatmul.bf16.gmra.mxu0 %v1967
      %v2050 = vpop.f32.mrf.mxu0
      %v2051 = vadd.f32 0.0, %v2050
      %v2052 = vpop.f32.mrf.mxu0
      %v2053 = vadd.f32 0.0, %v2052
      %2054 = vmatmul.bf16.gmra.mxu0 %v1970
      %v2055 = vpop.f32.mrf.mxu0
      %v2056 = vadd.f32 0.0, %v2055
      %v2057 = vpop.f32.mrf.mxu0
      %v2058 = vadd.f32 0.0, %v2057
      %2059 = vmatmul.bf16.gmra.mxu0 %v1973
      %v2060 = vpop.f32.mrf.mxu0
      %v2061 = vadd.f32 0.0, %v2060
      %v2062 = vpop.f32.mrf.mxu0
      %v2063 = vadd.f32 0.0, %v2062
      %2064 = vmatmul.bf16.gmra.mxu0 %v1976
      %v2065 = vpop.f32.mrf.mxu0
      %v2066 = vadd.f32 0.0, %v2065
      %v2067 = vpop.f32.mrf.mxu0
      %v2068 = vadd.f32 0.0, %v2067
      %2069 = vdwg.mxu0
      %v2070 = vadd.f32 %v1848, %v1991
      %v2071 = vadd.f32 %v1849, %v1993
      %v2072 = vadd.f32 %v1850, %v1996
      %v2073 = vadd.f32 %v1851, %v1998
      %v2074 = vadd.f32 %v1852, %v2001
      %v2075 = vadd.f32 %v1853, %v2003
      %v2076 = vadd.f32 %v1854, %v2006
      %v2077 = vadd.f32 %v1855, %v2008
      %v2078 = vadd.f32 %v1856, %v2011
      %v2079 = vadd.f32 %v1857, %v2013
      %v2080 = vadd.f32 %v1858, %v2016
      %v2081 = vadd.f32 %v1859, %v2018
      %v2082 = vadd.f32 %v1860, %v2021
      %v2083 = vadd.f32 %v1861, %v2023
      %v2084 = vadd.f32 %v1862, %v2026
      %v2085 = vadd.f32 %v1863, %v2028
      %v2086 = vadd.f32 %v1864, %v2031
      %v2087 = vadd.f32 %v1865, %v2033
      %v2088 = vadd.f32 %v1866, %v2036
      %v2089 = vadd.f32 %v1867, %v2038
      %v2090 = vadd.f32 %v1868, %v2041
      %v2091 = vadd.f32 %v1869, %v2043
      %v2092 = vadd.f32 %v1870, %v2046
      %v2093 = vadd.f32 %v1871, %v2048
      %v2094 = vadd.f32 %v1872, %v2051
      %v2095 = vadd.f32 %v1873, %v2053
      %v2096 = vadd.f32 %v1874, %v2056
      %v2097 = vadd.f32 %v1875, %v2058
      %v2098 = vadd.f32 %v1876, %v2061
      %v2099 = vadd.f32 %v1877, %v2063
      %v2100 = vadd.f32 %v1878, %v2066
      %v2101 = vadd.f32 %v1879, %v2068
      %v2102 = vld [vmem:[#allocation2 + $0x19] sm:$0xff]
      %v2103 = vld [vmem:[#allocation2 + $0x21] sm:$0xff]
      %v2104 = vld [vmem:[#allocation2 + $0x29] sm:$0xff]
      %v2105 = vld [vmem:[#allocation2 + $0x31] sm:$0xff]
      %v2106 = vld [vmem:[#allocation2 + $0x39] sm:$0xff]
      %v2107 = vld [vmem:[#allocation2 + $0x41] sm:$0xff]
      %v2108 = vld [vmem:[#allocation2 + $0x49] sm:$0xff]
      %v2109 = vld [vmem:[#allocation2 + $0x51] sm:$0xff]
      %v2110 = vld [vmem:[#allocation2 + $0x59] sm:$0xff]
      %v2111 = vld [vmem:[#allocation2 + $0x61] sm:$0xff]
      %v2112 = vld [vmem:[#allocation2 + $0x69] sm:$0xff]
      %v2113 = vld [vmem:[#allocation2 + $0x71] sm:$0xff]
      %v2114 = vld [vmem:[#allocation2 + $0x79] sm:$0xff]
      %v2115 = vld [vmem:[#allocation2 + $0x81] sm:$0xff]
      %v2116 = vld [vmem:[#allocation2 + $0x89] sm:$0xff]
      %v2117 = vld [vmem:[#allocation2 + $0x91] sm:$0xff]
      %v2118 = vld [vmem:[#allocation2 + $0x99] sm:$0xff]
      %v2119 = vld [vmem:[#allocation2 + $0xa1] sm:$0xff]
      %v2120 = vld [vmem:[#allocation2 + $0xa9] sm:$0xff]
      %v2121 = vld [vmem:[#allocation2 + $0xb1] sm:$0xff]
      %v2122 = vld [vmem:[#allocation2 + $0xb9] sm:$0xff]
      %v2123 = vld [vmem:[#allocation2 + $0xc1] sm:$0xff]
      %v2124 = vld [vmem:[#allocation2 + $0xc9] sm:$0xff]
      %v2125 = vld [vmem:[#allocation2 + $0xd1] sm:$0xff]
      %v2126 = vld [vmem:[#allocation2 + $0xd9] sm:$0xff]
      %v2127 = vld [vmem:[#allocation2 + $0xe1] sm:$0xff]
      %v2128 = vld [vmem:[#allocation2 + $0xe9] sm:$0xff]
      %v2129 = vld [vmem:[#allocation2 + $0xf1] sm:$0xff]
      %v2130 = vld [vmem:[#allocation2 + $0xf9] sm:$0xff]
      %v2131 = vld [vmem:[#allocation2 + $0x101] sm:$0xff]
      %v2132 = vld [vmem:[#allocation2 + $0x109] sm:$0xff]
      %v2133 = vld [vmem:[#allocation2 + $0x111] sm:$0xff]
      %v2134 = vmul.f32 %v2102, %v1247
      %v2135 = vmul.f32 %v2103, %v1252
      %v2136 = vmul.f32 %v2104, %v1257
      %v2137 = vmul.f32 %v2105, %v1262
      %v2138 = vmul.f32 %v2106, %v1267
      %v2139 = vmul.f32 %v2107, %v1272
      %v2140 = vmul.f32 %v2108, %v1277
      %v2141 = vmul.f32 %v2109, %v1282
      %v2142 = vmul.f32 %v2110, %v1287
      %v2143 = vmul.f32 %v2111, %v1292
      %v2144 = vmul.f32 %v2112, %v1297
      %v2145 = vmul.f32 %v2113, %v1302
      %v2146 = vmul.f32 %v2114, %v1307
      %v2147 = vmul.f32 %v2115, %v1312
      %v2148 = vmul.f32 %v2116, %v1317
      %v2149 = vmul.f32 %v2117, %v1322
      %v2150 = vmul.f32 %v2118, %v1327
      %v2151 = vmul.f32 %v2119, %v1332
      %v2152 = vmul.f32 %v2120, %v1337
      %v2153 = vmul.f32 %v2121, %v1342
      %v2154 = vmul.f32 %v2122, %v1347
      %v2155 = vmul.f32 %v2123, %v1352
      %v2156 = vmul.f32 %v2124, %v1357
      %v2157 = vmul.f32 %v2125, %v1362
      %v2158 = vmul.f32 %v2126, %v1367
      %v2159 = vmul.f32 %v2127, %v1372
      %v2160 = vmul.f32 %v2128, %v1377
      %v2161 = vmul.f32 %v2129, %v1382
      %v2162 = vmul.f32 %v2130, %v1387
      %v2163 = vmul.f32 %v2131, %v1392
      %v2164 = vmul.f32 %v2132, %v1397
      %v2165 = vmul.f32 %v2133, %v1402
      %v2166 = vpack.c.bf16 %v2135, %v2134
      %v2167 = vpack.c.bf16 %v2137, %v2136
      %v2168 = vpack.c.bf16 %v2139, %v2138
      %v2169 = vpack.c.bf16 %v2141, %v2140
      %v2170 = vpack.c.bf16 %v2143, %v2142
      %v2171 = vpack.c.bf16 %v2145, %v2144
      %v2172 = vpack.c.bf16 %v2147, %v2146
      %v2173 = vpack.c.bf16 %v2149, %v2148
      %v2174 = vpack.c.bf16 %v2151, %v2150
      %v2175 = vpack.c.bf16 %v2153, %v2152
      %v2176 = vpack.c.bf16 %v2155, %v2154
      %v2177 = vpack.c.bf16 %v2157, %v2156
      %v2178 = vpack.c.bf16 %v2159, %v2158
      %v2179 = vpack.c.bf16 %v2161, %v2160
      %v2180 = vpack.c.bf16 %v2163, %v2162
      %v2181 = vpack.c.bf16 %v2165, %v2164
      %s2182 = scalar_lea.vmem %s6, 20
      %v2183 = vld [vmem:[%s2182] sm:$0xf]
      %v2185 = vsel %vm305, %v2166, 0
      %v2188 = vsel %vm305, %v2167, 0
      %v2191 = vsel %vm305, %v2168, 0
      %v2194 = vsel %vm305, %v2169, 0
      %v2197 = vsel %vm305, %v2170, 0
      %v2200 = vsel %vm305, %v2171, 0
      %v2203 = vsel %vm305, %v2172, 0
      %v2206 = vsel %vm305, %v2173, 0
      %v2209 = vsel %vm305, %v2174, 0
      %v2212 = vsel %vm305, %v2175, 0
      %v2215 = vsel %vm305, %v2176, 0
      %v2218 = vsel %vm305, %v2177, 0
      %v2221 = vsel %vm305, %v2178, 0
      %v2224 = vsel %vm305, %v2179, 0
      %v2227 = vsel %vm305, %v2180, 0
      %v2230 = vsel %vm305, %v2181, 0
      %v2233 = vsel %vm979, %v2183, 0
      %2235 = vmatpush.bf16.msra.mxu0 0
      %2236 = vmatpush.bf16.msra.mxu0 0
      %2237 = vmatpush.bf16.msra.mxu0 0
      %2238 = vmatpush.bf16.msra.mxu0 0
      %2239 = vmatpush.bf16.msra.mxu0 0
      %2240 = vmatpush.bf16.msra.mxu0 0
      %2241 = vmatpush.bf16.msra.mxu0 0
      %2242 = vmatpush.bf16.msra.mxu0 %v2233
      %2243 = vmatmul.bf16.gmra.mxu0 %v2185
      %v2244 = vpop.f32.mrf.mxu0
      %v2245 = vadd.f32 0.0, %v2244
      %v2246 = vpop.f32.mrf.mxu0
      %v2247 = vadd.f32 0.0, %v2246
      %2248 = vmatmul.bf16.gmra.mxu0 %v2188
      %v2249 = vpop.f32.mrf.mxu0
      %v2250 = vadd.f32 0.0, %v2249
      %v2251 = vpop.f32.mrf.mxu0
      %v2252 = vadd.f32 0.0, %v2251
      %2253 = vmatmul.bf16.gmra.mxu0 %v2191
      %v2254 = vpop.f32.mrf.mxu0
      %v2255 = vadd.f32 0.0, %v2254
      %v2256 = vpop.f32.mrf.mxu0
      %v2257 = vadd.f32 0.0, %v2256
      %2258 = vmatmul.bf16.gmra.mxu0 %v2194
      %v2259 = vpop.f32.mrf.mxu0
      %v2260 = vadd.f32 0.0, %v2259
      %v2261 = vpop.f32.mrf.mxu0
      %v2262 = vadd.f32 0.0, %v2261
      %2263 = vmatmul.bf16.gmra.mxu0 %v2197
      %v2264 = vpop.f32.mrf.mxu0
      %v2265 = vadd.f32 0.0, %v2264
      %v2266 = vpop.f32.mrf.mxu0
      %v2267 = vadd.f32 0.0, %v2266
      %2268 = vmatmul.bf16.gmra.mxu0 %v2200
      %v2269 = vpop.f32.mrf.mxu0
      %v2270 = vadd.f32 0.0, %v2269
      %v2271 = vpop.f32.mrf.mxu0
      %v2272 = vadd.f32 0.0, %v2271
      %2273 = vmatmul.bf16.gmra.mxu0 %v2203
      %v2274 = vpop.f32.mrf.mxu0
      %v2275 = vadd.f32 0.0, %v2274
      %v2276 = vpop.f32.mrf.mxu0
      %v2277 = vadd.f32 0.0, %v2276
      %2278 = vmatmul.bf16.gmra.mxu0 %v2206
      %v2279 = vpop.f32.mrf.mxu0
      %v2280 = vadd.f32 0.0, %v2279
      %v2281 = vpop.f32.mrf.mxu0
      %v2282 = vadd.f32 0.0, %v2281
      %2283 = vmatmul.bf16.gmra.mxu0 %v2209
      %v2284 = vpop.f32.mrf.mxu0
      %v2285 = vadd.f32 0.0, %v2284
      %v2286 = vpop.f32.mrf.mxu0
      %v2287 = vadd.f32 0.0, %v2286
      %2288 = vmatmul.bf16.gmra.mxu0 %v2212
      %v2289 = vpop.f32.mrf.mxu0
      %v2290 = vadd.f32 0.0, %v2289
      %v2291 = vpop.f32.mrf.mxu0
      %v2292 = vadd.f32 0.0, %v2291
      %2293 = vmatmul.bf16.gmra.mxu0 %v2215
      %v2294 = vpop.f32.mrf.mxu0
      %v2295 = vadd.f32 0.0, %v2294
      %v2296 = vpop.f32.mrf.mxu0
      %v2297 = vadd.f32 0.0, %v2296
      %2298 = vmatmul.bf16.gmra.mxu0 %v2218
      %v2299 = vpop.f32.mrf.mxu0
      %v2300 = vadd.f32 0.0, %v2299
      %v2301 = vpop.f32.mrf.mxu0
      %v2302 = vadd.f32 0.0, %v2301
      %2303 = vmatmul.bf16.gmra.mxu0 %v2221
      %v2304 = vpop.f32.mrf.mxu0
      %v2305 = vadd.f32 0.0, %v2304
      %v2306 = vpop.f32.mrf.mxu0
      %v2307 = vadd.f32 0.0, %v2306
      %2308 = vmatmul.bf16.gmra.mxu0 %v2224
      %v2309 = vpop.f32.mrf.mxu0
      %v2310 = vadd.f32 0.0, %v2309
      %v2311 = vpop.f32.mrf.mxu0
      %v2312 = vadd.f32 0.0, %v2311
      %2313 = vmatmul.bf16.gmra.mxu0 %v2227
      %v2314 = vpop.f32.mrf.mxu0
      %v2315 = vadd.f32 0.0, %v2314
      %v2316 = vpop.f32.mrf.mxu0
      %v2317 = vadd.f32 0.0, %v2316
      %2318 = vmatmul.bf16.gmra.mxu0 %v2230
      %v2319 = vpop.f32.mrf.mxu0
      %v2320 = vadd.f32 0.0, %v2319
      %v2321 = vpop.f32.mrf.mxu0
      %v2322 = vadd.f32 0.0, %v2321
      %2323 = vdwg.mxu0
      %v2324 = vadd.f32 %v2070, %v2245
      %v2325 = vadd.f32 %v2071, %v2247
      %v2326 = vadd.f32 %v2072, %v2250
      %v2327 = vadd.f32 %v2073, %v2252
      %v2328 = vadd.f32 %v2074, %v2255
      %v2329 = vadd.f32 %v2075, %v2257
      %v2330 = vadd.f32 %v2076, %v2260
      %v2331 = vadd.f32 %v2077, %v2262
      %v2332 = vadd.f32 %v2078, %v2265
      %v2333 = vadd.f32 %v2079, %v2267
      %v2334 = vadd.f32 %v2080, %v2270
      %v2335 = vadd.f32 %v2081, %v2272
      %v2336 = vadd.f32 %v2082, %v2275
      %v2337 = vadd.f32 %v2083, %v2277
      %v2338 = vadd.f32 %v2084, %v2280
      %v2339 = vadd.f32 %v2085, %v2282
      %v2340 = vadd.f32 %v2086, %v2285
      %v2341 = vadd.f32 %v2087, %v2287
      %v2342 = vadd.f32 %v2088, %v2290
      %v2343 = vadd.f32 %v2089, %v2292
      %v2344 = vadd.f32 %v2090, %v2295
      %v2345 = vadd.f32 %v2091, %v2297
      %v2346 = vadd.f32 %v2092, %v2300
      %v2347 = vadd.f32 %v2093, %v2302
      %v2348 = vadd.f32 %v2094, %v2305
      %v2349 = vadd.f32 %v2095, %v2307
      %v2350 = vadd.f32 %v2096, %v2310
      %v2351 = vadd.f32 %v2097, %v2312
      %v2352 = vadd.f32 %v2098, %v2315
      %v2353 = vadd.f32 %v2099, %v2317
      %v2354 = vadd.f32 %v2100, %v2320
      %v2355 = vadd.f32 %v2101, %v2322
      %v2356 = vld [vmem:[#allocation2 + $0x27] sm:$0xff]
      %v2357 = vld [vmem:[#allocation2 + $0x2f] sm:$0xff]
      %v2358 = vld [vmem:[#allocation2 + $0x37] sm:$0xff]
      %v2359 = vld [vmem:[#allocation2 + $0x3f] sm:$0xff]
      %v2360 = vld [vmem:[#allocation2 + $0x47] sm:$0xff]
      %v2361 = vld [vmem:[#allocation2 + $0x4f] sm:$0xff]
      %v2362 = vld [vmem:[#allocation2 + $0x57] sm:$0xff]
      %v2363 = vld [vmem:[#allocation2 + $0x5f] sm:$0xff]
      %v2364 = vld [vmem:[#allocation2 + $0x67] sm:$0xff]
      %v2365 = vld [vmem:[#allocation2 + $0x6f] sm:$0xff]
      %v2366 = vld [vmem:[#allocation2 + $0x77] sm:$0xff]
      %v2367 = vld [vmem:[#allocation2 + $0x7f] sm:$0xff]
      %v2368 = vld [vmem:[#allocation2 + $0x87] sm:$0xff]
      %v2369 = vld [vmem:[#allocation2 + $0x8f] sm:$0xff]
      %v2370 = vld [vmem:[#allocation2 + $0x97] sm:$0xff]
      %v2371 = vld [vmem:[#allocation2 + $0x9f] sm:$0xff]
      %v2372 = vld [vmem:[#allocation2 + $0xa7] sm:$0xff]
      %v2373 = vld [vmem:[#allocation2 + $0xaf] sm:$0xff]
      %v2374 = vld [vmem:[#allocation2 + $0xb7] sm:$0xff]
      %v2375 = vld [vmem:[#allocation2 + $0xbf] sm:$0xff]
      %v2376 = vld [vmem:[#allocation2 + $0xc7] sm:$0xff]
      %v2377 = vld [vmem:[#allocation2 + $0xcf] sm:$0xff]
      %v2378 = vld [vmem:[#allocation2 + $0xd7] sm:$0xff]
      %v2379 = vld [vmem:[#allocation2 + $0xdf] sm:$0xff]
      %v2380 = vld [vmem:[#allocation2 + $0xe7] sm:$0xff]
      %v2381 = vld [vmem:[#allocation2 + $0xef] sm:$0xff]
      %v2382 = vld [vmem:[#allocation2 + $0xf7] sm:$0xff]
      %v2383 = vld [vmem:[#allocation2 + $0xff] sm:$0xff]
      %v2384 = vld [vmem:[#allocation2 + $0x107] sm:$0xff]
      %v2385 = vld [vmem:[#allocation2 + $0x10f] sm:$0xff]
      %v2386 = vld [vmem:[#allocation2 + $0x117] sm:$0xff]
      %v2387 = vld [vmem:[#allocation2 + $0x11f] sm:$0xff]
      %v2388 = vmul.f32 %v2356, %v675
      %v2389 = vmul.f32 %v2357, %v680
      %v2390 = vmul.f32 %v2358, %v685
      %v2391 = vmul.f32 %v2359, %v690
      %v2392 = vmul.f32 %v2360, %v695
      %v2393 = vmul.f32 %v2361, %v700
      %v2394 = vmul.f32 %v2362, %v705
      %v2395 = vmul.f32 %v2363, %v710
      %v2396 = vmul.f32 %v2364, %v715
      %v2397 = vmul.f32 %v2365, %v720
      %v2398 = vmul.f32 %v2366, %v725
      %v2399 = vmul.f32 %v2367, %v730
      %v2400 = vmul.f32 %v2368, %v735
      %v2401 = vmul.f32 %v2369, %v740
      %v2402 = vmul.f32 %v2370, %v745
      %v2403 = vmul.f32 %v2371, %v750
      %v2404 = vmul.f32 %v2372, %v755
      %v2405 = vmul.f32 %v2373, %v760
      %v2406 = vmul.f32 %v2374, %v765
      %v2407 = vmul.f32 %v2375, %v770
      %v2408 = vmul.f32 %v2376, %v775
      %v2409 = vmul.f32 %v2377, %v780
      %v2410 = vmul.f32 %v2378, %v785
      %v2411 = vmul.f32 %v2379, %v790
      %v2412 = vmul.f32 %v2380, %v795
      %v2413 = vmul.f32 %v2381, %v800
      %v2414 = vmul.f32 %v2382, %v805
      %v2415 = vmul.f32 %v2383, %v810
      %v2416 = vmul.f32 %v2384, %v815
      %v2417 = vmul.f32 %v2385, %v820
      %v2418 = vmul.f32 %v2386, %v825
      %v2419 = vmul.f32 %v2387, %v830
      %v2420 = vpack.c.bf16 %v2389, %v2388
      %v2421 = vpack.c.bf16 %v2391, %v2390
      %v2422 = vpack.c.bf16 %v2393, %v2392
      %v2423 = vpack.c.bf16 %v2395, %v2394
      %v2424 = vpack.c.bf16 %v2397, %v2396
      %v2425 = vpack.c.bf16 %v2399, %v2398
      %v2426 = vpack.c.bf16 %v2401, %v2400
      %v2427 = vpack.c.bf16 %v2403, %v2402
      %v2428 = vpack.c.bf16 %v2405, %v2404
      %v2429 = vpack.c.bf16 %v2407, %v2406
      %v2430 = vpack.c.bf16 %v2409, %v2408
      %v2431 = vpack.c.bf16 %v2411, %v2410
      %v2432 = vpack.c.bf16 %v2413, %v2412
      %v2433 = vpack.c.bf16 %v2415, %v2414
      %v2434 = vpack.c.bf16 %v2417, %v2416
      %v2435 = vpack.c.bf16 %v2419, %v2418
      %s2436 = scalar_lea.vmem %s6, 24
      %v2437 = vld [vmem:[%s2436] sm:$0xf]
      %v2439 = vsel %vm305, %v2420, 0
      %v2442 = vsel %vm305, %v2421, 0
      %v2445 = vsel %vm305, %v2422, 0
      %v2448 = vsel %vm305, %v2423, 0
      %v2451 = vsel %vm305, %v2424, 0
      %v2454 = vsel %vm305, %v2425, 0
      %v2457 = vsel %vm305, %v2426, 0
      %v2460 = vsel %vm305, %v2427, 0
      %v2463 = vsel %vm305, %v2428, 0
      %v2466 = vsel %vm305, %v2429, 0
      %v2469 = vsel %vm305, %v2430, 0
      %v2472 = vsel %vm305, %v2431, 0
      %v2475 = vsel %vm305, %v2432, 0
      %v2478 = vsel %vm305, %v2433, 0
      %v2481 = vsel %vm305, %v2434, 0
      %v2484 = vsel %vm305, %v2435, 0
      %v2487 = vsel %vm979, %v2437, 0
      %2489 = vmatpush.bf16.msra.mxu0 0
      %2490 = vmatpush.bf16.msra.mxu0 0
      %2491 = vmatpush.bf16.msra.mxu0 0
      %2492 = vmatpush.bf16.msra.mxu0 0
      %2493 = vmatpush.bf16.msra.mxu0 0
      %2494 = vmatpush.bf16.msra.mxu0 0
      %2495 = vmatpush.bf16.msra.mxu0 0
      %2496 = vmatpush.bf16.msra.mxu0 %v2487
      %2497 = vmatmul.bf16.gmra.mxu0 %v2439
      %v2498 = vpop.f32.mrf.mxu0
      %v2499 = vadd.f32 0.0, %v2498
      %v2500 = vpop.f32.mrf.mxu0
      %v2501 = vadd.f32 0.0, %v2500
      %2502 = vmatmul.bf16.gmra.mxu0 %v2442
      %v2503 = vpop.f32.mrf.mxu0
      %v2504 = vadd.f32 0.0, %v2503
      %v2505 = vpop.f32.mrf.mxu0
      %v2506 = vadd.f32 0.0, %v2505
      %2507 = vmatmul.bf16.gmra.mxu0 %v2445
      %v2508 = vpop.f32.mrf.mxu0
      %v2509 = vadd.f32 0.0, %v2508
      %v2510 = vpop.f32.mrf.mxu0
      %v2511 = vadd.f32 0.0, %v2510
      %2512 = vmatmul.bf16.gmra.mxu0 %v2448
      %v2513 = vpop.f32.mrf.mxu0
      %v2514 = vadd.f32 0.0, %v2513
      %v2515 = vpop.f32.mrf.mxu0
      %v2516 = vadd.f32 0.0, %v2515
      %2517 = vmatmul.bf16.gmra.mxu0 %v2451
      %v2518 = vpop.f32.mrf.mxu0
      %v2519 = vadd.f32 0.0, %v2518
      %v2520 = vpop.f32.mrf.mxu0
      %v2521 = vadd.f32 0.0, %v2520
      %2522 = vmatmul.bf16.gmra.mxu0 %v2454
      %v2523 = vpop.f32.mrf.mxu0
      %v2524 = vadd.f32 0.0, %v2523
      %v2525 = vpop.f32.mrf.mxu0
      %v2526 = vadd.f32 0.0, %v2525
      %2527 = vmatmul.bf16.gmra.mxu0 %v2457
      %v2528 = vpop.f32.mrf.mxu0
      %v2529 = vadd.f32 0.0, %v2528
      %v2530 = vpop.f32.mrf.mxu0
      %v2531 = vadd.f32 0.0, %v2530
      %2532 = vmatmul.bf16.gmra.mxu0 %v2460
      %v2533 = vpop.f32.mrf.mxu0
      %v2534 = vadd.f32 0.0, %v2533
      %v2535 = vpop.f32.mrf.mxu0
      %v2536 = vadd.f32 0.0, %v2535
      %2537 = vmatmul.bf16.gmra.mxu0 %v2463
      %v2538 = vpop.f32.mrf.mxu0
      %v2539 = vadd.f32 0.0, %v2538
      %v2540 = vpop.f32.mrf.mxu0
      %v2541 = vadd.f32 0.0, %v2540
      %2542 = vmatmul.bf16.gmra.mxu0 %v2466
      %v2543 = vpop.f32.mrf.mxu0
      %v2544 = vadd.f32 0.0, %v2543
      %v2545 = vpop.f32.mrf.mxu0
      %v2546 = vadd.f32 0.0, %v2545
      %2547 = vmatmul.bf16.gmra.mxu0 %v2469
      %v2548 = vpop.f32.mrf.mxu0
      %v2549 = vadd.f32 0.0, %v2548
      %v2550 = vpop.f32.mrf.mxu0
      %v2551 = vadd.f32 0.0, %v2550
      %2552 = vmatmul.bf16.gmra.mxu0 %v2472
      %v2553 = vpop.f32.mrf.mxu0
      %v2554 = vadd.f32 0.0, %v2553
      %v2555 = vpop.f32.mrf.mxu0
      %v2556 = vadd.f32 0.0, %v2555
      %2557 = vmatmul.bf16.gmra.mxu0 %v2475
      %v2558 = vpop.f32.mrf.mxu0
      %v2559 = vadd.f32 0.0, %v2558
      %v2560 = vpop.f32.mrf.mxu0
      %v2561 = vadd.f32 0.0, %v2560
      %2562 = vmatmul.bf16.gmra.mxu0 %v2478
      %v2563 = vpop.f32.mrf.mxu0
      %v2564 = vadd.f32 0.0, %v2563
      %v2565 = vpop.f32.mrf.mxu0
      %v2566 = vadd.f32 0.0, %v2565
      %2567 = vmatmul.bf16.gmra.mxu0 %v2481
      %v2568 = vpop.f32.mrf.mxu0
      %v2569 = vadd.f32 0.0, %v2568
      %v2570 = vpop.f32.mrf.mxu0
      %v2571 = vadd.f32 0.0, %v2570
      %2572 = vmatmul.bf16.gmra.mxu0 %v2484
      %v2573 = vpop.f32.mrf.mxu0
      %v2574 = vadd.f32 0.0, %v2573
      %v2575 = vpop.f32.mrf.mxu0
      %v2576 = vadd.f32 0.0, %v2575
      %2577 = vdwg.mxu0
      %v2578 = vadd.f32 %v2324, %v2499
      %v2579 = vadd.f32 %v2325, %v2501
      %v2580 = vadd.f32 %v2326, %v2504
      %v2581 = vadd.f32 %v2327, %v2506
      %v2582 = vadd.f32 %v2328, %v2509
      %v2583 = vadd.f32 %v2329, %v2511
      %v2584 = vadd.f32 %v2330, %v2514
      %v2585 = vadd.f32 %v2331, %v2516
      %v2586 = vadd.f32 %v2332, %v2519
      %v2587 = vadd.f32 %v2333, %v2521
      %v2588 = vadd.f32 %v2334, %v2524
      %v2589 = vadd.f32 %v2335, %v2526
      %v2590 = vadd.f32 %v2336, %v2529
      %v2591 = vadd.f32 %v2337, %v2531
      %v2592 = vadd.f32 %v2338, %v2534
      %v2593 = vadd.f32 %v2339, %v2536
      %v2594 = vadd.f32 %v2340, %v2539
      %v2595 = vadd.f32 %v2341, %v2541
      %v2596 = vadd.f32 %v2342, %v2544
      %v2597 = vadd.f32 %v2343, %v2546
      %v2598 = vadd.f32 %v2344, %v2549
      %v2599 = vadd.f32 %v2345, %v2551
      %v2600 = vadd.f32 %v2346, %v2554
      %v2601 = vadd.f32 %v2347, %v2556
      %v2602 = vadd.f32 %v2348, %v2559
      %v2603 = vadd.f32 %v2349, %v2561
      %v2604 = vadd.f32 %v2350, %v2564
      %v2605 = vadd.f32 %v2351, %v2566
      %v2606 = vadd.f32 %v2352, %v2569
      %v2607 = vadd.f32 %v2353, %v2571
      %v2608 = vadd.f32 %v2354, %v2574
      %v2609 = vadd.f32 %v2355, %v2576
      %v2610 = vld [vmem:[#allocation2 + $0x28] sm:$0xff]
      %v2611 = vld [vmem:[#allocation2 + $0x30] sm:$0xff]
      %v2612 = vld [vmem:[#allocation2 + $0x38] sm:$0xff]
      %v2613 = vld [vmem:[#allocation2 + $0x40] sm:$0xff]
      %v2614 = vld [vmem:[#allocation2 + $0x48] sm:$0xff]
      %v2615 = vld [vmem:[#allocation2 + $0x50] sm:$0xff]
      %v2616 = vld [vmem:[#allocation2 + $0x58] sm:$0xff]
      %v2617 = vld [vmem:[#allocation2 + $0x60] sm:$0xff]
      %v2618 = vld [vmem:[#allocation2 + $0x68] sm:$0xff]
      %v2619 = vld [vmem:[#allocation2 + $0x70] sm:$0xff]
      %v2620 = vld [vmem:[#allocation2 + $0x78] sm:$0xff]
      %v2621 = vld [vmem:[#allocation2 + $0x80] sm:$0xff]
      %v2622 = vld [vmem:[#allocation2 + $0x88] sm:$0xff]
      %v2623 = vld [vmem:[#allocation2 + $0x90] sm:$0xff]
      %v2624 = vld [vmem:[#allocation2 + $0x98] sm:$0xff]
      %v2625 = vld [vmem:[#allocation2 + $0xa0] sm:$0xff]
      %v2626 = vld [vmem:[#allocation2 + $0xa8] sm:$0xff]
      %v2627 = vld [vmem:[#allocation2 + $0xb0] sm:$0xff]
      %v2628 = vld [vmem:[#allocation2 + $0xb8] sm:$0xff]
      %v2629 = vld [vmem:[#allocation2 + $0xc0] sm:$0xff]
      %v2630 = vld [vmem:[#allocation2 + $0xc8] sm:$0xff]
      %v2631 = vld [vmem:[#allocation2 + $0xd0] sm:$0xff]
      %v2632 = vld [vmem:[#allocation2 + $0xd8] sm:$0xff]
      %v2633 = vld [vmem:[#allocation2 + $0xe0] sm:$0xff]
      %v2634 = vld [vmem:[#allocation2 + $0xe8] sm:$0xff]
      %v2635 = vld [vmem:[#allocation2 + $0xf0] sm:$0xff]
      %v2636 = vld [vmem:[#allocation2 + $0xf8] sm:$0xff]
      %v2637 = vld [vmem:[#allocation2 + $0x100] sm:$0xff]
      %v2638 = vld [vmem:[#allocation2 + $0x108] sm:$0xff]
      %v2639 = vld [vmem:[#allocation2 + $0x110] sm:$0xff]
      %v2640 = vld [vmem:[#allocation2 + $0x118] sm:$0xff]
      %v2641 = vld [vmem:[#allocation2 + $0x120] sm:$0xff]
      %v2642 = vpack.c.bf16 %v2611, %v2610
      %v2643 = vpack.c.bf16 %v2613, %v2612
      %v2644 = vpack.c.bf16 %v2615, %v2614
      %v2645 = vpack.c.bf16 %v2617, %v2616
      %v2646 = vpack.c.bf16 %v2619, %v2618
      %v2647 = vpack.c.bf16 %v2621, %v2620
      %v2648 = vpack.c.bf16 %v2623, %v2622
      %v2649 = vpack.c.bf16 %v2625, %v2624
      %v2650 = vpack.c.bf16 %v2627, %v2626
      %v2651 = vpack.c.bf16 %v2629, %v2628
      %v2652 = vpack.c.bf16 %v2631, %v2630
      %v2653 = vpack.c.bf16 %v2633, %v2632
      %v2654 = vpack.c.bf16 %v2635, %v2634
      %v2655 = vpack.c.bf16 %v2637, %v2636
      %v2656 = vpack.c.bf16 %v2639, %v2638
      %v2657 = vpack.c.bf16 %v2641, %v2640
      %s2658 = scalar_lea.vmem %s6, 28
      %v2659 = vld [vmem:[%s2658] sm:$0xf]
      %v2661 = vsel %vm305, %v2642, 0
      %v2664 = vsel %vm305, %v2643, 0
      %v2667 = vsel %vm305, %v2644, 0
      %v2670 = vsel %vm305, %v2645, 0
      %v2673 = vsel %vm305, %v2646, 0
      %v2676 = vsel %vm305, %v2647, 0
      %v2679 = vsel %vm305, %v2648, 0
      %v2682 = vsel %vm305, %v2649, 0
      %v2685 = vsel %vm305, %v2650, 0
      %v2688 = vsel %vm305, %v2651, 0
      %v2691 = vsel %vm305, %v2652, 0
      %v2694 = vsel %vm305, %v2653, 0
      %v2697 = vsel %vm305, %v2654, 0
      %v2700 = vsel %vm305, %v2655, 0
      %v2703 = vsel %vm305, %v2656, 0
      %v2706 = vsel %vm305, %v2657, 0
      %v2709 = vsel %vm979, %v2659, 0
      %2711 = vmatpush.bf16.msra.mxu0 0
      %2712 = vmatpush.bf16.msra.mxu0 0
      %2713 = vmatpush.bf16.msra.mxu0 0
      %2714 = vmatpush.bf16.msra.mxu0 0
      %2715 = vmatpush.bf16.msra.mxu0 0
      %2716 = vmatpush.bf16.msra.mxu0 0
      %2717 = vmatpush.bf16.msra.mxu0 0
      %2718 = vmatpush.bf16.msra.mxu0 %v2709
      %2719 = vmatmul.bf16.gmra.mxu0 %v2661
      %v2720 = vpop.f32.mrf.mxu0
      %v2721 = vadd.f32 0.0, %v2720
      %v2722 = vpop.f32.mrf.mxu0
      %v2723 = vadd.f32 0.0, %v2722
      %2724 = vmatmul.bf16.gmra.mxu0 %v2664
      %v2725 = vpop.f32.mrf.mxu0
      %v2726 = vadd.f32 0.0, %v2725
      %v2727 = vpop.f32.mrf.mxu0
      %v2728 = vadd.f32 0.0, %v2727
      %2729 = vmatmul.bf16.gmra.mxu0 %v2667
      %v2730 = vpop.f32.mrf.mxu0
      %v2731 = vadd.f32 0.0, %v2730
      %v2732 = vpop.f32.mrf.mxu0
      %v2733 = vadd.f32 0.0, %v2732
      %2734 = vmatmul.bf16.gmra.mxu0 %v2670
      %v2735 = vpop.f32.mrf.mxu0
      %v2736 = vadd.f32 0.0, %v2735
      %v2737 = vpop.f32.mrf.mxu0
      %v2738 = vadd.f32 0.0, %v2737
      %2739 = vmatmul.bf16.gmra.mxu0 %v2673
      %v2740 = vpop.f32.mrf.mxu0
      %v2741 = vadd.f32 0.0, %v2740
      %v2742 = vpop.f32.mrf.mxu0
      %v2743 = vadd.f32 0.0, %v2742
      %2744 = vmatmul.bf16.gmra.mxu0 %v2676
      %v2745 = vpop.f32.mrf.mxu0
      %v2746 = vadd.f32 0.0, %v2745
      %v2747 = vpop.f32.mrf.mxu0
      %v2748 = vadd.f32 0.0, %v2747
      %2749 = vmatmul.bf16.gmra.mxu0 %v2679
      %v2750 = vpop.f32.mrf.mxu0
      %v2751 = vadd.f32 0.0, %v2750
      %v2752 = vpop.f32.mrf.mxu0
      %v2753 = vadd.f32 0.0, %v2752
      %2754 = vmatmul.bf16.gmra.mxu0 %v2682
      %v2755 = vpop.f32.mrf.mxu0
      %v2756 = vadd.f32 0.0, %v2755
      %v2757 = vpop.f32.mrf.mxu0
      %v2758 = vadd.f32 0.0, %v2757
      %2759 = vmatmul.bf16.gmra.mxu0 %v2685
      %v2760 = vpop.f32.mrf.mxu0
      %v2761 = vadd.f32 0.0, %v2760
      %v2762 = vpop.f32.mrf.mxu0
      %v2763 = vadd.f32 0.0, %v2762
      %2764 = vmatmul.bf16.gmra.mxu0 %v2688
      %v2765 = vpop.f32.mrf.mxu0
      %v2766 = vadd.f32 0.0, %v2765
      %v2767 = vpop.f32.mrf.mxu0
      %v2768 = vadd.f32 0.0, %v2767
      %2769 = vmatmul.bf16.gmra.mxu0 %v2691
      %v2770 = vpop.f32.mrf.mxu0
      %v2771 = vadd.f32 0.0, %v2770
      %v2772 = vpop.f32.mrf.mxu0
      %v2773 = vadd.f32 0.0, %v2772
      %2774 = vmatmul.bf16.gmra.mxu0 %v2694
      %v2775 = vpop.f32.mrf.mxu0
      %v2776 = vadd.f32 0.0, %v2775
      %v2777 = vpop.f32.mrf.mxu0
      %v2778 = vadd.f32 0.0, %v2777
      %2779 = vmatmul.bf16.gmra.mxu0 %v2697
      %v2780 = vpop.f32.mrf.mxu0
      %v2781 = vadd.f32 0.0, %v2780
      %v2782 = vpop.f32.mrf.mxu0
      %v2783 = vadd.f32 0.0, %v2782
      %2784 = vmatmul.bf16.gmra.mxu0 %v2700
      %v2785 = vpop.f32.mrf.mxu0
      %v2786 = vadd.f32 0.0, %v2785
      %v2787 = vpop.f32.mrf.mxu0
      %v2788 = vadd.f32 0.0, %v2787
      %2789 = vmatmul.bf16.gmra.mxu0 %v2703
      %v2790 = vpop.f32.mrf.mxu0
      %v2791 = vadd.f32 0.0, %v2790
      %v2792 = vpop.f32.mrf.mxu0
      %v2793 = vadd.f32 0.0, %v2792
      %2794 = vmatmul.bf16.gmra.mxu0 %v2706
      %v2795 = vpop.f32.mrf.mxu0
      %v2796 = vadd.f32 0.0, %v2795
      %v2797 = vpop.f32.mrf.mxu0
      %v2798 = vadd.f32 0.0, %v2797
      %2799 = vdwg.mxu0
      %v2800 = vadd.f32 %v2578, %v2721
      %v2801 = vadd.f32 %v2579, %v2723
      %v2802 = vadd.f32 %v2580, %v2726
      %v2803 = vadd.f32 %v2581, %v2728
      %v2804 = vadd.f32 %v2582, %v2731
      %v2805 = vadd.f32 %v2583, %v2733
      %v2806 = vadd.f32 %v2584, %v2736
      %v2807 = vadd.f32 %v2585, %v2738
      %v2808 = vadd.f32 %v2586, %v2741
      %v2809 = vadd.f32 %v2587, %v2743
      %v2810 = vadd.f32 %v2588, %v2746
      %v2811 = vadd.f32 %v2589, %v2748
      %v2812 = vadd.f32 %v2590, %v2751
      %v2813 = vadd.f32 %v2591, %v2753
      %v2814 = vadd.f32 %v2592, %v2756
      %v2815 = vadd.f32 %v2593, %v2758
      %v2816 = vadd.f32 %v2594, %v2761
      %v2817 = vadd.f32 %v2595, %v2763
      %v2818 = vadd.f32 %v2596, %v2766
      %v2819 = vadd.f32 %v2597, %v2768
      %v2820 = vadd.f32 %v2598, %v2771
      %v2821 = vadd.f32 %v2599, %v2773
      %v2822 = vadd.f32 %v2600, %v2776
      %v2823 = vadd.f32 %v2601, %v2778
      %v2824 = vadd.f32 %v2602, %v2781
      %v2825 = vadd.f32 %v2603, %v2783
      %v2826 = vadd.f32 %v2604, %v2786
      %v2827 = vadd.f32 %v2605, %v2788
      %v2828 = vadd.f32 %v2606, %v2791
      %v2829 = vadd.f32 %v2607, %v2793
      %v2830 = vadd.f32 %v2608, %v2796
      %v2831 = vadd.f32 %v2609, %v2798
      %v2832 = vld [vmem:[#allocation2 + $0x29] sm:$0xff]
      %v2833 = vld [vmem:[#allocation2 + $0x31] sm:$0xff]
      %v2834 = vld [vmem:[#allocation2 + $0x39] sm:$0xff]
      %v2835 = vld [vmem:[#allocation2 + $0x41] sm:$0xff]
      %v2836 = vld [vmem:[#allocation2 + $0x49] sm:$0xff]
      %v2837 = vld [vmem:[#allocation2 + $0x51] sm:$0xff]
      %v2838 = vld [vmem:[#allocation2 + $0x59] sm:$0xff]
      %v2839 = vld [vmem:[#allocation2 + $0x61] sm:$0xff]
      %v2840 = vld [vmem:[#allocation2 + $0x69] sm:$0xff]
      %v2841 = vld [vmem:[#allocation2 + $0x71] sm:$0xff]
      %v2842 = vld [vmem:[#allocation2 + $0x79] sm:$0xff]
      %v2843 = vld [vmem:[#allocation2 + $0x81] sm:$0xff]
      %v2844 = vld [vmem:[#allocation2 + $0x89] sm:$0xff]
      %v2845 = vld [vmem:[#allocation2 + $0x91] sm:$0xff]
      %v2846 = vld [vmem:[#allocation2 + $0x99] sm:$0xff]
      %v2847 = vld [vmem:[#allocation2 + $0xa1] sm:$0xff]
      %v2848 = vld [vmem:[#allocation2 + $0xa9] sm:$0xff]
      %v2849 = vld [vmem:[#allocation2 + $0xb1] sm:$0xff]
      %v2850 = vld [vmem:[#allocation2 + $0xb9] sm:$0xff]
      %v2851 = vld [vmem:[#allocation2 + $0xc1] sm:$0xff]
      %v2852 = vld [vmem:[#allocation2 + $0xc9] sm:$0xff]
      %v2853 = vld [vmem:[#allocation2 + $0xd1] sm:$0xff]
      %v2854 = vld [vmem:[#allocation2 + $0xd9] sm:$0xff]
      %v2855 = vld [vmem:[#allocation2 + $0xe1] sm:$0xff]
      %v2856 = vld [vmem:[#allocation2 + $0xe9] sm:$0xff]
      %v2857 = vld [vmem:[#allocation2 + $0xf1] sm:$0xff]
      %v2858 = vld [vmem:[#allocation2 + $0xf9] sm:$0xff]
      %v2859 = vld [vmem:[#allocation2 + $0x101] sm:$0xff]
      %v2860 = vld [vmem:[#allocation2 + $0x109] sm:$0xff]
      %v2861 = vld [vmem:[#allocation2 + $0x111] sm:$0xff]
      %v2862 = vld [vmem:[#allocation2 + $0x119] sm:$0xff]
      %v2863 = vld [vmem:[#allocation2 + $0x121] sm:$0xff]
      %v2864 = vmul.f32 %v2832, %v1247
      %v2865 = vmul.f32 %v2833, %v1252
      %v2866 = vmul.f32 %v2834, %v1257
      %v2867 = vmul.f32 %v2835, %v1262
      %v2868 = vmul.f32 %v2836, %v1267
      %v2869 = vmul.f32 %v2837, %v1272
      %v2870 = vmul.f32 %v2838, %v1277
      %v2871 = vmul.f32 %v2839, %v1282
      %v2872 = vmul.f32 %v2840, %v1287
      %v2873 = vmul.f32 %v2841, %v1292
      %v2874 = vmul.f32 %v2842, %v1297
      %v2875 = vmul.f32 %v2843, %v1302
      %v2876 = vmul.f32 %v2844, %v1307
      %v2877 = vmul.f32 %v2845, %v1312
      %v2878 = vmul.f32 %v2846, %v1317
      %v2879 = vmul.f32 %v2847, %v1322
      %v2880 = vmul.f32 %v2848, %v1327
      %v2881 = vmul.f32 %v2849, %v1332
      %v2882 = vmul.f32 %v2850, %v1337
      %v2883 = vmul.f32 %v2851, %v1342
      %v2884 = vmul.f32 %v2852, %v1347
      %v2885 = vmul.f32 %v2853, %v1352
      %v2886 = vmul.f32 %v2854, %v1357
      %v2887 = vmul.f32 %v2855, %v1362
      %v2888 = vmul.f32 %v2856, %v1367
      %v2889 = vmul.f32 %v2857, %v1372
      %v2890 = vmul.f32 %v2858, %v1377
      %v2891 = vmul.f32 %v2859, %v1382
      %v2892 = vmul.f32 %v2860, %v1387
      %v2893 = vmul.f32 %v2861, %v1392
      %v2894 = vmul.f32 %v2862, %v1397
      %v2895 = vmul.f32 %v2863, %v1402
      %v2896 = vpack.c.bf16 %v2865, %v2864
      %v2897 = vpack.c.bf16 %v2867, %v2866
      %v2898 = vpack.c.bf16 %v2869, %v2868
      %v2899 = vpack.c.bf16 %v2871, %v2870
      %v2900 = vpack.c.bf16 %v2873, %v2872
      %v2901 = vpack.c.bf16 %v2875, %v2874
      %v2902 = vpack.c.bf16 %v2877, %v2876
      %v2903 = vpack.c.bf16 %v2879, %v2878
      %v2904 = vpack.c.bf16 %v2881, %v2880
      %v2905 = vpack.c.bf16 %v2883, %v2882
      %v2906 = vpack.c.bf16 %v2885, %v2884
      %v2907 = vpack.c.bf16 %v2887, %v2886
      %v2908 = vpack.c.bf16 %v2889, %v2888
      %v2909 = vpack.c.bf16 %v2891, %v2890
      %v2910 = vpack.c.bf16 %v2893, %v2892
      %v2911 = vpack.c.bf16 %v2895, %v2894
      %s2912 = scalar_lea.vmem %s6, 32
      %v2913 = vld [vmem:[%s2912] sm:$0xf]
      %v2915 = vsel %vm305, %v2896, 0
      %v2918 = vsel %vm305, %v2897, 0
      %v2921 = vsel %vm305, %v2898, 0
      %v2924 = vsel %vm305, %v2899, 0
      %v2927 = vsel %vm305, %v2900, 0
      %v2930 = vsel %vm305, %v2901, 0
      %v2933 = vsel %vm305, %v2902, 0
      %v2936 = vsel %vm305, %v2903, 0
      %v2939 = vsel %vm305, %v2904, 0
      %v2942 = vsel %vm305, %v2905, 0
      %v2945 = vsel %vm305, %v2906, 0
      %v2948 = vsel %vm305, %v2907, 0
      %v2951 = vsel %vm305, %v2908, 0
      %v2954 = vsel %vm305, %v2909, 0
      %v2957 = vsel %vm305, %v2910, 0
      %v2960 = vsel %vm305, %v2911, 0
      %v2963 = vsel %vm979, %v2913, 0
      %2965 = vmatpush.bf16.msra.mxu0 0
      %2966 = vmatpush.bf16.msra.mxu0 0
      %2967 = vmatpush.bf16.msra.mxu0 0
      %2968 = vmatpush.bf16.msra.mxu0 0
      %2969 = vmatpush.bf16.msra.mxu0 0
      %2970 = vmatpush.bf16.msra.mxu0 0
      %2971 = vmatpush.bf16.msra.mxu0 0
      %2972 = vmatpush.bf16.msra.mxu0 %v2963
      %2973 = vmatmul.bf16.gmra.mxu0 %v2915
      %v2974 = vpop.f32.mrf.mxu0
      %v2975 = vadd.f32 0.0, %v2974
      %v2976 = vpop.f32.mrf.mxu0
      %v2977 = vadd.f32 0.0, %v2976
      %2978 = vmatmul.bf16.gmra.mxu0 %v2918
      %v2979 = vpop.f32.mrf.mxu0
      %v2980 = vadd.f32 0.0, %v2979
      %v2981 = vpop.f32.mrf.mxu0
      %v2982 = vadd.f32 0.0, %v2981
      %2983 = vmatmul.bf16.gmra.mxu0 %v2921
      %v2984 = vpop.f32.mrf.mxu0
      %v2985 = vadd.f32 0.0, %v2984
      %v2986 = vpop.f32.mrf.mxu0
      %v2987 = vadd.f32 0.0, %v2986
      %2988 = vmatmul.bf16.gmra.mxu0 %v2924
      %v2989 = vpop.f32.mrf.mxu0
      %v2990 = vadd.f32 0.0, %v2989
      %v2991 = vpop.f32.mrf.mxu0
      %v2992 = vadd.f32 0.0, %v2991
      %2993 = vmatmul.bf16.gmra.mxu0 %v2927
      %v2994 = vpop.f32.mrf.mxu0
      %v2995 = vadd.f32 0.0, %v2994
      %v2996 = vpop.f32.mrf.mxu0
      %v2997 = vadd.f32 0.0, %v2996
      %2998 = vmatmul.bf16.gmra.mxu0 %v2930
      %v2999 = vpop.f32.mrf.mxu0
      %v3000 = vadd.f32 0.0, %v2999
      %v3001 = vpop.f32.mrf.mxu0
      %v3002 = vadd.f32 0.0, %v3001
      %3003 = vmatmul.bf16.gmra.mxu0 %v2933
      %v3004 = vpop.f32.mrf.mxu0
      %v3005 = vadd.f32 0.0, %v3004
      %v3006 = vpop.f32.mrf.mxu0
      %v3007 = vadd.f32 0.0, %v3006
      %3008 = vmatmul.bf16.gmra.mxu0 %v2936
      %v3009 = vpop.f32.mrf.mxu0
      %v3010 = vadd.f32 0.0, %v3009
      %v3011 = vpop.f32.mrf.mxu0
      %v3012 = vadd.f32 0.0, %v3011
      %3013 = vmatmul.bf16.gmra.mxu0 %v2939
      %v3014 = vpop.f32.mrf.mxu0
      %v3015 = vadd.f32 0.0, %v3014
      %v3016 = vpop.f32.mrf.mxu0
      %v3017 = vadd.f32 0.0, %v3016
      %3018 = vmatmul.bf16.gmra.mxu0 %v2942
      %v3019 = vpop.f32.mrf.mxu0
      %v3020 = vadd.f32 0.0, %v3019
      %v3021 = vpop.f32.mrf.mxu0
      %v3022 = vadd.f32 0.0, %v3021
      %3023 = vmatmul.bf16.gmra.mxu0 %v2945
      %v3024 = vpop.f32.mrf.mxu0
      %v3025 = vadd.f32 0.0, %v3024
      %v3026 = vpop.f32.mrf.mxu0
      %v3027 = vadd.f32 0.0, %v3026
      %3028 = vmatmul.bf16.gmra.mxu0 %v2948
      %v3029 = vpop.f32.mrf.mxu0
      %v3030 = vadd.f32 0.0, %v3029
      %v3031 = vpop.f32.mrf.mxu0
      %v3032 = vadd.f32 0.0, %v3031
      %3033 = vmatmul.bf16.gmra.mxu0 %v2951
      %v3034 = vpop.f32.mrf.mxu0
      %v3035 = vadd.f32 0.0, %v3034
      %v3036 = vpop.f32.mrf.mxu0
      %v3037 = vadd.f32 0.0, %v3036
      %3038 = vmatmul.bf16.gmra.mxu0 %v2954
      %v3039 = vpop.f32.mrf.mxu0
      %v3040 = vadd.f32 0.0, %v3039
      %v3041 = vpop.f32.mrf.mxu0
      %v3042 = vadd.f32 0.0, %v3041
      %3043 = vmatmul.bf16.gmra.mxu0 %v2957
      %v3044 = vpop.f32.mrf.mxu0
      %v3045 = vadd.f32 0.0, %v3044
      %v3046 = vpop.f32.mrf.mxu0
      %v3047 = vadd.f32 0.0, %v3046
      %3048 = vmatmul.bf16.gmra.mxu0 %v2960
      %v3049 = vpop.f32.mrf.mxu0
      %v3050 = vadd.f32 0.0, %v3049
      %v3051 = vpop.f32.mrf.mxu0
      %v3052 = vadd.f32 0.0, %v3051
      %3053 = vdwg.mxu0
      %v3054 = vadd.f32 %v2800, %v2975
      %v3055 = vadd.f32 %v2801, %v2977
      %v3056 = vadd.f32 %v2802, %v2980
      %v3057 = vadd.f32 %v2803, %v2982
      %v3058 = vadd.f32 %v2804, %v2985
      %v3059 = vadd.f32 %v2805, %v2987
      %v3060 = vadd.f32 %v2806, %v2990
      %v3061 = vadd.f32 %v2807, %v2992
      %v3062 = vadd.f32 %v2808, %v2995
      %v3063 = vadd.f32 %v2809, %v2997
      %v3064 = vadd.f32 %v2810, %v3000
      %v3065 = vadd.f32 %v2811, %v3002
      %v3066 = vadd.f32 %v2812, %v3005
      %v3067 = vadd.f32 %v2813, %v3007
      %v3068 = vadd.f32 %v2814, %v3010
      %v3069 = vadd.f32 %v2815, %v3012
      %v3070 = vadd.f32 %v2816, %v3015
      %v3071 = vadd.f32 %v2817, %v3017
      %v3072 = vadd.f32 %v2818, %v3020
      %v3073 = vadd.f32 %v2819, %v3022
      %v3074 = vadd.f32 %v2820, %v3025
      %v3075 = vadd.f32 %v2821, %v3027
      %v3076 = vadd.f32 %v2822, %v3030
      %v3077 = vadd.f32 %v2823, %v3032
      %v3078 = vadd.f32 %v2824, %v3035
      %v3079 = vadd.f32 %v2825, %v3037
      %v3080 = vadd.f32 %v2826, %v3040
      %v3081 = vadd.f32 %v2827, %v3042
      %v3082 = vadd.f32 %v2828, %v3045
      %v3083 = vadd.f32 %v2829, %v3047
      %v3084 = vadd.f32 %v2830, %v3050
      %v3085 = vadd.f32 %v2831, %v3052
      %3086 = vst.msk [vmem:[%s302] sm:$0xff] %vm305, %v3054
      %3087 = vst.msk [vmem:[%s302 + $0x8] sm:$0xff] %vm305, %v3055
      %3088 = vst.msk [vmem:[%s302 + $0x10] sm:$0xff] %vm305, %v3056
      %3089 = vst.msk [vmem:[%s302 + $0x18] sm:$0xff] %vm305, %v3057
      %3090 = vst.msk [vmem:[%s302 + $0x20] sm:$0xff] %vm305, %v3058
      %3091 = vst.msk [vmem:[%s302 + $0x28] sm:$0xff] %vm305, %v3059
      %3092 = vst.msk [vmem:[%s302 + $0x30] sm:$0xff] %vm305, %v3060
      %3093 = vst.msk [vmem:[%s302 + $0x38] sm:$0xff] %vm305, %v3061
      %3094 = vst.msk [vmem:[%s302 + $0x40] sm:$0xff] %vm305, %v3062
      %3095 = vst.msk [vmem:[%s302 + $0x48] sm:$0xff] %vm305, %v3063
      %3096 = vst.msk [vmem:[%s302 + $0x50] sm:$0xff] %vm305, %v3064
      %3097 = vst.msk [vmem:[%s302 + $0x58] sm:$0xff] %vm305, %v3065
      %3098 = vst.msk [vmem:[%s302 + $0x60] sm:$0xff] %vm305, %v3066
      %3099 = vst.msk [vmem:[%s302 + $0x68] sm:$0xff] %vm305, %v3067
      %3100 = vst.msk [vmem:[%s302 + $0x70] sm:$0xff] %vm305, %v3068
      %3101 = vst.msk [vmem:[%s302 + $0x78] sm:$0xff] %vm305, %v3069
      %3102 = vst.msk [vmem:[%s302 + $0x80] sm:$0xff] %vm305, %v3070
      %3103 = vst.msk [vmem:[%s302 + $0x88] sm:$0xff] %vm305, %v3071
      %3104 = vst.msk [vmem:[%s302 + $0x90] sm:$0xff] %vm305, %v3072
      %3105 = vst.msk [vmem:[%s302 + $0x98] sm:$0xff] %vm305, %v3073
      %3106 = vst.msk [vmem:[%s302 + $0xa0] sm:$0xff] %vm305, %v3074
      %3107 = vst.msk [vmem:[%s302 + $0xa8] sm:$0xff] %vm305, %v3075
      %3108 = vst.msk [vmem:[%s302 + $0xb0] sm:$0xff] %vm305, %v3076
      %3109 = vst.msk [vmem:[%s302 + $0xb8] sm:$0xff] %vm305, %v3077
      %3110 = vst.msk [vmem:[%s302 + $0xc0] sm:$0xff] %vm305, %v3078
      %3111 = vst.msk [vmem:[%s302 + $0xc8] sm:$0xff] %vm305, %v3079
      %3112 = vst.msk [vmem:[%s302 + $0xd0] sm:$0xff] %vm305, %v3080
      %3113 = vst.msk [vmem:[%s302 + $0xd8] sm:$0xff] %vm305, %v3081
      %3114 = vst.msk [vmem:[%s302 + $0xe0] sm:$0xff] %vm305, %v3082
      %3115 = vst.msk [vmem:[%s302 + $0xe8] sm:$0xff] %vm305, %v3083
      %3116 = vst.msk [vmem:[%s302 + $0xf0] sm:$0xff] %vm305, %v3084
      %3117 = vst.msk [vmem:[%s302 + $0xf8] sm:$0xff] %vm305, %v3085
      %s3118 = smul.u32 32, %s18
      %p3119 = scmp.lt.s32.totalorder %s3118, 63
      %s3120 = scalar_select %p3119, %s3118, 63
      %s3121 = smul.addr %s3120, 8
      %s3122 = scalar_lea.vmem %s7, %s3121
      // Predicated region
      $region49: #{dappm_forward.12} parent=47 // pred_check
        %p3123 = pneg %p193
      $region50: #{dappm_forward.12} parent=47 // pred_check_branch
        %3125 = sbr.rel (%p3123) target = $region52
      $region51: #{dappm_forward.12} parent=47 // pred_region
        %s3126 = smul.u32 32, %s18
      $region52: #{dappm_forward.12} parent=47 // pred_fallthru
        _
    $region48: #{dappm_forward.12} parent=5 // pred_fallthru
      _
    %p3127 = scmp.le.s32.totalorder 2, %s13
    // Predicated region
    $region53: #{dappm_forward.12} parent=5 // pred_check
      %p3128 = pneg %p3127
    $region54: #{dappm_forward.12} parent=5 // pred_check_branch
      %3130 = sbr.rel (%p3128) target = $region56
    $region55: #{dappm_forward.12} parent=5 // pred_region
      %s3131 = ssub.s32 %s13, 2
      // Predicated region
      $region57: #{dappm_forward.12} parent=55 // pred_check
        %p3132 = pneg %p199
      $region58: #{dappm_forward.12} parent=55 // pred_check_branch
        %3134 = sbr.rel (%p3132) target = $region60
      $region59: #{dappm_forward.12} parent=55 // pred_region
        %s3135 = smul.u32 32, %s19
        %p3136 = scmp.lt.s32.totalorder %s3135, 63
        %s3137 = scalar_select %p3136, %s3135, 63
        %s3138 = smul.addr %s3137, 8
        %s3139 = scalar_lea.vmem %s7, %s3138
      $region60: #{dappm_forward.12} parent=55 // pred_fallthru
        _
    $region56: #{dappm_forward.12} parent=5 // pred_fallthru
      _
  $region6: #{dappm_forward.12} parent=0 // loop_footer
    %s17 = sadd.s32 1, %s13
  $region7: #{dappm_forward.12} parent=0 // loop_footer_branch
    %12 = sbr.rel target = $region3
  $region8: #{dappm_forward.12} parent=0 // loop_exit
    _

// kernel: dappm_forward.17
$region0: #{dappm_forward.17}
  #allocation0 [shape = 'u32[]', space=smem, size = 0x4, offset = 0x4, fixed_abs, tag = 'smem constant byte address 0x4 - core index']
  #allocation1 [shape = 'u32[72,128]{1,0:T(1,128)}', space=vmem, size = 0x9000, scoped, tag = 'internal scratch']
  %s0 = inlined_call_operand.vmem [shape: f32[2,4], index: 0, kind: input, shape index: {}]
  %s1 = inlined_call_operand.vmem [shape: f32[1,4], index: 1, kind: input, shape index: {}]
  %s2 = inlined_call_operand.vmem [shape: f32[1,4], index: 2, kind: input, shape index: {}]
  %s3 = inlined_call_operand.vmem [shape: bf16[4,8], index: 3, kind: input, shape index: {}]
  %s4 = inlined_call_operand.vmem [shape: f32[2,8], index: 4, kind: output, shape index: {}]
  %s5 = sld [smem:[#allocation0]]
  $region26: #{dappm_forward.17} parent=0
    _
  %s7 = ssub.s32 1, %s5
  %s8 = scalar_select 0, %s7, %s5
  // Predicated region
  $region2: #{dappm_forward.17} parent=0 // pred_check
    _
  $region3: #{dappm_forward.17} parent=0 // pred_check_branch
    %10 = sbr.rel (0) target = $region5
  $region4: #{dappm_forward.17} parent=0 // pred_region
    _
  $region5: #{dappm_forward.17} parent=0 // pred_fallthru
    _
  // Predicated region
  $region6: #{dappm_forward.17} parent=0 // pred_check
    _
  $region7: #{dappm_forward.17} parent=0 // pred_check_branch
    %12 = sbr.rel (0) target = $region9
  $region8: #{dappm_forward.17} parent=0 // pred_region
    _
  $region9: #{dappm_forward.17} parent=0 // pred_fallthru
    _
  // Predicated region
  $region10: #{dappm_forward.17} parent=0 // pred_check
    _
  $region11: #{dappm_forward.17} parent=0 // pred_check_branch
    %14 = sbr.rel (0) target = $region13
  $region12: #{dappm_forward.17} parent=0 // pred_region
    _
  $region13: #{dappm_forward.17} parent=0 // pred_fallthru
    _
  // Predicated region
  $region14: #{dappm_forward.17} parent=0 // pred_check
    _
  $region15: #{dappm_forward.17} parent=0 // pred_check_branch
    %16 = sbr.rel (0) target = $region17
  $region16: #{dappm_forward.17} parent=0 // pred_region
    _
  $region17: #{dappm_forward.17} parent=0 // pred_fallthru
    _
  %v18 = vld [vmem:[%s0] sm:$0x3]
  %v19 = vld [vmem:[%s1] sm:$0x1]
  %v21 = vperm.slane %v19, 0
  %v23 = vmul.f32 %v18, %v21
  %v24 = vld [vmem:[%s2] sm:$0x1]
  %v26 = vperm.slane %v24, 0
  %v28 = vadd.f32 %v23, %v26
  %v29 = vmax.f32 %v28, 0.0
  %v30 = vpack.c.bf16 %v29, %v29
  %v31 = vld [vmem:[%s3] sm:$0x3]
  %vm32 = vcmask 31744
  %v34 = vsel %vm32, %v30, 0
  %vm36 = vcmask 1041408
  %v38 = vsel %vm36, %v31, 0
  %40 = vmatpush.bf16.msra.mxu0 0
  %41 = vmatpush.bf16.msra.mxu0 0
  %42 = vmatpush.bf16.msra.mxu0 0
  %43 = vmatpush.bf16.msra.mxu0 0
  %44 = vmatpush.bf16.msra.mxu0 0
  %45 = vmatpush.bf16.msra.mxu0 0
  %46 = vmatpush.bf16.msra.mxu0 0
  %47 = vmatpush.bf16.msra.mxu0 %v38
  %48 = vmatmul.bf16.gmra.mxu0 %v34
  %v49 = vpop.f32.mrf.mxu0
  %v50 = vadd.f32 0.0, %v49
  %v51 = vpop.f32.mrf.mxu0
  %52 = vdwg.mxu0
  %vm53 = vcmask 58368
  %54 = vst.msk [vmem:[%s4] sm:$0x3] %vm53, %v50
  // Predicated region
  $region18: #{dappm_forward.17} parent=0 // pred_check
    _
  $region19: #{dappm_forward.17} parent=0 // pred_check_branch
    %56 = sbr.rel (0) target = $region21
  $region20: #{dappm_forward.17} parent=0 // pred_region
    _
  $region21: #{dappm_forward.17} parent=0 // pred_fallthru
    _
  // Predicated region
  $region22: #{dappm_forward.17} parent=0 // pred_check
    _
  $region23: #{dappm_forward.17} parent=0 // pred_check_branch
    %58 = sbr.rel (0) target = $region25
  $region24: #{dappm_forward.17} parent=0 // pred_region
    _
  $region25: #{dappm_forward.17} parent=0 // pred_fallthru
    _

// kernel: dappm_forward.19
$region0: #{dappm_forward.19}
  #allocation0 [shape = 'u32[]', space=smem, size = 0x4, offset = 0x4, fixed_abs, tag = 'smem constant byte address 0x4 - core index']
  #allocation1 [shape = 'u32[72,128]{1,0:T(1,128)}', space=vmem, size = 0x9000, scoped, tag = 'internal scratch']
  %s0 = inlined_call_operand.vmem [shape: f32[512,8], index: 0, kind: input, shape index: {}]
  %s1 = inlined_call_operand.vmem [shape: f32[512,8], index: 1, kind: input, shape index: {}]
  %s2 = inlined_call_operand.vmem [shape: f32[512,8], index: 2, kind: input, shape index: {}]
  %s3 = inlined_call_operand.vmem [shape: f32[512,8], index: 3, kind: input, shape index: {}]
  %s4 = inlined_call_operand.vmem [shape: f32[512,8], index: 4, kind: input, shape index: {}]
  %s5 = inlined_call_operand.vmem [shape: f32[512,16], index: 5, kind: input, shape index: {}]
  %s6 = inlined_call_operand.vmem [shape: f32[5,1,8], index: 6, kind: input, shape index: {}]
  %s7 = inlined_call_operand.vmem [shape: f32[5,1,8], index: 7, kind: input, shape index: {}]
  %s8 = inlined_call_operand.vmem [shape: bf16[5,8,16], index: 8, kind: input, shape index: {}]
  %s9 = inlined_call_operand.vmem [shape: f32[512,16], index: 9, kind: output, shape index: {}]
  %s10 = sld [smem:[#allocation0]]
  $region46: #{dappm_forward.19} parent=0
    _
  %s12 = ssub.s32 1, %s10
  %s13 = scalar_select 0, %s12, %s10
  // Predicated region
  $region2: #{dappm_forward.19} parent=0 // pred_check
    _
  $region3: #{dappm_forward.19} parent=0 // pred_check_branch
    %15 = sbr.rel (0) target = $region5
  $region4: #{dappm_forward.19} parent=0 // pred_region
    _
  $region5: #{dappm_forward.19} parent=0 // pred_fallthru
    _
  // Predicated region
  $region6: #{dappm_forward.19} parent=0 // pred_check
    _
  $region7: #{dappm_forward.19} parent=0 // pred_check_branch
    %17 = sbr.rel (0) target = $region9
  $region8: #{dappm_forward.19} parent=0 // pred_region
    _
  $region9: #{dappm_forward.19} parent=0 // pred_fallthru
    _
  // Predicated region
  $region10: #{dappm_forward.19} parent=0 // pred_check
    _
  $region11: #{dappm_forward.19} parent=0 // pred_check_branch
    %19 = sbr.rel (0) target = $region13
  $region12: #{dappm_forward.19} parent=0 // pred_region
    _
  $region13: #{dappm_forward.19} parent=0 // pred_fallthru
    _
  // Predicated region
  $region14: #{dappm_forward.19} parent=0 // pred_check
    _
  $region15: #{dappm_forward.19} parent=0 // pred_check_branch
    %21 = sbr.rel (0) target = $region17
  $region16: #{dappm_forward.19} parent=0 // pred_region
    _
  $region17: #{dappm_forward.19} parent=0 // pred_fallthru
    _
  // Predicated region
  $region18: #{dappm_forward.19} parent=0 // pred_check
    _
  $region19: #{dappm_forward.19} parent=0 // pred_check_branch
    %23 = sbr.rel (0) target = $region21
  $region20: #{dappm_forward.19} parent=0 // pred_region
    _
  $region21: #{dappm_forward.19} parent=0 // pred_fallthru
    _
  // Predicated region
  $region22: #{dappm_forward.19} parent=0 // pred_check
    _
  $region23: #{dappm_forward.19} parent=0 // pred_check_branch
    %25 = sbr.rel (0) target = $region25
  $region24: #{dappm_forward.19} parent=0 // pred_region
    _
  $region25: #{dappm_forward.19} parent=0 // pred_fallthru
    _
  // Predicated region
  $region26: #{dappm_forward.19} parent=0 // pred_check
    _
  $region27: #{dappm_forward.19} parent=0 // pred_check_branch
    %27 = sbr.rel (0) target = $region29
  $region28: #{dappm_forward.19} parent=0 // pred_region
    _
  $region29: #{dappm_forward.19} parent=0 // pred_fallthru
    _
  // Predicated region
  $region30: #{dappm_forward.19} parent=0 // pred_check
    _
  $region31: #{dappm_forward.19} parent=0 // pred_check_branch
    %29 = sbr.rel (0) target = $region33
  $region32: #{dappm_forward.19} parent=0 // pred_region
    _
  $region33: #{dappm_forward.19} parent=0 // pred_fallthru
    _
  // Predicated region
  $region34: #{dappm_forward.19} parent=0 // pred_check
    _
  $region35: #{dappm_forward.19} parent=0 // pred_check_branch
    %31 = sbr.rel (0) target = $region37
  $region36: #{dappm_forward.19} parent=0 // pred_region
    _
  $region37: #{dappm_forward.19} parent=0 // pred_fallthru
    _
  %v33 = vld [vmem:[%s5] sm:$0xff]
  %v34 = vld [vmem:[%s5 + $0x8] sm:$0xff]
  %v35 = vld [vmem:[%s5 + $0x10] sm:$0xff]
  %v36 = vld [vmem:[%s5 + $0x18] sm:$0xff]
  %v37 = vld [vmem:[%s5 + $0x20] sm:$0xff]
  %v38 = vld [vmem:[%s5 + $0x28] sm:$0xff]
  %v39 = vld [vmem:[%s5 + $0x30] sm:$0xff]
  %v40 = vld [vmem:[%s5 + $0x38] sm:$0xff]
  %v41 = vld [vmem:[%s5 + $0x40] sm:$0xff]
  %v42 = vld [vmem:[%s5 + $0x48] sm:$0xff]
  %v43 = vld [vmem:[%s5 + $0x50] sm:$0xff]
  %v44 = vld [vmem:[%s5 + $0x58] sm:$0xff]
  %v45 = vld [vmem:[%s5 + $0x60] sm:$0xff]
  %v46 = vld [vmem:[%s5 + $0x68] sm:$0xff]
  %v47 = vld [vmem:[%s5 + $0x70] sm:$0xff]
  %v48 = vld [vmem:[%s5 + $0x78] sm:$0xff]
  %v49 = vld [vmem:[%s5 + $0x80] sm:$0xff]
  %v50 = vld [vmem:[%s5 + $0x88] sm:$0xff]
  %v51 = vld [vmem:[%s5 + $0x90] sm:$0xff]
  %v52 = vld [vmem:[%s5 + $0x98] sm:$0xff]
  %v53 = vld [vmem:[%s5 + $0xa0] sm:$0xff]
  %v54 = vld [vmem:[%s5 + $0xa8] sm:$0xff]
  %v55 = vld [vmem:[%s5 + $0xb0] sm:$0xff]
  %v56 = vld [vmem:[%s5 + $0xb8] sm:$0xff]
  %v57 = vld [vmem:[%s5 + $0xc0] sm:$0xff]
  %v58 = vld [vmem:[%s5 + $0xc8] sm:$0xff]
  %v59 = vld [vmem:[%s5 + $0xd0] sm:$0xff]
  %v60 = vld [vmem:[%s5 + $0xd8] sm:$0xff]
  %v61 = vld [vmem:[%s5 + $0xe0] sm:$0xff]
  %v62 = vld [vmem:[%s5 + $0xe8] sm:$0xff]
  %v63 = vld [vmem:[%s5 + $0xf0] sm:$0xff]
  %v64 = vld [vmem:[%s5 + $0xf8] sm:$0xff]
  %v65 = vld [vmem:[%s5 + $0x100] sm:$0xff]
  %v66 = vld [vmem:[%s5 + $0x108] sm:$0xff]
  %v67 = vld [vmem:[%s5 + $0x110] sm:$0xff]
  %v68 = vld [vmem:[%s5 + $0x118] sm:$0xff]
  %v69 = vld [vmem:[%s5 + $0x120] sm:$0xff]
  %v70 = vld [vmem:[%s5 + $0x128] sm:$0xff]
  %v71 = vld [vmem:[%s5 + $0x130] sm:$0xff]
  %v72 = vld [vmem:[%s5 + $0x138] sm:$0xff]
  %v73 = vld [vmem:[%s5 + $0x140] sm:$0xff]
  %v74 = vld [vmem:[%s5 + $0x148] sm:$0xff]
  %v75 = vld [vmem:[%s5 + $0x150] sm:$0xff]
  %v76 = vld [vmem:[%s5 + $0x158] sm:$0xff]
  %v77 = vld [vmem:[%s5 + $0x160] sm:$0xff]
  %v78 = vld [vmem:[%s5 + $0x168] sm:$0xff]
  %v79 = vld [vmem:[%s5 + $0x170] sm:$0xff]
  %v80 = vld [vmem:[%s5 + $0x178] sm:$0xff]
  %v81 = vld [vmem:[%s5 + $0x180] sm:$0xff]
  %v82 = vld [vmem:[%s5 + $0x188] sm:$0xff]
  %v83 = vld [vmem:[%s5 + $0x190] sm:$0xff]
  %v84 = vld [vmem:[%s5 + $0x198] sm:$0xff]
  %v85 = vld [vmem:[%s5 + $0x1a0] sm:$0xff]
  %v86 = vld [vmem:[%s5 + $0x1a8] sm:$0xff]
  %v87 = vld [vmem:[%s5 + $0x1b0] sm:$0xff]
  %v88 = vld [vmem:[%s5 + $0x1b8] sm:$0xff]
  %v89 = vld [vmem:[%s5 + $0x1c0] sm:$0xff]
  %v90 = vld [vmem:[%s5 + $0x1c8] sm:$0xff]
  %v91 = vld [vmem:[%s5 + $0x1d0] sm:$0xff]
  %v92 = vld [vmem:[%s5 + $0x1d8] sm:$0xff]
  %v93 = vld [vmem:[%s5 + $0x1e0] sm:$0xff]
  %v94 = vld [vmem:[%s5 + $0x1e8] sm:$0xff]
  %v95 = vld [vmem:[%s5 + $0x1f0] sm:$0xff]
  %v96 = vld [vmem:[%s5 + $0x1f8] sm:$0xff]
  %v97 = vld [vmem:[%s0] sm:$0xff]
  %v98 = vld [vmem:[%s0 + $0x8] sm:$0xff]
  %v99 = vld [vmem:[%s0 + $0x10] sm:$0xff]
  %v100 = vld [vmem:[%s0 + $0x18] sm:$0xff]
  %v101 = vld [vmem:[%s0 + $0x20] sm:$0xff]
  %v102 = vld [vmem:[%s0 + $0x28] sm:$0xff]
  %v103 = vld [vmem:[%s0 + $0x30] sm:$0xff]
  %v104 = vld [vmem:[%s0 + $0x38] sm:$0xff]
  %v105 = vld [vmem:[%s0 + $0x40] sm:$0xff]
  %v106 = vld [vmem:[%s0 + $0x48] sm:$0xff]
  %v107 = vld [vmem:[%s0 + $0x50] sm:$0xff]
  %v108 = vld [vmem:[%s0 + $0x58] sm:$0xff]
  %v109 = vld [vmem:[%s0 + $0x60] sm:$0xff]
  %v110 = vld [vmem:[%s0 + $0x68] sm:$0xff]
  %v111 = vld [vmem:[%s0 + $0x70] sm:$0xff]
  %v112 = vld [vmem:[%s0 + $0x78] sm:$0xff]
  %v113 = vld [vmem:[%s0 + $0x80] sm:$0xff]
  %v114 = vld [vmem:[%s0 + $0x88] sm:$0xff]
  %v115 = vld [vmem:[%s0 + $0x90] sm:$0xff]
  %v116 = vld [vmem:[%s0 + $0x98] sm:$0xff]
  %v117 = vld [vmem:[%s0 + $0xa0] sm:$0xff]
  %v118 = vld [vmem:[%s0 + $0xa8] sm:$0xff]
  %v119 = vld [vmem:[%s0 + $0xb0] sm:$0xff]
  %v120 = vld [vmem:[%s0 + $0xb8] sm:$0xff]
  %v121 = vld [vmem:[%s0 + $0xc0] sm:$0xff]
  %v122 = vld [vmem:[%s0 + $0xc8] sm:$0xff]
  %v123 = vld [vmem:[%s0 + $0xd0] sm:$0xff]
  %v124 = vld [vmem:[%s0 + $0xd8] sm:$0xff]
  %v125 = vld [vmem:[%s0 + $0xe0] sm:$0xff]
  %v126 = vld [vmem:[%s0 + $0xe8] sm:$0xff]
  %v127 = vld [vmem:[%s0 + $0xf0] sm:$0xff]
  %v128 = vld [vmem:[%s0 + $0xf8] sm:$0xff]
  %v129 = vld [vmem:[%s0 + $0x100] sm:$0xff]
  %v130 = vld [vmem:[%s0 + $0x108] sm:$0xff]
  %v131 = vld [vmem:[%s0 + $0x110] sm:$0xff]
  %v132 = vld [vmem:[%s0 + $0x118] sm:$0xff]
  %v133 = vld [vmem:[%s0 + $0x120] sm:$0xff]
  %v134 = vld [vmem:[%s0 + $0x128] sm:$0xff]
  %v135 = vld [vmem:[%s0 + $0x130] sm:$0xff]
  %v136 = vld [vmem:[%s0 + $0x138] sm:$0xff]
  %v137 = vld [vmem:[%s0 + $0x140] sm:$0xff]
  %v138 = vld [vmem:[%s0 + $0x148] sm:$0xff]
  %v139 = vld [vmem:[%s0 + $0x150] sm:$0xff]
  %v140 = vld [vmem:[%s0 + $0x158] sm:$0xff]
  %v141 = vld [vmem:[%s0 + $0x160] sm:$0xff]
  %v142 = vld [vmem:[%s0 + $0x168] sm:$0xff]
  %v143 = vld [vmem:[%s0 + $0x170] sm:$0xff]
  %v144 = vld [vmem:[%s0 + $0x178] sm:$0xff]
  %v145 = vld [vmem:[%s0 + $0x180] sm:$0xff]
  %v146 = vld [vmem:[%s0 + $0x188] sm:$0xff]
  %v147 = vld [vmem:[%s0 + $0x190] sm:$0xff]
  %v148 = vld [vmem:[%s0 + $0x198] sm:$0xff]
  %v149 = vld [vmem:[%s0 + $0x1a0] sm:$0xff]
  %v150 = vld [vmem:[%s0 + $0x1a8] sm:$0xff]
  %v151 = vld [vmem:[%s0 + $0x1b0] sm:$0xff]
  %v152 = vld [vmem:[%s0 + $0x1b8] sm:$0xff]
  %v153 = vld [vmem:[%s0 + $0x1c0] sm:$0xff]
  %v154 = vld [vmem:[%s0 + $0x1c8] sm:$0xff]
  %v155 = vld [vmem:[%s0 + $0x1d0] sm:$0xff]
  %v156 = vld [vmem:[%s0 + $0x1d8] sm:$0xff]
  %v157 = vld [vmem:[%s0 + $0x1e0] sm:$0xff]
  %v158 = vld [vmem:[%s0 + $0x1e8] sm:$0xff]
  %v159 = vld [vmem:[%s0 + $0x1f0] sm:$0xff]
  %v160 = vld [vmem:[%s0 + $0x1f8] sm:$0xff]
  %v161 = vld [vmem:[%s6] sm:$0x1]
  %v163 = vperm.slane %v161, 0
  %v165 = vmul.f32 %v97, %v163
  %v166 = vmul.f32 %v98, %v163
  %v167 = vmul.f32 %v99, %v163
  %v168 = vmul.f32 %v100, %v163
  %v169 = vmul.f32 %v101, %v163
  %v170 = vmul.f32 %v102, %v163
  %v171 = vmul.f32 %v103, %v163
  %v172 = vmul.f32 %v104, %v163
  %v173 = vmul.f32 %v105, %v163
  %v174 = vmul.f32 %v106, %v163
  %v175 = vmul.f32 %v107, %v163
  %v176 = vmul.f32 %v108, %v163
  %v177 = vmul.f32 %v109, %v163
  %v178 = vmul.f32 %v110, %v163
  %v179 = vmul.f32 %v111, %v163
  %v180 = vmul.f32 %v112, %v163
  %v181 = vmul.f32 %v113, %v163
  %v182 = vmul.f32 %v114, %v163
  %v183 = vmul.f32 %v115, %v163
  %v184 = vmul.f32 %v116, %v163
  %v185 = vmul.f32 %v117, %v163
  %v186 = vmul.f32 %v118, %v163
  %v187 = vmul.f32 %v119, %v163
  %v188 = vmul.f32 %v120, %v163
  %v189 = vmul.f32 %v121, %v163
  %v190 = vmul.f32 %v122, %v163
  %v191 = vmul.f32 %v123, %v163
  %v192 = vmul.f32 %v124, %v163
  %v193 = vmul.f32 %v125, %v163
  %v194 = vmul.f32 %v126, %v163
  %v195 = vmul.f32 %v127, %v163
  %v196 = vmul.f32 %v128, %v163
  %v197 = vmul.f32 %v129, %v163
  %v198 = vmul.f32 %v130, %v163
  %v199 = vmul.f32 %v131, %v163
  %v200 = vmul.f32 %v132, %v163
  %v201 = vmul.f32 %v133, %v163
  %v202 = vmul.f32 %v134, %v163
  %v203 = vmul.f32 %v135, %v163
  %v204 = vmul.f32 %v136, %v163
  %v205 = vmul.f32 %v137, %v163
  %v206 = vmul.f32 %v138, %v163
  %v207 = vmul.f32 %v139, %v163
  %v208 = vmul.f32 %v140, %v163
  %v209 = vmul.f32 %v141, %v163
  %v210 = vmul.f32 %v142, %v163
  %v211 = vmul.f32 %v143, %v163
  %v212 = vmul.f32 %v144, %v163
  %v213 = vmul.f32 %v145, %v163
  %v214 = vmul.f32 %v146, %v163
  %v215 = vmul.f32 %v147, %v163
  %v216 = vmul.f32 %v148, %v163
  %v217 = vmul.f32 %v149, %v163
  %v218 = vmul.f32 %v150, %v163
  %v219 = vmul.f32 %v151, %v163
  %v220 = vmul.f32 %v152, %v163
  %v221 = vmul.f32 %v153, %v163
  %v222 = vmul.f32 %v154, %v163
  %v223 = vmul.f32 %v155, %v163
  %v224 = vmul.f32 %v156, %v163
  %v225 = vmul.f32 %v157, %v163
  %v226 = vmul.f32 %v158, %v163
  %v227 = vmul.f32 %v159, %v163
  %v228 = vmul.f32 %v160, %v163
  %v229 = vld [vmem:[%s7] sm:$0x1]
  %v231 = vperm.slane %v229, 0
  %v233 = vadd.f32 %v165, %v231
  %v234 = vadd.f32 %v166, %v231
  %v235 = vadd.f32 %v167, %v231
  %v236 = vadd.f32 %v168, %v231
  %v237 = vadd.f32 %v169, %v231
  %v238 = vadd.f32 %v170, %v231
  %v239 = vadd.f32 %v171, %v231
  %v240 = vadd.f32 %v172, %v231
  %v241 = vadd.f32 %v173, %v231
  %v242 = vadd.f32 %v174, %v231
  %v243 = vadd.f32 %v175, %v231
  %v244 = vadd.f32 %v176, %v231
  %v245 = vadd.f32 %v177, %v231
  %v246 = vadd.f32 %v178, %v231
  %v247 = vadd.f32 %v179, %v231
  %v248 = vadd.f32 %v180, %v231
  %v249 = vadd.f32 %v181, %v231
  %v250 = vadd.f32 %v182, %v231
  %v251 = vadd.f32 %v183, %v231
  %v252 = vadd.f32 %v184, %v231
  %v253 = vadd.f32 %v185, %v231
  %v254 = vadd.f32 %v186, %v231
  %v255 = vadd.f32 %v187, %v231
  %v256 = vadd.f32 %v188, %v231
  %v257 = vadd.f32 %v189, %v231
  %v258 = vadd.f32 %v190, %v231
  %v259 = vadd.f32 %v191, %v231
  %v260 = vadd.f32 %v192, %v231
  %v261 = vadd.f32 %v193, %v231
  %v262 = vadd.f32 %v194, %v231
  %v263 = vadd.f32 %v195, %v231
  %v264 = vadd.f32 %v196, %v231
  %v265 = vadd.f32 %v197, %v231
  %v266 = vadd.f32 %v198, %v231
  %v267 = vadd.f32 %v199, %v231
  %v268 = vadd.f32 %v200, %v231
  %v269 = vadd.f32 %v201, %v231
  %v270 = vadd.f32 %v202, %v231
  %v271 = vadd.f32 %v203, %v231
  %v272 = vadd.f32 %v204, %v231
  %v273 = vadd.f32 %v205, %v231
  %v274 = vadd.f32 %v206, %v231
  %v275 = vadd.f32 %v207, %v231
  %v276 = vadd.f32 %v208, %v231
  %v277 = vadd.f32 %v209, %v231
  %v278 = vadd.f32 %v210, %v231
  %v279 = vadd.f32 %v211, %v231
  %v280 = vadd.f32 %v212, %v231
  %v281 = vadd.f32 %v213, %v231
  %v282 = vadd.f32 %v214, %v231
  %v283 = vadd.f32 %v215, %v231
  %v284 = vadd.f32 %v216, %v231
  %v285 = vadd.f32 %v217, %v231
  %v286 = vadd.f32 %v218, %v231
  %v287 = vadd.f32 %v219, %v231
  %v288 = vadd.f32 %v220, %v231
  %v289 = vadd.f32 %v221, %v231
  %v290 = vadd.f32 %v222, %v231
  %v291 = vadd.f32 %v223, %v231
  %v292 = vadd.f32 %v224, %v231
  %v293 = vadd.f32 %v225, %v231
  %v294 = vadd.f32 %v226, %v231
  %v295 = vadd.f32 %v227, %v231
  %v296 = vadd.f32 %v228, %v231
  %v297 = vmax.f32 %v233, 0.0
  %v298 = vmax.f32 %v234, 0.0
  %v299 = vmax.f32 %v235, 0.0
  %v300 = vmax.f32 %v236, 0.0
  %v301 = vmax.f32 %v237, 0.0
  %v302 = vmax.f32 %v238, 0.0
  %v303 = vmax.f32 %v239, 0.0
  %v304 = vmax.f32 %v240, 0.0
  %v305 = vmax.f32 %v241, 0.0
  %v306 = vmax.f32 %v242, 0.0
  %v307 = vmax.f32 %v243, 0.0
  %v308 = vmax.f32 %v244, 0.0
  %v309 = vmax.f32 %v245, 0.0
  %v310 = vmax.f32 %v246, 0.0
  %v311 = vmax.f32 %v247, 0.0
  %v312 = vmax.f32 %v248, 0.0
  %v313 = vmax.f32 %v249, 0.0
  %v314 = vmax.f32 %v250, 0.0
  %v315 = vmax.f32 %v251, 0.0
  %v316 = vmax.f32 %v252, 0.0
  %v317 = vmax.f32 %v253, 0.0
  %v318 = vmax.f32 %v254, 0.0
  %v319 = vmax.f32 %v255, 0.0
  %v320 = vmax.f32 %v256, 0.0
  %v321 = vmax.f32 %v257, 0.0
  %v322 = vmax.f32 %v258, 0.0
  %v323 = vmax.f32 %v259, 0.0
  %v324 = vmax.f32 %v260, 0.0
  %v325 = vmax.f32 %v261, 0.0
  %v326 = vmax.f32 %v262, 0.0
  %v327 = vmax.f32 %v263, 0.0
  %v328 = vmax.f32 %v264, 0.0
  %v329 = vmax.f32 %v265, 0.0
  %v330 = vmax.f32 %v266, 0.0
  %v331 = vmax.f32 %v267, 0.0
  %v332 = vmax.f32 %v268, 0.0
  %v333 = vmax.f32 %v269, 0.0
  %v334 = vmax.f32 %v270, 0.0
  %v335 = vmax.f32 %v271, 0.0
  %v336 = vmax.f32 %v272, 0.0
  %v337 = vmax.f32 %v273, 0.0
  %v338 = vmax.f32 %v274, 0.0
  %v339 = vmax.f32 %v275, 0.0
  %v340 = vmax.f32 %v276, 0.0
  %v341 = vmax.f32 %v277, 0.0
  %v342 = vmax.f32 %v278, 0.0
  %v343 = vmax.f32 %v279, 0.0
  %v344 = vmax.f32 %v280, 0.0
  %v345 = vmax.f32 %v281, 0.0
  %v346 = vmax.f32 %v282, 0.0
  %v347 = vmax.f32 %v283, 0.0
  %v348 = vmax.f32 %v284, 0.0
  %v349 = vmax.f32 %v285, 0.0
  %v350 = vmax.f32 %v286, 0.0
  %v351 = vmax.f32 %v287, 0.0
  %v352 = vmax.f32 %v288, 0.0
  %v353 = vmax.f32 %v289, 0.0
  %v354 = vmax.f32 %v290, 0.0
  %v355 = vmax.f32 %v291, 0.0
  %v356 = vmax.f32 %v292, 0.0
  %v357 = vmax.f32 %v293, 0.0
  %v358 = vmax.f32 %v294, 0.0
  %v359 = vmax.f32 %v295, 0.0
  %v360 = vmax.f32 %v296, 0.0
  %v361 = vpack.c.bf16 %v298, %v297
  %v362 = vpack.c.bf16 %v300, %v299
  %v363 = vpack.c.bf16 %v302, %v301
  %v364 = vpack.c.bf16 %v304, %v303
  %v365 = vpack.c.bf16 %v306, %v305
  %v366 = vpack.c.bf16 %v308, %v307
  %v367 = vpack.c.bf16 %v310, %v309
  %v368 = vpack.c.bf16 %v312, %v311
  %v369 = vpack.c.bf16 %v314, %v313
  %v370 = vpack.c.bf16 %v316, %v315
  %v371 = vpack.c.bf16 %v318, %v317
  %v372 = vpack.c.bf16 %v320, %v319
  %v373 = vpack.c.bf16 %v322, %v321
  %v374 = vpack.c.bf16 %v324, %v323
  %v375 = vpack.c.bf16 %v326, %v325
  %v376 = vpack.c.bf16 %v328, %v327
  %v377 = vpack.c.bf16 %v330, %v329
  %v378 = vpack.c.bf16 %v332, %v331
  %v379 = vpack.c.bf16 %v334, %v333
  %v380 = vpack.c.bf16 %v336, %v335
  %v381 = vpack.c.bf16 %v338, %v337
  %v382 = vpack.c.bf16 %v340, %v339
  %v383 = vpack.c.bf16 %v342, %v341
  %v384 = vpack.c.bf16 %v344, %v343
  %v385 = vpack.c.bf16 %v346, %v345
  %v386 = vpack.c.bf16 %v348, %v347
  %v387 = vpack.c.bf16 %v350, %v349
  %v388 = vpack.c.bf16 %v352, %v351
  %v389 = vpack.c.bf16 %v354, %v353
  %v390 = vpack.c.bf16 %v356, %v355
  %v391 = vpack.c.bf16 %v358, %v357
  %v392 = vpack.c.bf16 %v360, %v359
  %v393 = vld [vmem:[%s8] sm:$0xf]
  %vm394 = vcmask 64512
  %v396 = vsel %vm394, %v361, 0
  %v399 = vsel %vm394, %v362, 0
  %v402 = vsel %vm394, %v363, 0
  %v405 = vsel %vm394, %v364, 0
  %v408 = vsel %vm394, %v365, 0
  %v411 = vsel %vm394, %v366, 0
  %v414 = vsel %vm394, %v367, 0
  %v417 = vsel %vm394, %v368, 0
  %v420 = vsel %vm394, %v369, 0
  %v423 = vsel %vm394, %v370, 0
  %v426 = vsel %vm394, %v371, 0
  %v429 = vsel %vm394, %v372, 0
  %v432 = vsel %vm394, %v373, 0
  %v435 = vsel %vm394, %v374, 0
  %v438 = vsel %vm394, %v375, 0
  %v441 = vsel %vm394, %v376, 0
  %v444 = vsel %vm394, %v377, 0
  %v447 = vsel %vm394, %v378, 0
  %v450 = vsel %vm394, %v379, 0
  %v453 = vsel %vm394, %v380, 0
  %v456 = vsel %vm394, %v381, 0
  %v459 = vsel %vm394, %v382, 0
  %v462 = vsel %vm394, %v383, 0
  %v465 = vsel %vm394, %v384, 0
  %v468 = vsel %vm394, %v385, 0
  %v471 = vsel %vm394, %v386, 0
  %v474 = vsel %vm394, %v387, 0
  %v477 = vsel %vm394, %v388, 0
  %v480 = vsel %vm394, %v389, 0
  %v483 = vsel %vm394, %v390, 0
  %v486 = vsel %vm394, %v391, 0
  %v489 = vsel %vm394, %v392, 0
  %vm491 = vcmask 1043456
  %v493 = vsel %vm491, %v393, 0
  %495 = vmatpush.bf16.msra.mxu0 0
  %496 = vmatpush.bf16.msra.mxu0 0
  %497 = vmatpush.bf16.msra.mxu0 0
  %498 = vmatpush.bf16.msra.mxu0 0
  %499 = vmatpush.bf16.msra.mxu0 0
  %500 = vmatpush.bf16.msra.mxu0 0
  %501 = vmatpush.bf16.msra.mxu0 0
  %502 = vmatpush.bf16.msra.mxu0 %v493
  %503 = vmatmul.bf16.gmra.mxu0 %v396
  %v504 = vpop.f32.mrf.mxu0
  %v505 = vadd.f32 0.0, %v504
  %v506 = vpop.f32.mrf.mxu0
  %v507 = vadd.f32 0.0, %v506
  %508 = vmatmul.bf16.gmra.mxu0 %v399
  %v509 = vpop.f32.mrf.mxu0
  %v510 = vadd.f32 0.0, %v509
  %v511 = vpop.f32.mrf.mxu0
  %v512 = vadd.f32 0.0, %v511
  %513 = vmatmul.bf16.gmra.mxu0 %v402
  %v514 = vpop.f32.mrf.mxu0
  %v515 = vadd.f32 0.0, %v514
  %v516 = vpop.f32.mrf.mxu0
  %v517 = vadd.f32 0.0, %v516
  %518 = vmatmul.bf16.gmra.mxu0 %v405
  %v519 = vpop.f32.mrf.mxu0
  %v520 = vadd.f32 0.0, %v519
  %v521 = vpop.f32.mrf.mxu0
  %v522 = vadd.f32 0.0, %v521
  %523 = vmatmul.bf16.gmra.mxu0 %v408
  %v524 = vpop.f32.mrf.mxu0
  %v525 = vadd.f32 0.0, %v524
  %v526 = vpop.f32.mrf.mxu0
  %v527 = vadd.f32 0.0, %v526
  %528 = vmatmul.bf16.gmra.mxu0 %v411
  %v529 = vpop.f32.mrf.mxu0
  %v530 = vadd.f32 0.0, %v529
  %v531 = vpop.f32.mrf.mxu0
  %v532 = vadd.f32 0.0, %v531
  %533 = vmatmul.bf16.gmra.mxu0 %v414
  %v534 = vpop.f32.mrf.mxu0
  %v535 = vadd.f32 0.0, %v534
  %v536 = vpop.f32.mrf.mxu0
  %v537 = vadd.f32 0.0, %v536
  %538 = vmatmul.bf16.gmra.mxu0 %v417
  %v539 = vpop.f32.mrf.mxu0
  %v540 = vadd.f32 0.0, %v539
  %v541 = vpop.f32.mrf.mxu0
  %v542 = vadd.f32 0.0, %v541
  %543 = vmatmul.bf16.gmra.mxu0 %v420
  %v544 = vpop.f32.mrf.mxu0
  %v545 = vadd.f32 0.0, %v544
  %v546 = vpop.f32.mrf.mxu0
  %v547 = vadd.f32 0.0, %v546
  %548 = vmatmul.bf16.gmra.mxu0 %v423
  %v549 = vpop.f32.mrf.mxu0
  %v550 = vadd.f32 0.0, %v549
  %v551 = vpop.f32.mrf.mxu0
  %v552 = vadd.f32 0.0, %v551
  %553 = vmatmul.bf16.gmra.mxu0 %v426
  %v554 = vpop.f32.mrf.mxu0
  %v555 = vadd.f32 0.0, %v554
  %v556 = vpop.f32.mrf.mxu0
  %v557 = vadd.f32 0.0, %v556
  %558 = vmatmul.bf16.gmra.mxu0 %v429
  %v559 = vpop.f32.mrf.mxu0
  %v560 = vadd.f32 0.0, %v559
  %v561 = vpop.f32.mrf.mxu0
  %v562 = vadd.f32 0.0, %v561
  %563 = vmatmul.bf16.gmra.mxu0 %v432
  %v564 = vpop.f32.mrf.mxu0
  %v565 = vadd.f32 0.0, %v564
  %v566 = vpop.f32.mrf.mxu0
  %v567 = vadd.f32 0.0, %v566
  %568 = vmatmul.bf16.gmra.mxu0 %v435
  %v569 = vpop.f32.mrf.mxu0
  %v570 = vadd.f32 0.0, %v569
  %v571 = vpop.f32.mrf.mxu0
  %v572 = vadd.f32 0.0, %v571
  %573 = vmatmul.bf16.gmra.mxu0 %v438
  %v574 = vpop.f32.mrf.mxu0
  %v575 = vadd.f32 0.0, %v574
  %v576 = vpop.f32.mrf.mxu0
  %v577 = vadd.f32 0.0, %v576
  %578 = vmatmul.bf16.gmra.mxu0 %v441
  %v579 = vpop.f32.mrf.mxu0
  %v580 = vadd.f32 0.0, %v579
  %v581 = vpop.f32.mrf.mxu0
  %v582 = vadd.f32 0.0, %v581
  %583 = vmatmul.bf16.gmra.mxu0 %v444
  %v584 = vpop.f32.mrf.mxu0
  %v585 = vadd.f32 0.0, %v584
  %v586 = vpop.f32.mrf.mxu0
  %v587 = vadd.f32 0.0, %v586
  %588 = vmatmul.bf16.gmra.mxu0 %v447
  %v589 = vpop.f32.mrf.mxu0
  %v590 = vadd.f32 0.0, %v589
  %v591 = vpop.f32.mrf.mxu0
  %v592 = vadd.f32 0.0, %v591
  %593 = vmatmul.bf16.gmra.mxu0 %v450
  %v594 = vpop.f32.mrf.mxu0
  %v595 = vadd.f32 0.0, %v594
  %v596 = vpop.f32.mrf.mxu0
  %v597 = vadd.f32 0.0, %v596
  %598 = vmatmul.bf16.gmra.mxu0 %v453
  %v599 = vpop.f32.mrf.mxu0
  %v600 = vadd.f32 0.0, %v599
  %v601 = vpop.f32.mrf.mxu0
  %v602 = vadd.f32 0.0, %v601
  %603 = vmatmul.bf16.gmra.mxu0 %v456
  %v604 = vpop.f32.mrf.mxu0
  %v605 = vadd.f32 0.0, %v604
  %v606 = vpop.f32.mrf.mxu0
  %v607 = vadd.f32 0.0, %v606
  %608 = vmatmul.bf16.gmra.mxu0 %v459
  %v609 = vpop.f32.mrf.mxu0
  %v610 = vadd.f32 0.0, %v609
  %v611 = vpop.f32.mrf.mxu0
  %v612 = vadd.f32 0.0, %v611
  %613 = vmatmul.bf16.gmra.mxu0 %v462
  %v614 = vpop.f32.mrf.mxu0
  %v615 = vadd.f32 0.0, %v614
  %v616 = vpop.f32.mrf.mxu0
  %v617 = vadd.f32 0.0, %v616
  %618 = vmatmul.bf16.gmra.mxu0 %v465
  %v619 = vpop.f32.mrf.mxu0
  %v620 = vadd.f32 0.0, %v619
  %v621 = vpop.f32.mrf.mxu0
  %v622 = vadd.f32 0.0, %v621
  %623 = vmatmul.bf16.gmra.mxu0 %v468
  %v624 = vpop.f32.mrf.mxu0
  %v625 = vadd.f32 0.0, %v624
  %v626 = vpop.f32.mrf.mxu0
  %v627 = vadd.f32 0.0, %v626
  %628 = vmatmul.bf16.gmra.mxu0 %v471
  %v629 = vpop.f32.mrf.mxu0
  %v630 = vadd.f32 0.0, %v629
  %v631 = vpop.f32.mrf.mxu0
  %v632 = vadd.f32 0.0, %v631
  %633 = vmatmul.bf16.gmra.mxu0 %v474
  %v634 = vpop.f32.mrf.mxu0
  %v635 = vadd.f32 0.0, %v634
  %v636 = vpop.f32.mrf.mxu0
  %v637 = vadd.f32 0.0, %v636
  %638 = vmatmul.bf16.gmra.mxu0 %v477
  %v639 = vpop.f32.mrf.mxu0
  %v640 = vadd.f32 0.0, %v639
  %v641 = vpop.f32.mrf.mxu0
  %v642 = vadd.f32 0.0, %v641
  %643 = vmatmul.bf16.gmra.mxu0 %v480
  %v644 = vpop.f32.mrf.mxu0
  %v645 = vadd.f32 0.0, %v644
  %v646 = vpop.f32.mrf.mxu0
  %v647 = vadd.f32 0.0, %v646
  %648 = vmatmul.bf16.gmra.mxu0 %v483
  %v649 = vpop.f32.mrf.mxu0
  %v650 = vadd.f32 0.0, %v649
  %v651 = vpop.f32.mrf.mxu0
  %v652 = vadd.f32 0.0, %v651
  %653 = vmatmul.bf16.gmra.mxu0 %v486
  %v654 = vpop.f32.mrf.mxu0
  %v655 = vadd.f32 0.0, %v654
  %v656 = vpop.f32.mrf.mxu0
  %v657 = vadd.f32 0.0, %v656
  %658 = vmatmul.bf16.gmra.mxu0 %v489
  %v659 = vpop.f32.mrf.mxu0
  %v660 = vadd.f32 0.0, %v659
  %v661 = vpop.f32.mrf.mxu0
  %v662 = vadd.f32 0.0, %v661
  %663 = vdwg.mxu0
  %v664 = vadd.f32 %v33, %v505
  %v665 = vadd.f32 %v34, %v507
  %v666 = vadd.f32 %v35, %v510
  %v667 = vadd.f32 %v36, %v512
  %v668 = vadd.f32 %v37, %v515
  %v669 = vadd.f32 %v38, %v517
  %v670 = vadd.f32 %v39, %v520
  %v671 = vadd.f32 %v40, %v522
  %v672 = vadd.f32 %v41, %v525
  %v673 = vadd.f32 %v42, %v527
  %v674 = vadd.f32 %v43, %v530
  %v675 = vadd.f32 %v44, %v532
  %v676 = vadd.f32 %v45, %v535
  %v677 = vadd.f32 %v46, %v537
  %v678 = vadd.f32 %v47, %v540
  %v679 = vadd.f32 %v48, %v542
  %v680 = vadd.f32 %v49, %v545
  %v681 = vadd.f32 %v50, %v547
  %v682 = vadd.f32 %v51, %v550
  %v683 = vadd.f32 %v52, %v552
  %v684 = vadd.f32 %v53, %v555
  %v685 = vadd.f32 %v54, %v557
  %v686 = vadd.f32 %v55, %v560
  %v687 = vadd.f32 %v56, %v562
  %v688 = vadd.f32 %v57, %v565
  %v689 = vadd.f32 %v58, %v567
  %v690 = vadd.f32 %v59, %v570
  %v691 = vadd.f32 %v60, %v572
  %v692 = vadd.f32 %v61, %v575
  %v693 = vadd.f32 %v62, %v577
  %v694 = vadd.f32 %v63, %v580
  %v695 = vadd.f32 %v64, %v582
  %v696 = vadd.f32 %v65, %v585
  %v697 = vadd.f32 %v66, %v587
  %v698 = vadd.f32 %v67, %v590
  %v699 = vadd.f32 %v68, %v592
  %v700 = vadd.f32 %v69, %v595
  %v701 = vadd.f32 %v70, %v597
  %v702 = vadd.f32 %v71, %v600
  %v703 = vadd.f32 %v72, %v602
  %v704 = vadd.f32 %v73, %v605
  %v705 = vadd.f32 %v74, %v607
  %v706 = vadd.f32 %v75, %v610
  %v707 = vadd.f32 %v76, %v612
  %v708 = vadd.f32 %v77, %v615
  %v709 = vadd.f32 %v78, %v617
  %v710 = vadd.f32 %v79, %v620
  %v711 = vadd.f32 %v80, %v622
  %v712 = vadd.f32 %v81, %v625
  %v713 = vadd.f32 %v82, %v627
  %v714 = vadd.f32 %v83, %v630
  %v715 = vadd.f32 %v84, %v632
  %v716 = vadd.f32 %v85, %v635
  %v717 = vadd.f32 %v86, %v637
  %v718 = vadd.f32 %v87, %v640
  %v719 = vadd.f32 %v88, %v642
  %v720 = vadd.f32 %v89, %v645
  %v721 = vadd.f32 %v90, %v647
  %v722 = vadd.f32 %v91, %v650
  %v723 = vadd.f32 %v92, %v652
  %v724 = vadd.f32 %v93, %v655
  %v725 = vadd.f32 %v94, %v657
  %v726 = vadd.f32 %v95, %v660
  %v727 = vadd.f32 %v96, %v662
  %v728 = vld [vmem:[%s1] sm:$0xff]
  %v729 = vld [vmem:[%s1 + $0x8] sm:$0xff]
  %v730 = vld [vmem:[%s1 + $0x10] sm:$0xff]
  %v731 = vld [vmem:[%s1 + $0x18] sm:$0xff]
  %v732 = vld [vmem:[%s1 + $0x20] sm:$0xff]
  %v733 = vld [vmem:[%s1 + $0x28] sm:$0xff]
  %v734 = vld [vmem:[%s1 + $0x30] sm:$0xff]
  %v735 = vld [vmem:[%s1 + $0x38] sm:$0xff]
  %v736 = vld [vmem:[%s1 + $0x40] sm:$0xff]
  %v737 = vld [vmem:[%s1 + $0x48] sm:$0xff]
  %v738 = vld [vmem:[%s1 + $0x50] sm:$0xff]
  %v739 = vld [vmem:[%s1 + $0x58] sm:$0xff]
  %v740 = vld [vmem:[%s1 + $0x60] sm:$0xff]
  %v741 = vld [vmem:[%s1 + $0x68] sm:$0xff]
  %v742 = vld [vmem:[%s1 + $0x70] sm:$0xff]
  %v743 = vld [vmem:[%s1 + $0x78] sm:$0xff]
  %v744 = vld [vmem:[%s1 + $0x80] sm:$0xff]
  %v745 = vld [vmem:[%s1 + $0x88] sm:$0xff]
  %v746 = vld [vmem:[%s1 + $0x90] sm:$0xff]
  %v747 = vld [vmem:[%s1 + $0x98] sm:$0xff]
  %v748 = vld [vmem:[%s1 + $0xa0] sm:$0xff]
  %v749 = vld [vmem:[%s1 + $0xa8] sm:$0xff]
  %v750 = vld [vmem:[%s1 + $0xb0] sm:$0xff]
  %v751 = vld [vmem:[%s1 + $0xb8] sm:$0xff]
  %v752 = vld [vmem:[%s1 + $0xc0] sm:$0xff]
  %v753 = vld [vmem:[%s1 + $0xc8] sm:$0xff]
  %v754 = vld [vmem:[%s1 + $0xd0] sm:$0xff]
  %v755 = vld [vmem:[%s1 + $0xd8] sm:$0xff]
  %v756 = vld [vmem:[%s1 + $0xe0] sm:$0xff]
  %v757 = vld [vmem:[%s1 + $0xe8] sm:$0xff]
  %v758 = vld [vmem:[%s1 + $0xf0] sm:$0xff]
  %v759 = vld [vmem:[%s1 + $0xf8] sm:$0xff]
  %v760 = vld [vmem:[%s1 + $0x100] sm:$0xff]
  %v761 = vld [vmem:[%s1 + $0x108] sm:$0xff]
  %v762 = vld [vmem:[%s1 + $0x110] sm:$0xff]
  %v763 = vld [vmem:[%s1 + $0x118] sm:$0xff]
  %v764 = vld [vmem:[%s1 + $0x120] sm:$0xff]
  %v765 = vld [vmem:[%s1 + $0x128] sm:$0xff]
  %v766 = vld [vmem:[%s1 + $0x130] sm:$0xff]
  %v767 = vld [vmem:[%s1 + $0x138] sm:$0xff]
  %v768 = vld [vmem:[%s1 + $0x140] sm:$0xff]
  %v769 = vld [vmem:[%s1 + $0x148] sm:$0xff]
  %v770 = vld [vmem:[%s1 + $0x150] sm:$0xff]
  %v771 = vld [vmem:[%s1 + $0x158] sm:$0xff]
  %v772 = vld [vmem:[%s1 + $0x160] sm:$0xff]
  %v773 = vld [vmem:[%s1 + $0x168] sm:$0xff]
  %v774 = vld [vmem:[%s1 + $0x170] sm:$0xff]
  %v775 = vld [vmem:[%s1 + $0x178] sm:$0xff]
  %v776 = vld [vmem:[%s1 + $0x180] sm:$0xff]
  %v777 = vld [vmem:[%s1 + $0x188] sm:$0xff]
  %v778 = vld [vmem:[%s1 + $0x190] sm:$0xff]
  %v779 = vld [vmem:[%s1 + $0x198] sm:$0xff]
  %v780 = vld [vmem:[%s1 + $0x1a0] sm:$0xff]
  %v781 = vld [vmem:[%s1 + $0x1a8] sm:$0xff]
  %v782 = vld [vmem:[%s1 + $0x1b0] sm:$0xff]
  %v783 = vld [vmem:[%s1 + $0x1b8] sm:$0xff]
  %v784 = vld [vmem:[%s1 + $0x1c0] sm:$0xff]
  %v785 = vld [vmem:[%s1 + $0x1c8] sm:$0xff]
  %v786 = vld [vmem:[%s1 + $0x1d0] sm:$0xff]
  %v787 = vld [vmem:[%s1 + $0x1d8] sm:$0xff]
  %v788 = vld [vmem:[%s1 + $0x1e0] sm:$0xff]
  %v789 = vld [vmem:[%s1 + $0x1e8] sm:$0xff]
  %v790 = vld [vmem:[%s1 + $0x1f0] sm:$0xff]
  %v791 = vld [vmem:[%s1 + $0x1f8] sm:$0xff]
  %s792 = scalar_lea.vmem %s6, 1
  %v793 = vld [vmem:[%s792] sm:$0x1]
  %v795 = vperm.slane %v793, 0
  %v797 = vmul.f32 %v728, %v795
  %v798 = vmul.f32 %v729, %v795
  %v799 = vmul.f32 %v730, %v795
  %v800 = vmul.f32 %v731, %v795
  %v801 = vmul.f32 %v732, %v795
  %v802 = vmul.f32 %v733, %v795
  %v803 = vmul.f32 %v734, %v795
  %v804 = vmul.f32 %v735, %v795
  %v805 = vmul.f32 %v736, %v795
  %v806 = vmul.f32 %v737, %v795
  %v807 = vmul.f32 %v738, %v795
  %v808 = vmul.f32 %v739, %v795
  %v809 = vmul.f32 %v740, %v795
  %v810 = vmul.f32 %v741, %v795
  %v811 = vmul.f32 %v742, %v795
  %v812 = vmul.f32 %v743, %v795
  %v813 = vmul.f32 %v744, %v795
  %v814 = vmul.f32 %v745, %v795
  %v815 = vmul.f32 %v746, %v795
  %v816 = vmul.f32 %v747, %v795
  %v817 = vmul.f32 %v748, %v795
  %v818 = vmul.f32 %v749, %v795
  %v819 = vmul.f32 %v750, %v795
  %v820 = vmul.f32 %v751, %v795
  %v821 = vmul.f32 %v752, %v795
  %v822 = vmul.f32 %v753, %v795
  %v823 = vmul.f32 %v754, %v795
  %v824 = vmul.f32 %v755, %v795
  %v825 = vmul.f32 %v756, %v795
  %v826 = vmul.f32 %v757, %v795
  %v827 = vmul.f32 %v758, %v795
  %v828 = vmul.f32 %v759, %v795
  %v829 = vmul.f32 %v760, %v795
  %v830 = vmul.f32 %v761, %v795
  %v831 = vmul.f32 %v762, %v795
  %v832 = vmul.f32 %v763, %v795
  %v833 = vmul.f32 %v764, %v795
  %v834 = vmul.f32 %v765, %v795
  %v835 = vmul.f32 %v766, %v795
  %v836 = vmul.f32 %v767, %v795
  %v837 = vmul.f32 %v768, %v795
  %v838 = vmul.f32 %v769, %v795
  %v839 = vmul.f32 %v770, %v795
  %v840 = vmul.f32 %v771, %v795
  %v841 = vmul.f32 %v772, %v795
  %v842 = vmul.f32 %v773, %v795
  %v843 = vmul.f32 %v774, %v795
  %v844 = vmul.f32 %v775, %v795
  %v845 = vmul.f32 %v776, %v795
  %v846 = vmul.f32 %v777, %v795
  %v847 = vmul.f32 %v778, %v795
  %v848 = vmul.f32 %v779, %v795
  %v849 = vmul.f32 %v780, %v795
  %v850 = vmul.f32 %v781, %v795
  %v851 = vmul.f32 %v782, %v795
  %v852 = vmul.f32 %v783, %v795
  %v853 = vmul.f32 %v784, %v795
  %v854 = vmul.f32 %v785, %v795
  %v855 = vmul.f32 %v786, %v795
  %v856 = vmul.f32 %v787, %v795
  %v857 = vmul.f32 %v788, %v795
  %v858 = vmul.f32 %v789, %v795
  %v859 = vmul.f32 %v790, %v795
  %v860 = vmul.f32 %v791, %v795
  %s861 = scalar_lea.vmem %s7, 1
  %v862 = vld [vmem:[%s861] sm:$0x1]
  %v864 = vperm.slane %v862, 0
  %v866 = vadd.f32 %v797, %v864
  %v867 = vadd.f32 %v798, %v864
  %v868 = vadd.f32 %v799, %v864
  %v869 = vadd.f32 %v800, %v864
  %v870 = vadd.f32 %v801, %v864
  %v871 = vadd.f32 %v802, %v864
  %v872 = vadd.f32 %v803, %v864
  %v873 = vadd.f32 %v804, %v864
  %v874 = vadd.f32 %v805, %v864
  %v875 = vadd.f32 %v806, %v864
  %v876 = vadd.f32 %v807, %v864
  %v877 = vadd.f32 %v808, %v864
  %v878 = vadd.f32 %v809, %v864
  %v879 = vadd.f32 %v810, %v864
  %v880 = vadd.f32 %v811, %v864
  %v881 = vadd.f32 %v812, %v864
  %v882 = vadd.f32 %v813, %v864
  %v883 = vadd.f32 %v814, %v864
  %v884 = vadd.f32 %v815, %v864
  %v885 = vadd.f32 %v816, %v864
  %v886 = vadd.f32 %v817, %v864
  %v887 = vadd.f32 %v818, %v864
  %v888 = vadd.f32 %v819, %v864
  %v889 = vadd.f32 %v820, %v864
  %v890 = vadd.f32 %v821, %v864
  %v891 = vadd.f32 %v822, %v864
  %v892 = vadd.f32 %v823, %v864
  %v893 = vadd.f32 %v824, %v864
  %v894 = vadd.f32 %v825, %v864
  %v895 = vadd.f32 %v826, %v864
  %v896 = vadd.f32 %v827, %v864
  %v897 = vadd.f32 %v828, %v864
  %v898 = vadd.f32 %v829, %v864
  %v899 = vadd.f32 %v830, %v864
  %v900 = vadd.f32 %v831, %v864
  %v901 = vadd.f32 %v832, %v864
  %v902 = vadd.f32 %v833, %v864
  %v903 = vadd.f32 %v834, %v864
  %v904 = vadd.f32 %v835, %v864
  %v905 = vadd.f32 %v836, %v864
  %v906 = vadd.f32 %v837, %v864
  %v907 = vadd.f32 %v838, %v864
  %v908 = vadd.f32 %v839, %v864
  %v909 = vadd.f32 %v840, %v864
  %v910 = vadd.f32 %v841, %v864
  %v911 = vadd.f32 %v842, %v864
  %v912 = vadd.f32 %v843, %v864
  %v913 = vadd.f32 %v844, %v864
  %v914 = vadd.f32 %v845, %v864
  %v915 = vadd.f32 %v846, %v864
  %v916 = vadd.f32 %v847, %v864
  %v917 = vadd.f32 %v848, %v864
  %v918 = vadd.f32 %v849, %v864
  %v919 = vadd.f32 %v850, %v864
  %v920 = vadd.f32 %v851, %v864
  %v921 = vadd.f32 %v852, %v864
  %v922 = vadd.f32 %v853, %v864
  %v923 = vadd.f32 %v854, %v864
  %v924 = vadd.f32 %v855, %v864
  %v925 = vadd.f32 %v856, %v864
  %v926 = vadd.f32 %v857, %v864
  %v927 = vadd.f32 %v858, %v864
  %v928 = vadd.f32 %v859, %v864
  %v929 = vadd.f32 %v860, %v864
  %v930 = vmax.f32 %v866, 0.0
  %v931 = vmax.f32 %v867, 0.0
  %v932 = vmax.f32 %v868, 0.0
  %v933 = vmax.f32 %v869, 0.0
  %v934 = vmax.f32 %v870, 0.0
  %v935 = vmax.f32 %v871, 0.0
  %v936 = vmax.f32 %v872, 0.0
  %v937 = vmax.f32 %v873, 0.0
  %v938 = vmax.f32 %v874, 0.0
  %v939 = vmax.f32 %v875, 0.0
  %v940 = vmax.f32 %v876, 0.0
  %v941 = vmax.f32 %v877, 0.0
  %v942 = vmax.f32 %v878, 0.0
  %v943 = vmax.f32 %v879, 0.0
  %v944 = vmax.f32 %v880, 0.0
  %v945 = vmax.f32 %v881, 0.0
  %v946 = vmax.f32 %v882, 0.0
  %v947 = vmax.f32 %v883, 0.0
  %v948 = vmax.f32 %v884, 0.0
  %v949 = vmax.f32 %v885, 0.0
  %v950 = vmax.f32 %v886, 0.0
  %v951 = vmax.f32 %v887, 0.0
  %v952 = vmax.f32 %v888, 0.0
  %v953 = vmax.f32 %v889, 0.0
  %v954 = vmax.f32 %v890, 0.0
  %v955 = vmax.f32 %v891, 0.0
  %v956 = vmax.f32 %v892, 0.0
  %v957 = vmax.f32 %v893, 0.0
  %v958 = vmax.f32 %v894, 0.0
  %v959 = vmax.f32 %v895, 0.0
  %v960 = vmax.f32 %v896, 0.0
  %v961 = vmax.f32 %v897, 0.0
  %v962 = vmax.f32 %v898, 0.0
  %v963 = vmax.f32 %v899, 0.0
  %v964 = vmax.f32 %v900, 0.0
  %v965 = vmax.f32 %v901, 0.0
  %v966 = vmax.f32 %v902, 0.0
  %v967 = vmax.f32 %v903, 0.0
  %v968 = vmax.f32 %v904, 0.0
  %v969 = vmax.f32 %v905, 0.0
  %v970 = vmax.f32 %v906, 0.0
  %v971 = vmax.f32 %v907, 0.0
  %v972 = vmax.f32 %v908, 0.0
  %v973 = vmax.f32 %v909, 0.0
  %v974 = vmax.f32 %v910, 0.0
  %v975 = vmax.f32 %v911, 0.0
  %v976 = vmax.f32 %v912, 0.0
  %v977 = vmax.f32 %v913, 0.0
  %v978 = vmax.f32 %v914, 0.0
  %v979 = vmax.f32 %v915, 0.0
  %v980 = vmax.f32 %v916, 0.0
  %v981 = vmax.f32 %v917, 0.0
  %v982 = vmax.f32 %v918, 0.0
  %v983 = vmax.f32 %v919, 0.0
  %v984 = vmax.f32 %v920, 0.0
  %v985 = vmax.f32 %v921, 0.0
  %v986 = vmax.f32 %v922, 0.0
  %v987 = vmax.f32 %v923, 0.0
  %v988 = vmax.f32 %v924, 0.0
  %v989 = vmax.f32 %v925, 0.0
  %v990 = vmax.f32 %v926, 0.0
  %v991 = vmax.f32 %v927, 0.0
  %v992 = vmax.f32 %v928, 0.0
  %v993 = vmax.f32 %v929, 0.0
  %v994 = vpack.c.bf16 %v931, %v930
  %v995 = vpack.c.bf16 %v933, %v932
  %v996 = vpack.c.bf16 %v935, %v934
  %v997 = vpack.c.bf16 %v937, %v936
  %v998 = vpack.c.bf16 %v939, %v938
  %v999 = vpack.c.bf16 %v941, %v940
  %v1000 = vpack.c.bf16 %v943, %v942
  %v1001 = vpack.c.bf16 %v945, %v944
  %v1002 = vpack.c.bf16 %v947, %v946
  %v1003 = vpack.c.bf16 %v949, %v948
  %v1004 = vpack.c.bf16 %v951, %v950
  %v1005 = vpack.c.bf16 %v953, %v952
  %v1006 = vpack.c.bf16 %v955, %v954
  %v1007 = vpack.c.bf16 %v957, %v956
  %v1008 = vpack.c.bf16 %v959, %v958
  %v1009 = vpack.c.bf16 %v961, %v960
  %v1010 = vpack.c.bf16 %v963, %v962
  %v1011 = vpack.c.bf16 %v965, %v964
  %v1012 = vpack.c.bf16 %v967, %v966
  %v1013 = vpack.c.bf16 %v969, %v968
  %v1014 = vpack.c.bf16 %v971, %v970
  %v1015 = vpack.c.bf16 %v973, %v972
  %v1016 = vpack.c.bf16 %v975, %v974
  %v1017 = vpack.c.bf16 %v977, %v976
  %v1018 = vpack.c.bf16 %v979, %v978
  %v1019 = vpack.c.bf16 %v981, %v980
  %v1020 = vpack.c.bf16 %v983, %v982
  %v1021 = vpack.c.bf16 %v985, %v984
  %v1022 = vpack.c.bf16 %v987, %v986
  %v1023 = vpack.c.bf16 %v989, %v988
  %v1024 = vpack.c.bf16 %v991, %v990
  %v1025 = vpack.c.bf16 %v993, %v992
  %s1026 = scalar_lea.vmem %s8, 4
  %v1027 = vld [vmem:[%s1026] sm:$0xf]
  %v1029 = vsel %vm394, %v994, 0
  %v1032 = vsel %vm394, %v995, 0
  %v1035 = vsel %vm394, %v996, 0
  %v1038 = vsel %vm394, %v997, 0
  %v1041 = vsel %vm394, %v998, 0
  %v1044 = vsel %vm394, %v999, 0
  %v1047 = vsel %vm394, %v1000, 0
  %v1050 = vsel %vm394, %v1001, 0
  %v1053 = vsel %vm394, %v1002, 0
  %v1056 = vsel %vm394, %v1003, 0
  %v1059 = vsel %vm394, %v1004, 0
  %v1062 = vsel %vm394, %v1005, 0
  %v1065 = vsel %vm394, %v1006, 0
  %v1068 = vsel %vm394, %v1007, 0
  %v1071 = vsel %vm394, %v1008, 0
  %v1074 = vsel %vm394, %v1009, 0
  %v1077 = vsel %vm394, %v1010, 0
  %v1080 = vsel %vm394, %v1011, 0
  %v1083 = vsel %vm394, %v1012, 0
  %v1086 = vsel %vm394, %v1013, 0
  %v1089 = vsel %vm394, %v1014, 0
  %v1092 = vsel %vm394, %v1015, 0
  %v1095 = vsel %vm394, %v1016, 0
  %v1098 = vsel %vm394, %v1017, 0
  %v1101 = vsel %vm394, %v1018, 0
  %v1104 = vsel %vm394, %v1019, 0
  %v1107 = vsel %vm394, %v1020, 0
  %v1110 = vsel %vm394, %v1021, 0
  %v1113 = vsel %vm394, %v1022, 0
  %v1116 = vsel %vm394, %v1023, 0
  %v1119 = vsel %vm394, %v1024, 0
  %v1122 = vsel %vm394, %v1025, 0
  %v1125 = vsel %vm491, %v1027, 0
  %1127 = vmatpush.bf16.msra.mxu0 0
  %1128 = vmatpush.bf16.msra.mxu0 0
  %1129 = vmatpush.bf16.msra.mxu0 0
  %1130 = vmatpush.bf16.msra.mxu0 0
  %1131 = vmatpush.bf16.msra.mxu0 0
  %1132 = vmatpush.bf16.msra.mxu0 0
  %1133 = vmatpush.bf16.msra.mxu0 0
  %1134 = vmatpush.bf16.msra.mxu0 %v1125
  %1135 = vmatmul.bf16.gmra.mxu0 %v1029
  %v1136 = vpop.f32.mrf.mxu0
  %v1137 = vadd.f32 0.0, %v1136
  %v1138 = vpop.f32.mrf.mxu0
  %v1139 = vadd.f32 0.0, %v1138
  %1140 = vmatmul.bf16.gmra.mxu0 %v1032
  %v1141 = vpop.f32.mrf.mxu0
  %v1142 = vadd.f32 0.0, %v1141
  %v1143 = vpop.f32.mrf.mxu0
  %v1144 = vadd.f32 0.0, %v1143
  %1145 = vmatmul.bf16.gmra.mxu0 %v1035
  %v1146 = vpop.f32.mrf.mxu0
  %v1147 = vadd.f32 0.0, %v1146
  %v1148 = vpop.f32.mrf.mxu0
  %v1149 = vadd.f32 0.0, %v1148
  %1150 = vmatmul.bf16.gmra.mxu0 %v1038
  %v1151 = vpop.f32.mrf.mxu0
  %v1152 = vadd.f32 0.0, %v1151
  %v1153 = vpop.f32.mrf.mxu0
  %v1154 = vadd.f32 0.0, %v1153
  %1155 = vmatmul.bf16.gmra.mxu0 %v1041
  %v1156 = vpop.f32.mrf.mxu0
  %v1157 = vadd.f32 0.0, %v1156
  %v1158 = vpop.f32.mrf.mxu0
  %v1159 = vadd.f32 0.0, %v1158
  %1160 = vmatmul.bf16.gmra.mxu0 %v1044
  %v1161 = vpop.f32.mrf.mxu0
  %v1162 = vadd.f32 0.0, %v1161
  %v1163 = vpop.f32.mrf.mxu0
  %v1164 = vadd.f32 0.0, %v1163
  %1165 = vmatmul.bf16.gmra.mxu0 %v1047
  %v1166 = vpop.f32.mrf.mxu0
  %v1167 = vadd.f32 0.0, %v1166
  %v1168 = vpop.f32.mrf.mxu0
  %v1169 = vadd.f32 0.0, %v1168
  %1170 = vmatmul.bf16.gmra.mxu0 %v1050
  %v1171 = vpop.f32.mrf.mxu0
  %v1172 = vadd.f32 0.0, %v1171
  %v1173 = vpop.f32.mrf.mxu0
  %v1174 = vadd.f32 0.0, %v1173
  %1175 = vmatmul.bf16.gmra.mxu0 %v1053
  %v1176 = vpop.f32.mrf.mxu0
  %v1177 = vadd.f32 0.0, %v1176
  %v1178 = vpop.f32.mrf.mxu0
  %v1179 = vadd.f32 0.0, %v1178
  %1180 = vmatmul.bf16.gmra.mxu0 %v1056
  %v1181 = vpop.f32.mrf.mxu0
  %v1182 = vadd.f32 0.0, %v1181
  %v1183 = vpop.f32.mrf.mxu0
  %v1184 = vadd.f32 0.0, %v1183
  %1185 = vmatmul.bf16.gmra.mxu0 %v1059
  %v1186 = vpop.f32.mrf.mxu0
  %v1187 = vadd.f32 0.0, %v1186
  %v1188 = vpop.f32.mrf.mxu0
  %v1189 = vadd.f32 0.0, %v1188
  %1190 = vmatmul.bf16.gmra.mxu0 %v1062
  %v1191 = vpop.f32.mrf.mxu0
  %v1192 = vadd.f32 0.0, %v1191
  %v1193 = vpop.f32.mrf.mxu0
  %v1194 = vadd.f32 0.0, %v1193
  %1195 = vmatmul.bf16.gmra.mxu0 %v1065
  %v1196 = vpop.f32.mrf.mxu0
  %v1197 = vadd.f32 0.0, %v1196
  %v1198 = vpop.f32.mrf.mxu0
  %v1199 = vadd.f32 0.0, %v1198
  %1200 = vmatmul.bf16.gmra.mxu0 %v1068
  %v1201 = vpop.f32.mrf.mxu0
  %v1202 = vadd.f32 0.0, %v1201
  %v1203 = vpop.f32.mrf.mxu0
  %v1204 = vadd.f32 0.0, %v1203
  %1205 = vmatmul.bf16.gmra.mxu0 %v1071
  %v1206 = vpop.f32.mrf.mxu0
  %v1207 = vadd.f32 0.0, %v1206
  %v1208 = vpop.f32.mrf.mxu0
  %v1209 = vadd.f32 0.0, %v1208
  %1210 = vmatmul.bf16.gmra.mxu0 %v1074
  %v1211 = vpop.f32.mrf.mxu0
  %v1212 = vadd.f32 0.0, %v1211
  %v1213 = vpop.f32.mrf.mxu0
  %v1214 = vadd.f32 0.0, %v1213
  %1215 = vmatmul.bf16.gmra.mxu0 %v1077
  %v1216 = vpop.f32.mrf.mxu0
  %v1217 = vadd.f32 0.0, %v1216
  %v1218 = vpop.f32.mrf.mxu0
  %v1219 = vadd.f32 0.0, %v1218
  %1220 = vmatmul.bf16.gmra.mxu0 %v1080
  %v1221 = vpop.f32.mrf.mxu0
  %v1222 = vadd.f32 0.0, %v1221
  %v1223 = vpop.f32.mrf.mxu0
  %v1224 = vadd.f32 0.0, %v1223
  %1225 = vmatmul.bf16.gmra.mxu0 %v1083
  %v1226 = vpop.f32.mrf.mxu0
  %v1227 = vadd.f32 0.0, %v1226
  %v1228 = vpop.f32.mrf.mxu0
  %v1229 = vadd.f32 0.0, %v1228
  %1230 = vmatmul.bf16.gmra.mxu0 %v1086
  %v1231 = vpop.f32.mrf.mxu0
  %v1232 = vadd.f32 0.0, %v1231
  %v1233 = vpop.f32.mrf.mxu0
  %v1234 = vadd.f32 0.0, %v1233
  %1235 = vmatmul.bf16.gmra.mxu0 %v1089
  %v1236 = vpop.f32.mrf.mxu0
  %v1237 = vadd.f32 0.0, %v1236
  %v1238 = vpop.f32.mrf.mxu0
  %v1239 = vadd.f32 0.0, %v1238
  %1240 = vmatmul.bf16.gmra.mxu0 %v1092
  %v1241 = vpop.f32.mrf.mxu0
  %v1242 = vadd.f32 0.0, %v1241
  %v1243 = vpop.f32.mrf.mxu0
  %v1244 = vadd.f32 0.0, %v1243
  %1245 = vmatmul.bf16.gmra.mxu0 %v1095
  %v1246 = vpop.f32.mrf.mxu0
  %v1247 = vadd.f32 0.0, %v1246
  %v1248 = vpop.f32.mrf.mxu0
  %v1249 = vadd.f32 0.0, %v1248
  %1250 = vmatmul.bf16.gmra.mxu0 %v1098
  %v1251 = vpop.f32.mrf.mxu0
  %v1252 = vadd.f32 0.0, %v1251
  %v1253 = vpop.f32.mrf.mxu0
  %v1254 = vadd.f32 0.0, %v1253
  %1255 = vmatmul.bf16.gmra.mxu0 %v1101
  %v1256 = vpop.f32.mrf.mxu0
  %v1257 = vadd.f32 0.0, %v1256
  %v1258 = vpop.f32.mrf.mxu0
  %v1259 = vadd.f32 0.0, %v1258
  %1260 = vmatmul.bf16.gmra.mxu0 %v1104
  %v1261 = vpop.f32.mrf.mxu0
  %v1262 = vadd.f32 0.0, %v1261
  %v1263 = vpop.f32.mrf.mxu0
  %v1264 = vadd.f32 0.0, %v1263
  %1265 = vmatmul.bf16.gmra.mxu0 %v1107
  %v1266 = vpop.f32.mrf.mxu0
  %v1267 = vadd.f32 0.0, %v1266
  %v1268 = vpop.f32.mrf.mxu0
  %v1269 = vadd.f32 0.0, %v1268
  %1270 = vmatmul.bf16.gmra.mxu0 %v1110
  %v1271 = vpop.f32.mrf.mxu0
  %v1272 = vadd.f32 0.0, %v1271
  %v1273 = vpop.f32.mrf.mxu0
  %v1274 = vadd.f32 0.0, %v1273
  %1275 = vmatmul.bf16.gmra.mxu0 %v1113
  %v1276 = vpop.f32.mrf.mxu0
  %v1277 = vadd.f32 0.0, %v1276
  %v1278 = vpop.f32.mrf.mxu0
  %v1279 = vadd.f32 0.0, %v1278
  %1280 = vmatmul.bf16.gmra.mxu0 %v1116
  %v1281 = vpop.f32.mrf.mxu0
  %v1282 = vadd.f32 0.0, %v1281
  %v1283 = vpop.f32.mrf.mxu0
  %v1284 = vadd.f32 0.0, %v1283
  %1285 = vmatmul.bf16.gmra.mxu0 %v1119
  %v1286 = vpop.f32.mrf.mxu0
  %v1287 = vadd.f32 0.0, %v1286
  %v1288 = vpop.f32.mrf.mxu0
  %v1289 = vadd.f32 0.0, %v1288
  %1290 = vmatmul.bf16.gmra.mxu0 %v1122
  %v1291 = vpop.f32.mrf.mxu0
  %v1292 = vadd.f32 0.0, %v1291
  %v1293 = vpop.f32.mrf.mxu0
  %v1294 = vadd.f32 0.0, %v1293
  %1295 = vdwg.mxu0
  %v1296 = vadd.f32 %v664, %v1137
  %v1297 = vadd.f32 %v665, %v1139
  %v1298 = vadd.f32 %v666, %v1142
  %v1299 = vadd.f32 %v667, %v1144
  %v1300 = vadd.f32 %v668, %v1147
  %v1301 = vadd.f32 %v669, %v1149
  %v1302 = vadd.f32 %v670, %v1152
  %v1303 = vadd.f32 %v671, %v1154
  %v1304 = vadd.f32 %v672, %v1157
  %v1305 = vadd.f32 %v673, %v1159
  %v1306 = vadd.f32 %v674, %v1162
  %v1307 = vadd.f32 %v675, %v1164
  %v1308 = vadd.f32 %v676, %v1167
  %v1309 = vadd.f32 %v677, %v1169
  %v1310 = vadd.f32 %v678, %v1172
  %v1311 = vadd.f32 %v679, %v1174
  %v1312 = vadd.f32 %v680, %v1177
  %v1313 = vadd.f32 %v681, %v1179
  %v1314 = vadd.f32 %v682, %v1182
  %v1315 = vadd.f32 %v683, %v1184
  %v1316 = vadd.f32 %v684, %v1187
  %v1317 = vadd.f32 %v685, %v1189
  %v1318 = vadd.f32 %v686, %v1192
  %v1319 = vadd.f32 %v687, %v1194
  %v1320 = vadd.f32 %v688, %v1197
  %v1321 = vadd.f32 %v689, %v1199
  %v1322 = vadd.f32 %v690, %v1202
  %v1323 = vadd.f32 %v691, %v1204
  %v1324 = vadd.f32 %v692, %v1207
  %v1325 = vadd.f32 %v693, %v1209
  %v1326 = vadd.f32 %v694, %v1212
  %v1327 = vadd.f32 %v695, %v1214
  %v1328 = vadd.f32 %v696, %v1217
  %v1329 = vadd.f32 %v697, %v1219
  %v1330 = vadd.f32 %v698, %v1222
  %v1331 = vadd.f32 %v699, %v1224
  %v1332 = vadd.f32 %v700, %v1227
  %v1333 = vadd.f32 %v701, %v1229
  %v1334 = vadd.f32 %v702, %v1232
  %v1335 = vadd.f32 %v703, %v1234
  %v1336 = vadd.f32 %v704, %v1237
  %v1337 = vadd.f32 %v705, %v1239
  %v1338 = vadd.f32 %v706, %v1242
  %v1339 = vadd.f32 %v707, %v1244
  %v1340 = vadd.f32 %v708, %v1247
  %v1341 = vadd.f32 %v709, %v1249
  %v1342 = vadd.f32 %v710, %v1252
  %v1343 = vadd.f32 %v711, %v1254
  %v1344 = vadd.f32 %v712, %v1257
  %v1345 = vadd.f32 %v713, %v1259
  %v1346 = vadd.f32 %v714, %v1262
  %v1347 = vadd.f32 %v715, %v1264
  %v1348 = vadd.f32 %v716, %v1267
  %v1349 = vadd.f32 %v717, %v1269
  %v1350 = vadd.f32 %v718, %v1272
  %v1351 = vadd.f32 %v719, %v1274
  %v1352 = vadd.f32 %v720, %v1277
  %v1353 = vadd.f32 %v721, %v1279
  %v1354 = vadd.f32 %v722, %v1282
  %v1355 = vadd.f32 %v723, %v1284
  %v1356 = vadd.f32 %v724, %v1287
  %v1357 = vadd.f32 %v725, %v1289
  %v1358 = vadd.f32 %v726, %v1292
  %v1359 = vadd.f32 %v727, %v1294
  %v1360 = vld [vmem:[%s2] sm:$0xff]
  %v1361 = vld [vmem:[%s2 + $0x8] sm:$0xff]
  %v1362 = vld [vmem:[%s2 + $0x10] sm:$0xff]
  %v1363 = vld [vmem:[%s2 + $0x18] sm:$0xff]
  %v1364 = vld [vmem:[%s2 + $0x20] sm:$0xff]
  %v1365 = vld [vmem:[%s2 + $0x28] sm:$0xff]
  %v1366 = vld [vmem:[%s2 + $0x30] sm:$0xff]
  %v1367 = vld [vmem:[%s2 + $0x38] sm:$0xff]
  %v1368 = vld [vmem:[%s2 + $0x40] sm:$0xff]
  %v1369 = vld [vmem:[%s2 + $0x48] sm:$0xff]
  %v1370 = vld [vmem:[%s2 + $0x50] sm:$0xff]
  %v1371 = vld [vmem:[%s2 + $0x58] sm:$0xff]
  %v1372 = vld [vmem:[%s2 + $0x60] sm:$0xff]
  %v1373 = vld [vmem:[%s2 + $0x68] sm:$0xff]
  %v1374 = vld [vmem:[%s2 + $0x70] sm:$0xff]
  %v1375 = vld [vmem:[%s2 + $0x78] sm:$0xff]
  %v1376 = vld [vmem:[%s2 + $0x80] sm:$0xff]
  %v1377 = vld [vmem:[%s2 + $0x88] sm:$0xff]
  %v1378 = vld [vmem:[%s2 + $0x90] sm:$0xff]
  %v1379 = vld [vmem:[%s2 + $0x98] sm:$0xff]
  %v1380 = vld [vmem:[%s2 + $0xa0] sm:$0xff]
  %v1381 = vld [vmem:[%s2 + $0xa8] sm:$0xff]
  %v1382 = vld [vmem:[%s2 + $0xb0] sm:$0xff]
  %v1383 = vld [vmem:[%s2 + $0xb8] sm:$0xff]
  %v1384 = vld [vmem:[%s2 + $0xc0] sm:$0xff]
  %v1385 = vld [vmem:[%s2 + $0xc8] sm:$0xff]
  %v1386 = vld [vmem:[%s2 + $0xd0] sm:$0xff]
  %v1387 = vld [vmem:[%s2 + $0xd8] sm:$0xff]
  %v1388 = vld [vmem:[%s2 + $0xe0] sm:$0xff]
  %v1389 = vld [vmem:[%s2 + $0xe8] sm:$0xff]
  %v1390 = vld [vmem:[%s2 + $0xf0] sm:$0xff]
  %v1391 = vld [vmem:[%s2 + $0xf8] sm:$0xff]
  %v1392 = vld [vmem:[%s2 + $0x100] sm:$0xff]
  %v1393 = vld [vmem:[%s2 + $0x108] sm:$0xff]
  %v1394 = vld [vmem:[%s2 + $0x110] sm:$0xff]
  %v1395 = vld [vmem:[%s2 + $0x118] sm:$0xff]
  %v1396 = vld [vmem:[%s2 + $0x120] sm:$0xff]
  %v1397 = vld [vmem:[%s2 + $0x128] sm:$0xff]
  %v1398 = vld [vmem:[%s2 + $0x130] sm:$0xff]
  %v1399 = vld [vmem:[%s2 + $0x138] sm:$0xff]
  %v1400 = vld [vmem:[%s2 + $0x140] sm:$0xff]
  %v1401 = vld [vmem:[%s2 + $0x148] sm:$0xff]
  %v1402 = vld [vmem:[%s2 + $0x150] sm:$0xff]
  %v1403 = vld [vmem:[%s2 + $0x158] sm:$0xff]
  %v1404 = vld [vmem:[%s2 + $0x160] sm:$0xff]
  %v1405 = vld [vmem:[%s2 + $0x168] sm:$0xff]
  %v1406 = vld [vmem:[%s2 + $0x170] sm:$0xff]
  %v1407 = vld [vmem:[%s2 + $0x178] sm:$0xff]
  %v1408 = vld [vmem:[%s2 + $0x180] sm:$0xff]
  %v1409 = vld [vmem:[%s2 + $0x188] sm:$0xff]
  %v1410 = vld [vmem:[%s2 + $0x190] sm:$0xff]
  %v1411 = vld [vmem:[%s2 + $0x198] sm:$0xff]
  %v1412 = vld [vmem:[%s2 + $0x1a0] sm:$0xff]
  %v1413 = vld [vmem:[%s2 + $0x1a8] sm:$0xff]
  %v1414 = vld [vmem:[%s2 + $0x1b0] sm:$0xff]
  %v1415 = vld [vmem:[%s2 + $0x1b8] sm:$0xff]
  %v1416 = vld [vmem:[%s2 + $0x1c0] sm:$0xff]
  %v1417 = vld [vmem:[%s2 + $0x1c8] sm:$0xff]
  %v1418 = vld [vmem:[%s2 + $0x1d0] sm:$0xff]
  %v1419 = vld [vmem:[%s2 + $0x1d8] sm:$0xff]
  %v1420 = vld [vmem:[%s2 + $0x1e0] sm:$0xff]
  %v1421 = vld [vmem:[%s2 + $0x1e8] sm:$0xff]
  %v1422 = vld [vmem:[%s2 + $0x1f0] sm:$0xff]
  %v1423 = vld [vmem:[%s2 + $0x1f8] sm:$0xff]
  %s1424 = scalar_lea.vmem %s6, 2
  %v1425 = vld [vmem:[%s1424] sm:$0x1]
  %v1427 = vperm.slane %v1425, 0
  %v1429 = vmul.f32 %v1360, %v1427
  %v1430 = vmul.f32 %v1361, %v1427
  %v1431 = vmul.f32 %v1362, %v1427
  %v1432 = vmul.f32 %v1363, %v1427
  %v1433 = vmul.f32 %v1364, %v1427
  %v1434 = vmul.f32 %v1365, %v1427
  %v1435 = vmul.f32 %v1366, %v1427
  %v1436 = vmul.f32 %v1367, %v1427
  %v1437 = vmul.f32 %v1368, %v1427
  %v1438 = vmul.f32 %v1369, %v1427
  %v1439 = vmul.f32 %v1370, %v1427
  %v1440 = vmul.f32 %v1371, %v1427
  %v1441 = vmul.f32 %v1372, %v1427
  %v1442 = vmul.f32 %v1373, %v1427
  %v1443 = vmul.f32 %v1374, %v1427
  %v1444 = vmul.f32 %v1375, %v1427
  %v1445 = vmul.f32 %v1376, %v1427
  %v1446 = vmul.f32 %v1377, %v1427
  %v1447 = vmul.f32 %v1378, %v1427
  %v1448 = vmul.f32 %v1379, %v1427
  %v1449 = vmul.f32 %v1380, %v1427
  %v1450 = vmul.f32 %v1381, %v1427
  %v1451 = vmul.f32 %v1382, %v1427
  %v1452 = vmul.f32 %v1383, %v1427
  %v1453 = vmul.f32 %v1384, %v1427
  %v1454 = vmul.f32 %v1385, %v1427
  %v1455 = vmul.f32 %v1386, %v1427
  %v1456 = vmul.f32 %v1387, %v1427
  %v1457 = vmul.f32 %v1388, %v1427
  %v1458 = vmul.f32 %v1389, %v1427
  %v1459 = vmul.f32 %v1390, %v1427
  %v1460 = vmul.f32 %v1391, %v1427
  %v1461 = vmul.f32 %v1392, %v1427
  %v1462 = vmul.f32 %v1393, %v1427
  %v1463 = vmul.f32 %v1394, %v1427
  %v1464 = vmul.f32 %v1395, %v1427
  %v1465 = vmul.f32 %v1396, %v1427
  %v1466 = vmul.f32 %v1397, %v1427
  %v1467 = vmul.f32 %v1398, %v1427
  %v1468 = vmul.f32 %v1399, %v1427
  %v1469 = vmul.f32 %v1400, %v1427
  %v1470 = vmul.f32 %v1401, %v1427
  %v1471 = vmul.f32 %v1402, %v1427
  %v1472 = vmul.f32 %v1403, %v1427
  %v1473 = vmul.f32 %v1404, %v1427
  %v1474 = vmul.f32 %v1405, %v1427
  %v1475 = vmul.f32 %v1406, %v1427
  %v1476 = vmul.f32 %v1407, %v1427
  %v1477 = vmul.f32 %v1408, %v1427
  %v1478 = vmul.f32 %v1409, %v1427
  %v1479 = vmul.f32 %v1410, %v1427
  %v1480 = vmul.f32 %v1411, %v1427
  %v1481 = vmul.f32 %v1412, %v1427
  %v1482 = vmul.f32 %v1413, %v1427
  %v1483 = vmul.f32 %v1414, %v1427
  %v1484 = vmul.f32 %v1415, %v1427
  %v1485 = vmul.f32 %v1416, %v1427
  %v1486 = vmul.f32 %v1417, %v1427
  %v1487 = vmul.f32 %v1418, %v1427
  %v1488 = vmul.f32 %v1419, %v1427
  %v1489 = vmul.f32 %v1420, %v1427
  %v1490 = vmul.f32 %v1421, %v1427
  %v1491 = vmul.f32 %v1422, %v1427
  %v1492 = vmul.f32 %v1423, %v1427
  %s1493 = scalar_lea.vmem %s7, 2
  %v1494 = vld [vmem:[%s1493] sm:$0x1]
  %v1496 = vperm.slane %v1494, 0
  %v1498 = vadd.f32 %v1429, %v1496
  %v1499 = vadd.f32 %v1430, %v1496
  %v1500 = vadd.f32 %v1431, %v1496
  %v1501 = vadd.f32 %v1432, %v1496
  %v1502 = vadd.f32 %v1433, %v1496
  %v1503 = vadd.f32 %v1434, %v1496
  %v1504 = vadd.f32 %v1435, %v1496
  %v1505 = vadd.f32 %v1436, %v1496
  %v1506 = vadd.f32 %v1437, %v1496
  %v1507 = vadd.f32 %v1438, %v1496
  %v1508 = vadd.f32 %v1439, %v1496
  %v1509 = vadd.f32 %v1440, %v1496
  %v1510 = vadd.f32 %v1441, %v1496
  %v1511 = vadd.f32 %v1442, %v1496
  %v1512 = vadd.f32 %v1443, %v1496
  %v1513 = vadd.f32 %v1444, %v1496
  %v1514 = vadd.f32 %v1445, %v1496
  %v1515 = vadd.f32 %v1446, %v1496
  %v1516 = vadd.f32 %v1447, %v1496
  %v1517 = vadd.f32 %v1448, %v1496
  %v1518 = vadd.f32 %v1449, %v1496
  %v1519 = vadd.f32 %v1450, %v1496
  %v1520 = vadd.f32 %v1451, %v1496
  %v1521 = vadd.f32 %v1452, %v1496
  %v1522 = vadd.f32 %v1453, %v1496
  %v1523 = vadd.f32 %v1454, %v1496
  %v1524 = vadd.f32 %v1455, %v1496
  %v1525 = vadd.f32 %v1456, %v1496
  %v1526 = vadd.f32 %v1457, %v1496
  %v1527 = vadd.f32 %v1458, %v1496
  %v1528 = vadd.f32 %v1459, %v1496
  %v1529 = vadd.f32 %v1460, %v1496
  %v1530 = vadd.f32 %v1461, %v1496
  %v1531 = vadd.f32 %v1462, %v1496
  %v1532 = vadd.f32 %v1463, %v1496
  %v1533 = vadd.f32 %v1464, %v1496
  %v1534 = vadd.f32 %v1465, %v1496
  %v1535 = vadd.f32 %v1466, %v1496
  %v1536 = vadd.f32 %v1467, %v1496
  %v1537 = vadd.f32 %v1468, %v1496
  %v1538 = vadd.f32 %v1469, %v1496
  %v1539 = vadd.f32 %v1470, %v1496
  %v1540 = vadd.f32 %v1471, %v1496
  %v1541 = vadd.f32 %v1472, %v1496
  %v1542 = vadd.f32 %v1473, %v1496
  %v1543 = vadd.f32 %v1474, %v1496
  %v1544 = vadd.f32 %v1475, %v1496
  %v1545 = vadd.f32 %v1476, %v1496
  %v1546 = vadd.f32 %v1477, %v1496
  %v1547 = vadd.f32 %v1478, %v1496
  %v1548 = vadd.f32 %v1479, %v1496
  %v1549 = vadd.f32 %v1480, %v1496
  %v1550 = vadd.f32 %v1481, %v1496
  %v1551 = vadd.f32 %v1482, %v1496
  %v1552 = vadd.f32 %v1483, %v1496
  %v1553 = vadd.f32 %v1484, %v1496
  %v1554 = vadd.f32 %v1485, %v1496
  %v1555 = vadd.f32 %v1486, %v1496
  %v1556 = vadd.f32 %v1487, %v1496
  %v1557 = vadd.f32 %v1488, %v1496
  %v1558 = vadd.f32 %v1489, %v1496
  %v1559 = vadd.f32 %v1490, %v1496
  %v1560 = vadd.f32 %v1491, %v1496
  %v1561 = vadd.f32 %v1492, %v1496
  %v1562 = vmax.f32 %v1498, 0.0
  %v1563 = vmax.f32 %v1499, 0.0
  %v1564 = vmax.f32 %v1500, 0.0
  %v1565 = vmax.f32 %v1501, 0.0
  %v1566 = vmax.f32 %v1502, 0.0
  %v1567 = vmax.f32 %v1503, 0.0
  %v1568 = vmax.f32 %v1504, 0.0
  %v1569 = vmax.f32 %v1505, 0.0
  %v1570 = vmax.f32 %v1506, 0.0
  %v1571 = vmax.f32 %v1507, 0.0
  %v1572 = vmax.f32 %v1508, 0.0
  %v1573 = vmax.f32 %v1509, 0.0
  %v1574 = vmax.f32 %v1510, 0.0
  %v1575 = vmax.f32 %v1511, 0.0
  %v1576 = vmax.f32 %v1512, 0.0
  %v1577 = vmax.f32 %v1513, 0.0
  %v1578 = vmax.f32 %v1514, 0.0
  %v1579 = vmax.f32 %v1515, 0.0
  %v1580 = vmax.f32 %v1516, 0.0
  %v1581 = vmax.f32 %v1517, 0.0
  %v1582 = vmax.f32 %v1518, 0.0
  %v1583 = vmax.f32 %v1519, 0.0
  %v1584 = vmax.f32 %v1520, 0.0
  %v1585 = vmax.f32 %v1521, 0.0
  %v1586 = vmax.f32 %v1522, 0.0
  %v1587 = vmax.f32 %v1523, 0.0
  %v1588 = vmax.f32 %v1524, 0.0
  %v1589 = vmax.f32 %v1525, 0.0
  %v1590 = vmax.f32 %v1526, 0.0
  %v1591 = vmax.f32 %v1527, 0.0
  %v1592 = vmax.f32 %v1528, 0.0
  %v1593 = vmax.f32 %v1529, 0.0
  %v1594 = vmax.f32 %v1530, 0.0
  %v1595 = vmax.f32 %v1531, 0.0
  %v1596 = vmax.f32 %v1532, 0.0
  %v1597 = vmax.f32 %v1533, 0.0
  %v1598 = vmax.f32 %v1534, 0.0
  %v1599 = vmax.f32 %v1535, 0.0
  %v1600 = vmax.f32 %v1536, 0.0
  %v1601 = vmax.f32 %v1537, 0.0
  %v1602 = vmax.f32 %v1538, 0.0
  %v1603 = vmax.f32 %v1539, 0.0
  %v1604 = vmax.f32 %v1540, 0.0
  %v1605 = vmax.f32 %v1541, 0.0
  %v1606 = vmax.f32 %v1542, 0.0
  %v1607 = vmax.f32 %v1543, 0.0
  %v1608 = vmax.f32 %v1544, 0.0
  %v1609 = vmax.f32 %v1545, 0.0
  %v1610 = vmax.f32 %v1546, 0.0
  %v1611 = vmax.f32 %v1547, 0.0
  %v1612 = vmax.f32 %v1548, 0.0
  %v1613 = vmax.f32 %v1549, 0.0
  %v1614 = vmax.f32 %v1550, 0.0
  %v1615 = vmax.f32 %v1551, 0.0
  %v1616 = vmax.f32 %v1552, 0.0
  %v1617 = vmax.f32 %v1553, 0.0
  %v1618 = vmax.f32 %v1554, 0.0
  %v1619 = vmax.f32 %v1555, 0.0
  %v1620 = vmax.f32 %v1556, 0.0
  %v1621 = vmax.f32 %v1557, 0.0
  %v1622 = vmax.f32 %v1558, 0.0
  %v1623 = vmax.f32 %v1559, 0.0
  %v1624 = vmax.f32 %v1560, 0.0
  %v1625 = vmax.f32 %v1561, 0.0
  %v1626 = vpack.c.bf16 %v1563, %v1562
  %v1627 = vpack.c.bf16 %v1565, %v1564
  %v1628 = vpack.c.bf16 %v1567, %v1566
  %v1629 = vpack.c.bf16 %v1569, %v1568
  %v1630 = vpack.c.bf16 %v1571, %v1570
  %v1631 = vpack.c.bf16 %v1573, %v1572
  %v1632 = vpack.c.bf16 %v1575, %v1574
  %v1633 = vpack.c.bf16 %v1577, %v1576
  %v1634 = vpack.c.bf16 %v1579, %v1578
  %v1635 = vpack.c.bf16 %v1581, %v1580
  %v1636 = vpack.c.bf16 %v1583, %v1582
  %v1637 = vpack.c.bf16 %v1585, %v1584
  %v1638 = vpack.c.bf16 %v1587, %v1586
  %v1639 = vpack.c.bf16 %v1589, %v1588
  %v1640 = vpack.c.bf16 %v1591, %v1590
  %v1641 = vpack.c.bf16 %v1593, %v1592
  %v1642 = vpack.c.bf16 %v1595, %v1594
  %v1643 = vpack.c.bf16 %v1597, %v1596
  %v1644 = vpack.c.bf16 %v1599, %v1598
  %v1645 = vpack.c.bf16 %v1601, %v1600
  %v1646 = vpack.c.bf16 %v1603, %v1602
  %v1647 = vpack.c.bf16 %v1605, %v1604
  %v1648 = vpack.c.bf16 %v1607, %v1606
  %v1649 = vpack.c.bf16 %v1609, %v1608
  %v1650 = vpack.c.bf16 %v1611, %v1610
  %v1651 = vpack.c.bf16 %v1613, %v1612
  %v1652 = vpack.c.bf16 %v1615, %v1614
  %v1653 = vpack.c.bf16 %v1617, %v1616
  %v1654 = vpack.c.bf16 %v1619, %v1618
  %v1655 = vpack.c.bf16 %v1621, %v1620
  %v1656 = vpack.c.bf16 %v1623, %v1622
  %v1657 = vpack.c.bf16 %v1625, %v1624
  %s1658 = scalar_lea.vmem %s8, 8
  %v1659 = vld [vmem:[%s1658] sm:$0xf]
  %v1661 = vsel %vm394, %v1626, 0
  %v1664 = vsel %vm394, %v1627, 0
  %v1667 = vsel %vm394, %v1628, 0
  %v1670 = vsel %vm394, %v1629, 0
  %v1673 = vsel %vm394, %v1630, 0
  %v1676 = vsel %vm394, %v1631, 0
  %v1679 = vsel %vm394, %v1632, 0
  %v1682 = vsel %vm394, %v1633, 0
  %v1685 = vsel %vm394, %v1634, 0
  %v1688 = vsel %vm394, %v1635, 0
  %v1691 = vsel %vm394, %v1636, 0
  %v1694 = vsel %vm394, %v1637, 0
  %v1697 = vsel %vm394, %v1638, 0
  %v1700 = vsel %vm394, %v1639, 0
  %v1703 = vsel %vm394, %v1640, 0
  %v1706 = vsel %vm394, %v1641, 0
  %v1709 = vsel %vm394, %v1642, 0
  %v1712 = vsel %vm394, %v1643, 0
  %v1715 = vsel %vm394, %v1644, 0
  %v1718 = vsel %vm394, %v1645, 0
  %v1721 = vsel %vm394, %v1646, 0
  %v1724 = vsel %vm394, %v1647, 0
  %v1727 = vsel %vm394, %v1648, 0
  %v1730 = vsel %vm394, %v1649, 0
  %v1733 = vsel %vm394, %v1650, 0
  %v1736 = vsel %vm394, %v1651, 0
  %v1739 = vsel %vm394, %v1652, 0
  %v1742 = vsel %vm394, %v1653, 0
  %v1745 = vsel %vm394, %v1654, 0
  %v1748 = vsel %vm394, %v1655, 0
  %v1751 = vsel %vm394, %v1656, 0
  %v1754 = vsel %vm394, %v1657, 0
  %v1757 = vsel %vm491, %v1659, 0
  %1759 = vmatpush.bf16.msra.mxu0 0
  %1760 = vmatpush.bf16.msra.mxu0 0
  %1761 = vmatpush.bf16.msra.mxu0 0
  %1762 = vmatpush.bf16.msra.mxu0 0
  %1763 = vmatpush.bf16.msra.mxu0 0
  %1764 = vmatpush.bf16.msra.mxu0 0
  %1765 = vmatpush.bf16.msra.mxu0 0
  %1766 = vmatpush.bf16.msra.mxu0 %v1757
  %1767 = vmatmul.bf16.gmra.mxu0 %v1661
  %v1768 = vpop.f32.mrf.mxu0
  %v1769 = vadd.f32 0.0, %v1768
  %v1770 = vpop.f32.mrf.mxu0
  %v1771 = vadd.f32 0.0, %v1770
  %1772 = vmatmul.bf16.gmra.mxu0 %v1664
  %v1773 = vpop.f32.mrf.mxu0
  %v1774 = vadd.f32 0.0, %v1773
  %v1775 = vpop.f32.mrf.mxu0
  %v1776 = vadd.f32 0.0, %v1775
  %1777 = vmatmul.bf16.gmra.mxu0 %v1667
  %v1778 = vpop.f32.mrf.mxu0
  %v1779 = vadd.f32 0.0, %v1778
  %v1780 = vpop.f32.mrf.mxu0
  %v1781 = vadd.f32 0.0, %v1780
  %1782 = vmatmul.bf16.gmra.mxu0 %v1670
  %v1783 = vpop.f32.mrf.mxu0
  %v1784 = vadd.f32 0.0, %v1783
  %v1785 = vpop.f32.mrf.mxu0
  %v1786 = vadd.f32 0.0, %v1785
  %1787 = vmatmul.bf16.gmra.mxu0 %v1673
  %v1788 = vpop.f32.mrf.mxu0
  %v1789 = vadd.f32 0.0, %v1788
  %v1790 = vpop.f32.mrf.mxu0
  %v1791 = vadd.f32 0.0, %v1790
  %1792 = vmatmul.bf16.gmra.mxu0 %v1676
  %v1793 = vpop.f32.mrf.mxu0
  %v1794 = vadd.f32 0.0, %v1793
  %v1795 = vpop.f32.mrf.mxu0
  %v1796 = vadd.f32 0.0, %v1795
  %1797 = vmatmul.bf16.gmra.mxu0 %v1679
  %v1798 = vpop.f32.mrf.mxu0
  %v1799 = vadd.f32 0.0, %v1798
  %v1800 = vpop.f32.mrf.mxu0
  %v1801 = vadd.f32 0.0, %v1800
  %1802 = vmatmul.bf16.gmra.mxu0 %v1682
  %v1803 = vpop.f32.mrf.mxu0
  %v1804 = vadd.f32 0.0, %v1803
  %v1805 = vpop.f32.mrf.mxu0
  %v1806 = vadd.f32 0.0, %v1805
  %1807 = vmatmul.bf16.gmra.mxu0 %v1685
  %v1808 = vpop.f32.mrf.mxu0
  %v1809 = vadd.f32 0.0, %v1808
  %v1810 = vpop.f32.mrf.mxu0
  %v1811 = vadd.f32 0.0, %v1810
  %1812 = vmatmul.bf16.gmra.mxu0 %v1688
  %v1813 = vpop.f32.mrf.mxu0
  %v1814 = vadd.f32 0.0, %v1813
  %v1815 = vpop.f32.mrf.mxu0
  %v1816 = vadd.f32 0.0, %v1815
  %1817 = vmatmul.bf16.gmra.mxu0 %v1691
  %v1818 = vpop.f32.mrf.mxu0
  %v1819 = vadd.f32 0.0, %v1818
  %v1820 = vpop.f32.mrf.mxu0
  %v1821 = vadd.f32 0.0, %v1820
  %1822 = vmatmul.bf16.gmra.mxu0 %v1694
  %v1823 = vpop.f32.mrf.mxu0
  %v1824 = vadd.f32 0.0, %v1823
  %v1825 = vpop.f32.mrf.mxu0
  %v1826 = vadd.f32 0.0, %v1825
  %1827 = vmatmul.bf16.gmra.mxu0 %v1697
  %v1828 = vpop.f32.mrf.mxu0
  %v1829 = vadd.f32 0.0, %v1828
  %v1830 = vpop.f32.mrf.mxu0
  %v1831 = vadd.f32 0.0, %v1830
  %1832 = vmatmul.bf16.gmra.mxu0 %v1700
  %v1833 = vpop.f32.mrf.mxu0
  %v1834 = vadd.f32 0.0, %v1833
  %v1835 = vpop.f32.mrf.mxu0
  %v1836 = vadd.f32 0.0, %v1835
  %1837 = vmatmul.bf16.gmra.mxu0 %v1703
  %v1838 = vpop.f32.mrf.mxu0
  %v1839 = vadd.f32 0.0, %v1838
  %v1840 = vpop.f32.mrf.mxu0
  %v1841 = vadd.f32 0.0, %v1840
  %1842 = vmatmul.bf16.gmra.mxu0 %v1706
  %v1843 = vpop.f32.mrf.mxu0
  %v1844 = vadd.f32 0.0, %v1843
  %v1845 = vpop.f32.mrf.mxu0
  %v1846 = vadd.f32 0.0, %v1845
  %1847 = vmatmul.bf16.gmra.mxu0 %v1709
  %v1848 = vpop.f32.mrf.mxu0
  %v1849 = vadd.f32 0.0, %v1848
  %v1850 = vpop.f32.mrf.mxu0
  %v1851 = vadd.f32 0.0, %v1850
  %1852 = vmatmul.bf16.gmra.mxu0 %v1712
  %v1853 = vpop.f32.mrf.mxu0
  %v1854 = vadd.f32 0.0, %v1853
  %v1855 = vpop.f32.mrf.mxu0
  %v1856 = vadd.f32 0.0, %v1855
  %1857 = vmatmul.bf16.gmra.mxu0 %v1715
  %v1858 = vpop.f32.mrf.mxu0
  %v1859 = vadd.f32 0.0, %v1858
  %v1860 = vpop.f32.mrf.mxu0
  %v1861 = vadd.f32 0.0, %v1860
  %1862 = vmatmul.bf16.gmra.mxu0 %v1718
  %v1863 = vpop.f32.mrf.mxu0
  %v1864 = vadd.f32 0.0, %v1863
  %v1865 = vpop.f32.mrf.mxu0
  %v1866 = vadd.f32 0.0, %v1865
  %1867 = vmatmul.bf16.gmra.mxu0 %v1721
  %v1868 = vpop.f32.mrf.mxu0
  %v1869 = vadd.f32 0.0, %v1868
  %v1870 = vpop.f32.mrf.mxu0
  %v1871 = vadd.f32 0.0, %v1870
  %1872 = vmatmul.bf16.gmra.mxu0 %v1724
  %v1873 = vpop.f32.mrf.mxu0
  %v1874 = vadd.f32 0.0, %v1873
  %v1875 = vpop.f32.mrf.mxu0
  %v1876 = vadd.f32 0.0, %v1875
  %1877 = vmatmul.bf16.gmra.mxu0 %v1727
  %v1878 = vpop.f32.mrf.mxu0
  %v1879 = vadd.f32 0.0, %v1878
  %v1880 = vpop.f32.mrf.mxu0
  %v1881 = vadd.f32 0.0, %v1880
  %1882 = vmatmul.bf16.gmra.mxu0 %v1730
  %v1883 = vpop.f32.mrf.mxu0
  %v1884 = vadd.f32 0.0, %v1883
  %v1885 = vpop.f32.mrf.mxu0
  %v1886 = vadd.f32 0.0, %v1885
  %1887 = vmatmul.bf16.gmra.mxu0 %v1733
  %v1888 = vpop.f32.mrf.mxu0
  %v1889 = vadd.f32 0.0, %v1888
  %v1890 = vpop.f32.mrf.mxu0
  %v1891 = vadd.f32 0.0, %v1890
  %1892 = vmatmul.bf16.gmra.mxu0 %v1736
  %v1893 = vpop.f32.mrf.mxu0
  %v1894 = vadd.f32 0.0, %v1893
  %v1895 = vpop.f32.mrf.mxu0
  %v1896 = vadd.f32 0.0, %v1895
  %1897 = vmatmul.bf16.gmra.mxu0 %v1739
  %v1898 = vpop.f32.mrf.mxu0
  %v1899 = vadd.f32 0.0, %v1898
  %v1900 = vpop.f32.mrf.mxu0
  %v1901 = vadd.f32 0.0, %v1900
  %1902 = vmatmul.bf16.gmra.mxu0 %v1742
  %v1903 = vpop.f32.mrf.mxu0
  %v1904 = vadd.f32 0.0, %v1903
  %v1905 = vpop.f32.mrf.mxu0
  %v1906 = vadd.f32 0.0, %v1905
  %1907 = vmatmul.bf16.gmra.mxu0 %v1745
  %v1908 = vpop.f32.mrf.mxu0
  %v1909 = vadd.f32 0.0, %v1908
  %v1910 = vpop.f32.mrf.mxu0
  %v1911 = vadd.f32 0.0, %v1910
  %1912 = vmatmul.bf16.gmra.mxu0 %v1748
  %v1913 = vpop.f32.mrf.mxu0
  %v1914 = vadd.f32 0.0, %v1913
  %v1915 = vpop.f32.mrf.mxu0
  %v1916 = vadd.f32 0.0, %v1915
  %1917 = vmatmul.bf16.gmra.mxu0 %v1751
  %v1918 = vpop.f32.mrf.mxu0
  %v1919 = vadd.f32 0.0, %v1918
  %v1920 = vpop.f32.mrf.mxu0
  %v1921 = vadd.f32 0.0, %v1920
  %1922 = vmatmul.bf16.gmra.mxu0 %v1754
  %v1923 = vpop.f32.mrf.mxu0
  %v1924 = vadd.f32 0.0, %v1923
  %v1925 = vpop.f32.mrf.mxu0
  %v1926 = vadd.f32 0.0, %v1925
  %1927 = vdwg.mxu0
  %v1928 = vadd.f32 %v1296, %v1769
  %v1929 = vadd.f32 %v1297, %v1771
  %v1930 = vadd.f32 %v1298, %v1774
  %v1931 = vadd.f32 %v1299, %v1776
  %v1932 = vadd.f32 %v1300, %v1779
  %v1933 = vadd.f32 %v1301, %v1781
  %v1934 = vadd.f32 %v1302, %v1784
  %v1935 = vadd.f32 %v1303, %v1786
  %v1936 = vadd.f32 %v1304, %v1789
  %v1937 = vadd.f32 %v1305, %v1791
  %v1938 = vadd.f32 %v1306, %v1794
  %v1939 = vadd.f32 %v1307, %v1796
  %v1940 = vadd.f32 %v1308, %v1799
  %v1941 = vadd.f32 %v1309, %v1801
  %v1942 = vadd.f32 %v1310, %v1804
  %v1943 = vadd.f32 %v1311, %v1806
  %v1944 = vadd.f32 %v1312, %v1809
  %v1945 = vadd.f32 %v1313, %v1811
  %v1946 = vadd.f32 %v1314, %v1814
  %v1947 = vadd.f32 %v1315, %v1816
  %v1948 = vadd.f32 %v1316, %v1819
  %v1949 = vadd.f32 %v1317, %v1821
  %v1950 = vadd.f32 %v1318, %v1824
  %v1951 = vadd.f32 %v1319, %v1826
  %v1952 = vadd.f32 %v1320, %v1829
  %v1953 = vadd.f32 %v1321, %v1831
  %v1954 = vadd.f32 %v1322, %v1834
  %v1955 = vadd.f32 %v1323, %v1836
  %v1956 = vadd.f32 %v1324, %v1839
  %v1957 = vadd.f32 %v1325, %v1841
  %v1958 = vadd.f32 %v1326, %v1844
  %v1959 = vadd.f32 %v1327, %v1846
  %v1960 = vadd.f32 %v1328, %v1849
  %v1961 = vadd.f32 %v1329, %v1851
  %v1962 = vadd.f32 %v1330, %v1854
  %v1963 = vadd.f32 %v1331, %v1856
  %v1964 = vadd.f32 %v1332, %v1859
  %v1965 = vadd.f32 %v1333, %v1861
  %v1966 = vadd.f32 %v1334, %v1864
  %v1967 = vadd.f32 %v1335, %v1866
  %v1968 = vadd.f32 %v1336, %v1869
  %v1969 = vadd.f32 %v1337, %v1871
  %v1970 = vadd.f32 %v1338, %v1874
  %v1971 = vadd.f32 %v1339, %v1876
  %v1972 = vadd.f32 %v1340, %v1879
  %v1973 = vadd.f32 %v1341, %v1881
  %v1974 = vadd.f32 %v1342, %v1884
  %v1975 = vadd.f32 %v1343, %v1886
  %v1976 = vadd.f32 %v1344, %v1889
  %v1977 = vadd.f32 %v1345, %v1891
  %v1978 = vadd.f32 %v1346, %v1894
  %v1979 = vadd.f32 %v1347, %v1896
  %v1980 = vadd.f32 %v1348, %v1899
  %v1981 = vadd.f32 %v1349, %v1901
  %v1982 = vadd.f32 %v1350, %v1904
  %v1983 = vadd.f32 %v1351, %v1906
  %v1984 = vadd.f32 %v1352, %v1909
  %v1985 = vadd.f32 %v1353, %v1911
  %v1986 = vadd.f32 %v1354, %v1914
  %v1987 = vadd.f32 %v1355, %v1916
  %v1988 = vadd.f32 %v1356, %v1919
  %v1989 = vadd.f32 %v1357, %v1921
  %v1990 = vadd.f32 %v1358, %v1924
  %v1991 = vadd.f32 %v1359, %v1926
  %v1992 = vld [vmem:[%s3] sm:$0xff]
  %v1993 = vld [vmem:[%s3 + $0x8] sm:$0xff]
  %v1994 = vld [vmem:[%s3 + $0x10] sm:$0xff]
  %v1995 = vld [vmem:[%s3 + $0x18] sm:$0xff]
  %v1996 = vld [vmem:[%s3 + $0x20] sm:$0xff]
  %v1997 = vld [vmem:[%s3 + $0x28] sm:$0xff]
  %v1998 = vld [vmem:[%s3 + $0x30] sm:$0xff]
  %v1999 = vld [vmem:[%s3 + $0x38] sm:$0xff]
  %v2000 = vld [vmem:[%s3 + $0x40] sm:$0xff]
  %v2001 = vld [vmem:[%s3 + $0x48] sm:$0xff]
  %v2002 = vld [vmem:[%s3 + $0x50] sm:$0xff]
  %v2003 = vld [vmem:[%s3 + $0x58] sm:$0xff]
  %v2004 = vld [vmem:[%s3 + $0x60] sm:$0xff]
  %v2005 = vld [vmem:[%s3 + $0x68] sm:$0xff]
  %v2006 = vld [vmem:[%s3 + $0x70] sm:$0xff]
  %v2007 = vld [vmem:[%s3 + $0x78] sm:$0xff]
  %v2008 = vld [vmem:[%s3 + $0x80] sm:$0xff]
  %v2009 = vld [vmem:[%s3 + $0x88] sm:$0xff]
  %v2010 = vld [vmem:[%s3 + $0x90] sm:$0xff]
  %v2011 = vld [vmem:[%s3 + $0x98] sm:$0xff]
  %v2012 = vld [vmem:[%s3 + $0xa0] sm:$0xff]
  %v2013 = vld [vmem:[%s3 + $0xa8] sm:$0xff]
  %v2014 = vld [vmem:[%s3 + $0xb0] sm:$0xff]
  %v2015 = vld [vmem:[%s3 + $0xb8] sm:$0xff]
  %v2016 = vld [vmem:[%s3 + $0xc0] sm:$0xff]
  %v2017 = vld [vmem:[%s3 + $0xc8] sm:$0xff]
  %v2018 = vld [vmem:[%s3 + $0xd0] sm:$0xff]
  %v2019 = vld [vmem:[%s3 + $0xd8] sm:$0xff]
  %v2020 = vld [vmem:[%s3 + $0xe0] sm:$0xff]
  %v2021 = vld [vmem:[%s3 + $0xe8] sm:$0xff]
  %v2022 = vld [vmem:[%s3 + $0xf0] sm:$0xff]
  %v2023 = vld [vmem:[%s3 + $0xf8] sm:$0xff]
  %v2024 = vld [vmem:[%s3 + $0x100] sm:$0xff]
  %v2025 = vld [vmem:[%s3 + $0x108] sm:$0xff]
  %v2026 = vld [vmem:[%s3 + $0x110] sm:$0xff]
  %v2027 = vld [vmem:[%s3 + $0x118] sm:$0xff]
  %v2028 = vld [vmem:[%s3 + $0x120] sm:$0xff]
  %v2029 = vld [vmem:[%s3 + $0x128] sm:$0xff]
  %v2030 = vld [vmem:[%s3 + $0x130] sm:$0xff]
  %v2031 = vld [vmem:[%s3 + $0x138] sm:$0xff]
  %v2032 = vld [vmem:[%s3 + $0x140] sm:$0xff]
  %v2033 = vld [vmem:[%s3 + $0x148] sm:$0xff]
  %v2034 = vld [vmem:[%s3 + $0x150] sm:$0xff]
  %v2035 = vld [vmem:[%s3 + $0x158] sm:$0xff]
  %v2036 = vld [vmem:[%s3 + $0x160] sm:$0xff]
  %v2037 = vld [vmem:[%s3 + $0x168] sm:$0xff]
  %v2038 = vld [vmem:[%s3 + $0x170] sm:$0xff]
  %v2039 = vld [vmem:[%s3 + $0x178] sm:$0xff]
  %v2040 = vld [vmem:[%s3 + $0x180] sm:$0xff]
  %v2041 = vld [vmem:[%s3 + $0x188] sm:$0xff]
  %v2042 = vld [vmem:[%s3 + $0x190] sm:$0xff]
  %v2043 = vld [vmem:[%s3 + $0x198] sm:$0xff]
  %v2044 = vld [vmem:[%s3 + $0x1a0] sm:$0xff]
  %v2045 = vld [vmem:[%s3 + $0x1a8] sm:$0xff]
  %v2046 = vld [vmem:[%s3 + $0x1b0] sm:$0xff]
  %v2047 = vld [vmem:[%s3 + $0x1b8] sm:$0xff]
  %v2048 = vld [vmem:[%s3 + $0x1c0] sm:$0xff]
  %v2049 = vld [vmem:[%s3 + $0x1c8] sm:$0xff]
  %v2050 = vld [vmem:[%s3 + $0x1d0] sm:$0xff]
  %v2051 = vld [vmem:[%s3 + $0x1d8] sm:$0xff]
  %v2052 = vld [vmem:[%s3 + $0x1e0] sm:$0xff]
  %v2053 = vld [vmem:[%s3 + $0x1e8] sm:$0xff]
  %v2054 = vld [vmem:[%s3 + $0x1f0] sm:$0xff]
  %v2055 = vld [vmem:[%s3 + $0x1f8] sm:$0xff]
  %s2056 = scalar_lea.vmem %s6, 3
  %v2057 = vld [vmem:[%s2056] sm:$0x1]
  %v2059 = vperm.slane %v2057, 0
  %v2061 = vmul.f32 %v1992, %v2059
  %v2062 = vmul.f32 %v1993, %v2059
  %v2063 = vmul.f32 %v1994, %v2059
  %v2064 = vmul.f32 %v1995, %v2059
  %v2065 = vmul.f32 %v1996, %v2059
  %v2066 = vmul.f32 %v1997, %v2059
  %v2067 = vmul.f32 %v1998, %v2059
  %v2068 = vmul.f32 %v1999, %v2059
  %v2069 = vmul.f32 %v2000, %v2059
  %v2070 = vmul.f32 %v2001, %v2059
  %v2071 = vmul.f32 %v2002, %v2059
  %v2072 = vmul.f32 %v2003, %v2059
  %v2073 = vmul.f32 %v2004, %v2059
  %v2074 = vmul.f32 %v2005, %v2059
  %v2075 = vmul.f32 %v2006, %v2059
  %v2076 = vmul.f32 %v2007, %v2059
  %v2077 = vmul.f32 %v2008, %v2059
  %v2078 = vmul.f32 %v2009, %v2059
  %v2079 = vmul.f32 %v2010, %v2059
  %v2080 = vmul.f32 %v2011, %v2059
  %v2081 = vmul.f32 %v2012, %v2059
  %v2082 = vmul.f32 %v2013, %v2059
  %v2083 = vmul.f32 %v2014, %v2059
  %v2084 = vmul.f32 %v2015, %v2059
  %v2085 = vmul.f32 %v2016, %v2059
  %v2086 = vmul.f32 %v2017, %v2059
  %v2087 = vmul.f32 %v2018, %v2059
  %v2088 = vmul.f32 %v2019, %v2059
  %v2089 = vmul.f32 %v2020, %v2059
  %v2090 = vmul.f32 %v2021, %v2059
  %v2091 = vmul.f32 %v2022, %v2059
  %v2092 = vmul.f32 %v2023, %v2059
  %v2093 = vmul.f32 %v2024, %v2059
  %v2094 = vmul.f32 %v2025, %v2059
  %v2095 = vmul.f32 %v2026, %v2059
  %v2096 = vmul.f32 %v2027, %v2059
  %v2097 = vmul.f32 %v2028, %v2059
  %v2098 = vmul.f32 %v2029, %v2059
  %v2099 = vmul.f32 %v2030, %v2059
  %v2100 = vmul.f32 %v2031, %v2059
  %v2101 = vmul.f32 %v2032, %v2059
  %v2102 = vmul.f32 %v2033, %v2059
  %v2103 = vmul.f32 %v2034, %v2059
  %v2104 = vmul.f32 %v2035, %v2059
  %v2105 = vmul.f32 %v2036, %v2059
  %v2106 = vmul.f32 %v2037, %v2059
  %v2107 = vmul.f32 %v2038, %v2059
  %v2108 = vmul.f32 %v2039, %v2059
  %v2109 = vmul.f32 %v2040, %v2059
  %v2110 = vmul.f32 %v2041, %v2059
  %v2111 = vmul.f32 %v2042, %v2059
  %v2112 = vmul.f32 %v2043, %v2059
  %v2113 = vmul.f32 %v2044, %v2059
  %v2114 = vmul.f32 %v2045, %v2059
  %v2115 = vmul.f32 %v2046, %v2059
  %v2116 = vmul.f32 %v2047, %v2059
  %v2117 = vmul.f32 %v2048, %v2059
  %v2118 = vmul.f32 %v2049, %v2059
  %v2119 = vmul.f32 %v2050, %v2059
  %v2120 = vmul.f32 %v2051, %v2059
  %v2121 = vmul.f32 %v2052, %v2059
  %v2122 = vmul.f32 %v2053, %v2059
  %v2123 = vmul.f32 %v2054, %v2059
  %v2124 = vmul.f32 %v2055, %v2059
  %s2125 = scalar_lea.vmem %s7, 3
  %v2126 = vld [vmem:[%s2125] sm:$0x1]
  %v2128 = vperm.slane %v2126, 0
  %v2130 = vadd.f32 %v2061, %v2128
  %v2131 = vadd.f32 %v2062, %v2128
  %v2132 = vadd.f32 %v2063, %v2128
  %v2133 = vadd.f32 %v2064, %v2128
  %v2134 = vadd.f32 %v2065, %v2128
  %v2135 = vadd.f32 %v2066, %v2128
  %v2136 = vadd.f32 %v2067, %v2128
  %v2137 = vadd.f32 %v2068, %v2128
  %v2138 = vadd.f32 %v2069, %v2128
  %v2139 = vadd.f32 %v2070, %v2128
  %v2140 = vadd.f32 %v2071, %v2128
  %v2141 = vadd.f32 %v2072, %v2128
  %v2142 = vadd.f32 %v2073, %v2128
  %v2143 = vadd.f32 %v2074, %v2128
  %v2144 = vadd.f32 %v2075, %v2128
  %v2145 = vadd.f32 %v2076, %v2128
  %v2146 = vadd.f32 %v2077, %v2128
  %v2147 = vadd.f32 %v2078, %v2128
  %v2148 = vadd.f32 %v2079, %v2128
  %v2149 = vadd.f32 %v2080, %v2128
  %v2150 = vadd.f32 %v2081, %v2128
  %v2151 = vadd.f32 %v2082, %v2128
  %v2152 = vadd.f32 %v2083, %v2128
  %v2153 = vadd.f32 %v2084, %v2128
  %v2154 = vadd.f32 %v2085, %v2128
  %v2155 = vadd.f32 %v2086, %v2128
  %v2156 = vadd.f32 %v2087, %v2128
  %v2157 = vadd.f32 %v2088, %v2128
  %v2158 = vadd.f32 %v2089, %v2128
  %v2159 = vadd.f32 %v2090, %v2128
  %v2160 = vadd.f32 %v2091, %v2128
  %v2161 = vadd.f32 %v2092, %v2128
  %v2162 = vadd.f32 %v2093, %v2128
  %v2163 = vadd.f32 %v2094, %v2128
  %v2164 = vadd.f32 %v2095, %v2128
  %v2165 = vadd.f32 %v2096, %v2128
  %v2166 = vadd.f32 %v2097, %v2128
  %v2167 = vadd.f32 %v2098, %v2128
  %v2168 = vadd.f32 %v2099, %v2128
  %v2169 = vadd.f32 %v2100, %v2128
  %v2170 = vadd.f32 %v2101, %v2128
  %v2171 = vadd.f32 %v2102, %v2128
  %v2172 = vadd.f32 %v2103, %v2128
  %v2173 = vadd.f32 %v2104, %v2128
  %v2174 = vadd.f32 %v2105, %v2128
  %v2175 = vadd.f32 %v2106, %v2128
  %v2176 = vadd.f32 %v2107, %v2128
  %v2177 = vadd.f32 %v2108, %v2128
  %v2178 = vadd.f32 %v2109, %v2128
  %v2179 = vadd.f32 %v2110, %v2128
  %v2180 = vadd.f32 %v2111, %v2128
  %v2181 = vadd.f32 %v2112, %v2128
  %v2182 = vadd.f32 %v2113, %v2128
  %v2183 = vadd.f32 %v2114, %v2128
  %v2184 = vadd.f32 %v2115, %v2128
  %v2185 = vadd.f32 %v2116, %v2128
  %v2186 = vadd.f32 %v2117, %v2128
  %v2187 = vadd.f32 %v2118, %v2128
  %v2188 = vadd.f32 %v2119, %v2128
  %v2189 = vadd.f32 %v2120, %v2128
  %v2190 = vadd.f32 %v2121, %v2128
  %v2191 = vadd.f32 %v2122, %v2128
  %v2192 = vadd.f32 %v2123, %v2128
  %v2193 = vadd.f32 %v2124, %v2128
  %v2194 = vmax.f32 %v2130, 0.0
  %v2195 = vmax.f32 %v2131, 0.0
  %v2196 = vmax.f32 %v2132, 0.0
  %v2197 = vmax.f32 %v2133, 0.0
  %v2198 = vmax.f32 %v2134, 0.0
  %v2199 = vmax.f32 %v2135, 0.0
  %v2200 = vmax.f32 %v2136, 0.0
  %v2201 = vmax.f32 %v2137, 0.0
  %v2202 = vmax.f32 %v2138, 0.0
  %v2203 = vmax.f32 %v2139, 0.0
  %v2204 = vmax.f32 %v2140, 0.0
  %v2205 = vmax.f32 %v2141, 0.0
  %v2206 = vmax.f32 %v2142, 0.0
  %v2207 = vmax.f32 %v2143, 0.0
  %v2208 = vmax.f32 %v2144, 0.0
  %v2209 = vmax.f32 %v2145, 0.0
  %v2210 = vmax.f32 %v2146, 0.0
  %v2211 = vmax.f32 %v2147, 0.0
  %v2212 = vmax.f32 %v2148, 0.0
  %v2213 = vmax.f32 %v2149, 0.0
  %v2214 = vmax.f32 %v2150, 0.0
  %v2215 = vmax.f32 %v2151, 0.0
  %v2216 = vmax.f32 %v2152, 0.0
  %v2217 = vmax.f32 %v2153, 0.0
  %v2218 = vmax.f32 %v2154, 0.0
  %v2219 = vmax.f32 %v2155, 0.0
  %v2220 = vmax.f32 %v2156, 0.0
  %v2221 = vmax.f32 %v2157, 0.0
  %v2222 = vmax.f32 %v2158, 0.0
  %v2223 = vmax.f32 %v2159, 0.0
  %v2224 = vmax.f32 %v2160, 0.0
  %v2225 = vmax.f32 %v2161, 0.0
  %v2226 = vmax.f32 %v2162, 0.0
  %v2227 = vmax.f32 %v2163, 0.0
  %v2228 = vmax.f32 %v2164, 0.0
  %v2229 = vmax.f32 %v2165, 0.0
  %v2230 = vmax.f32 %v2166, 0.0
  %v2231 = vmax.f32 %v2167, 0.0
  %v2232 = vmax.f32 %v2168, 0.0
  %v2233 = vmax.f32 %v2169, 0.0
  %v2234 = vmax.f32 %v2170, 0.0
  %v2235 = vmax.f32 %v2171, 0.0
  %v2236 = vmax.f32 %v2172, 0.0
  %v2237 = vmax.f32 %v2173, 0.0
  %v2238 = vmax.f32 %v2174, 0.0
  %v2239 = vmax.f32 %v2175, 0.0
  %v2240 = vmax.f32 %v2176, 0.0
  %v2241 = vmax.f32 %v2177, 0.0
  %v2242 = vmax.f32 %v2178, 0.0
  %v2243 = vmax.f32 %v2179, 0.0
  %v2244 = vmax.f32 %v2180, 0.0
  %v2245 = vmax.f32 %v2181, 0.0
  %v2246 = vmax.f32 %v2182, 0.0
  %v2247 = vmax.f32 %v2183, 0.0
  %v2248 = vmax.f32 %v2184, 0.0
  %v2249 = vmax.f32 %v2185, 0.0
  %v2250 = vmax.f32 %v2186, 0.0
  %v2251 = vmax.f32 %v2187, 0.0
  %v2252 = vmax.f32 %v2188, 0.0
  %v2253 = vmax.f32 %v2189, 0.0
  %v2254 = vmax.f32 %v2190, 0.0
  %v2255 = vmax.f32 %v2191, 0.0
  %v2256 = vmax.f32 %v2192, 0.0
  %v2257 = vmax.f32 %v2193, 0.0
  %v2258 = vpack.c.bf16 %v2195, %v2194
  %v2259 = vpack.c.bf16 %v2197, %v2196
  %v2260 = vpack.c.bf16 %v2199, %v2198
  %v2261 = vpack.c.bf16 %v2201, %v2200
  %v2262 = vpack.c.bf16 %v2203, %v2202
  %v2263 = vpack.c.bf16 %v2205, %v2204
  %v2264 = vpack.c.bf16 %v2207, %v2206
  %v2265 = vpack.c.bf16 %v2209, %v2208
  %v2266 = vpack.c.bf16 %v2211, %v2210
  %v2267 = vpack.c.bf16 %v2213, %v2212
  %v2268 = vpack.c.bf16 %v2215, %v2214
  %v2269 = vpack.c.bf16 %v2217, %v2216
  %v2270 = vpack.c.bf16 %v2219, %v2218
  %v2271 = vpack.c.bf16 %v2221, %v2220
  %v2272 = vpack.c.bf16 %v2223, %v2222
  %v2273 = vpack.c.bf16 %v2225, %v2224
  %v2274 = vpack.c.bf16 %v2227, %v2226
  %v2275 = vpack.c.bf16 %v2229, %v2228
  %v2276 = vpack.c.bf16 %v2231, %v2230
  %v2277 = vpack.c.bf16 %v2233, %v2232
  %v2278 = vpack.c.bf16 %v2235, %v2234
  %v2279 = vpack.c.bf16 %v2237, %v2236
  %v2280 = vpack.c.bf16 %v2239, %v2238
  %v2281 = vpack.c.bf16 %v2241, %v2240
  %v2282 = vpack.c.bf16 %v2243, %v2242
  %v2283 = vpack.c.bf16 %v2245, %v2244
  %v2284 = vpack.c.bf16 %v2247, %v2246
  %v2285 = vpack.c.bf16 %v2249, %v2248
  %v2286 = vpack.c.bf16 %v2251, %v2250
  %v2287 = vpack.c.bf16 %v2253, %v2252
  %v2288 = vpack.c.bf16 %v2255, %v2254
  %v2289 = vpack.c.bf16 %v2257, %v2256
  %s2290 = scalar_lea.vmem %s8, 12
  %v2291 = vld [vmem:[%s2290] sm:$0xf]
  %v2293 = vsel %vm394, %v2258, 0
  %v2296 = vsel %vm394, %v2259, 0
  %v2299 = vsel %vm394, %v2260, 0
  %v2302 = vsel %vm394, %v2261, 0
  %v2305 = vsel %vm394, %v2262, 0
  %v2308 = vsel %vm394, %v2263, 0
  %v2311 = vsel %vm394, %v2264, 0
  %v2314 = vsel %vm394, %v2265, 0
  %v2317 = vsel %vm394, %v2266, 0
  %v2320 = vsel %vm394, %v2267, 0
  %v2323 = vsel %vm394, %v2268, 0
  %v2326 = vsel %vm394, %v2269, 0
  %v2329 = vsel %vm394, %v2270, 0
  %v2332 = vsel %vm394, %v2271, 0
  %v2335 = vsel %vm394, %v2272, 0
  %v2338 = vsel %vm394, %v2273, 0
  %v2341 = vsel %vm394, %v2274, 0
  %v2344 = vsel %vm394, %v2275, 0
  %v2347 = vsel %vm394, %v2276, 0
  %v2350 = vsel %vm394, %v2277, 0
  %v2353 = vsel %vm394, %v2278, 0
  %v2356 = vsel %vm394, %v2279, 0
  %v2359 = vsel %vm394, %v2280, 0
  %v2362 = vsel %vm394, %v2281, 0
  %v2365 = vsel %vm394, %v2282, 0
  %v2368 = vsel %vm394, %v2283, 0
  %v2371 = vsel %vm394, %v2284, 0
  %v2374 = vsel %vm394, %v2285, 0
  %v2377 = vsel %vm394, %v2286, 0
  %v2380 = vsel %vm394, %v2287, 0
  %v2383 = vsel %vm394, %v2288, 0
  %v2386 = vsel %vm394, %v2289, 0
  %v2389 = vsel %vm491, %v2291, 0
  %2391 = vmatpush.bf16.msra.mxu0 0
  %2392 = vmatpush.bf16.msra.mxu0 0
  %2393 = vmatpush.bf16.msra.mxu0 0
  %2394 = vmatpush.bf16.msra.mxu0 0
  %2395 = vmatpush.bf16.msra.mxu0 0
  %2396 = vmatpush.bf16.msra.mxu0 0
  %2397 = vmatpush.bf16.msra.mxu0 0
  %2398 = vmatpush.bf16.msra.mxu0 %v2389
  %2399 = vmatmul.bf16.gmra.mxu0 %v2293
  %v2400 = vpop.f32.mrf.mxu0
  %v2401 = vadd.f32 0.0, %v2400
  %v2402 = vpop.f32.mrf.mxu0
  %v2403 = vadd.f32 0.0, %v2402
  %2404 = vmatmul.bf16.gmra.mxu0 %v2296
  %v2405 = vpop.f32.mrf.mxu0
  %v2406 = vadd.f32 0.0, %v2405
  %v2407 = vpop.f32.mrf.mxu0
  %v2408 = vadd.f32 0.0, %v2407
  %2409 = vmatmul.bf16.gmra.mxu0 %v2299
  %v2410 = vpop.f32.mrf.mxu0
  %v2411 = vadd.f32 0.0, %v2410
  %v2412 = vpop.f32.mrf.mxu0
  %v2413 = vadd.f32 0.0, %v2412
  %2414 = vmatmul.bf16.gmra.mxu0 %v2302
  %v2415 = vpop.f32.mrf.mxu0
  %v2416 = vadd.f32 0.0, %v2415
  %v2417 = vpop.f32.mrf.mxu0
  %v2418 = vadd.f32 0.0, %v2417
  %2419 = vmatmul.bf16.gmra.mxu0 %v2305
  %v2420 = vpop.f32.mrf.mxu0
  %v2421 = vadd.f32 0.0, %v2420
  %v2422 = vpop.f32.mrf.mxu0
  %v2423 = vadd.f32 0.0, %v2422
  %2424 = vmatmul.bf16.gmra.mxu0 %v2308
  %v2425 = vpop.f32.mrf.mxu0
  %v2426 = vadd.f32 0.0, %v2425
  %v2427 = vpop.f32.mrf.mxu0
  %v2428 = vadd.f32 0.0, %v2427
  %2429 = vmatmul.bf16.gmra.mxu0 %v2311
  %v2430 = vpop.f32.mrf.mxu0
  %v2431 = vadd.f32 0.0, %v2430
  %v2432 = vpop.f32.mrf.mxu0
  %v2433 = vadd.f32 0.0, %v2432
  %2434 = vmatmul.bf16.gmra.mxu0 %v2314
  %v2435 = vpop.f32.mrf.mxu0
  %v2436 = vadd.f32 0.0, %v2435
  %v2437 = vpop.f32.mrf.mxu0
  %v2438 = vadd.f32 0.0, %v2437
  %2439 = vmatmul.bf16.gmra.mxu0 %v2317
  %v2440 = vpop.f32.mrf.mxu0
  %v2441 = vadd.f32 0.0, %v2440
  %v2442 = vpop.f32.mrf.mxu0
  %v2443 = vadd.f32 0.0, %v2442
  %2444 = vmatmul.bf16.gmra.mxu0 %v2320
  %v2445 = vpop.f32.mrf.mxu0
  %v2446 = vadd.f32 0.0, %v2445
  %v2447 = vpop.f32.mrf.mxu0
  %v2448 = vadd.f32 0.0, %v2447
  %2449 = vmatmul.bf16.gmra.mxu0 %v2323
  %v2450 = vpop.f32.mrf.mxu0
  %v2451 = vadd.f32 0.0, %v2450
  %v2452 = vpop.f32.mrf.mxu0
  %v2453 = vadd.f32 0.0, %v2452
  %2454 = vmatmul.bf16.gmra.mxu0 %v2326
  %v2455 = vpop.f32.mrf.mxu0
  %v2456 = vadd.f32 0.0, %v2455
  %v2457 = vpop.f32.mrf.mxu0
  %v2458 = vadd.f32 0.0, %v2457
  %2459 = vmatmul.bf16.gmra.mxu0 %v2329
  %v2460 = vpop.f32.mrf.mxu0
  %v2461 = vadd.f32 0.0, %v2460
  %v2462 = vpop.f32.mrf.mxu0
  %v2463 = vadd.f32 0.0, %v2462
  %2464 = vmatmul.bf16.gmra.mxu0 %v2332
  %v2465 = vpop.f32.mrf.mxu0
  %v2466 = vadd.f32 0.0, %v2465
  %v2467 = vpop.f32.mrf.mxu0
  %v2468 = vadd.f32 0.0, %v2467
  %2469 = vmatmul.bf16.gmra.mxu0 %v2335
  %v2470 = vpop.f32.mrf.mxu0
  %v2471 = vadd.f32 0.0, %v2470
  %v2472 = vpop.f32.mrf.mxu0
  %v2473 = vadd.f32 0.0, %v2472
  %2474 = vmatmul.bf16.gmra.mxu0 %v2338
  %v2475 = vpop.f32.mrf.mxu0
  %v2476 = vadd.f32 0.0, %v2475
  %v2477 = vpop.f32.mrf.mxu0
  %v2478 = vadd.f32 0.0, %v2477
  %2479 = vmatmul.bf16.gmra.mxu0 %v2341
  %v2480 = vpop.f32.mrf.mxu0
  %v2481 = vadd.f32 0.0, %v2480
  %v2482 = vpop.f32.mrf.mxu0
  %v2483 = vadd.f32 0.0, %v2482
  %2484 = vmatmul.bf16.gmra.mxu0 %v2344
  %v2485 = vpop.f32.mrf.mxu0
  %v2486 = vadd.f32 0.0, %v2485
  %v2487 = vpop.f32.mrf.mxu0
  %v2488 = vadd.f32 0.0, %v2487
  %2489 = vmatmul.bf16.gmra.mxu0 %v2347
  %v2490 = vpop.f32.mrf.mxu0
  %v2491 = vadd.f32 0.0, %v2490
  %v2492 = vpop.f32.mrf.mxu0
  %v2493 = vadd.f32 0.0, %v2492
  %2494 = vmatmul.bf16.gmra.mxu0 %v2350
  %v2495 = vpop.f32.mrf.mxu0
  %v2496 = vadd.f32 0.0, %v2495
  %v2497 = vpop.f32.mrf.mxu0
  %v2498 = vadd.f32 0.0, %v2497
  %2499 = vmatmul.bf16.gmra.mxu0 %v2353
  %v2500 = vpop.f32.mrf.mxu0
  %v2501 = vadd.f32 0.0, %v2500
  %v2502 = vpop.f32.mrf.mxu0
  %v2503 = vadd.f32 0.0, %v2502
  %2504 = vmatmul.bf16.gmra.mxu0 %v2356
  %v2505 = vpop.f32.mrf.mxu0
  %v2506 = vadd.f32 0.0, %v2505
  %v2507 = vpop.f32.mrf.mxu0
  %v2508 = vadd.f32 0.0, %v2507
  %2509 = vmatmul.bf16.gmra.mxu0 %v2359
  %v2510 = vpop.f32.mrf.mxu0
  %v2511 = vadd.f32 0.0, %v2510
  %v2512 = vpop.f32.mrf.mxu0
  %v2513 = vadd.f32 0.0, %v2512
  %2514 = vmatmul.bf16.gmra.mxu0 %v2362
  %v2515 = vpop.f32.mrf.mxu0
  %v2516 = vadd.f32 0.0, %v2515
  %v2517 = vpop.f32.mrf.mxu0
  %v2518 = vadd.f32 0.0, %v2517
  %2519 = vmatmul.bf16.gmra.mxu0 %v2365
  %v2520 = vpop.f32.mrf.mxu0
  %v2521 = vadd.f32 0.0, %v2520
  %v2522 = vpop.f32.mrf.mxu0
  %v2523 = vadd.f32 0.0, %v2522
  %2524 = vmatmul.bf16.gmra.mxu0 %v2368
  %v2525 = vpop.f32.mrf.mxu0
  %v2526 = vadd.f32 0.0, %v2525
  %v2527 = vpop.f32.mrf.mxu0
  %v2528 = vadd.f32 0.0, %v2527
  %2529 = vmatmul.bf16.gmra.mxu0 %v2371
  %v2530 = vpop.f32.mrf.mxu0
  %v2531 = vadd.f32 0.0, %v2530
  %v2532 = vpop.f32.mrf.mxu0
  %v2533 = vadd.f32 0.0, %v2532
  %2534 = vmatmul.bf16.gmra.mxu0 %v2374
  %v2535 = vpop.f32.mrf.mxu0
  %v2536 = vadd.f32 0.0, %v2535
  %v2537 = vpop.f32.mrf.mxu0
  %v2538 = vadd.f32 0.0, %v2537
  %2539 = vmatmul.bf16.gmra.mxu0 %v2377
  %v2540 = vpop.f32.mrf.mxu0
  %v2541 = vadd.f32 0.0, %v2540
  %v2542 = vpop.f32.mrf.mxu0
  %v2543 = vadd.f32 0.0, %v2542
  %2544 = vmatmul.bf16.gmra.mxu0 %v2380
  %v2545 = vpop.f32.mrf.mxu0
  %v2546 = vadd.f32 0.0, %v2545
  %v2547 = vpop.f32.mrf.mxu0
  %v2548 = vadd.f32 0.0, %v2547
  %2549 = vmatmul.bf16.gmra.mxu0 %v2383
  %v2550 = vpop.f32.mrf.mxu0
  %v2551 = vadd.f32 0.0, %v2550
  %v2552 = vpop.f32.mrf.mxu0
  %v2553 = vadd.f32 0.0, %v2552
  %2554 = vmatmul.bf16.gmra.mxu0 %v2386
  %v2555 = vpop.f32.mrf.mxu0
  %v2556 = vadd.f32 0.0, %v2555
  %v2557 = vpop.f32.mrf.mxu0
  %v2558 = vadd.f32 0.0, %v2557
  %2559 = vdwg.mxu0
  %v2560 = vadd.f32 %v1928, %v2401
  %v2561 = vadd.f32 %v1929, %v2403
  %v2562 = vadd.f32 %v1930, %v2406
  %v2563 = vadd.f32 %v1931, %v2408
  %v2564 = vadd.f32 %v1932, %v2411
  %v2565 = vadd.f32 %v1933, %v2413
  %v2566 = vadd.f32 %v1934, %v2416
  %v2567 = vadd.f32 %v1935, %v2418
  %v2568 = vadd.f32 %v1936, %v2421
  %v2569 = vadd.f32 %v1937, %v2423
  %v2570 = vadd.f32 %v1938, %v2426
  %v2571 = vadd.f32 %v1939, %v2428
  %v2572 = vadd.f32 %v1940, %v2431
  %v2573 = vadd.f32 %v1941, %v2433
  %v2574 = vadd.f32 %v1942, %v2436
  %v2575 = vadd.f32 %v1943, %v2438
  %v2576 = vadd.f32 %v1944, %v2441
  %v2577 = vadd.f32 %v1945, %v2443
  %v2578 = vadd.f32 %v1946, %v2446
  %v2579 = vadd.f32 %v1947, %v2448
  %v2580 = vadd.f32 %v1948, %v2451
  %v2581 = vadd.f32 %v1949, %v2453
  %v2582 = vadd.f32 %v1950, %v2456
  %v2583 = vadd.f32 %v1951, %v2458
  %v2584 = vadd.f32 %v1952, %v2461
  %v2585 = vadd.f32 %v1953, %v2463
  %v2586 = vadd.f32 %v1954, %v2466
  %v2587 = vadd.f32 %v1955, %v2468
  %v2588 = vadd.f32 %v1956, %v2471
  %v2589 = vadd.f32 %v1957, %v2473
  %v2590 = vadd.f32 %v1958, %v2476
  %v2591 = vadd.f32 %v1959, %v2478
  %v2592 = vadd.f32 %v1960, %v2481
  %v2593 = vadd.f32 %v1961, %v2483
  %v2594 = vadd.f32 %v1962, %v2486
  %v2595 = vadd.f32 %v1963, %v2488
  %v2596 = vadd.f32 %v1964, %v2491
  %v2597 = vadd.f32 %v1965, %v2493
  %v2598 = vadd.f32 %v1966, %v2496
  %v2599 = vadd.f32 %v1967, %v2498
  %v2600 = vadd.f32 %v1968, %v2501
  %v2601 = vadd.f32 %v1969, %v2503
  %v2602 = vadd.f32 %v1970, %v2506
  %v2603 = vadd.f32 %v1971, %v2508
  %v2604 = vadd.f32 %v1972, %v2511
  %v2605 = vadd.f32 %v1973, %v2513
  %v2606 = vadd.f32 %v1974, %v2516
  %v2607 = vadd.f32 %v1975, %v2518
  %v2608 = vadd.f32 %v1976, %v2521
  %v2609 = vadd.f32 %v1977, %v2523
  %v2610 = vadd.f32 %v1978, %v2526
  %v2611 = vadd.f32 %v1979, %v2528
  %v2612 = vadd.f32 %v1980, %v2531
  %v2613 = vadd.f32 %v1981, %v2533
  %v2614 = vadd.f32 %v1982, %v2536
  %v2615 = vadd.f32 %v1983, %v2538
  %v2616 = vadd.f32 %v1984, %v2541
  %v2617 = vadd.f32 %v1985, %v2543
  %v2618 = vadd.f32 %v1986, %v2546
  %v2619 = vadd.f32 %v1987, %v2548
  %v2620 = vadd.f32 %v1988, %v2551
  %v2621 = vadd.f32 %v1989, %v2553
  %v2622 = vadd.f32 %v1990, %v2556
  %v2623 = vadd.f32 %v1991, %v2558
  %v2624 = vld [vmem:[%s4] sm:$0xff]
  %v2625 = vld [vmem:[%s4 + $0x8] sm:$0xff]
  %v2626 = vld [vmem:[%s4 + $0x10] sm:$0xff]
  %v2627 = vld [vmem:[%s4 + $0x18] sm:$0xff]
  %v2628 = vld [vmem:[%s4 + $0x20] sm:$0xff]
  %v2629 = vld [vmem:[%s4 + $0x28] sm:$0xff]
  %v2630 = vld [vmem:[%s4 + $0x30] sm:$0xff]
  %v2631 = vld [vmem:[%s4 + $0x38] sm:$0xff]
  %v2632 = vld [vmem:[%s4 + $0x40] sm:$0xff]
  %v2633 = vld [vmem:[%s4 + $0x48] sm:$0xff]
  %v2634 = vld [vmem:[%s4 + $0x50] sm:$0xff]
  %v2635 = vld [vmem:[%s4 + $0x58] sm:$0xff]
  %v2636 = vld [vmem:[%s4 + $0x60] sm:$0xff]
  %v2637 = vld [vmem:[%s4 + $0x68] sm:$0xff]
  %v2638 = vld [vmem:[%s4 + $0x70] sm:$0xff]
  %v2639 = vld [vmem:[%s4 + $0x78] sm:$0xff]
  %v2640 = vld [vmem:[%s4 + $0x80] sm:$0xff]
  %v2641 = vld [vmem:[%s4 + $0x88] sm:$0xff]
  %v2642 = vld [vmem:[%s4 + $0x90] sm:$0xff]
  %v2643 = vld [vmem:[%s4 + $0x98] sm:$0xff]
  %v2644 = vld [vmem:[%s4 + $0xa0] sm:$0xff]
  %v2645 = vld [vmem:[%s4 + $0xa8] sm:$0xff]
  %v2646 = vld [vmem:[%s4 + $0xb0] sm:$0xff]
  %v2647 = vld [vmem:[%s4 + $0xb8] sm:$0xff]
  %v2648 = vld [vmem:[%s4 + $0xc0] sm:$0xff]
  %v2649 = vld [vmem:[%s4 + $0xc8] sm:$0xff]
  %v2650 = vld [vmem:[%s4 + $0xd0] sm:$0xff]
  %v2651 = vld [vmem:[%s4 + $0xd8] sm:$0xff]
  %v2652 = vld [vmem:[%s4 + $0xe0] sm:$0xff]
  %v2653 = vld [vmem:[%s4 + $0xe8] sm:$0xff]
  %v2654 = vld [vmem:[%s4 + $0xf0] sm:$0xff]
  %v2655 = vld [vmem:[%s4 + $0xf8] sm:$0xff]
  %v2656 = vld [vmem:[%s4 + $0x100] sm:$0xff]
  %v2657 = vld [vmem:[%s4 + $0x108] sm:$0xff]
  %v2658 = vld [vmem:[%s4 + $0x110] sm:$0xff]
  %v2659 = vld [vmem:[%s4 + $0x118] sm:$0xff]
  %v2660 = vld [vmem:[%s4 + $0x120] sm:$0xff]
  %v2661 = vld [vmem:[%s4 + $0x128] sm:$0xff]
  %v2662 = vld [vmem:[%s4 + $0x130] sm:$0xff]
  %v2663 = vld [vmem:[%s4 + $0x138] sm:$0xff]
  %v2664 = vld [vmem:[%s4 + $0x140] sm:$0xff]
  %v2665 = vld [vmem:[%s4 + $0x148] sm:$0xff]
  %v2666 = vld [vmem:[%s4 + $0x150] sm:$0xff]
  %v2667 = vld [vmem:[%s4 + $0x158] sm:$0xff]
  %v2668 = vld [vmem:[%s4 + $0x160] sm:$0xff]
  %v2669 = vld [vmem:[%s4 + $0x168] sm:$0xff]
  %v2670 = vld [vmem:[%s4 + $0x170] sm:$0xff]
  %v2671 = vld [vmem:[%s4 + $0x178] sm:$0xff]
  %v2672 = vld [vmem:[%s4 + $0x180] sm:$0xff]
  %v2673 = vld [vmem:[%s4 + $0x188] sm:$0xff]
  %v2674 = vld [vmem:[%s4 + $0x190] sm:$0xff]
  %v2675 = vld [vmem:[%s4 + $0x198] sm:$0xff]
  %v2676 = vld [vmem:[%s4 + $0x1a0] sm:$0xff]
  %v2677 = vld [vmem:[%s4 + $0x1a8] sm:$0xff]
  %v2678 = vld [vmem:[%s4 + $0x1b0] sm:$0xff]
  %v2679 = vld [vmem:[%s4 + $0x1b8] sm:$0xff]
  %v2680 = vld [vmem:[%s4 + $0x1c0] sm:$0xff]
  %v2681 = vld [vmem:[%s4 + $0x1c8] sm:$0xff]
  %v2682 = vld [vmem:[%s4 + $0x1d0] sm:$0xff]
  %v2683 = vld [vmem:[%s4 + $0x1d8] sm:$0xff]
  %v2684 = vld [vmem:[%s4 + $0x1e0] sm:$0xff]
  %v2685 = vld [vmem:[%s4 + $0x1e8] sm:$0xff]
  %v2686 = vld [vmem:[%s4 + $0x1f0] sm:$0xff]
  %v2687 = vld [vmem:[%s4 + $0x1f8] sm:$0xff]
  %s2688 = scalar_lea.vmem %s6, 4
  %v2689 = vld [vmem:[%s2688] sm:$0x1]
  %v2691 = vperm.slane %v2689, 0
  %v2693 = vmul.f32 %v2624, %v2691
  %v2694 = vmul.f32 %v2625, %v2691
  %v2695 = vmul.f32 %v2626, %v2691
  %v2696 = vmul.f32 %v2627, %v2691
  %v2697 = vmul.f32 %v2628, %v2691
  %v2698 = vmul.f32 %v2629, %v2691
  %v2699 = vmul.f32 %v2630, %v2691
  %v2700 = vmul.f32 %v2631, %v2691
  %v2701 = vmul.f32 %v2632, %v2691
  %v2702 = vmul.f32 %v2633, %v2691
  %v2703 = vmul.f32 %v2634, %v2691
  %v2704 = vmul.f32 %v2635, %v2691
  %v2705 = vmul.f32 %v2636, %v2691
  %v2706 = vmul.f32 %v2637, %v2691
  %v2707 = vmul.f32 %v2638, %v2691
  %v2708 = vmul.f32 %v2639, %v2691
  %v2709 = vmul.f32 %v2640, %v2691
  %v2710 = vmul.f32 %v2641, %v2691
  %v2711 = vmul.f32 %v2642, %v2691
  %v2712 = vmul.f32 %v2643, %v2691
  %v2713 = vmul.f32 %v2644, %v2691
  %v2714 = vmul.f32 %v2645, %v2691
  %v2715 = vmul.f32 %v2646, %v2691
  %v2716 = vmul.f32 %v2647, %v2691
  %v2717 = vmul.f32 %v2648, %v2691
  %v2718 = vmul.f32 %v2649, %v2691
  %v2719 = vmul.f32 %v2650, %v2691
  %v2720 = vmul.f32 %v2651, %v2691
  %v2721 = vmul.f32 %v2652, %v2691
  %v2722 = vmul.f32 %v2653, %v2691
  %v2723 = vmul.f32 %v2654, %v2691
  %v2724 = vmul.f32 %v2655, %v2691
  %v2725 = vmul.f32 %v2656, %v2691
  %v2726 = vmul.f32 %v2657, %v2691
  %v2727 = vmul.f32 %v2658, %v2691
  %v2728 = vmul.f32 %v2659, %v2691
  %v2729 = vmul.f32 %v2660, %v2691
  %v2730 = vmul.f32 %v2661, %v2691
  %v2731 = vmul.f32 %v2662, %v2691
  %v2732 = vmul.f32 %v2663, %v2691
  %v2733 = vmul.f32 %v2664, %v2691
  %v2734 = vmul.f32 %v2665, %v2691
  %v2735 = vmul.f32 %v2666, %v2691
  %v2736 = vmul.f32 %v2667, %v2691
  %v2737 = vmul.f32 %v2668, %v2691
  %v2738 = vmul.f32 %v2669, %v2691
  %v2739 = vmul.f32 %v2670, %v2691
  %v2740 = vmul.f32 %v2671, %v2691
  %v2741 = vmul.f32 %v2672, %v2691
  %v2742 = vmul.f32 %v2673, %v2691
  %v2743 = vmul.f32 %v2674, %v2691
  %v2744 = vmul.f32 %v2675, %v2691
  %v2745 = vmul.f32 %v2676, %v2691
  %v2746 = vmul.f32 %v2677, %v2691
  %v2747 = vmul.f32 %v2678, %v2691
  %v2748 = vmul.f32 %v2679, %v2691
  %v2749 = vmul.f32 %v2680, %v2691
  %v2750 = vmul.f32 %v2681, %v2691
  %v2751 = vmul.f32 %v2682, %v2691
  %v2752 = vmul.f32 %v2683, %v2691
  %v2753 = vmul.f32 %v2684, %v2691
  %v2754 = vmul.f32 %v2685, %v2691
  %v2755 = vmul.f32 %v2686, %v2691
  %v2756 = vmul.f32 %v2687, %v2691
  %s2757 = scalar_lea.vmem %s7, 4
  %v2758 = vld [vmem:[%s2757] sm:$0x1]
  %v2760 = vperm.slane %v2758, 0
  %v2762 = vadd.f32 %v2693, %v2760
  %v2763 = vadd.f32 %v2694, %v2760
  %v2764 = vadd.f32 %v2695, %v2760
  %v2765 = vadd.f32 %v2696, %v2760
  %v2766 = vadd.f32 %v2697, %v2760
  %v2767 = vadd.f32 %v2698, %v2760
  %v2768 = vadd.f32 %v2699, %v2760
  %v2769 = vadd.f32 %v2700, %v2760
  %v2770 = vadd.f32 %v2701, %v2760
  %v2771 = vadd.f32 %v2702, %v2760
  %v2772 = vadd.f32 %v2703, %v2760
  %v2773 = vadd.f32 %v2704, %v2760
  %v2774 = vadd.f32 %v2705, %v2760
  %v2775 = vadd.f32 %v2706, %v2760
  %v2776 = vadd.f32 %v2707, %v2760
  %v2777 = vadd.f32 %v2708, %v2760
  %v2778 = vadd.f32 %v2709, %v2760
  %v2779 = vadd.f32 %v2710, %v2760
  %v2780 = vadd.f32 %v2711, %v2760
  %v2781 = vadd.f32 %v2712, %v2760
  %v2782 = vadd.f32 %v2713, %v2760
  %v2783 = vadd.f32 %v2714, %v2760
  %v2784 = vadd.f32 %v2715, %v2760
  %v2785 = vadd.f32 %v2716, %v2760
  %v2786 = vadd.f32 %v2717, %v2760
  %v2787 = vadd.f32 %v2718, %v2760
  %v2788 = vadd.f32 %v2719, %v2760
  %v2789 = vadd.f32 %v2720, %v2760
  %v2790 = vadd.f32 %v2721, %v2760
  %v2791 = vadd.f32 %v2722, %v2760
  %v2792 = vadd.f32 %v2723, %v2760
  %v2793 = vadd.f32 %v2724, %v2760
  %v2794 = vadd.f32 %v2725, %v2760
  %v2795 = vadd.f32 %v2726, %v2760
  %v2796 = vadd.f32 %v2727, %v2760
  %v2797 = vadd.f32 %v2728, %v2760
  %v2798 = vadd.f32 %v2729, %v2760
  %v2799 = vadd.f32 %v2730, %v2760
  %v2800 = vadd.f32 %v2731, %v2760
  %v2801 = vadd.f32 %v2732, %v2760
  %v2802 = vadd.f32 %v2733, %v2760
  %v2803 = vadd.f32 %v2734, %v2760
  %v2804 = vadd.f32 %v2735, %v2760
  %v2805 = vadd.f32 %v2736, %v2760
  %v2806 = vadd.f32 %v2737, %v2760
  %v2807 = vadd.f32 %v2738, %v2760
  %v2808 = vadd.f32 %v2739, %v2760
  %v2809 = vadd.f32 %v2740, %v2760
  %v2810 = vadd.f32 %v2741, %v2760
  %v2811 = vadd.f32 %v2742, %v2760
  %v2812 = vadd.f32 %v2743, %v2760
  %v2813 = vadd.f32 %v2744, %v2760
  %v2814 = vadd.f32 %v2745, %v2760
  %v2815 = vadd.f32 %v2746, %v2760
  %v2816 = vadd.f32 %v2747, %v2760
  %v2817 = vadd.f32 %v2748, %v2760
  %v2818 = vadd.f32 %v2749, %v2760
  %v2819 = vadd.f32 %v2750, %v2760
  %v2820 = vadd.f32 %v2751, %v2760
  %v2821 = vadd.f32 %v2752, %v2760
  %v2822 = vadd.f32 %v2753, %v2760
  %v2823 = vadd.f32 %v2754, %v2760
  %v2824 = vadd.f32 %v2755, %v2760
  %v2825 = vadd.f32 %v2756, %v2760
  %v2826 = vmax.f32 %v2762, 0.0
  %v2827 = vmax.f32 %v2763, 0.0
  %v2828 = vmax.f32 %v2764, 0.0
  %v2829 = vmax.f32 %v2765, 0.0
  %v2830 = vmax.f32 %v2766, 0.0
  %v2831 = vmax.f32 %v2767, 0.0
  %v2832 = vmax.f32 %v2768, 0.0
  %v2833 = vmax.f32 %v2769, 0.0
  %v2834 = vmax.f32 %v2770, 0.0
  %v2835 = vmax.f32 %v2771, 0.0
  %v2836 = vmax.f32 %v2772, 0.0
  %v2837 = vmax.f32 %v2773, 0.0
  %v2838 = vmax.f32 %v2774, 0.0
  %v2839 = vmax.f32 %v2775, 0.0
  %v2840 = vmax.f32 %v2776, 0.0
  %v2841 = vmax.f32 %v2777, 0.0
  %v2842 = vmax.f32 %v2778, 0.0
  %v2843 = vmax.f32 %v2779, 0.0
  %v2844 = vmax.f32 %v2780, 0.0
  %v2845 = vmax.f32 %v2781, 0.0
  %v2846 = vmax.f32 %v2782, 0.0
  %v2847 = vmax.f32 %v2783, 0.0
  %v2848 = vmax.f32 %v2784, 0.0
  %v2849 = vmax.f32 %v2785, 0.0
  %v2850 = vmax.f32 %v2786, 0.0
  %v2851 = vmax.f32 %v2787, 0.0
  %v2852 = vmax.f32 %v2788, 0.0
  %v2853 = vmax.f32 %v2789, 0.0
  %v2854 = vmax.f32 %v2790, 0.0
  %v2855 = vmax.f32 %v2791, 0.0
  %v2856 = vmax.f32 %v2792, 0.0
  %v2857 = vmax.f32 %v2793, 0.0
  %v2858 = vmax.f32 %v2794, 0.0
  %v2859 = vmax.f32 %v2795, 0.0
  %v2860 = vmax.f32 %v2796, 0.0
  %v2861 = vmax.f32 %v2797, 0.0
  %v2862 = vmax.f32 %v2798, 0.0
  %v2863 = vmax.f32 %v2799, 0.0
  %v2864 = vmax.f32 %v2800, 0.0
  %v2865 = vmax.f32 %v2801, 0.0
  %v2866 = vmax.f32 %v2802, 0.0
  %v2867 = vmax.f32 %v2803, 0.0
  %v2868 = vmax.f32 %v2804, 0.0
  %v2869 = vmax.f32 %v2805, 0.0
  %v2870 = vmax.f32 %v2806, 0.0
  %v2871 = vmax.f32 %v2807, 0.0
  %v2872 = vmax.f32 %v2808, 0.0
  %v2873 = vmax.f32 %v2809, 0.0
  %v2874 = vmax.f32 %v2810, 0.0
  %v2875 = vmax.f32 %v2811, 0.0
  %v2876 = vmax.f32 %v2812, 0.0
  %v2877 = vmax.f32 %v2813, 0.0
  %v2878 = vmax.f32 %v2814, 0.0
  %v2879 = vmax.f32 %v2815, 0.0
  %v2880 = vmax.f32 %v2816, 0.0
  %v2881 = vmax.f32 %v2817, 0.0
  %v2882 = vmax.f32 %v2818, 0.0
  %v2883 = vmax.f32 %v2819, 0.0
  %v2884 = vmax.f32 %v2820, 0.0
  %v2885 = vmax.f32 %v2821, 0.0
  %v2886 = vmax.f32 %v2822, 0.0
  %v2887 = vmax.f32 %v2823, 0.0
  %v2888 = vmax.f32 %v2824, 0.0
  %v2889 = vmax.f32 %v2825, 0.0
  %v2890 = vpack.c.bf16 %v2827, %v2826
  %v2891 = vpack.c.bf16 %v2829, %v2828
  %v2892 = vpack.c.bf16 %v2831, %v2830
  %v2893 = vpack.c.bf16 %v2833, %v2832
  %v2894 = vpack.c.bf16 %v2835, %v2834
  %v2895 = vpack.c.bf16 %v2837, %v2836
  %v2896 = vpack.c.bf16 %v2839, %v2838
  %v2897 = vpack.c.bf16 %v2841, %v2840
  %v2898 = vpack.c.bf16 %v2843, %v2842
  %v2899 = vpack.c.bf16 %v2845, %v2844
  %v2900 = vpack.c.bf16 %v2847, %v2846
  %v2901 = vpack.c.bf16 %v2849, %v2848
  %v2902 = vpack.c.bf16 %v2851, %v2850
  %v2903 = vpack.c.bf16 %v2853, %v2852
  %v2904 = vpack.c.bf16 %v2855, %v2854
  %v2905 = vpack.c.bf16 %v2857, %v2856
  %v2906 = vpack.c.bf16 %v2859, %v2858
  %v2907 = vpack.c.bf16 %v2861, %v2860
  %v2908 = vpack.c.bf16 %v2863, %v2862
  %v2909 = vpack.c.bf16 %v2865, %v2864
  %v2910 = vpack.c.bf16 %v2867, %v2866
  %v2911 = vpack.c.bf16 %v2869, %v2868
  %v2912 = vpack.c.bf16 %v2871, %v2870
  %v2913 = vpack.c.bf16 %v2873, %v2872
  %v2914 = vpack.c.bf16 %v2875, %v2874
  %v2915 = vpack.c.bf16 %v2877, %v2876
  %v2916 = vpack.c.bf16 %v2879, %v2878
  %v2917 = vpack.c.bf16 %v2881, %v2880
  %v2918 = vpack.c.bf16 %v2883, %v2882
  %v2919 = vpack.c.bf16 %v2885, %v2884
  %v2920 = vpack.c.bf16 %v2887, %v2886
  %v2921 = vpack.c.bf16 %v2889, %v2888
  %s2922 = scalar_lea.vmem %s8, 16
  %v2923 = vld [vmem:[%s2922] sm:$0xf]
  %v2925 = vsel %vm394, %v2890, 0
  %v2928 = vsel %vm394, %v2891, 0
  %v2931 = vsel %vm394, %v2892, 0
  %v2934 = vsel %vm394, %v2893, 0
  %v2937 = vsel %vm394, %v2894, 0
  %v2940 = vsel %vm394, %v2895, 0
  %v2943 = vsel %vm394, %v2896, 0
  %v2946 = vsel %vm394, %v2897, 0
  %v2949 = vsel %vm394, %v2898, 0
  %v2952 = vsel %vm394, %v2899, 0
  %v2955 = vsel %vm394, %v2900, 0
  %v2958 = vsel %vm394, %v2901, 0
  %v2961 = vsel %vm394, %v2902, 0
  %v2964 = vsel %vm394, %v2903, 0
  %v2967 = vsel %vm394, %v2904, 0
  %v2970 = vsel %vm394, %v2905, 0
  %v2973 = vsel %vm394, %v2906, 0
  %v2976 = vsel %vm394, %v2907, 0
  %v2979 = vsel %vm394, %v2908, 0
  %v2982 = vsel %vm394, %v2909, 0
  %v2985 = vsel %vm394, %v2910, 0
  %v2988 = vsel %vm394, %v2911, 0
  %v2991 = vsel %vm394, %v2912, 0
  %v2994 = vsel %vm394, %v2913, 0
  %v2997 = vsel %vm394, %v2914, 0
  %v3000 = vsel %vm394, %v2915, 0
  %v3003 = vsel %vm394, %v2916, 0
  %v3006 = vsel %vm394, %v2917, 0
  %v3009 = vsel %vm394, %v2918, 0
  %v3012 = vsel %vm394, %v2919, 0
  %v3015 = vsel %vm394, %v2920, 0
  %v3018 = vsel %vm394, %v2921, 0
  %v3021 = vsel %vm491, %v2923, 0
  %3023 = vmatpush.bf16.msra.mxu0 0
  %3024 = vmatpush.bf16.msra.mxu0 0
  %3025 = vmatpush.bf16.msra.mxu0 0
  %3026 = vmatpush.bf16.msra.mxu0 0
  %3027 = vmatpush.bf16.msra.mxu0 0
  %3028 = vmatpush.bf16.msra.mxu0 0
  %3029 = vmatpush.bf16.msra.mxu0 0
  %3030 = vmatpush.bf16.msra.mxu0 %v3021
  %3031 = vmatmul.bf16.gmra.mxu0 %v2925
  %v3032 = vpop.f32.mrf.mxu0
  %v3033 = vadd.f32 0.0, %v3032
  %v3034 = vpop.f32.mrf.mxu0
  %v3035 = vadd.f32 0.0, %v3034
  %3036 = vmatmul.bf16.gmra.mxu0 %v2928
  %v3037 = vpop.f32.mrf.mxu0
  %v3038 = vadd.f32 0.0, %v3037
  %v3039 = vpop.f32.mrf.mxu0
  %v3040 = vadd.f32 0.0, %v3039
  %3041 = vmatmul.bf16.gmra.mxu0 %v2931
  %v3042 = vpop.f32.mrf.mxu0
  %v3043 = vadd.f32 0.0, %v3042
  %v3044 = vpop.f32.mrf.mxu0
  %v3045 = vadd.f32 0.0, %v3044
  %3046 = vmatmul.bf16.gmra.mxu0 %v2934
  %v3047 = vpop.f32.mrf.mxu0
  %v3048 = vadd.f32 0.0, %v3047
  %v3049 = vpop.f32.mrf.mxu0
  %v3050 = vadd.f32 0.0, %v3049
  %3051 = vmatmul.bf16.gmra.mxu0 %v2937
  %v3052 = vpop.f32.mrf.mxu0
  %v3053 = vadd.f32 0.0, %v3052
  %v3054 = vpop.f32.mrf.mxu0
  %v3055 = vadd.f32 0.0, %v3054
  %3056 = vmatmul.bf16.gmra.mxu0 %v2940
  %v3057 = vpop.f32.mrf.mxu0
  %v3058 = vadd.f32 0.0, %v3057
  %v3059 = vpop.f32.mrf.mxu0
  %v3060 = vadd.f32 0.0, %v3059
  %3061 = vmatmul.bf16.gmra.mxu0 %v2943
  %v3062 = vpop.f32.mrf.mxu0
  %v3063 = vadd.f32 0.0, %v3062
  %v3064 = vpop.f32.mrf.mxu0
  %v3065 = vadd.f32 0.0, %v3064
  %3066 = vmatmul.bf16.gmra.mxu0 %v2946
  %v3067 = vpop.f32.mrf.mxu0
  %v3068 = vadd.f32 0.0, %v3067
  %v3069 = vpop.f32.mrf.mxu0
  %v3070 = vadd.f32 0.0, %v3069
  %3071 = vmatmul.bf16.gmra.mxu0 %v2949
  %v3072 = vpop.f32.mrf.mxu0
  %v3073 = vadd.f32 0.0, %v3072
  %v3074 = vpop.f32.mrf.mxu0
  %v3075 = vadd.f32 0.0, %v3074
  %3076 = vmatmul.bf16.gmra.mxu0 %v2952
  %v3077 = vpop.f32.mrf.mxu0
  %v3078 = vadd.f32 0.0, %v3077
  %v3079 = vpop.f32.mrf.mxu0
  %v3080 = vadd.f32 0.0, %v3079
  %3081 = vmatmul.bf16.gmra.mxu0 %v2955
  %v3082 = vpop.f32.mrf.mxu0
  %v3083 = vadd.f32 0.0, %v3082
  %v3084 = vpop.f32.mrf.mxu0
  %v3085 = vadd.f32 0.0, %v3084
  %3086 = vmatmul.bf16.gmra.mxu0 %v2958
  %v3087 = vpop.f32.mrf.mxu0
  %v3088 = vadd.f32 0.0, %v3087
  %v3089 = vpop.f32.mrf.mxu0
  %v3090 = vadd.f32 0.0, %v3089
  %3091 = vmatmul.bf16.gmra.mxu0 %v2961
  %v3092 = vpop.f32.mrf.mxu0
  %v3093 = vadd.f32 0.0, %v3092
  %v3094 = vpop.f32.mrf.mxu0
  %v3095 = vadd.f32 0.0, %v3094
  %3096 = vmatmul.bf16.gmra.mxu0 %v2964
  %v3097 = vpop.f32.mrf.mxu0
  %v3098 = vadd.f32 0.0, %v3097
  %v3099 = vpop.f32.mrf.mxu0
  %v3100 = vadd.f32 0.0, %v3099
  %3101 = vmatmul.bf16.gmra.mxu0 %v2967
  %v3102 = vpop.f32.mrf.mxu0
  %v3103 = vadd.f32 0.0, %v3102
  %v3104 = vpop.f32.mrf.mxu0
  %v3105 = vadd.f32 0.0, %v3104
  %3106 = vmatmul.bf16.gmra.mxu0 %v2970
  %v3107 = vpop.f32.mrf.mxu0
  %v3108 = vadd.f32 0.0, %v3107
  %v3109 = vpop.f32.mrf.mxu0
  %v3110 = vadd.f32 0.0, %v3109
  %3111 = vmatmul.bf16.gmra.mxu0 %v2973
  %v3112 = vpop.f32.mrf.mxu0
  %v3113 = vadd.f32 0.0, %v3112
  %v3114 = vpop.f32.mrf.mxu0
  %v3115 = vadd.f32 0.0, %v3114
  %3116 = vmatmul.bf16.gmra.mxu0 %v2976
  %v3117 = vpop.f32.mrf.mxu0
  %v3118 = vadd.f32 0.0, %v3117
  %v3119 = vpop.f32.mrf.mxu0
  %v3120 = vadd.f32 0.0, %v3119
  %3121 = vmatmul.bf16.gmra.mxu0 %v2979
  %v3122 = vpop.f32.mrf.mxu0
  %v3123 = vadd.f32 0.0, %v3122
  %v3124 = vpop.f32.mrf.mxu0
  %v3125 = vadd.f32 0.0, %v3124
  %3126 = vmatmul.bf16.gmra.mxu0 %v2982
  %v3127 = vpop.f32.mrf.mxu0
  %v3128 = vadd.f32 0.0, %v3127
  %v3129 = vpop.f32.mrf.mxu0
  %v3130 = vadd.f32 0.0, %v3129
  %3131 = vmatmul.bf16.gmra.mxu0 %v2985
  %v3132 = vpop.f32.mrf.mxu0
  %v3133 = vadd.f32 0.0, %v3132
  %v3134 = vpop.f32.mrf.mxu0
  %v3135 = vadd.f32 0.0, %v3134
  %3136 = vmatmul.bf16.gmra.mxu0 %v2988
  %v3137 = vpop.f32.mrf.mxu0
  %v3138 = vadd.f32 0.0, %v3137
  %v3139 = vpop.f32.mrf.mxu0
  %v3140 = vadd.f32 0.0, %v3139
  %3141 = vmatmul.bf16.gmra.mxu0 %v2991
  %v3142 = vpop.f32.mrf.mxu0
  %v3143 = vadd.f32 0.0, %v3142
  %v3144 = vpop.f32.mrf.mxu0
  %v3145 = vadd.f32 0.0, %v3144
  %3146 = vmatmul.bf16.gmra.mxu0 %v2994
  %v3147 = vpop.f32.mrf.mxu0
  %v3148 = vadd.f32 0.0, %v3147
  %v3149 = vpop.f32.mrf.mxu0
  %v3150 = vadd.f32 0.0, %v3149
  %3151 = vmatmul.bf16.gmra.mxu0 %v2997
  %v3152 = vpop.f32.mrf.mxu0
  %v3153 = vadd.f32 0.0, %v3152
  %v3154 = vpop.f32.mrf.mxu0
  %v3155 = vadd.f32 0.0, %v3154
  %3156 = vmatmul.bf16.gmra.mxu0 %v3000
  %v3157 = vpop.f32.mrf.mxu0
  %v3158 = vadd.f32 0.0, %v3157
  %v3159 = vpop.f32.mrf.mxu0
  %v3160 = vadd.f32 0.0, %v3159
  %3161 = vmatmul.bf16.gmra.mxu0 %v3003
  %v3162 = vpop.f32.mrf.mxu0
  %v3163 = vadd.f32 0.0, %v3162
  %v3164 = vpop.f32.mrf.mxu0
  %v3165 = vadd.f32 0.0, %v3164
  %3166 = vmatmul.bf16.gmra.mxu0 %v3006
  %v3167 = vpop.f32.mrf.mxu0
  %v3168 = vadd.f32 0.0, %v3167
  %v3169 = vpop.f32.mrf.mxu0
  %v3170 = vadd.f32 0.0, %v3169
  %3171 = vmatmul.bf16.gmra.mxu0 %v3009
  %v3172 = vpop.f32.mrf.mxu0
  %v3173 = vadd.f32 0.0, %v3172
  %v3174 = vpop.f32.mrf.mxu0
  %v3175 = vadd.f32 0.0, %v3174
  %3176 = vmatmul.bf16.gmra.mxu0 %v3012
  %v3177 = vpop.f32.mrf.mxu0
  %v3178 = vadd.f32 0.0, %v3177
  %v3179 = vpop.f32.mrf.mxu0
  %v3180 = vadd.f32 0.0, %v3179
  %3181 = vmatmul.bf16.gmra.mxu0 %v3015
  %v3182 = vpop.f32.mrf.mxu0
  %v3183 = vadd.f32 0.0, %v3182
  %v3184 = vpop.f32.mrf.mxu0
  %v3185 = vadd.f32 0.0, %v3184
  %3186 = vmatmul.bf16.gmra.mxu0 %v3018
  %v3187 = vpop.f32.mrf.mxu0
  %v3188 = vadd.f32 0.0, %v3187
  %v3189 = vpop.f32.mrf.mxu0
  %v3190 = vadd.f32 0.0, %v3189
  %3191 = vdwg.mxu0
  %v3192 = vadd.f32 %v2560, %v3033
  %v3193 = vadd.f32 %v2561, %v3035
  %v3194 = vadd.f32 %v2562, %v3038
  %v3195 = vadd.f32 %v2563, %v3040
  %v3196 = vadd.f32 %v2564, %v3043
  %v3197 = vadd.f32 %v2565, %v3045
  %v3198 = vadd.f32 %v2566, %v3048
  %v3199 = vadd.f32 %v2567, %v3050
  %v3200 = vadd.f32 %v2568, %v3053
  %v3201 = vadd.f32 %v2569, %v3055
  %v3202 = vadd.f32 %v2570, %v3058
  %v3203 = vadd.f32 %v2571, %v3060
  %v3204 = vadd.f32 %v2572, %v3063
  %v3205 = vadd.f32 %v2573, %v3065
  %v3206 = vadd.f32 %v2574, %v3068
  %v3207 = vadd.f32 %v2575, %v3070
  %v3208 = vadd.f32 %v2576, %v3073
  %v3209 = vadd.f32 %v2577, %v3075
  %v3210 = vadd.f32 %v2578, %v3078
  %v3211 = vadd.f32 %v2579, %v3080
  %v3212 = vadd.f32 %v2580, %v3083
  %v3213 = vadd.f32 %v2581, %v3085
  %v3214 = vadd.f32 %v2582, %v3088
  %v3215 = vadd.f32 %v2583, %v3090
  %v3216 = vadd.f32 %v2584, %v3093
  %v3217 = vadd.f32 %v2585, %v3095
  %v3218 = vadd.f32 %v2586, %v3098
  %v3219 = vadd.f32 %v2587, %v3100
  %v3220 = vadd.f32 %v2588, %v3103
  %v3221 = vadd.f32 %v2589, %v3105
  %v3222 = vadd.f32 %v2590, %v3108
  %v3223 = vadd.f32 %v2591, %v3110
  %v3224 = vadd.f32 %v2592, %v3113
  %v3225 = vadd.f32 %v2593, %v3115
  %v3226 = vadd.f32 %v2594, %v3118
  %v3227 = vadd.f32 %v2595, %v3120
  %v3228 = vadd.f32 %v2596, %v3123
  %v3229 = vadd.f32 %v2597, %v3125
  %v3230 = vadd.f32 %v2598, %v3128
  %v3231 = vadd.f32 %v2599, %v3130
  %v3232 = vadd.f32 %v2600, %v3133
  %v3233 = vadd.f32 %v2601, %v3135
  %v3234 = vadd.f32 %v2602, %v3138
  %v3235 = vadd.f32 %v2603, %v3140
  %v3236 = vadd.f32 %v2604, %v3143
  %v3237 = vadd.f32 %v2605, %v3145
  %v3238 = vadd.f32 %v2606, %v3148
  %v3239 = vadd.f32 %v2607, %v3150
  %v3240 = vadd.f32 %v2608, %v3153
  %v3241 = vadd.f32 %v2609, %v3155
  %v3242 = vadd.f32 %v2610, %v3158
  %v3243 = vadd.f32 %v2611, %v3160
  %v3244 = vadd.f32 %v2612, %v3163
  %v3245 = vadd.f32 %v2613, %v3165
  %v3246 = vadd.f32 %v2614, %v3168
  %v3247 = vadd.f32 %v2615, %v3170
  %v3248 = vadd.f32 %v2616, %v3173
  %v3249 = vadd.f32 %v2617, %v3175
  %v3250 = vadd.f32 %v2618, %v3178
  %v3251 = vadd.f32 %v2619, %v3180
  %v3252 = vadd.f32 %v2620, %v3183
  %v3253 = vadd.f32 %v2621, %v3185
  %v3254 = vadd.f32 %v2622, %v3188
  %v3255 = vadd.f32 %v2623, %v3190
  %vm3256 = vcmask 130048
  %3257 = vst.msk [vmem:[%s9] sm:$0xff] %vm3256, %v3192
  %3258 = vst.msk [vmem:[%s9 + $0x8] sm:$0xff] %vm3256, %v3193
  %3259 = vst.msk [vmem:[%s9 + $0x10] sm:$0xff] %vm3256, %v3194
  %3260 = vst.msk [vmem:[%s9 + $0x18] sm:$0xff] %vm3256, %v3195
  %3261 = vst.msk [vmem:[%s9 + $0x20] sm:$0xff] %vm3256, %v3196
  %3262 = vst.msk [vmem:[%s9 + $0x28] sm:$0xff] %vm3256, %v3197
  %3263 = vst.msk [vmem:[%s9 + $0x30] sm:$0xff] %vm3256, %v3198
  %3264 = vst.msk [vmem:[%s9 + $0x38] sm:$0xff] %vm3256, %v3199
  %3265 = vst.msk [vmem:[%s9 + $0x40] sm:$0xff] %vm3256, %v3200
  %3266 = vst.msk [vmem:[%s9 + $0x48] sm:$0xff] %vm3256, %v3201
  %3267 = vst.msk [vmem:[%s9 + $0x50] sm:$0xff] %vm3256, %v3202
  %3268 = vst.msk [vmem:[%s9 + $0x58] sm:$0xff] %vm3256, %v3203
  %3269 = vst.msk [vmem:[%s9 + $0x60] sm:$0xff] %vm3256, %v3204
  %3270 = vst.msk [vmem:[%s9 + $0x68] sm:$0xff] %vm3256, %v3205
  %3271 = vst.msk [vmem:[%s9 + $0x70] sm:$0xff] %vm3256, %v3206
  %3272 = vst.msk [vmem:[%s9 + $0x78] sm:$0xff] %vm3256, %v3207
  %3273 = vst.msk [vmem:[%s9 + $0x80] sm:$0xff] %vm3256, %v3208
  %3274 = vst.msk [vmem:[%s9 + $0x88] sm:$0xff] %vm3256, %v3209
  %3275 = vst.msk [vmem:[%s9 + $0x90] sm:$0xff] %vm3256, %v3210
  %3276 = vst.msk [vmem:[%s9 + $0x98] sm:$0xff] %vm3256, %v3211
  %3277 = vst.msk [vmem:[%s9 + $0xa0] sm:$0xff] %vm3256, %v3212
  %3278 = vst.msk [vmem:[%s9 + $0xa8] sm:$0xff] %vm3256, %v3213
  %3279 = vst.msk [vmem:[%s9 + $0xb0] sm:$0xff] %vm3256, %v3214
  %3280 = vst.msk [vmem:[%s9 + $0xb8] sm:$0xff] %vm3256, %v3215
  %3281 = vst.msk [vmem:[%s9 + $0xc0] sm:$0xff] %vm3256, %v3216
  %3282 = vst.msk [vmem:[%s9 + $0xc8] sm:$0xff] %vm3256, %v3217
  %3283 = vst.msk [vmem:[%s9 + $0xd0] sm:$0xff] %vm3256, %v3218
  %3284 = vst.msk [vmem:[%s9 + $0xd8] sm:$0xff] %vm3256, %v3219
  %3285 = vst.msk [vmem:[%s9 + $0xe0] sm:$0xff] %vm3256, %v3220
  %3286 = vst.msk [vmem:[%s9 + $0xe8] sm:$0xff] %vm3256, %v3221
  %3287 = vst.msk [vmem:[%s9 + $0xf0] sm:$0xff] %vm3256, %v3222
  %3288 = vst.msk [vmem:[%s9 + $0xf8] sm:$0xff] %vm3256, %v3223
  %3289 = vst.msk [vmem:[%s9 + $0x100] sm:$0xff] %vm3256, %v3224
  %3290 = vst.msk [vmem:[%s9 + $0x108] sm:$0xff] %vm3256, %v3225
  %3291 = vst.msk [vmem:[%s9 + $0x110] sm:$0xff] %vm3256, %v3226
  %3292 = vst.msk [vmem:[%s9 + $0x118] sm:$0xff] %vm3256, %v3227
  %3293 = vst.msk [vmem:[%s9 + $0x120] sm:$0xff] %vm3256, %v3228
  %3294 = vst.msk [vmem:[%s9 + $0x128] sm:$0xff] %vm3256, %v3229
  %3295 = vst.msk [vmem:[%s9 + $0x130] sm:$0xff] %vm3256, %v3230
  %3296 = vst.msk [vmem:[%s9 + $0x138] sm:$0xff] %vm3256, %v3231
  %3297 = vst.msk [vmem:[%s9 + $0x140] sm:$0xff] %vm3256, %v3232
  %3298 = vst.msk [vmem:[%s9 + $0x148] sm:$0xff] %vm3256, %v3233
  %3299 = vst.msk [vmem:[%s9 + $0x150] sm:$0xff] %vm3256, %v3234
  %3300 = vst.msk [vmem:[%s9 + $0x158] sm:$0xff] %vm3256, %v3235
  %3301 = vst.msk [vmem:[%s9 + $0x160] sm:$0xff] %vm3256, %v3236
  %3302 = vst.msk [vmem:[%s9 + $0x168] sm:$0xff] %vm3256, %v3237
  %3303 = vst.msk [vmem:[%s9 + $0x170] sm:$0xff] %vm3256, %v3238
  %3304 = vst.msk [vmem:[%s9 + $0x178] sm:$0xff] %vm3256, %v3239
  %3305 = vst.msk [vmem:[%s9 + $0x180] sm:$0xff] %vm3256, %v3240
  %3306 = vst.msk [vmem:[%s9 + $0x188] sm:$0xff] %vm3256, %v3241
  %3307 = vst.msk [vmem:[%s9 + $0x190] sm:$0xff] %vm3256, %v3242
  %3308 = vst.msk [vmem:[%s9 + $0x198] sm:$0xff] %vm3256, %v3243
  %3309 = vst.msk [vmem:[%s9 + $0x1a0] sm:$0xff] %vm3256, %v3244
  %3310 = vst.msk [vmem:[%s9 + $0x1a8] sm:$0xff] %vm3256, %v3245
  %3311 = vst.msk [vmem:[%s9 + $0x1b0] sm:$0xff] %vm3256, %v3246
  %3312 = vst.msk [vmem:[%s9 + $0x1b8] sm:$0xff] %vm3256, %v3247
  %3313 = vst.msk [vmem:[%s9 + $0x1c0] sm:$0xff] %vm3256, %v3248
  %3314 = vst.msk [vmem:[%s9 + $0x1c8] sm:$0xff] %vm3256, %v3249
  %3315 = vst.msk [vmem:[%s9 + $0x1d0] sm:$0xff] %vm3256, %v3250
  %3316 = vst.msk [vmem:[%s9 + $0x1d8] sm:$0xff] %vm3256, %v3251
  %3317 = vst.msk [vmem:[%s9 + $0x1e0] sm:$0xff] %vm3256, %v3252
  %3318 = vst.msk [vmem:[%s9 + $0x1e8] sm:$0xff] %vm3256, %v3253
  %3319 = vst.msk [vmem:[%s9 + $0x1f0] sm:$0xff] %vm3256, %v3254
  %3320 = vst.msk [vmem:[%s9 + $0x1f8] sm:$0xff] %vm3256, %v3255
  // Predicated region
  $region38: #{dappm_forward.19} parent=0 // pred_check
    _
  $region39: #{dappm_forward.19} parent=0 // pred_check_branch
    %3322 = sbr.rel (0) target = $region41
  $region40: #{dappm_forward.19} parent=0 // pred_region
    _
  $region41: #{dappm_forward.19} parent=0 // pred_fallthru
    _
  // Predicated region
  $region42: #{dappm_forward.19} parent=0 // pred_check
    _
  $region43: #{dappm_forward.19} parent=0 // pred_check_branch
    %3324 = sbr.rel (0) target = $region45
  $region44: #{dappm_forward.19} parent=0 // pred_region
    _
  $region45: #{dappm_forward.19} parent=0 // pred_fallthru
    _

</llo_original>
